<compile_context>
chip_gen: v7x
topology: tpu7x:2x2x1
jax: 0.10.0
libtpu: 0.0.40
codegen_flags: <defaults>
</compile_context>

<pallas_src>
import functools

import jax
import jax.numpy as jnp
from jax.experimental import pallas as pl
from jax.experimental.pallas import tpu as pltpu


def _round_up(x, m):
    return (x + m - 1) // m * m


_TAPS = tuple((kh, kw) for kh in range(3) for kw in range(3))


# ---------------------------------------------------------------------------
# Fused kernel: one grid step == one image.
#   x_ref  : (HP*WP, Cin_p) bf16  flat zero-padded input (halo + lane pad), HP = h+3
#   w1_ref : (9, Cin_p, Cp) bf16  conv1 weights, BN1 scale folded, tap-major (kh*3+kw)
#   t1_ref : (1, Cp)        f32   folded BN1 shift (incl. conv1 bias)
#   w2_ref : (9, Cp, Cp)    bf16  conv2 weights, BN2 scale folded
#   t23_ref: (1, Cp)        f32   folded BN2 shift (incl. conv2 bias) + shortcut bias
#   w3_ref : (Cin_p, Cp)    bf16  1x1 shortcut weights
#   out_ref: (h, w, Cp)     bf16
#   y1p_ref: (HP*WP, Cp)    bf16  VMEM scratch: y1 with zero halo, flat layout
# ---------------------------------------------------------------------------
def _cell_kernel(x_ref, w1_ref, t1_ref, w2_ref, t23_ref, w3_ref,
                 out_ref, y1p_ref, *, h, w, wp, cp):
    hw = h * wp

    # ---- r1: 3x3 conv as 9 per-tap MXU matmuls, f32 accumulation, no im2col slab.
    acc = None
    for t, (kh, kw) in enumerate(_TAPS):
        off = kh * wp + kw
        p = jnp.dot(x_ref[off:off + hw, :], w1_ref[t],
                    preferred_element_type=jnp.float32)
        acc = p if acc is None else acc + p
    y1 = jnp.maximum(acc + t1_ref[...], 0.0)            # BN1 scale already in w1
    # zero the width-padding / wrap-around columns so they act as conv2 halo zeros
    col = jax.lax.broadcasted_iota(jnp.int32, (hw, 1), 0) % wp
    y1 = jnp.where(col < w, y1, 0.0)

    # ---- stage y1 with a zero halo in VMEM (never touches HBM).  Zero only the
    # border strips every step; interior lands with one shifted store.
    y1p_ref[0:wp + 8, :] = jnp.zeros((wp + 8, cp), y1p_ref.dtype)           # top halo + left halo of row 1
    y1p_ref[(h + 1) * wp:(h + 2) * wp, :] = jnp.zeros((wp, cp), y1p_ref.dtype)  # bottom halo row
    y1p_ref[wp + 1:wp + 1 + hw, :] = y1.astype(y1p_ref.dtype)

    # ---- r3 (1x1 shortcut on the resident x interior) fused with
    # ---- r2 (3x3 conv, BN2 scale folded): one f32 accumulator, one epilogue.
    acc2 = jnp.dot(x_ref[wp + 1:wp + 1 + hw, :], w3_ref[...],
                   preferred_element_type=jnp.float32)
    for t, (kh, kw) in enumerate(_TAPS):
        off = kh * wp + kw
        acc2 = acc2 + jnp.dot(y1p_ref[off:off + hw, :], w2_ref[t],
                              preferred_element_type=jnp.float32)
    out = jnp.maximum(acc2 + t23_ref[...], 0.0)

    # lane-dense bf16 store, dropping the width-padding columns row by row
    for r in range(h):
        out_ref[r, :, :] = out[r * wp:r * wp + w, :].astype(out_ref.dtype)


# ---------------------------------------------------------------------------
# Wrapper: cast to bf16, NCHW -> NHWC, bake the SAME halo + width/channel padding
# into a flat (HP*WP, Cin_p) slab per image, launch the fused kernel with a
# batch grid, strip padding and return NCHW f32.
# ---------------------------------------------------------------------------
def make_cell_v1_spatial_forward(x_nchw, fp, out_filters):
    n, cin, h, w = x_nchw.shape
    cin_p, cp = fp["w3"].shape
    wp = _round_up(w + 2, 8)      # sublane-friendly padded width (>= w + 2 halo cols)
    hp = h + 3                    # top halo + bottom halo + 1 guard row for flat tap slices

    # bf16 BEFORE the relayout/pad: halves prologue HBM traffic
    x = jnp.transpose(x_nchw.astype(jnp.bfloat16), (0, 2, 3, 1))          # NHWC bf16
    xp = jnp.pad(x, ((0, 0), (1, hp - h - 1), (1, wp - w - 1), (0, cin_p - cin)))
    xflat = xp.reshape(n, hp * wp, cin_p)

    kernel = functools.partial(_cell_kernel, h=h, w=w, wp=wp, cp=cp)
    const2 = lambda i: (0, 0)                                             # weights: load once
    const3 = lambda i: (0, 0, 0)
    out = pl.pallas_call(
        kernel,
        out_shape=jax.ShapeDtypeStruct((n, h, w, cp), jnp.bfloat16),
        grid=(n,),
        in_specs=[
            pl.BlockSpec((None, hp * wp, cin_p), lambda i: (i, 0, 0)),
            pl.BlockSpec((9, cin_p, cp), const3),
            pl.BlockSpec((1, cp), const2),
            pl.BlockSpec((9, cp, cp), const3),
            pl.BlockSpec((1, cp), const2),
            pl.BlockSpec((cin_p, cp), const2),
        ],
        out_specs=pl.BlockSpec((None, h, w, cp), lambda i: (i, 0, 0, 0)),
        scratch_shapes=[pltpu.VMEM((hp * wp, cp), jnp.bfloat16)],
        compiler_params=pltpu.CompilerParams(
            dimension_semantics=("parallel",),
            vmem_limit_bytes=32 * 1024 * 1024),
    )(xflat, fp["w1"], fp["t1"], fp["w2"], fp["t23"], fp["w3"])

    out = out[..., :out_filters]                                          # drop lane padding (bf16)
    return jnp.transpose(out, (0, 3, 1, 2)).astype(jnp.float32)           # NCHW f32


# ---------------------------------------------------------------------------
# Parameters: raw PyTorch-style params, then a one-time fold/pad/cast step.
# ---------------------------------------------------------------------------
def init_params(key, in_filters, out_filters):
    ks = jax.random.split(key, 14)

    def bn(k0, k1, k2, k3, c):
        gamma = 1.0 + 0.1 * jax.random.normal(k0, (c,), jnp.float32)
        beta = 0.1 * jax.random.normal(k1, (c,), jnp.float32)
        mean = 0.1 * jax.random.normal(k2, (c,), jnp.float32)
        var = 1.0 + 0.1 * jnp.abs(jax.random.normal(k3, (c,), jnp.float32))
        return gamma, beta, mean, var

    g1, be1, m1, v1 = bn(ks[0], ks[1], ks[2], ks[3], out_filters)
    g2, be2, m2, v2 = bn(ks[4], ks[5], ks[6], ks[7], out_filters)
    return {
        "w1": 0.1 * jax.random.normal(ks[8], (3, 3, in_filters, out_filters), jnp.float32),
        "b1": 0.05 * jax.random.normal(ks[9], (out_filters,), jnp.float32),
        "w2": 0.1 * jax.random.normal(ks[10], (3, 3, out_filters, out_filters), jnp.float32),
        "b2": 0.05 * jax.random.normal(ks[11], (out_filters,), jnp.float32),
        "w3": 0.1 * jax.random.normal(ks[12], (in_filters, out_filters), jnp.float32),
        "b3": 0.05 * jax.random.normal(ks[13], (out_filters,), jnp.float32),
        "gamma1": g1, "beta1": be1, "mean1": m1, "var1": v1,
        "gamma2": g2, "beta2": be2, "mean2": m2, "var2": v2,
    }


def fold_params(raw, in_filters, out_filters, eps=1e-5):
    """Fold eval-mode BN scale INTO the conv weights, fold conv bias into the BN
    shift, pad channels to lane multiples, cast MXU operands to bf16."""
    cin_p = _round_up(in_filters, 128)
    cp = _round_up(out_filters, 128)
    pad_c = cp - out_filters

    def bn_fold(gamma, beta, mean, var, bias):
        scale = gamma / jnp.sqrt(var + eps)
        shift = beta + (bias - mean) * scale            # conv bias folded in
        return scale, shift

    s1, t1 = bn_fold(raw["gamma1"], raw["beta1"], raw["mean1"], raw["var1"], raw["b1"])
    s2, t2 = bn_fold(raw["gamma2"], raw["beta2"], raw["mean2"], raw["var2"], raw["b2"])

    w1 = raw["w1"] * s1[None, None, None, :]            # BN1 scale -> conv1 weights
    w2 = raw["w2"] * s2[None, None, None, :]            # BN2 scale -> conv2 weights
    w1 = jnp.pad(w1, ((0, 0), (0, 0), (0, cin_p - in_filters), (0, pad_c)))
    w2 = jnp.pad(w2, ((0, 0), (0, 0), (0, pad_c), (0, pad_c)))
    w3 = jnp.pad(raw["w3"], ((0, cin_p - in_filters), (0, pad_c)))

    def pad_vec(v):
        return jnp.pad(v, (0, pad_c)).reshape(1, cp).astype(jnp.float32)

    return {
        "w1": w1.reshape(9, cin_p, cp).astype(jnp.bfloat16),
        "w2": w2.reshape(9, cp, cp).astype(jnp.bfloat16),
        "w3": w3.astype(jnp.bfloat16),
        "t1": pad_vec(t1),
        "t23": pad_vec(t2 + raw["b3"]),                  # BN2 shift + shortcut bias, added once
    }


# ---------------------------------------------------------------------------
# Pure-JAX reference (same math; models the kernel's bf16 MXU operands).
# ---------------------------------------------------------------------------
def _ref_forward(x_nchw, raw, eps=1e-5):
    x = jnp.transpose(x_nchw, (0, 2, 3, 1)).astype(jnp.float32)
    dn = ("NHWC", "HWIO", "NHWC")

    def conv3(v, wt, b):
        return jax.lax.conv_general_dilated(
            v.astype(jnp.bfloat16), wt.astype(jnp.bfloat16), (1, 1), "SAME",
            dimension_numbers=dn, preferred_element_type=jnp.float32) + b

    def bn(v, g, b, m, var):
        return (v - m) * (g / jnp.sqrt(var + eps)) + b

    y = conv3(x, raw["w1"], raw["b1"])
    y = jnp.maximum(bn(y, raw["gamma1"], raw["beta1"], raw["mean1"], raw["var1"]), 0.0)
    y = conv3(y, raw["w2"], raw["b2"])
    y = bn(y, raw["gamma2"], raw["beta2"], raw["mean2"], raw["var2"])
    shortcut = jnp.einsum("nhwc,co->nhwo", x.astype(jnp.bfloat16),
                          raw["w3"].astype(jnp.bfloat16),
                          preferred_element_type=jnp.float32) + raw["b3"]
    out = jnp.maximum(shortcut + y, 0.0)
    return jnp.transpose(out, (0, 3, 1, 2))


if __name__ == "__main__":
    # make_cell_v1_spatial(stack=1, resblock=0, strides=1,
    #                      in_filters=4, out_filters=8)  -> 1x1 shortcut active
    batch, in_filters, out_filters, hw = 2, 4, 8, 16

    key = jax.random.PRNGKey(0)
    kx, kp = jax.random.split(key)
    x = jax.random.normal(kx, (batch, in_filters, hw, hw), jnp.float32)  # NCHW
    raw = init_params(kp, in_filters, out_filters)
    folded = fold_params(raw, in_filters, out_filters)

    fwd = jax.jit(make_cell_v1_spatial_forward, static_argnums=2)
    out = jax.block_until_ready(fwd(x, folded, out_filters))
    ref = jax.block_until_ready(_ref_forward(x, raw))

    assert out.shape == (batch, out_filters, hw, hw), out.shape
    max_err = float(jnp.max(jnp.abs(out - ref)))
    assert jnp.allclose(out, ref, rtol=2e-2, atol=2e-2), max_err

    print("KERNEL_OK")
</pallas_src>

<mosaic_0001>
module attributes {stable_mosaic.version = 11 : i64} {
  func.func @_cell_kernel(%arg0: i32, %arg1: memref<1x456x128xbf16, #tpu.memory_space<vmem>>, %arg2: memref<9x128x128xbf16, #tpu.memory_space<vmem>>, %arg3: memref<1x128xf32, #tpu.memory_space<vmem>>, %arg4: memref<9x128x128xbf16, #tpu.memory_space<vmem>>, %arg5: memref<1x128xf32, #tpu.memory_space<vmem>>, %arg6: memref<128x128xbf16, #tpu.memory_space<vmem>>, %arg7: memref<1x16x16x128xbf16, #tpu.memory_space<vmem>>, %arg8: memref<456x128xbf16, #tpu.memory_space<vmem>>) attributes {dimension_semantics = [#tpu.dimension_semantics<parallel>], iteration_bounds = array<i64: 2>, scalar_prefetch = 0 : i64, scratch_operands = 1 : i64, tpu.core_type = #tpu.core_type<tc>, window_params = [{transform_indices = @transform_0, window_bounds = array<i64: 1, 456, 128>}, {pipeline_mode = #tpu.pipeline_mode<synchronous>, transform_indices = @transform_1, window_bounds = array<i64: 9, 128, 128>}, {pipeline_mode = #tpu.pipeline_mode<synchronous>, transform_indices = @transform_2, window_bounds = array<i64: 1, 128>}, {pipeline_mode = #tpu.pipeline_mode<synchronous>, transform_indices = @transform_3, window_bounds = array<i64: 9, 128, 128>}, {pipeline_mode = #tpu.pipeline_mode<synchronous>, transform_indices = @transform_4, window_bounds = array<i64: 1, 128>}, {pipeline_mode = #tpu.pipeline_mode<synchronous>, transform_indices = @transform_5, window_bounds = array<i64: 128, 128>}, {transform_indices = @transform_6, window_bounds = array<i64: 1, 16, 16, 128>}]} {
    %c0 = arith.constant 0 : index
    %c0_0 = arith.constant 0 : index
    %c0_1 = arith.constant 0 : index
    %0 = vector.load %arg1[%c0, %c0_0, %c0_1] : memref<1x456x128xbf16, #tpu.memory_space<vmem>>, vector<1x384x128xbf16>
    %1 = vector.shape_cast %0 : vector<1x384x128xbf16> to vector<384x128xbf16>
    %c0_2 = arith.constant 0 : index
    %c0_3 = arith.constant 0 : index
    %c0_4 = arith.constant 0 : index
    %2 = vector.load %arg2[%c0_2, %c0_3, %c0_4] : memref<9x128x128xbf16, #tpu.memory_space<vmem>>, vector<1x128x128xbf16>
    %3 = vector.shape_cast %2 : vector<1x128x128xbf16> to vector<128x128xbf16>
    %cst = arith.constant dense<0.000000e+00> : vector<384x128xf32>
    %4 = tpu.matmul %1, %3, %cst {dimension_numbers = #tpu.dot_dimension_numbers<[1], [0], [0], [1], [0, 0, 1, 1], [], []>} : vector<384x128xbf16>, vector<128x128xbf16>, vector<384x128xf32> -> vector<384x128xf32>
    %c0_5 = arith.constant 0 : index
    %c1 = arith.constant 1 : index
    %c0_6 = arith.constant 0 : index
    %5 = vector.load %arg1[%c0_5, %c1, %c0_6] : memref<1x456x128xbf16, #tpu.memory_space<vmem>>, vector<1x384x128xbf16>
    %6 = vector.shape_cast %5 : vector<1x384x128xbf16> to vector<384x128xbf16>
    %c1_7 = arith.constant 1 : index
    %c0_8 = arith.constant 0 : index
    %c0_9 = arith.constant 0 : index
    %7 = vector.load %arg2[%c1_7, %c0_8, %c0_9] : memref<9x128x128xbf16, #tpu.memory_space<vmem>>, vector<1x128x128xbf16>
    %8 = vector.shape_cast %7 : vector<1x128x128xbf16> to vector<128x128xbf16>
    %cst_10 = arith.constant dense<0.000000e+00> : vector<384x128xf32>
    %9 = tpu.matmul %6, %8, %cst_10 {dimension_numbers = #tpu.dot_dimension_numbers<[1], [0], [0], [1], [0, 0, 1, 1], [], []>} : vector<384x128xbf16>, vector<128x128xbf16>, vector<384x128xf32> -> vector<384x128xf32>
    %10 = arith.addf %4, %9 : vector<384x128xf32>
    %c0_11 = arith.constant 0 : index
    %c2 = arith.constant 2 : index
    %c0_12 = arith.constant 0 : index
    %11 = vector.load %arg1[%c0_11, %c2, %c0_12] : memref<1x456x128xbf16, #tpu.memory_space<vmem>>, vector<1x384x128xbf16>
    %12 = vector.shape_cast %11 : vector<1x384x128xbf16> to vector<384x128xbf16>
    %c2_13 = arith.constant 2 : index
    %c0_14 = arith.constant 0 : index
    %c0_15 = arith.constant 0 : index
    %13 = vector.load %arg2[%c2_13, %c0_14, %c0_15] : memref<9x128x128xbf16, #tpu.memory_space<vmem>>, vector<1x128x128xbf16>
    %14 = vector.shape_cast %13 : vector<1x128x128xbf16> to vector<128x128xbf16>
    %cst_16 = arith.constant dense<0.000000e+00> : vector<384x128xf32>
    %15 = tpu.matmul %12, %14, %cst_16 {dimension_numbers = #tpu.dot_dimension_numbers<[1], [0], [0], [1], [0, 0, 1, 1], [], []>} : vector<384x128xbf16>, vector<128x128xbf16>, vector<384x128xf32> -> vector<384x128xf32>
    %16 = arith.addf %10, %15 : vector<384x128xf32>
    %c0_17 = arith.constant 0 : index
    %c24 = arith.constant 24 : index
    %c0_18 = arith.constant 0 : index
    %17 = vector.load %arg1[%c0_17, %c24, %c0_18] : memref<1x456x128xbf16, #tpu.memory_space<vmem>>, vector<1x384x128xbf16>
    %18 = vector.shape_cast %17 : vector<1x384x128xbf16> to vector<384x128xbf16>
    %c3 = arith.constant 3 : index
    %c0_19 = arith.constant 0 : index
    %c0_20 = arith.constant 0 : index
    %19 = vector.load %arg2[%c3, %c0_19, %c0_20] : memref<9x128x128xbf16, #tpu.memory_space<vmem>>, vector<1x128x128xbf16>
    %20 = vector.shape_cast %19 : vector<1x128x128xbf16> to vector<128x128xbf16>
    %cst_21 = arith.constant dense<0.000000e+00> : vector<384x128xf32>
    %21 = tpu.matmul %18, %20, %cst_21 {dimension_numbers = #tpu.dot_dimension_numbers<[1], [0], [0], [1], [0, 0, 1, 1], [], []>} : vector<384x128xbf16>, vector<128x128xbf16>, vector<384x128xf32> -> vector<384x128xf32>
    %22 = arith.addf %16, %21 : vector<384x128xf32>
    %c0_22 = arith.constant 0 : index
    %c25 = arith.constant 25 : index
    %c0_23 = arith.constant 0 : index
    %23 = vector.load %arg1[%c0_22, %c25, %c0_23] : memref<1x456x128xbf16, #tpu.memory_space<vmem>>, vector<1x384x128xbf16>
    %24 = vector.shape_cast %23 : vector<1x384x128xbf16> to vector<384x128xbf16>
    %c4 = arith.constant 4 : index
    %c0_24 = arith.constant 0 : index
    %c0_25 = arith.constant 0 : index
    %25 = vector.load %arg2[%c4, %c0_24, %c0_25] : memref<9x128x128xbf16, #tpu.memory_space<vmem>>, vector<1x128x128xbf16>
    %26 = vector.shape_cast %25 : vector<1x128x128xbf16> to vector<128x128xbf16>
    %cst_26 = arith.constant dense<0.000000e+00> : vector<384x128xf32>
    %27 = tpu.matmul %24, %26, %cst_26 {dimension_numbers = #tpu.dot_dimension_numbers<[1], [0], [0], [1], [0, 0, 1, 1], [], []>} : vector<384x128xbf16>, vector<128x128xbf16>, vector<384x128xf32> -> vector<384x128xf32>
    %28 = arith.addf %22, %27 : vector<384x128xf32>
    %c0_27 = arith.constant 0 : index
    %c26 = arith.constant 26 : index
    %c0_28 = arith.constant 0 : index
    %29 = vector.load %arg1[%c0_27, %c26, %c0_28] : memref<1x456x128xbf16, #tpu.memory_space<vmem>>, vector<1x384x128xbf16>
    %30 = vector.shape_cast %29 : vector<1x384x128xbf16> to vector<384x128xbf16>
    %c5 = arith.constant 5 : index
    %c0_29 = arith.constant 0 : index
    %c0_30 = arith.constant 0 : index
    %31 = vector.load %arg2[%c5, %c0_29, %c0_30] : memref<9x128x128xbf16, #tpu.memory_space<vmem>>, vector<1x128x128xbf16>
    %32 = vector.shape_cast %31 : vector<1x128x128xbf16> to vector<128x128xbf16>
    %cst_31 = arith.constant dense<0.000000e+00> : vector<384x128xf32>
    %33 = tpu.matmul %30, %32, %cst_31 {dimension_numbers = #tpu.dot_dimension_numbers<[1], [0], [0], [1], [0, 0, 1, 1], [], []>} : vector<384x128xbf16>, vector<128x128xbf16>, vector<384x128xf32> -> vector<384x128xf32>
    %34 = arith.addf %28, %33 : vector<384x128xf32>
    %c0_32 = arith.constant 0 : index
    %c48 = arith.constant 48 : index
    %c0_33 = arith.constant 0 : index
    %35 = vector.load %arg1[%c0_32, %c48, %c0_33] : memref<1x456x128xbf16, #tpu.memory_space<vmem>>, vector<1x384x128xbf16>
    %36 = vector.shape_cast %35 : vector<1x384x128xbf16> to vector<384x128xbf16>
    %c6 = arith.constant 6 : index
    %c0_34 = arith.constant 0 : index
    %c0_35 = arith.constant 0 : index
    %37 = vector.load %arg2[%c6, %c0_34, %c0_35] : memref<9x128x128xbf16, #tpu.memory_space<vmem>>, vector<1x128x128xbf16>
    %38 = vector.shape_cast %37 : vector<1x128x128xbf16> to vector<128x128xbf16>
    %cst_36 = arith.constant dense<0.000000e+00> : vector<384x128xf32>
    %39 = tpu.matmul %36, %38, %cst_36 {dimension_numbers = #tpu.dot_dimension_numbers<[1], [0], [0], [1], [0, 0, 1, 1], [], []>} : vector<384x128xbf16>, vector<128x128xbf16>, vector<384x128xf32> -> vector<384x128xf32>
    %40 = arith.addf %34, %39 : vector<384x128xf32>
    %c0_37 = arith.constant 0 : index
    %c49 = arith.constant 49 : index
    %c0_38 = arith.constant 0 : index
    %41 = vector.load %arg1[%c0_37, %c49, %c0_38] : memref<1x456x128xbf16, #tpu.memory_space<vmem>>, vector<1x384x128xbf16>
    %42 = vector.shape_cast %41 : vector<1x384x128xbf16> to vector<384x128xbf16>
    %c7 = arith.constant 7 : index
    %c0_39 = arith.constant 0 : index
    %c0_40 = arith.constant 0 : index
    %43 = vector.load %arg2[%c7, %c0_39, %c0_40] : memref<9x128x128xbf16, #tpu.memory_space<vmem>>, vector<1x128x128xbf16>
    %44 = vector.shape_cast %43 : vector<1x128x128xbf16> to vector<128x128xbf16>
    %cst_41 = arith.constant dense<0.000000e+00> : vector<384x128xf32>
    %45 = tpu.matmul %42, %44, %cst_41 {dimension_numbers = #tpu.dot_dimension_numbers<[1], [0], [0], [1], [0, 0, 1, 1], [], []>} : vector<384x128xbf16>, vector<128x128xbf16>, vector<384x128xf32> -> vector<384x128xf32>
    %46 = arith.addf %40, %45 : vector<384x128xf32>
    %c0_42 = arith.constant 0 : index
    %c50 = arith.constant 50 : index
    %c0_43 = arith.constant 0 : index
    %47 = vector.load %arg1[%c0_42, %c50, %c0_43] : memref<1x456x128xbf16, #tpu.memory_space<vmem>>, vector<1x384x128xbf16>
    %48 = vector.shape_cast %47 : vector<1x384x128xbf16> to vector<384x128xbf16>
    %c8 = arith.constant 8 : index
    %c0_44 = arith.constant 0 : index
    %c0_45 = arith.constant 0 : index
    %49 = vector.load %arg2[%c8, %c0_44, %c0_45] : memref<9x128x128xbf16, #tpu.memory_space<vmem>>, vector<1x128x128xbf16>
    %50 = vector.shape_cast %49 : vector<1x128x128xbf16> to vector<128x128xbf16>
    %cst_46 = arith.constant dense<0.000000e+00> : vector<384x128xf32>
    %51 = tpu.matmul %48, %50, %cst_46 {dimension_numbers = #tpu.dot_dimension_numbers<[1], [0], [0], [1], [0, 0, 1, 1], [], []>} : vector<384x128xbf16>, vector<128x128xbf16>, vector<384x128xf32> -> vector<384x128xf32>
    %52 = arith.addf %46, %51 : vector<384x128xf32>
    %c0_47 = arith.constant 0 : index
    %c0_48 = arith.constant 0 : index
    %53 = vector.load %arg3[%c0_47, %c0_48] : memref<1x128xf32, #tpu.memory_space<vmem>>, vector<1x128xf32>
    %54 = vector.broadcast %53 : vector<1x128xf32> to vector<384x128xf32>
    %55 = arith.addf %52, %54 : vector<384x128xf32>
    %cst_49 = arith.constant 0.000000e+00 : f32
    %56 = vector.broadcast %cst_49 : f32 to vector<384x128xf32>
    %57 = arith.maximumf %55, %56 : vector<384x128xf32>
    %58 = tpu.iota {dimensions = array<i32: 0>} : vector<384x1xi32>
    %c24_i32 = arith.constant 24 : i32
    %c0_i32 = arith.constant 0 : i32
    %59 = arith.cmpi eq, %c24_i32, %c0_i32 : i32
    %c1_i32 = arith.constant 1 : i32
    %60 = arith.select %59, %c1_i32, %c24_i32 : i32
    %61 = vector.broadcast %60 : i32 to vector<384x1xi32>
    %62 = arith.remsi %58, %61 : vector<384x1xi32>
    %c0_i32_50 = arith.constant 0 : i32
    %63 = vector.broadcast %c0_i32_50 : i32 to vector<384x1xi32>
    %64 = arith.cmpi ne, %62, %63 : vector<384x1xi32>
    %c0_i32_51 = arith.constant 0 : i32
    %65 = vector.broadcast %c0_i32_51 : i32 to vector<384x1xi32>
    %66 = arith.cmpi slt, %62, %65 : vector<384x1xi32>
    %c0_i32_52 = arith.constant 0 : i32
    %67 = arith.cmpi slt, %60, %c0_i32_52 : i32
    %68 = vector.broadcast %67 : i1 to vector<384x1xi1>
    %69 = vector.broadcast %68 : vector<384x1xi1> to vector<384x1xi1>
    %70 = arith.xori %66, %69 : vector<384x1xi1>
    %71 = arith.andi %70, %64 : vector<384x1xi1>
    %72 = vector.broadcast %60 : i32 to vector<384x1xi32>
    %73 = arith.addi %62, %72 : vector<384x1xi32>
    %74 = arith.select %71, %73, %62 : vector<384x1xi1>, vector<384x1xi32>
    %c16_i32 = arith.constant 16 : i32
    %75 = vector.broadcast %c16_i32 : i32 to vector<384x1xi32>
    %76 = arith.cmpi slt, %74, %75 : vector<384x1xi32>
    %cst_53 = arith.constant 0.000000e+00 : f32
    %77 = vector.shape_cast %76 : vector<384x1xi1> to vector<384x1xi1>
    %78 = vector.broadcast %77 : vector<384x1xi1> to vector<384x128xi1>
    %79 = vector.broadcast %cst_53 : f32 to vector<384x128xf32>
    %80 = arith.select %78, %57, %79 : vector<384x128xi1>, vector<384x128xf32>
    %cst_54 = arith.constant 0.000000e+00 : bf16
    %81 = vector.broadcast %cst_54 : bf16 to vector<32x128xbf16>
    %c0_55 = arith.constant 0 : index
    %c0_56 = arith.constant 0 : index
    %82 = vector.load %arg8[%c0_55, %c0_56] : memref<456x128xbf16, #tpu.memory_space<vmem>>, vector<32x128xbf16>
    tpu.vector_store %arg8[%c0_55, %c0_56], %81 {strides = array<i32>} : memref<456x128xbf16, #tpu.memory_space<vmem>>, vector<32x128xbf16>,
    %cst_57 = arith.constant 0.000000e+00 : bf16
    %83 = vector.broadcast %cst_57 : bf16 to vector<24x128xbf16>
    %c408 = arith.constant 408 : index
    %c0_58 = arith.constant 0 : index
    %84 = vector.load %arg8[%c408, %c0_58] : memref<456x128xbf16, #tpu.memory_space<vmem>>, vector<24x128xbf16>
    tpu.vector_store %arg8[%c408, %c0_58], %83 {strides = array<i32>} : memref<456x128xbf16, #tpu.memory_space<vmem>>, vector<24x128xbf16>,
    %85 = arith.truncf %80 : vector<384x128xf32> to vector<384x128xbf16>
    %c25_59 = arith.constant 25 : index
    %c0_60 = arith.constant 0 : index
    %86 = vector.load %arg8[%c25_59, %c0_60] : memref<456x128xbf16, #tpu.memory_space<vmem>>, vector<384x128xbf16>
    tpu.vector_store %arg8[%c25_59, %c0_60], %85 {strides = array<i32>} : memref<456x128xbf16, #tpu.memory_space<vmem>>, vector<384x128xbf16>,
    %c0_61 = arith.constant 0 : index
    %c25_62 = arith.constant 25 : index
    %c0_63 = arith.constant 0 : index
    %87 = vector.load %arg1[%c0_61, %c25_62, %c0_63] : memref<1x456x128xbf16, #tpu.memory_space<vmem>>, vector<1x384x128xbf16>
    %88 = vector.shape_cast %87 : vector<1x384x128xbf16> to vector<384x128xbf16>
    %c0_64 = arith.constant 0 : index
    %c0_65 = arith.constant 0 : index
    %89 = vector.load %arg6[%c0_64, %c0_65] : memref<128x128xbf16, #tpu.memory_space<vmem>>, vector<128x128xbf16>
    %cst_66 = arith.constant dense<0.000000e+00> : vector<384x128xf32>
    %90 = tpu.matmul %88, %89, %cst_66 {dimension_numbers = #tpu.dot_dimension_numbers<[1], [0], [0], [1], [0, 0, 1, 1], [], []>} : vector<384x128xbf16>, vector<128x128xbf16>, vector<384x128xf32> -> vector<384x128xf32>
    %c0_67 = arith.constant 0 : index
    %c0_68 = arith.constant 0 : index
    %91 = vector.load %arg8[%c0_67, %c0_68] : memref<456x128xbf16, #tpu.memory_space<vmem>>, vector<384x128xbf16>
    %c0_69 = arith.constant 0 : index
    %c0_70 = arith.constant 0 : index
    %c0_71 = arith.constant 0 : index
    %92 = vector.load %arg4[%c0_69, %c0_70, %c0_71] : memref<9x128x128xbf16, #tpu.memory_space<vmem>>, vector<1x128x128xbf16>
    %93 = vector.shape_cast %92 : vector<1x128x128xbf16> to vector<128x128xbf16>
    %cst_72 = arith.constant dense<0.000000e+00> : vector<384x128xf32>
    %94 = tpu.matmul %91, %93, %cst_72 {dimension_numbers = #tpu.dot_dimension_numbers<[1], [0], [0], [1], [0, 0, 1, 1], [], []>} : vector<384x128xbf16>, vector<128x128xbf16>, vector<384x128xf32> -> vector<384x128xf32>
    %95 = arith.addf %90, %94 : vector<384x128xf32>
    %c1_73 = arith.constant 1 : index
    %c0_74 = arith.constant 0 : index
    %96 = vector.load %arg8[%c1_73, %c0_74] : memref<456x128xbf16, #tpu.memory_space<vmem>>, vector<384x128xbf16>
    %c1_75 = arith.constant 1 : index
    %c0_76 = arith.constant 0 : index
    %c0_77 = arith.constant 0 : index
    %97 = vector.load %arg4[%c1_75, %c0_76, %c0_77] : memref<9x128x128xbf16, #tpu.memory_space<vmem>>, vector<1x128x128xbf16>
    %98 = vector.shape_cast %97 : vector<1x128x128xbf16> to vector<128x128xbf16>
    %cst_78 = arith.constant dense<0.000000e+00> : vector<384x128xf32>
    %99 = tpu.matmul %96, %98, %cst_78 {dimension_numbers = #tpu.dot_dimension_numbers<[1], [0], [0], [1], [0, 0, 1, 1], [], []>} : vector<384x128xbf16>, vector<128x128xbf16>, vector<384x128xf32> -> vector<384x128xf32>
    %100 = arith.addf %95, %99 : vector<384x128xf32>
    %c2_79 = arith.constant 2 : index
    %c0_80 = arith.constant 0 : index
    %101 = vector.load %arg8[%c2_79, %c0_80] : memref<456x128xbf16, #tpu.memory_space<vmem>>, vector<384x128xbf16>
    %c2_81 = arith.constant 2 : index
    %c0_82 = arith.constant 0 : index
    %c0_83 = arith.constant 0 : index
    %102 = vector.load %arg4[%c2_81, %c0_82, %c0_83] : memref<9x128x128xbf16, #tpu.memory_space<vmem>>, vector<1x128x128xbf16>
    %103 = vector.shape_cast %102 : vector<1x128x128xbf16> to vector<128x128xbf16>
    %cst_84 = arith.constant dense<0.000000e+00> : vector<384x128xf32>
    %104 = tpu.matmul %101, %103, %cst_84 {dimension_numbers = #tpu.dot_dimension_numbers<[1], [0], [0], [1], [0, 0, 1, 1], [], []>} : vector<384x128xbf16>, vector<128x128xbf16>, vector<384x128xf32> -> vector<384x128xf32>
    %105 = arith.addf %100, %104 : vector<384x128xf32>
    %c24_85 = arith.constant 24 : index
    %c0_86 = arith.constant 0 : index
    %106 = vector.load %arg8[%c24_85, %c0_86] : memref<456x128xbf16, #tpu.memory_space<vmem>>, vector<384x128xbf16>
    %c3_87 = arith.constant 3 : index
    %c0_88 = arith.constant 0 : index
    %c0_89 = arith.constant 0 : index
    %107 = vector.load %arg4[%c3_87, %c0_88, %c0_89] : memref<9x128x128xbf16, #tpu.memory_space<vmem>>, vector<1x128x128xbf16>
    %108 = vector.shape_cast %107 : vector<1x128x128xbf16> to vector<128x128xbf16>
    %cst_90 = arith.constant dense<0.000000e+00> : vector<384x128xf32>
    %109 = tpu.matmul %106, %108, %cst_90 {dimension_numbers = #tpu.dot_dimension_numbers<[1], [0], [0], [1], [0, 0, 1, 1], [], []>} : vector<384x128xbf16>, vector<128x128xbf16>, vector<384x128xf32> -> vector<384x128xf32>
    %110 = arith.addf %105, %109 : vector<384x128xf32>
    %c25_91 = arith.constant 25 : index
    %c0_92 = arith.constant 0 : index
    %111 = vector.load %arg8[%c25_91, %c0_92] : memref<456x128xbf16, #tpu.memory_space<vmem>>, vector<384x128xbf16>
    %c4_93 = arith.constant 4 : index
    %c0_94 = arith.constant 0 : index
    %c0_95 = arith.constant 0 : index
    %112 = vector.load %arg4[%c4_93, %c0_94, %c0_95] : memref<9x128x128xbf16, #tpu.memory_space<vmem>>, vector<1x128x128xbf16>
    %113 = vector.shape_cast %112 : vector<1x128x128xbf16> to vector<128x128xbf16>
    %cst_96 = arith.constant dense<0.000000e+00> : vector<384x128xf32>
    %114 = tpu.matmul %111, %113, %cst_96 {dimension_numbers = #tpu.dot_dimension_numbers<[1], [0], [0], [1], [0, 0, 1, 1], [], []>} : vector<384x128xbf16>, vector<128x128xbf16>, vector<384x128xf32> -> vector<384x128xf32>
    %115 = arith.addf %110, %114 : vector<384x128xf32>
    %c26_97 = arith.constant 26 : index
    %c0_98 = arith.constant 0 : index
    %116 = vector.load %arg8[%c26_97, %c0_98] : memref<456x128xbf16, #tpu.memory_space<vmem>>, vector<384x128xbf16>
    %c5_99 = arith.constant 5 : index
    %c0_100 = arith.constant 0 : index
    %c0_101 = arith.constant 0 : index
    %117 = vector.load %arg4[%c5_99, %c0_100, %c0_101] : memref<9x128x128xbf16, #tpu.memory_space<vmem>>, vector<1x128x128xbf16>
    %118 = vector.shape_cast %117 : vector<1x128x128xbf16> to vector<128x128xbf16>
    %cst_102 = arith.constant dense<0.000000e+00> : vector<384x128xf32>
    %119 = tpu.matmul %116, %118, %cst_102 {dimension_numbers = #tpu.dot_dimension_numbers<[1], [0], [0], [1], [0, 0, 1, 1], [], []>} : vector<384x128xbf16>, vector<128x128xbf16>, vector<384x128xf32> -> vector<384x128xf32>
    %120 = arith.addf %115, %119 : vector<384x128xf32>
    %c48_103 = arith.constant 48 : index
    %c0_104 = arith.constant 0 : index
    %121 = vector.load %arg8[%c48_103, %c0_104] : memref<456x128xbf16, #tpu.memory_space<vmem>>, vector<384x128xbf16>
    %c6_105 = arith.constant 6 : index
    %c0_106 = arith.constant 0 : index
    %c0_107 = arith.constant 0 : index
    %122 = vector.load %arg4[%c6_105, %c0_106, %c0_107] : memref<9x128x128xbf16, #tpu.memory_space<vmem>>, vector<1x128x128xbf16>
    %123 = vector.shape_cast %122 : vector<1x128x128xbf16> to vector<128x128xbf16>
    %cst_108 = arith.constant dense<0.000000e+00> : vector<384x128xf32>
    %124 = tpu.matmul %121, %123, %cst_108 {dimension_numbers = #tpu.dot_dimension_numbers<[1], [0], [0], [1], [0, 0, 1, 1], [], []>} : vector<384x128xbf16>, vector<128x128xbf16>, vector<384x128xf32> -> vector<384x128xf32>
    %125 = arith.addf %120, %124 : vector<384x128xf32>
    %c49_109 = arith.constant 49 : index
    %c0_110 = arith.constant 0 : index
    %126 = vector.load %arg8[%c49_109, %c0_110] : memref<456x128xbf16, #tpu.memory_space<vmem>>, vector<384x128xbf16>
    %c7_111 = arith.constant 7 : index
    %c0_112 = arith.constant 0 : index
    %c0_113 = arith.constant 0 : index
    %127 = vector.load %arg4[%c7_111, %c0_112, %c0_113] : memref<9x128x128xbf16, #tpu.memory_space<vmem>>, vector<1x128x128xbf16>
    %128 = vector.shape_cast %127 : vector<1x128x128xbf16> to vector<128x128xbf16>
    %cst_114 = arith.constant dense<0.000000e+00> : vector<384x128xf32>
    %129 = tpu.matmul %126, %128, %cst_114 {dimension_numbers = #tpu.dot_dimension_numbers<[1], [0], [0], [1], [0, 0, 1, 1], [], []>} : vector<384x128xbf16>, vector<128x128xbf16>, vector<384x128xf32> -> vector<384x128xf32>
    %130 = arith.addf %125, %129 : vector<384x128xf32>
    %c50_115 = arith.constant 50 : index
    %c0_116 = arith.constant 0 : index
    %131 = vector.load %arg8[%c50_115, %c0_116] : memref<456x128xbf16, #tpu.memory_space<vmem>>, vector<384x128xbf16>
    %c8_117 = arith.constant 8 : index
    %c0_118 = arith.constant 0 : index
    %c0_119 = arith.constant 0 : index
    %132 = vector.load %arg4[%c8_117, %c0_118, %c0_119] : memref<9x128x128xbf16, #tpu.memory_space<vmem>>, vector<1x128x128xbf16>
    %133 = vector.shape_cast %132 : vector<1x128x128xbf16> to vector<128x128xbf16>
    %cst_120 = arith.constant dense<0.000000e+00> : vector<384x128xf32>
    %134 = tpu.matmul %131, %133, %cst_120 {dimension_numbers = #tpu.dot_dimension_numbers<[1], [0], [0], [1], [0, 0, 1, 1], [], []>} : vector<384x128xbf16>, vector<128x128xbf16>, vector<384x128xf32> -> vector<384x128xf32>
    %135 = arith.addf %130, %134 : vector<384x128xf32>
    %c0_121 = arith.constant 0 : index
    %c0_122 = arith.constant 0 : index
    %136 = vector.load %arg5[%c0_121, %c0_122] : memref<1x128xf32, #tpu.memory_space<vmem>>, vector<1x128xf32>
    %137 = vector.broadcast %136 : vector<1x128xf32> to vector<384x128xf32>
    %138 = arith.addf %135, %137 : vector<384x128xf32>
    %cst_123 = arith.constant 0.000000e+00 : f32
    %139 = vector.broadcast %cst_123 : f32 to vector<384x128xf32>
    %140 = arith.maximumf %138, %139 : vector<384x128xf32>
    %141 = vector.extract_strided_slice %140 {offsets = [0, 0], sizes = [16, 128], strides = [1, 1]} : vector<384x128xf32> to vector<16x128xf32>
    %142 = arith.truncf %141 : vector<16x128xf32> to vector<16x128xbf16>
    %c0_124 = arith.constant 0 : index
    %c0_125 = arith.constant 0 : index
    %c0_126 = arith.constant 0 : index
    %c0_127 = arith.constant 0 : index
    %143 = vector.load %arg7[%c0_124, %c0_125, %c0_126, %c0_127] : memref<1x16x16x128xbf16, #tpu.memory_space<vmem>>, vector<1x1x16x128xbf16>
    %144 = vector.shape_cast %143 : vector<1x1x16x128xbf16> to vector<16x128xbf16>
    %145 = vector.shape_cast %142 : vector<16x128xbf16> to vector<1x1x16x128xbf16>
    tpu.vector_store %arg7[%c0_124, %c0_125, %c0_126, %c0_127], %145 {strides = array<i32>} : memref<1x16x16x128xbf16, #tpu.memory_space<vmem>>, vector<1x1x16x128xbf16>,
    %146 = vector.extract_strided_slice %140 {offsets = [24, 0], sizes = [16, 128], strides = [1, 1]} : vector<384x128xf32> to vector<16x128xf32>
    %147 = arith.truncf %146 : vector<16x128xf32> to vector<16x128xbf16>
    %c0_128 = arith.constant 0 : index
    %c1_129 = arith.constant 1 : index
    %c0_130 = arith.constant 0 : index
    %c0_131 = arith.constant 0 : index
    %148 = vector.load %arg7[%c0_128, %c1_129, %c0_130, %c0_131] : memref<1x16x16x128xbf16, #tpu.memory_space<vmem>>, vector<1x1x16x128xbf16>
    %149 = vector.shape_cast %148 : vector<1x1x16x128xbf16> to vector<16x128xbf16>
    %150 = vector.shape_cast %147 : vector<16x128xbf16> to vector<1x1x16x128xbf16>
    tpu.vector_store %arg7[%c0_128, %c1_129, %c0_130, %c0_131], %150 {strides = array<i32>} : memref<1x16x16x128xbf16, #tpu.memory_space<vmem>>, vector<1x1x16x128xbf16>,
    %151 = vector.extract_strided_slice %140 {offsets = [48, 0], sizes = [16, 128], strides = [1, 1]} : vector<384x128xf32> to vector<16x128xf32>
    %152 = arith.truncf %151 : vector<16x128xf32> to vector<16x128xbf16>
    %c0_132 = arith.constant 0 : index
    %c2_133 = arith.constant 2 : index
    %c0_134 = arith.constant 0 : index
    %c0_135 = arith.constant 0 : index
    %153 = vector.load %arg7[%c0_132, %c2_133, %c0_134, %c0_135] : memref<1x16x16x128xbf16, #tpu.memory_space<vmem>>, vector<1x1x16x128xbf16>
    %154 = vector.shape_cast %153 : vector<1x1x16x128xbf16> to vector<16x128xbf16>
    %155 = vector.shape_cast %152 : vector<16x128xbf16> to vector<1x1x16x128xbf16>
    tpu.vector_store %arg7[%c0_132, %c2_133, %c0_134, %c0_135], %155 {strides = array<i32>} : memref<1x16x16x128xbf16, #tpu.memory_space<vmem>>, vector<1x1x16x128xbf16>,
    %156 = vector.extract_strided_slice %140 {offsets = [72, 0], sizes = [16, 128], strides = [1, 1]} : vector<384x128xf32> to vector<16x128xf32>
    %157 = arith.truncf %156 : vector<16x128xf32> to vector<16x128xbf16>
    %c0_136 = arith.constant 0 : index
    %c3_137 = arith.constant 3 : index
    %c0_138 = arith.constant 0 : index
    %c0_139 = arith.constant 0 : index
    %158 = vector.load %arg7[%c0_136, %c3_137, %c0_138, %c0_139] : memref<1x16x16x128xbf16, #tpu.memory_space<vmem>>, vector<1x1x16x128xbf16>
    %159 = vector.shape_cast %158 : vector<1x1x16x128xbf16> to vector<16x128xbf16>
    %160 = vector.shape_cast %157 : vector<16x128xbf16> to vector<1x1x16x128xbf16>
    tpu.vector_store %arg7[%c0_136, %c3_137, %c0_138, %c0_139], %160 {strides = array<i32>} : memref<1x16x16x128xbf16, #tpu.memory_space<vmem>>, vector<1x1x16x128xbf16>,
    %161 = vector.extract_strided_slice %140 {offsets = [96, 0], sizes = [16, 128], strides = [1, 1]} : vector<384x128xf32> to vector<16x128xf32>
    %162 = arith.truncf %161 : vector<16x128xf32> to vector<16x128xbf16>
    %c0_140 = arith.constant 0 : index
    %c4_141 = arith.constant 4 : index
    %c0_142 = arith.constant 0 : index
    %c0_143 = arith.constant 0 : index
    %163 = vector.load %arg7[%c0_140, %c4_141, %c0_142, %c0_143] : memref<1x16x16x128xbf16, #tpu.memory_space<vmem>>, vector<1x1x16x128xbf16>
    %164 = vector.shape_cast %163 : vector<1x1x16x128xbf16> to vector<16x128xbf16>
    %165 = vector.shape_cast %162 : vector<16x128xbf16> to vector<1x1x16x128xbf16>
    tpu.vector_store %arg7[%c0_140, %c4_141, %c0_142, %c0_143], %165 {strides = array<i32>} : memref<1x16x16x128xbf16, #tpu.memory_space<vmem>>, vector<1x1x16x128xbf16>,
    %166 = vector.extract_strided_slice %140 {offsets = [120, 0], sizes = [16, 128], strides = [1, 1]} : vector<384x128xf32> to vector<16x128xf32>
    %167 = arith.truncf %166 : vector<16x128xf32> to vector<16x128xbf16>
    %c0_144 = arith.constant 0 : index
    %c5_145 = arith.constant 5 : index
    %c0_146 = arith.constant 0 : index
    %c0_147 = arith.constant 0 : index
    %168 = vector.load %arg7[%c0_144, %c5_145, %c0_146, %c0_147] : memref<1x16x16x128xbf16, #tpu.memory_space<vmem>>, vector<1x1x16x128xbf16>
    %169 = vector.shape_cast %168 : vector<1x1x16x128xbf16> to vector<16x128xbf16>
    %170 = vector.shape_cast %167 : vector<16x128xbf16> to vector<1x1x16x128xbf16>
    tpu.vector_store %arg7[%c0_144, %c5_145, %c0_146, %c0_147], %170 {strides = array<i32>} : memref<1x16x16x128xbf16, #tpu.memory_space<vmem>>, vector<1x1x16x128xbf16>,
    %171 = vector.extract_strided_slice %140 {offsets = [144, 0], sizes = [16, 128], strides = [1, 1]} : vector<384x128xf32> to vector<16x128xf32>
    %172 = arith.truncf %171 : vector<16x128xf32> to vector<16x128xbf16>
    %c0_148 = arith.constant 0 : index
    %c6_149 = arith.constant 6 : index
    %c0_150 = arith.constant 0 : index
    %c0_151 = arith.constant 0 : index
    %173 = vector.load %arg7[%c0_148, %c6_149, %c0_150, %c0_151] : memref<1x16x16x128xbf16, #tpu.memory_space<vmem>>, vector<1x1x16x128xbf16>
    %174 = vector.shape_cast %173 : vector<1x1x16x128xbf16> to vector<16x128xbf16>
    %175 = vector.shape_cast %172 : vector<16x128xbf16> to vector<1x1x16x128xbf16>
    tpu.vector_store %arg7[%c0_148, %c6_149, %c0_150, %c0_151], %175 {strides = array<i32>} : memref<1x16x16x128xbf16, #tpu.memory_space<vmem>>, vector<1x1x16x128xbf16>,
    %176 = vector.extract_strided_slice %140 {offsets = [168, 0], sizes = [16, 128], strides = [1, 1]} : vector<384x128xf32> to vector<16x128xf32>
    %177 = arith.truncf %176 : vector<16x128xf32> to vector<16x128xbf16>
    %c0_152 = arith.constant 0 : index
    %c7_153 = arith.constant 7 : index
    %c0_154 = arith.constant 0 : index
    %c0_155 = arith.constant 0 : index
    %178 = vector.load %arg7[%c0_152, %c7_153, %c0_154, %c0_155] : memref<1x16x16x128xbf16, #tpu.memory_space<vmem>>, vector<1x1x16x128xbf16>
    %179 = vector.shape_cast %178 : vector<1x1x16x128xbf16> to vector<16x128xbf16>
    %180 = vector.shape_cast %177 : vector<16x128xbf16> to vector<1x1x16x128xbf16>
    tpu.vector_store %arg7[%c0_152, %c7_153, %c0_154, %c0_155], %180 {strides = array<i32>} : memref<1x16x16x128xbf16, #tpu.memory_space<vmem>>, vector<1x1x16x128xbf16>,
    %181 = vector.extract_strided_slice %140 {offsets = [192, 0], sizes = [16, 128], strides = [1, 1]} : vector<384x128xf32> to vector<16x128xf32>
    %182 = arith.truncf %181 : vector<16x128xf32> to vector<16x128xbf16>
    %c0_156 = arith.constant 0 : index
    %c8_157 = arith.constant 8 : index
    %c0_158 = arith.constant 0 : index
    %c0_159 = arith.constant 0 : index
    %183 = vector.load %arg7[%c0_156, %c8_157, %c0_158, %c0_159] : memref<1x16x16x128xbf16, #tpu.memory_space<vmem>>, vector<1x1x16x128xbf16>
    %184 = vector.shape_cast %183 : vector<1x1x16x128xbf16> to vector<16x128xbf16>
    %185 = vector.shape_cast %182 : vector<16x128xbf16> to vector<1x1x16x128xbf16>
    tpu.vector_store %arg7[%c0_156, %c8_157, %c0_158, %c0_159], %185 {strides = array<i32>} : memref<1x16x16x128xbf16, #tpu.memory_space<vmem>>, vector<1x1x16x128xbf16>,
    %186 = vector.extract_strided_slice %140 {offsets = [216, 0], sizes = [16, 128], strides = [1, 1]} : vector<384x128xf32> to vector<16x128xf32>
    %187 = arith.truncf %186 : vector<16x128xf32> to vector<16x128xbf16>
    %c0_160 = arith.constant 0 : index
    %c9 = arith.constant 9 : index
    %c0_161 = arith.constant 0 : index
    %c0_162 = arith.constant 0 : index
    %188 = vector.load %arg7[%c0_160, %c9, %c0_161, %c0_162] : memref<1x16x16x128xbf16, #tpu.memory_space<vmem>>, vector<1x1x16x128xbf16>
    %189 = vector.shape_cast %188 : vector<1x1x16x128xbf16> to vector<16x128xbf16>
    %190 = vector.shape_cast %187 : vector<16x128xbf16> to vector<1x1x16x128xbf16>
    tpu.vector_store %arg7[%c0_160, %c9, %c0_161, %c0_162], %190 {strides = array<i32>} : memref<1x16x16x128xbf16, #tpu.memory_space<vmem>>, vector<1x1x16x128xbf16>,
    %191 = vector.extract_strided_slice %140 {offsets = [240, 0], sizes = [16, 128], strides = [1, 1]} : vector<384x128xf32> to vector<16x128xf32>
    %192 = arith.truncf %191 : vector<16x128xf32> to vector<16x128xbf16>
    %c0_163 = arith.constant 0 : index
    %c10 = arith.constant 10 : index
    %c0_164 = arith.constant 0 : index
    %c0_165 = arith.constant 0 : index
    %193 = vector.load %arg7[%c0_163, %c10, %c0_164, %c0_165] : memref<1x16x16x128xbf16, #tpu.memory_space<vmem>>, vector<1x1x16x128xbf16>
    %194 = vector.shape_cast %193 : vector<1x1x16x128xbf16> to vector<16x128xbf16>
    %195 = vector.shape_cast %192 : vector<16x128xbf16> to vector<1x1x16x128xbf16>
    tpu.vector_store %arg7[%c0_163, %c10, %c0_164, %c0_165], %195 {strides = array<i32>} : memref<1x16x16x128xbf16, #tpu.memory_space<vmem>>, vector<1x1x16x128xbf16>,
    %196 = vector.extract_strided_slice %140 {offsets = [264, 0], sizes = [16, 128], strides = [1, 1]} : vector<384x128xf32> to vector<16x128xf32>
    %197 = arith.truncf %196 : vector<16x128xf32> to vector<16x128xbf16>
    %c0_166 = arith.constant 0 : index
    %c11 = arith.constant 11 : index
    %c0_167 = arith.constant 0 : index
    %c0_168 = arith.constant 0 : index
    %198 = vector.load %arg7[%c0_166, %c11, %c0_167, %c0_168] : memref<1x16x16x128xbf16, #tpu.memory_space<vmem>>, vector<1x1x16x128xbf16>
    %199 = vector.shape_cast %198 : vector<1x1x16x128xbf16> to vector<16x128xbf16>
    %200 = vector.shape_cast %197 : vector<16x128xbf16> to vector<1x1x16x128xbf16>
    tpu.vector_store %arg7[%c0_166, %c11, %c0_167, %c0_168], %200 {strides = array<i32>} : memref<1x16x16x128xbf16, #tpu.memory_space<vmem>>, vector<1x1x16x128xbf16>,
    %201 = vector.extract_strided_slice %140 {offsets = [288, 0], sizes = [16, 128], strides = [1, 1]} : vector<384x128xf32> to vector<16x128xf32>
    %202 = arith.truncf %201 : vector<16x128xf32> to vector<16x128xbf16>
    %c0_169 = arith.constant 0 : index
    %c12 = arith.constant 12 : index
    %c0_170 = arith.constant 0 : index
    %c0_171 = arith.constant 0 : index
    %203 = vector.load %arg7[%c0_169, %c12, %c0_170, %c0_171] : memref<1x16x16x128xbf16, #tpu.memory_space<vmem>>, vector<1x1x16x128xbf16>
    %204 = vector.shape_cast %203 : vector<1x1x16x128xbf16> to vector<16x128xbf16>
    %205 = vector.shape_cast %202 : vector<16x128xbf16> to vector<1x1x16x128xbf16>
    tpu.vector_store %arg7[%c0_169, %c12, %c0_170, %c0_171], %205 {strides = array<i32>} : memref<1x16x16x128xbf16, #tpu.memory_space<vmem>>, vector<1x1x16x128xbf16>,
    %206 = vector.extract_strided_slice %140 {offsets = [312, 0], sizes = [16, 128], strides = [1, 1]} : vector<384x128xf32> to vector<16x128xf32>
    %207 = arith.truncf %206 : vector<16x128xf32> to vector<16x128xbf16>
    %c0_172 = arith.constant 0 : index
    %c13 = arith.constant 13 : index
    %c0_173 = arith.constant 0 : index
    %c0_174 = arith.constant 0 : index
    %208 = vector.load %arg7[%c0_172, %c13, %c0_173, %c0_174] : memref<1x16x16x128xbf16, #tpu.memory_space<vmem>>, vector<1x1x16x128xbf16>
    %209 = vector.shape_cast %208 : vector<1x1x16x128xbf16> to vector<16x128xbf16>
    %210 = vector.shape_cast %207 : vector<16x128xbf16> to vector<1x1x16x128xbf16>
    tpu.vector_store %arg7[%c0_172, %c13, %c0_173, %c0_174], %210 {strides = array<i32>} : memref<1x16x16x128xbf16, #tpu.memory_space<vmem>>, vector<1x1x16x128xbf16>,
    %211 = vector.extract_strided_slice %140 {offsets = [336, 0], sizes = [16, 128], strides = [1, 1]} : vector<384x128xf32> to vector<16x128xf32>
    %212 = arith.truncf %211 : vector<16x128xf32> to vector<16x128xbf16>
    %c0_175 = arith.constant 0 : index
    %c14 = arith.constant 14 : index
    %c0_176 = arith.constant 0 : index
    %c0_177 = arith.constant 0 : index
    %213 = vector.load %arg7[%c0_175, %c14, %c0_176, %c0_177] : memref<1x16x16x128xbf16, #tpu.memory_space<vmem>>, vector<1x1x16x128xbf16>
    %214 = vector.shape_cast %213 : vector<1x1x16x128xbf16> to vector<16x128xbf16>
    %215 = vector.shape_cast %212 : vector<16x128xbf16> to vector<1x1x16x128xbf16>
    tpu.vector_store %arg7[%c0_175, %c14, %c0_176, %c0_177], %215 {strides = array<i32>} : memref<1x16x16x128xbf16, #tpu.memory_space<vmem>>, vector<1x1x16x128xbf16>,
    %216 = vector.extract_strided_slice %140 {offsets = [360, 0], sizes = [16, 128], strides = [1, 1]} : vector<384x128xf32> to vector<16x128xf32>
    %217 = arith.truncf %216 : vector<16x128xf32> to vector<16x128xbf16>
    %c0_178 = arith.constant 0 : index
    %c15 = arith.constant 15 : index
    %c0_179 = arith.constant 0 : index
    %c0_180 = arith.constant 0 : index
    %218 = vector.load %arg7[%c0_178, %c15, %c0_179, %c0_180] : memref<1x16x16x128xbf16, #tpu.memory_space<vmem>>, vector<1x1x16x128xbf16>
    %219 = vector.shape_cast %218 : vector<1x1x16x128xbf16> to vector<16x128xbf16>
    %220 = vector.shape_cast %217 : vector<16x128xbf16> to vector<1x1x16x128xbf16>
    tpu.vector_store %arg7[%c0_178, %c15, %c0_179, %c0_180], %220 {strides = array<i32>} : memref<1x16x16x128xbf16, #tpu.memory_space<vmem>>, vector<1x1x16x128xbf16>,
    return
  }
  func.func @transform_0(%arg0: i32) -> (i32, i32, i32) {
    %c0_i32 = arith.constant 0 : i32
    %c0_i32_0 = arith.constant 0 : i32
    %c0_i32_1 = arith.constant 0 : i32
    return %arg0, %c0_i32, %c0_i32_0 : i32, i32, i32
  }
  func.func @transform_1(%arg0: i32) -> (i32, i32, i32) {
    %c0_i32 = arith.constant 0 : i32
    %c0_i32_0 = arith.constant 0 : i32
    %c0_i32_1 = arith.constant 0 : i32
    %c0_i32_2 = arith.constant 0 : i32
    return %c0_i32, %c0_i32_0, %c0_i32_1 : i32, i32, i32
  }
  func.func @transform_2(%arg0: i32) -> (i32, i32) {
    %c0_i32 = arith.constant 0 : i32
    %c0_i32_0 = arith.constant 0 : i32
    %c0_i32_1 = arith.constant 0 : i32
    return %c0_i32, %c0_i32_0 : i32, i32
  }
  func.func @transform_3(%arg0: i32) -> (i32, i32, i32) {
    %c0_i32 = arith.constant 0 : i32
    %c0_i32_0 = arith.constant 0 : i32
    %c0_i32_1 = arith.constant 0 : i32
    %c0_i32_2 = arith.constant 0 : i32
    return %c0_i32, %c0_i32_0, %c0_i32_1 : i32, i32, i32
  }
  func.func @transform_4(%arg0: i32) -> (i32, i32) {
    %c0_i32 = arith.constant 0 : i32
    %c0_i32_0 = arith.constant 0 : i32
    %c0_i32_1 = arith.constant 0 : i32
    return %c0_i32, %c0_i32_0 : i32, i32
  }
  func.func @transform_5(%arg0: i32) -> (i32, i32) {
    %c0_i32 = arith.constant 0 : i32
    %c0_i32_0 = arith.constant 0 : i32
    %c0_i32_1 = arith.constant 0 : i32
    return %c0_i32, %c0_i32_0 : i32, i32
  }
  func.func @transform_6(%arg0: i32) -> (i32, i32, i32, i32) {
    %c0_i32 = arith.constant 0 : i32
    %c0_i32_0 = arith.constant 0 : i32
    %c0_i32_1 = arith.constant 0 : i32
    %c0_i32_2 = arith.constant 0 : i32
    return %arg0, %c0_i32, %c0_i32_0, %c0_i32_1 : i32, i32, i32, i32
  }
}

</mosaic_0001>

<llo_original>
// kernel: make_cell_v1_spatial_forward.1
$region0: #{make_cell_v1_spatial_forward.1}
  #allocation0 [shape = 'u32[]', space=smem, size = 0x4, offset = 0x4, fixed_abs, tag = 'smem constant byte address 0x4 - core index']
  #allocation1 [shape = 'u32[144,128]{1,0:T(1,128)}', space=vmem, size = 0x12000, scoped, tag = 'internal scratch']
  #allocation2 [shape = 'bf16[456,128]{1,0:T(8,128)(2,1)}', space=vmem, size = 0x1c800, scoped, tag = 'scratch operand']
  %s0 = inlined_call_operand.vmem [shape: bf16[2,456,128], index: 0, kind: input, shape index: {}]
  %s1 = inlined_call_operand.vmem [shape: bf16[9,128,128], index: 1, kind: input, shape index: {}]
  %s2 = inlined_call_operand.vmem [shape: f32[1,128], index: 2, kind: input, shape index: {}]
  %s3 = inlined_call_operand.vmem [shape: bf16[9,128,128], index: 3, kind: input, shape index: {}]
  %s4 = inlined_call_operand.vmem [shape: f32[1,128], index: 4, kind: input, shape index: {}]
  %s5 = inlined_call_operand.vmem [shape: bf16[128,128], index: 5, kind: input, shape index: {}]
  %s6 = inlined_call_operand.vmem [shape: bf16[2,16,16,128], index: 6, kind: output, shape index: {}]
  %s7 = sld [smem:[#allocation0]]
  $region57: #{make_cell_v1_spatial_forward.1} parent=0
    _
  %s9 = ssub.s32 1, %s7
  %s10 = scalar_select 0, %s9, %s7
  loop: start=0, step=1, limit=4
  $region2: #{make_cell_v1_spatial_forward.1} parent=0 // loop_pre_header
    _
  $region3: #{make_cell_v1_spatial_forward.1} parent=0 // loop_header
    %s12 = sphi 0, %s16
    %p13 = scmp.ge.s32.totalorder %s12, 4
    %s22 = sphi 0, %s24
    %s25 = sphi 0, %s22
    %s26 = sphi 0, %s25
    %s42 = sphi 0, %s26
    %s46 = sphi 0, %s46
    %s48 = sphi 0, %s46
    %s49 = sphi 0, %s48
    %s63 = sphi 0, %s49
    %s67 = sphi 0, %s67
    %s69 = sphi 0, %s67
    %s70 = sphi 0, %s69
    %s84 = sphi 0, %s70
    %s88 = sphi 0, %s88
    %s90 = sphi 0, %s88
    %s91 = sphi 0, %s90
    %s105 = sphi 0, %s91
    %s109 = sphi 0, %s109
    %s111 = sphi 0, %s109
    %s112 = sphi 0, %s111
    %s126 = sphi 0, %s112
    %s130 = sphi 0, %s130
    %s132 = sphi 0, %s130
    %s133 = sphi 0, %s132
    %s147 = sphi 0, %s133
    %s153 = sphi 0, %s155
    %s156 = sphi 0, %s153
    %s157 = sphi 0, %s156
    %s173 = sphi 0, %s157
  $region4: #{make_cell_v1_spatial_forward.1} parent=0 // loop_header_branch
    %15 = sbr.rel (%p13) target = $region8
  $region5: #{make_cell_v1_spatial_forward.1} parent=0 // loop_body
    %s17 = ssub.s32 %s12, 1
    %s18 = ssub.s32 %s12, 2
    %s19 = sadd.s32 %s12, 1
    %s20 = ssub.s32 %s12, %s19
    %p21 = scmp.eq.s32.totalorder %s20, 0
    %s23 = sadd.s32 %s22, 1
    %s24 = scalar_select %p21, %s22, %s23
    %p27 = pneg %p21
    %p28 = scmp.eq.s32.totalorder %s12, 1
    %p29 = por %p27, %p28
    %p30 = scmp.ne.s32.totalorder %s22, %s25
    %p31 = scmp.eq.s32.totalorder %s12, 0
    %p32 = por %p30, %p31
    %p33 = scmp.ne.s32.totalorder %s22, %s25
    %p34 = scmp.eq.s32.totalorder %s17, 1
    %p35 = por %p33, %p34
    %p36 = scmp.ne.s32.totalorder %s25, %s26
    %p37 = scmp.eq.s32.totalorder %s17, 0
    %p38 = por %p36, %p37
    %p39 = scmp.ne.s32.totalorder %s25, %s26
    %p40 = scmp.eq.s32.totalorder %s18, 1
    %p41 = por %p39, %p40
    %p43 = scmp.ne.s32.totalorder %s26, %s42
    %p44 = scmp.eq.s32.totalorder %s18, 0
    %p45 = por %p43, %p44
    %s47 = sadd.s32 %s46, 1
    %p50 = scmp.eq.s32.totalorder %s12, 1
    %p51 = scmp.ne.s32.totalorder %s46, %s48
    %p52 = scmp.eq.s32.totalorder %s12, 0
    %p53 = por %p51, %p52
    %p54 = scmp.ne.s32.totalorder %s46, %s48
    %p55 = scmp.eq.s32.totalorder %s17, 1
    %p56 = por %p54, %p55
    %p57 = scmp.ne.s32.totalorder %s48, %s49
    %p58 = scmp.eq.s32.totalorder %s17, 0
    %p59 = por %p57, %p58
    %p60 = scmp.ne.s32.totalorder %s48, %s49
    %p61 = scmp.eq.s32.totalorder %s18, 1
    %p62 = por %p60, %p61
    %p64 = scmp.ne.s32.totalorder %s49, %s63
    %p65 = scmp.eq.s32.totalorder %s18, 0
    %p66 = por %p64, %p65
    %s68 = sadd.s32 %s67, 1
    %p71 = scmp.eq.s32.totalorder %s12, 1
    %p72 = scmp.ne.s32.totalorder %s67, %s69
    %p73 = scmp.eq.s32.totalorder %s12, 0
    %p74 = por %p72, %p73
    %p75 = scmp.ne.s32.totalorder %s67, %s69
    %p76 = scmp.eq.s32.totalorder %s17, 1
    %p77 = por %p75, %p76
    %p78 = scmp.ne.s32.totalorder %s69, %s70
    %p79 = scmp.eq.s32.totalorder %s17, 0
    %p80 = por %p78, %p79
    %p81 = scmp.ne.s32.totalorder %s69, %s70
    %p82 = scmp.eq.s32.totalorder %s18, 1
    %p83 = por %p81, %p82
    %p85 = scmp.ne.s32.totalorder %s70, %s84
    %p86 = scmp.eq.s32.totalorder %s18, 0
    %p87 = por %p85, %p86
    %s89 = sadd.s32 %s88, 1
    %p92 = scmp.eq.s32.totalorder %s12, 1
    %p93 = scmp.ne.s32.totalorder %s88, %s90
    %p94 = scmp.eq.s32.totalorder %s12, 0
    %p95 = por %p93, %p94
    %p96 = scmp.ne.s32.totalorder %s88, %s90
    %p97 = scmp.eq.s32.totalorder %s17, 1
    %p98 = por %p96, %p97
    %p99 = scmp.ne.s32.totalorder %s90, %s91
    %p100 = scmp.eq.s32.totalorder %s17, 0
    %p101 = por %p99, %p100
    %p102 = scmp.ne.s32.totalorder %s90, %s91
    %p103 = scmp.eq.s32.totalorder %s18, 1
    %p104 = por %p102, %p103
    %p106 = scmp.ne.s32.totalorder %s91, %s105
    %p107 = scmp.eq.s32.totalorder %s18, 0
    %p108 = por %p106, %p107
    %s110 = sadd.s32 %s109, 1
    %p113 = scmp.eq.s32.totalorder %s12, 1
    %p114 = scmp.ne.s32.totalorder %s109, %s111
    %p115 = scmp.eq.s32.totalorder %s12, 0
    %p116 = por %p114, %p115
    %p117 = scmp.ne.s32.totalorder %s109, %s111
    %p118 = scmp.eq.s32.totalorder %s17, 1
    %p119 = por %p117, %p118
    %p120 = scmp.ne.s32.totalorder %s111, %s112
    %p121 = scmp.eq.s32.totalorder %s17, 0
    %p122 = por %p120, %p121
    %p123 = scmp.ne.s32.totalorder %s111, %s112
    %p124 = scmp.eq.s32.totalorder %s18, 1
    %p125 = por %p123, %p124
    %p127 = scmp.ne.s32.totalorder %s112, %s126
    %p128 = scmp.eq.s32.totalorder %s18, 0
    %p129 = por %p127, %p128
    %s131 = sadd.s32 %s130, 1
    %p134 = scmp.eq.s32.totalorder %s12, 1
    %p135 = scmp.ne.s32.totalorder %s130, %s132
    %p136 = scmp.eq.s32.totalorder %s12, 0
    %p137 = por %p135, %p136
    %p138 = scmp.ne.s32.totalorder %s130, %s132
    %p139 = scmp.eq.s32.totalorder %s17, 1
    %p140 = por %p138, %p139
    %p141 = scmp.ne.s32.totalorder %s132, %s133
    %p142 = scmp.eq.s32.totalorder %s17, 0
    %p143 = por %p141, %p142
    %p144 = scmp.ne.s32.totalorder %s132, %s133
    %p145 = scmp.eq.s32.totalorder %s18, 1
    %p146 = por %p144, %p145
    %p148 = scmp.ne.s32.totalorder %s133, %s147
    %p149 = scmp.eq.s32.totalorder %s18, 0
    %p150 = por %p148, %p149
    %s151 = ssub.s32 %s12, %s19
    %p152 = scmp.eq.s32.totalorder %s151, 0
    %s154 = sadd.s32 %s153, 1
    %s155 = scalar_select %p152, %s153, %s154
    %p158 = pneg %p152
    %p159 = scmp.eq.s32.totalorder %s12, 1
    %p160 = por %p158, %p159
    %p161 = scmp.ne.s32.totalorder %s153, %s156
    %p162 = scmp.eq.s32.totalorder %s12, 0
    %p163 = por %p161, %p162
    %p164 = scmp.ne.s32.totalorder %s153, %s156
    %p165 = scmp.eq.s32.totalorder %s17, 1
    %p166 = por %p164, %p165
    %p167 = scmp.ne.s32.totalorder %s156, %s157
    %p168 = scmp.eq.s32.totalorder %s17, 0
    %p169 = por %p167, %p168
    %p170 = scmp.ne.s32.totalorder %s156, %s157
    %p171 = scmp.eq.s32.totalorder %s18, 1
    %p172 = por %p170, %p171
    %p174 = scmp.ne.s32.totalorder %s157, %s173
    %p175 = scmp.eq.s32.totalorder %s18, 0
    %p176 = por %p174, %p175
    %p177 = scmp.le.s32.totalorder 1, %s12
    %p178 = scmp.lt.s32.totalorder %s12, 3
    %p179 = pnand %p177, %p178
    %p180 = pneg %p179
    // Predicated region
    $region9: #{make_cell_v1_spatial_forward.1} parent=5 // pred_check
      _
    $region10: #{make_cell_v1_spatial_forward.1} parent=5 // pred_check_branch
      %182 = sbr.rel (%p179) target = $region12
    $region11: #{make_cell_v1_spatial_forward.1} parent=5 // pred_region
      %s183 = ssub.s32 %s12, 1
      // Predicated region
      $region13: #{make_cell_v1_spatial_forward.1} parent=11 // pred_check
        %p184 = pneg %p59
      $region14: #{make_cell_v1_spatial_forward.1} parent=11 // pred_check_branch
        %186 = sbr.rel (%p184) target = $region16
      $region15: #{make_cell_v1_spatial_forward.1} parent=11 // pred_region
        _
      $region16: #{make_cell_v1_spatial_forward.1} parent=11 // pred_fallthru
        _
      // Predicated region
      $region17: #{make_cell_v1_spatial_forward.1} parent=11 // pred_check
        %p187 = pneg %p80
      $region18: #{make_cell_v1_spatial_forward.1} parent=11 // pred_check_branch
        %189 = sbr.rel (%p187) target = $region20
      $region19: #{make_cell_v1_spatial_forward.1} parent=11 // pred_region
        _
      $region20: #{make_cell_v1_spatial_forward.1} parent=11 // pred_fallthru
        _
      // Predicated region
      $region21: #{make_cell_v1_spatial_forward.1} parent=11 // pred_check
        %p190 = pneg %p101
      $region22: #{make_cell_v1_spatial_forward.1} parent=11 // pred_check_branch
        %192 = sbr.rel (%p190) target = $region24
      $region23: #{make_cell_v1_spatial_forward.1} parent=11 // pred_region
        _
      $region24: #{make_cell_v1_spatial_forward.1} parent=11 // pred_fallthru
        _
      // Predicated region
      $region25: #{make_cell_v1_spatial_forward.1} parent=11 // pred_check
        %p193 = pneg %p122
      $region26: #{make_cell_v1_spatial_forward.1} parent=11 // pred_check_branch
        %195 = sbr.rel (%p193) target = $region28
      $region27: #{make_cell_v1_spatial_forward.1} parent=11 // pred_region
        _
      $region28: #{make_cell_v1_spatial_forward.1} parent=11 // pred_fallthru
        _
      // Predicated region
      $region29: #{make_cell_v1_spatial_forward.1} parent=11 // pred_check
        %p196 = pneg %p143
      $region30: #{make_cell_v1_spatial_forward.1} parent=11 // pred_check_branch
        %198 = sbr.rel (%p196) target = $region32
      $region31: #{make_cell_v1_spatial_forward.1} parent=11 // pred_region
        _
      $region32: #{make_cell_v1_spatial_forward.1} parent=11 // pred_fallthru
        _
    $region12: #{make_cell_v1_spatial_forward.1} parent=5 // pred_fallthru
      _
    %p199 = scmp.lt.s32.totalorder %s12, 2
    // Predicated region
    $region33: #{make_cell_v1_spatial_forward.1} parent=5 // pred_check
      %p200 = pneg %p199
    $region34: #{make_cell_v1_spatial_forward.1} parent=5 // pred_check_branch
      %202 = sbr.rel (%p200) target = $region36
    $region35: #{make_cell_v1_spatial_forward.1} parent=5 // pred_region
      // Predicated region
      $region37: #{make_cell_v1_spatial_forward.1} parent=35 // pred_check
        %p203 = pneg %p32
      $region38: #{make_cell_v1_spatial_forward.1} parent=35 // pred_check_branch
        %205 = sbr.rel (%p203) target = $region40
      $region39: #{make_cell_v1_spatial_forward.1} parent=35 // pred_region
        %p206 = scmp.lt.s32.totalorder %s12, 1
        %s207 = scalar_select %p206, %s12, 1
        %s208 = smul.addr %s207, 57
        %s209 = smul.addr %s208, 4
        %s210 = scalar_lea.vmem %s0, %s209
      $region40: #{make_cell_v1_spatial_forward.1} parent=35 // pred_fallthru
        _
    $region36: #{make_cell_v1_spatial_forward.1} parent=5 // pred_fallthru
      _
    %p211 = scmp.le.s32.totalorder 1, %s12
    %p212 = scmp.lt.s32.totalorder %s12, 3
    %p213 = pnand %p211, %p212
    %p214 = pneg %p213
    // Predicated region
    $region41: #{make_cell_v1_spatial_forward.1} parent=5 // pred_check
      _
    $region42: #{make_cell_v1_spatial_forward.1} parent=5 // pred_check_branch
      %216 = sbr.rel (%p213) target = $region44
    $region43: #{make_cell_v1_spatial_forward.1} parent=5 // pred_region
      %s217 = ssub.s32 %s12, 1
      %p218 = scmp.lt.s32.totalorder %s17, 1
      %s219 = scalar_select %p218, %s17, 1
      %s220 = smul.addr %s219, 57
      %s221 = smul.addr %s220, 4
      %s222 = scalar_lea.vmem %s0, %s221
      %p223 = pneg %p38
      %p224 = pneg %p35
      %p225 = pneg %p59
      %p226 = pneg %p56
      %p227 = pneg %p80
      %p228 = pneg %p77
      %p229 = pneg %p101
      %p230 = pneg %p98
      %p231 = pneg %p122
      %p232 = pneg %p119
      %p233 = pneg %p143
      %p234 = pneg %p140
      %p235 = pneg %p169
      %p236 = pneg %p166
      %p237 = scmp.lt.s32.totalorder %s17, 1
      %s238 = scalar_select %p237, %s17, 1
      %s239 = smul.addr %s238, 32
      %s240 = smul.addr %s239, 4
      %s241 = scalar_lea.vmem %s6, %s240
      %p242 = scmp.lt.s32.totalorder %s17, 1
      %s243 = scalar_select %p242, %s17, 1
      %s244 = smul.addr %s243, 57
      %s245 = smul.addr %s244, 4
      %s246 = scalar_lea.vmem %s0, %s245
      %p247 = scmp.lt.s32.totalorder %s17, 1
      %s248 = scalar_select %p247, %s17, 1
      %s249 = smul.addr %s248, 32
      %s250 = smul.addr %s249, 4
      %s251 = scalar_lea.vmem %s6, %s250
      %v253 = vld [vmem:[%s246] sm:$0xf]
      %v254 = vld [vmem:[%s246 + $0x4] sm:$0xf]
      %v255 = vld [vmem:[%s246 + $0x8] sm:$0xf]
      %v256 = vld [vmem:[%s246 + $0xc] sm:$0xf]
      %v257 = vld [vmem:[%s246 + $0x10] sm:$0xf]
      %v258 = vld [vmem:[%s246 + $0x14] sm:$0xf]
      %v259 = vld [vmem:[%s246 + $0x18] sm:$0xf]
      %v260 = vld [vmem:[%s246 + $0x1c] sm:$0xf]
      %v261 = vld [vmem:[%s246 + $0x20] sm:$0xf]
      %v262 = vld [vmem:[%s246 + $0x24] sm:$0xf]
      %v263 = vld [vmem:[%s246 + $0x28] sm:$0xf]
      %v264 = vld [vmem:[%s246 + $0x2c] sm:$0xf]
      %v265 = vld [vmem:[%s246 + $0x30] sm:$0xf]
      %v266 = vld [vmem:[%s246 + $0x34] sm:$0xf]
      %v267 = vld [vmem:[%s246 + $0x38] sm:$0xf]
      %v268 = vld [vmem:[%s246 + $0x3c] sm:$0xf]
      %v269 = vld [vmem:[%s246 + $0x40] sm:$0xf]
      %v270 = vld [vmem:[%s246 + $0x44] sm:$0xf]
      %v271 = vld [vmem:[%s246 + $0x48] sm:$0xf]
      %v272 = vld [vmem:[%s246 + $0x4c] sm:$0xf]
      %v273 = vld [vmem:[%s246 + $0x50] sm:$0xf]
      %v274 = vld [vmem:[%s246 + $0x54] sm:$0xf]
      %v275 = vld [vmem:[%s246 + $0x58] sm:$0xf]
      %v276 = vld [vmem:[%s246 + $0x5c] sm:$0xf]
      %v277 = vld [vmem:[%s246 + $0x60] sm:$0xf]
      %v278 = vld [vmem:[%s246 + $0x64] sm:$0xf]
      %v279 = vld [vmem:[%s246 + $0x68] sm:$0xf]
      %v280 = vld [vmem:[%s246 + $0x6c] sm:$0xf]
      %v281 = vld [vmem:[%s246 + $0x70] sm:$0xf]
      %v282 = vld [vmem:[%s246 + $0x74] sm:$0xf]
      %v283 = vld [vmem:[%s246 + $0x78] sm:$0xf]
      %v284 = vld [vmem:[%s246 + $0x7c] sm:$0xf]
      %v285 = vld [vmem:[%s246 + $0x80] sm:$0xf]
      %v286 = vld [vmem:[%s246 + $0x84] sm:$0xf]
      %v287 = vld [vmem:[%s246 + $0x88] sm:$0xf]
      %v288 = vld [vmem:[%s246 + $0x8c] sm:$0xf]
      %v289 = vld [vmem:[%s246 + $0x90] sm:$0xf]
      %v290 = vld [vmem:[%s246 + $0x94] sm:$0xf]
      %v291 = vld [vmem:[%s246 + $0x98] sm:$0xf]
      %v292 = vld [vmem:[%s246 + $0x9c] sm:$0xf]
      %v293 = vld [vmem:[%s246 + $0xa0] sm:$0xf]
      %v294 = vld [vmem:[%s246 + $0xa4] sm:$0xf]
      %v295 = vld [vmem:[%s246 + $0xa8] sm:$0xf]
      %v296 = vld [vmem:[%s246 + $0xac] sm:$0xf]
      %v297 = vld [vmem:[%s246 + $0xb0] sm:$0xf]
      %v298 = vld [vmem:[%s246 + $0xb4] sm:$0xf]
      %v299 = vld [vmem:[%s246 + $0xb8] sm:$0xf]
      %v300 = vld [vmem:[%s246 + $0xbc] sm:$0xf]
      %v301 = vld [vmem:[%s1] sm:$0xf]
      %v302 = vld [vmem:[%s1 + $0x4] sm:$0xf]
      %v303 = vld [vmem:[%s1 + $0x8] sm:$0xf]
      %v304 = vld [vmem:[%s1 + $0xc] sm:$0xf]
      %v305 = vld [vmem:[%s1 + $0x10] sm:$0xf]
      %v306 = vld [vmem:[%s1 + $0x14] sm:$0xf]
      %v307 = vld [vmem:[%s1 + $0x18] sm:$0xf]
      %v308 = vld [vmem:[%s1 + $0x1c] sm:$0xf]
      %v309 = vld [vmem:[%s1 + $0x20] sm:$0xf]
      %v310 = vld [vmem:[%s1 + $0x24] sm:$0xf]
      %v311 = vld [vmem:[%s1 + $0x28] sm:$0xf]
      %v312 = vld [vmem:[%s1 + $0x2c] sm:$0xf]
      %v313 = vld [vmem:[%s1 + $0x30] sm:$0xf]
      %v314 = vld [vmem:[%s1 + $0x34] sm:$0xf]
      %v315 = vld [vmem:[%s1 + $0x38] sm:$0xf]
      %v316 = vld [vmem:[%s1 + $0x3c] sm:$0xf]
      %v317 = vld [vmem:[%s246 + $0xc0] sm:$0x1]
      %s318 = scalar_lea.vmem %s1, 64
      %v319 = vld [vmem:[%s318] sm:$0xf]
      %v320 = vld [vmem:[%s318 + $0x4] sm:$0xf]
      %v321 = vld [vmem:[%s318 + $0x8] sm:$0xf]
      %v322 = vld [vmem:[%s318 + $0xc] sm:$0xf]
      %v323 = vld [vmem:[%s318 + $0x10] sm:$0xf]
      %v324 = vld [vmem:[%s318 + $0x14] sm:$0xf]
      %v325 = vld [vmem:[%s318 + $0x18] sm:$0xf]
      %v326 = vld [vmem:[%s318 + $0x1c] sm:$0xf]
      %v327 = vld [vmem:[%s318 + $0x20] sm:$0xf]
      %v328 = vld [vmem:[%s318 + $0x24] sm:$0xf]
      %v329 = vld [vmem:[%s318 + $0x28] sm:$0xf]
      %v330 = vld [vmem:[%s318 + $0x2c] sm:$0xf]
      %v331 = vld [vmem:[%s318 + $0x30] sm:$0xf]
      %v332 = vld [vmem:[%s318 + $0x34] sm:$0xf]
      %v333 = vld [vmem:[%s318 + $0x38] sm:$0xf]
      %v334 = vld [vmem:[%s318 + $0x3c] sm:$0xf]
      %v384 = vunpack.c.l.b16 %v253
      %v385 = vunpack.c.l.b16 %v254
      %v386 = vunpack.c.l.b16 %v255
      %v387 = vunpack.c.l.b16 %v256
      %v388 = vunpack.c.l.b16 %v257
      %v389 = vunpack.c.l.b16 %v258
      %v390 = vunpack.c.l.b16 %v259
      %v391 = vunpack.c.l.b16 %v260
      %v392 = vunpack.c.l.b16 %v261
      %v393 = vunpack.c.l.b16 %v262
      %v394 = vunpack.c.l.b16 %v263
      %v395 = vunpack.c.l.b16 %v264
      %v396 = vunpack.c.l.b16 %v265
      %v397 = vunpack.c.l.b16 %v266
      %v398 = vunpack.c.l.b16 %v267
      %v399 = vunpack.c.l.b16 %v268
      %v400 = vunpack.c.l.b16 %v269
      %v401 = vunpack.c.l.b16 %v270
      %v402 = vunpack.c.l.b16 %v271
      %v403 = vunpack.c.l.b16 %v272
      %v404 = vunpack.c.l.b16 %v273
      %v405 = vunpack.c.l.b16 %v274
      %v406 = vunpack.c.l.b16 %v275
      %v407 = vunpack.c.l.b16 %v276
      %v408 = vunpack.c.l.b16 %v277
      %v409 = vunpack.c.l.b16 %v278
      %v410 = vunpack.c.l.b16 %v279
      %v411 = vunpack.c.l.b16 %v280
      %v412 = vunpack.c.l.b16 %v281
      %v413 = vunpack.c.l.b16 %v282
      %v414 = vunpack.c.l.b16 %v283
      %v415 = vunpack.c.l.b16 %v284
      %v416 = vunpack.c.l.b16 %v285
      %v417 = vunpack.c.l.b16 %v286
      %v418 = vunpack.c.l.b16 %v287
      %v419 = vunpack.c.l.b16 %v288
      %v420 = vunpack.c.l.b16 %v289
      %v421 = vunpack.c.l.b16 %v290
      %v422 = vunpack.c.l.b16 %v291
      %v423 = vunpack.c.l.b16 %v292
      %v424 = vunpack.c.l.b16 %v293
      %v425 = vunpack.c.l.b16 %v294
      %v426 = vunpack.c.l.b16 %v295
      %v427 = vunpack.c.l.b16 %v296
      %v428 = vunpack.c.l.b16 %v297
      %v429 = vunpack.c.l.b16 %v298
      %v430 = vunpack.c.l.b16 %v299
      %v431 = vunpack.c.l.b16 %v300
      %v432 = vunpack.c.l.b16 %v317
      %v433 = vpack.c.b16 %v385, %v384
      %v434 = vpack.c.b16 %v387, %v386
      %v435 = vpack.c.b16 %v389, %v388
      %v436 = vpack.c.b16 %v391, %v390
      %v437 = vpack.c.b16 %v393, %v392
      %v438 = vpack.c.b16 %v395, %v394
      %v439 = vpack.c.b16 %v397, %v396
      %v440 = vpack.c.b16 %v399, %v398
      %v441 = vpack.c.b16 %v401, %v400
      %v442 = vpack.c.b16 %v403, %v402
      %v443 = vpack.c.b16 %v405, %v404
      %v444 = vpack.c.b16 %v407, %v406
      %v445 = vpack.c.b16 %v409, %v408
      %v446 = vpack.c.b16 %v411, %v410
      %v447 = vpack.c.b16 %v413, %v412
      %v448 = vpack.c.b16 %v415, %v414
      %v449 = vpack.c.b16 %v417, %v416
      %v450 = vpack.c.b16 %v419, %v418
      %v451 = vpack.c.b16 %v421, %v420
      %v452 = vpack.c.b16 %v423, %v422
      %v453 = vpack.c.b16 %v425, %v424
      %v454 = vpack.c.b16 %v427, %v426
      %v455 = vpack.c.b16 %v429, %v428
      %v456 = vpack.c.b16 %v431, %v430
      %v457 = vpack.c.b16 %v432, %v432
      %vm458 = vsmask.f32 7424
      %v460 = vshrl.u32 %v433, 16
      %v462 = vshll.u32 %v433, 16
      %v464 = vrot.slane %v462, 1
      %v465 = vor.u32 %v460, %v464
      %v467 = vshll.u32 %v434, 16
      %v469 = vrot.slane %v467, 1
      %v470 = vsel %vm458, %v465, %v469
      %v471 = vshrl.u32 %v434, 16
      %v473 = vor.u32 %v471, %v469
      %v475 = vshll.u32 %v435, 16
      %v477 = vrot.slane %v475, 1
      %v478 = vsel %vm458, %v473, %v477
      %v479 = vshrl.u32 %v435, 16
      %v481 = vor.u32 %v479, %v477
      %v483 = vshll.u32 %v436, 16
      %v485 = vrot.slane %v483, 1
      %v486 = vsel %vm458, %v481, %v485
      %v487 = vshrl.u32 %v436, 16
      %v489 = vor.u32 %v487, %v485
      %v491 = vshll.u32 %v437, 16
      %v493 = vrot.slane %v491, 1
      %v494 = vsel %vm458, %v489, %v493
      %v495 = vshrl.u32 %v437, 16
      %v497 = vor.u32 %v495, %v493
      %v499 = vshll.u32 %v438, 16
      %v501 = vrot.slane %v499, 1
      %v502 = vsel %vm458, %v497, %v501
      %v503 = vshrl.u32 %v438, 16
      %v505 = vor.u32 %v503, %v501
      %v507 = vshll.u32 %v439, 16
      %v509 = vrot.slane %v507, 1
      %v510 = vsel %vm458, %v505, %v509
      %v511 = vshrl.u32 %v439, 16
      %v513 = vor.u32 %v511, %v509
      %v515 = vshll.u32 %v440, 16
      %v517 = vrot.slane %v515, 1
      %v518 = vsel %vm458, %v513, %v517
      %v519 = vshrl.u32 %v440, 16
      %v521 = vor.u32 %v519, %v517
      %v523 = vshll.u32 %v441, 16
      %v525 = vrot.slane %v523, 1
      %v526 = vsel %vm458, %v521, %v525
      %v527 = vshrl.u32 %v441, 16
      %v529 = vor.u32 %v527, %v525
      %v531 = vshll.u32 %v442, 16
      %v533 = vrot.slane %v531, 1
      %v534 = vsel %vm458, %v529, %v533
      %v535 = vshrl.u32 %v442, 16
      %v537 = vor.u32 %v535, %v533
      %v539 = vshll.u32 %v443, 16
      %v541 = vrot.slane %v539, 1
      %v542 = vsel %vm458, %v537, %v541
      %v543 = vshrl.u32 %v443, 16
      %v545 = vor.u32 %v543, %v541
      %v547 = vshll.u32 %v444, 16
      %v549 = vrot.slane %v547, 1
      %v550 = vsel %vm458, %v545, %v549
      %v551 = vshrl.u32 %v444, 16
      %v553 = vor.u32 %v551, %v549
      %v555 = vshll.u32 %v445, 16
      %v557 = vrot.slane %v555, 1
      %v558 = vsel %vm458, %v553, %v557
      %v559 = vshrl.u32 %v445, 16
      %v561 = vor.u32 %v559, %v557
      %v563 = vshll.u32 %v446, 16
      %v565 = vrot.slane %v563, 1
      %v566 = vsel %vm458, %v561, %v565
      %v567 = vshrl.u32 %v446, 16
      %v569 = vor.u32 %v567, %v565
      %v571 = vshll.u32 %v447, 16
      %v573 = vrot.slane %v571, 1
      %v574 = vsel %vm458, %v569, %v573
      %v575 = vshrl.u32 %v447, 16
      %v577 = vor.u32 %v575, %v573
      %v579 = vshll.u32 %v448, 16
      %v581 = vrot.slane %v579, 1
      %v582 = vsel %vm458, %v577, %v581
      %v583 = vshrl.u32 %v448, 16
      %v585 = vor.u32 %v583, %v581
      %v587 = vshll.u32 %v449, 16
      %v589 = vrot.slane %v587, 1
      %v590 = vsel %vm458, %v585, %v589
      %v591 = vshrl.u32 %v449, 16
      %v593 = vor.u32 %v591, %v589
      %v595 = vshll.u32 %v450, 16
      %v597 = vrot.slane %v595, 1
      %v598 = vsel %vm458, %v593, %v597
      %v599 = vshrl.u32 %v450, 16
      %v601 = vor.u32 %v599, %v597
      %v603 = vshll.u32 %v451, 16
      %v605 = vrot.slane %v603, 1
      %v606 = vsel %vm458, %v601, %v605
      %v607 = vshrl.u32 %v451, 16
      %v609 = vor.u32 %v607, %v605
      %v611 = vshll.u32 %v452, 16
      %v613 = vrot.slane %v611, 1
      %v614 = vsel %vm458, %v609, %v613
      %v615 = vshrl.u32 %v452, 16
      %v617 = vor.u32 %v615, %v613
      %v619 = vshll.u32 %v453, 16
      %v621 = vrot.slane %v619, 1
      %v622 = vsel %vm458, %v617, %v621
      %v623 = vshrl.u32 %v453, 16
      %v625 = vor.u32 %v623, %v621
      %v627 = vshll.u32 %v454, 16
      %v629 = vrot.slane %v627, 1
      %v630 = vsel %vm458, %v625, %v629
      %v631 = vshrl.u32 %v454, 16
      %v633 = vor.u32 %v631, %v629
      %v635 = vshll.u32 %v455, 16
      %v637 = vrot.slane %v635, 1
      %v638 = vsel %vm458, %v633, %v637
      %v639 = vshrl.u32 %v455, 16
      %v641 = vor.u32 %v639, %v637
      %v643 = vshll.u32 %v456, 16
      %v645 = vrot.slane %v643, 1
      %v646 = vsel %vm458, %v641, %v645
      %v647 = vshrl.u32 %v456, 16
      %v649 = vor.u32 %v647, %v645
      %v651 = vshll.u32 %v457, 16
      %v653 = vrot.slane %v651, 1
      %v654 = vsel %vm458, %v649, %v653
      %v695 = vunpack.c.l.b16 %v319
      %v696 = vunpack.c.l.b16 %v320
      %v697 = vunpack.c.l.b16 %v321
      %v698 = vunpack.c.l.b16 %v322
      %v699 = vunpack.c.l.b16 %v323
      %v700 = vunpack.c.l.b16 %v324
      %v701 = vunpack.c.l.b16 %v325
      %v702 = vunpack.c.l.b16 %v326
      %v703 = vunpack.c.l.b16 %v327
      %v704 = vunpack.c.l.b16 %v328
      %v705 = vunpack.c.l.b16 %v329
      %v706 = vunpack.c.l.b16 %v330
      %v707 = vunpack.c.l.b16 %v331
      %v708 = vunpack.c.l.b16 %v332
      %v709 = vunpack.c.l.b16 %v333
      %v710 = vunpack.c.l.b16 %v334
      %v711 = vpack.c.b16 %v696, %v695
      %v712 = vpack.c.b16 %v698, %v697
      %v713 = vpack.c.b16 %v700, %v699
      %v714 = vpack.c.b16 %v702, %v701
      %v715 = vpack.c.b16 %v704, %v703
      %v716 = vpack.c.b16 %v706, %v705
      %v717 = vpack.c.b16 %v708, %v707
      %v718 = vpack.c.b16 %v710, %v709
      %727 = vmatprep.subr.bf16.mxu0 0
      %728 = vmatpush1.bf16.msra.mxu0 %v711
      %729 = vmatprep.subr.bf16.mxu0 0
      %730 = vmatpush1.bf16.msra.mxu0 %v712
      %731 = vmatprep.subr.bf16.mxu0 0
      %732 = vmatpush1.bf16.msra.mxu0 %v713
      %733 = vmatprep.subr.bf16.mxu0 0
      %734 = vmatpush1.bf16.msra.mxu0 %v714
      %735 = vmatprep.subr.bf16.mxu0 0
      %736 = vmatpush1.bf16.msra.mxu0 %v715
      %737 = vmatprep.subr.bf16.mxu0 0
      %738 = vmatpush1.bf16.msra.mxu0 %v716
      %739 = vmatprep.subr.bf16.mxu0 0
      %740 = vmatpush1.bf16.msra.mxu0 %v717
      %741 = vmatprep.subr.bf16.mxu0 0
      %742 = vmatpush1.bf16.msra.mxu0 %v718
      %743 = vmatprep.subr.bf16.mxu0 0
      %744 = vmatpush1.bf16.msra.mxu0 0
      %745 = vmatprep.subr.bf16.mxu0 0
      %746 = vmatpush1.bf16.msra.mxu0 0
      %747 = vmatprep.subr.bf16.mxu0 0
      %748 = vmatpush1.bf16.msra.mxu0 0
      %749 = vmatprep.subr.bf16.mxu0 0
      %750 = vmatpush1.bf16.msra.mxu0 0
      %751 = vmatprep.subr.bf16.mxu0 0
      %752 = vmatpush1.bf16.msra.mxu0 0
      %753 = vmatprep.subr.bf16.mxu0 0
      %754 = vmatpush1.bf16.msra.mxu0 0
      %755 = vmatprep.subr.bf16.mxu0 0
      %756 = vmatpush1.bf16.msra.mxu0 0
      %757 = vmatprep.subr.bf16.mxu0 0
      %758 = vmatpush1.bf16.msra.mxu0 0
      %759 = vmatprep.mubr.bf16.mxu0 0
      %760 = vmatmul.mubr.bf16.gmra.mrb[0].mxu0 %v470
      %v761 = vpop.f32.mrb[0].mxu0
      %v762 = vadd.f32 0.0, %v761
      %v763 = vpop.f32.mrb[0].mxu0
      %v764 = vpop.f32.mrb[0].mxu0
      %v765 = vadd.f32 0.0, %v764
      %v766 = vpop.f32.mrb[0].mxu0
      %767 = vmatprep.mubr.bf16.mxu0 0
      %768 = vmatmul.mubr.bf16.gmra.mrb[0].mxu0 %v478
      %v769 = vpop.f32.mrb[0].mxu0
      %v770 = vadd.f32 0.0, %v769
      %v771 = vpop.f32.mrb[0].mxu0
      %v772 = vpop.f32.mrb[0].mxu0
      %v773 = vadd.f32 0.0, %v772
      %v774 = vpop.f32.mrb[0].mxu0
      %775 = vmatprep.mubr.bf16.mxu0 0
      %776 = vmatmul.mubr.bf16.gmra.mrb[0].mxu0 %v486
      %v777 = vpop.f32.mrb[0].mxu0
      %v778 = vadd.f32 0.0, %v777
      %v779 = vpop.f32.mrb[0].mxu0
      %v780 = vpop.f32.mrb[0].mxu0
      %v781 = vadd.f32 0.0, %v780
      %v782 = vpop.f32.mrb[0].mxu0
      %783 = vmatprep.mubr.bf16.mxu0 0
      %784 = vmatmul.mubr.bf16.gmra.mrb[0].mxu0 %v494
      %v785 = vpop.f32.mrb[0].mxu0
      %v786 = vadd.f32 0.0, %v785
      %v787 = vpop.f32.mrb[0].mxu0
      %v788 = vpop.f32.mrb[0].mxu0
      %v789 = vadd.f32 0.0, %v788
      %v790 = vpop.f32.mrb[0].mxu0
      %791 = vmatprep.mubr.bf16.mxu0 0
      %792 = vmatmul.mubr.bf16.gmra.mrb[0].mxu0 %v502
      %v793 = vpop.f32.mrb[0].mxu0
      %v794 = vadd.f32 0.0, %v793
      %v795 = vpop.f32.mrb[0].mxu0
      %v796 = vpop.f32.mrb[0].mxu0
      %v797 = vadd.f32 0.0, %v796
      %v798 = vpop.f32.mrb[0].mxu0
      %799 = vmatprep.mubr.bf16.mxu0 0
      %800 = vmatmul.mubr.bf16.gmra.mrb[0].mxu0 %v510
      %v801 = vpop.f32.mrb[0].mxu0
      %v802 = vadd.f32 0.0, %v801
      %v803 = vpop.f32.mrb[0].mxu0
      %v804 = vpop.f32.mrb[0].mxu0
      %v805 = vadd.f32 0.0, %v804
      %v806 = vpop.f32.mrb[0].mxu0
      %807 = vmatprep.mubr.bf16.mxu0 0
      %808 = vmatmul.mubr.bf16.gmra.mrb[0].mxu0 %v518
      %v809 = vpop.f32.mrb[0].mxu0
      %v810 = vadd.f32 0.0, %v809
      %v811 = vpop.f32.mrb[0].mxu0
      %v812 = vpop.f32.mrb[0].mxu0
      %v813 = vadd.f32 0.0, %v812
      %v814 = vpop.f32.mrb[0].mxu0
      %815 = vmatprep.mubr.bf16.mxu0 0
      %816 = vmatmul.mubr.bf16.gmra.mrb[0].mxu0 %v526
      %v817 = vpop.f32.mrb[0].mxu0
      %v818 = vadd.f32 0.0, %v817
      %v819 = vpop.f32.mrb[0].mxu0
      %v820 = vpop.f32.mrb[0].mxu0
      %v821 = vadd.f32 0.0, %v820
      %v822 = vpop.f32.mrb[0].mxu0
      %823 = vmatprep.mubr.bf16.mxu0 0
      %824 = vmatmul.mubr.bf16.gmra.mrb[0].mxu0 %v534
      %v825 = vpop.f32.mrb[0].mxu0
      %v826 = vadd.f32 0.0, %v825
      %v827 = vpop.f32.mrb[0].mxu0
      %v828 = vpop.f32.mrb[0].mxu0
      %v829 = vadd.f32 0.0, %v828
      %v830 = vpop.f32.mrb[0].mxu0
      %831 = vmatprep.mubr.bf16.mxu0 0
      %832 = vmatmul.mubr.bf16.gmra.mrb[0].mxu0 %v542
      %v833 = vpop.f32.mrb[0].mxu0
      %v834 = vadd.f32 0.0, %v833
      %v835 = vpop.f32.mrb[0].mxu0
      %v836 = vpop.f32.mrb[0].mxu0
      %v837 = vadd.f32 0.0, %v836
      %v838 = vpop.f32.mrb[0].mxu0
      %839 = vmatprep.mubr.bf16.mxu0 0
      %840 = vmatmul.mubr.bf16.gmra.mrb[0].mxu0 %v550
      %v841 = vpop.f32.mrb[0].mxu0
      %v842 = vadd.f32 0.0, %v841
      %v843 = vpop.f32.mrb[0].mxu0
      %v844 = vpop.f32.mrb[0].mxu0
      %v845 = vadd.f32 0.0, %v844
      %v846 = vpop.f32.mrb[0].mxu0
      %847 = vmatprep.mubr.bf16.mxu0 0
      %848 = vmatmul.mubr.bf16.gmra.mrb[0].mxu0 %v558
      %v849 = vpop.f32.mrb[0].mxu0
      %v850 = vadd.f32 0.0, %v849
      %v851 = vpop.f32.mrb[0].mxu0
      %v852 = vpop.f32.mrb[0].mxu0
      %v853 = vadd.f32 0.0, %v852
      %v854 = vpop.f32.mrb[0].mxu0
      %855 = vmatprep.mubr.bf16.mxu0 0
      %856 = vmatmul.mubr.bf16.gmra.mrb[0].mxu0 %v566
      %v857 = vpop.f32.mrb[0].mxu0
      %v858 = vadd.f32 0.0, %v857
      %v859 = vpop.f32.mrb[0].mxu0
      %v860 = vpop.f32.mrb[0].mxu0
      %v861 = vadd.f32 0.0, %v860
      %v862 = vpop.f32.mrb[0].mxu0
      %863 = vmatprep.mubr.bf16.mxu0 0
      %864 = vmatmul.mubr.bf16.gmra.mrb[0].mxu0 %v574
      %v865 = vpop.f32.mrb[0].mxu0
      %v866 = vadd.f32 0.0, %v865
      %v867 = vpop.f32.mrb[0].mxu0
      %v868 = vpop.f32.mrb[0].mxu0
      %v869 = vadd.f32 0.0, %v868
      %v870 = vpop.f32.mrb[0].mxu0
      %871 = vmatprep.mubr.bf16.mxu0 0
      %872 = vmatmul.mubr.bf16.gmra.mrb[0].mxu0 %v582
      %v873 = vpop.f32.mrb[0].mxu0
      %v874 = vadd.f32 0.0, %v873
      %v875 = vpop.f32.mrb[0].mxu0
      %v876 = vpop.f32.mrb[0].mxu0
      %v877 = vadd.f32 0.0, %v876
      %v878 = vpop.f32.mrb[0].mxu0
      %879 = vmatprep.mubr.bf16.mxu0 0
      %880 = vmatmul.mubr.bf16.gmra.mrb[0].mxu0 %v590
      %v881 = vpop.f32.mrb[0].mxu0
      %v882 = vadd.f32 0.0, %v881
      %v883 = vpop.f32.mrb[0].mxu0
      %v884 = vpop.f32.mrb[0].mxu0
      %v885 = vadd.f32 0.0, %v884
      %v886 = vpop.f32.mrb[0].mxu0
      %887 = vmatprep.mubr.bf16.mxu0 0
      %888 = vmatmul.mubr.bf16.gmra.mrb[0].mxu0 %v598
      %v889 = vpop.f32.mrb[0].mxu0
      %v890 = vadd.f32 0.0, %v889
      %v891 = vpop.f32.mrb[0].mxu0
      %v892 = vpop.f32.mrb[0].mxu0
      %v893 = vadd.f32 0.0, %v892
      %v894 = vpop.f32.mrb[0].mxu0
      %895 = vmatprep.mubr.bf16.mxu0 0
      %896 = vmatmul.mubr.bf16.gmra.mrb[0].mxu0 %v606
      %v897 = vpop.f32.mrb[0].mxu0
      %v898 = vadd.f32 0.0, %v897
      %v899 = vpop.f32.mrb[0].mxu0
      %v900 = vpop.f32.mrb[0].mxu0
      %v901 = vadd.f32 0.0, %v900
      %v902 = vpop.f32.mrb[0].mxu0
      %903 = vmatprep.mubr.bf16.mxu0 0
      %904 = vmatmul.mubr.bf16.gmra.mrb[0].mxu0 %v614
      %v905 = vpop.f32.mrb[0].mxu0
      %v906 = vadd.f32 0.0, %v905
      %v907 = vpop.f32.mrb[0].mxu0
      %v908 = vpop.f32.mrb[0].mxu0
      %v909 = vadd.f32 0.0, %v908
      %v910 = vpop.f32.mrb[0].mxu0
      %911 = vmatprep.mubr.bf16.mxu0 0
      %912 = vmatmul.mubr.bf16.gmra.mrb[0].mxu0 %v622
      %v913 = vpop.f32.mrb[0].mxu0
      %v914 = vadd.f32 0.0, %v913
      %v915 = vpop.f32.mrb[0].mxu0
      %v916 = vpop.f32.mrb[0].mxu0
      %v917 = vadd.f32 0.0, %v916
      %v918 = vpop.f32.mrb[0].mxu0
      %919 = vmatprep.mubr.bf16.mxu0 0
      %920 = vmatmul.mubr.bf16.gmra.mrb[0].mxu0 %v630
      %v921 = vpop.f32.mrb[0].mxu0
      %v922 = vadd.f32 0.0, %v921
      %v923 = vpop.f32.mrb[0].mxu0
      %v924 = vpop.f32.mrb[0].mxu0
      %v925 = vadd.f32 0.0, %v924
      %v926 = vpop.f32.mrb[0].mxu0
      %927 = vmatprep.mubr.bf16.mxu0 0
      %928 = vmatmul.mubr.bf16.gmra.mrb[0].mxu0 %v638
      %v929 = vpop.f32.mrb[0].mxu0
      %v930 = vadd.f32 0.0, %v929
      %v931 = vpop.f32.mrb[0].mxu0
      %v932 = vpop.f32.mrb[0].mxu0
      %v933 = vadd.f32 0.0, %v932
      %v934 = vpop.f32.mrb[0].mxu0
      %935 = vmatprep.mubr.bf16.mxu0 0
      %936 = vmatmul.mubr.bf16.gmra.mrb[0].mxu0 %v646
      %v937 = vpop.f32.mrb[0].mxu0
      %v938 = vadd.f32 0.0, %v937
      %v939 = vpop.f32.mrb[0].mxu0
      %v940 = vpop.f32.mrb[0].mxu0
      %v941 = vadd.f32 0.0, %v940
      %v942 = vpop.f32.mrb[0].mxu0
      %943 = vmatprep.mubr.bf16.mxu0 0
      %944 = vmatmul.mubr.bf16.gmra.mrb[0].mxu0 %v654
      %v945 = vpop.f32.mrb[0].mxu0
      %v946 = vadd.f32 0.0, %v945
      %v947 = vpop.f32.mrb[0].mxu0
      %v948 = vpop.f32.mrb[0].mxu0
      %v949 = vadd.f32 0.0, %v948
      %v950 = vpop.f32.mrb[0].mxu0
      %951 = vdwg.mxu0
      %v992 = vunpack.c.l.b16 %v301
      %v993 = vunpack.c.l.b16 %v302
      %v994 = vunpack.c.l.b16 %v303
      %v995 = vunpack.c.l.b16 %v304
      %v996 = vunpack.c.l.b16 %v305
      %v997 = vunpack.c.l.b16 %v306
      %v998 = vunpack.c.l.b16 %v307
      %v999 = vunpack.c.l.b16 %v308
      %v1000 = vunpack.c.l.b16 %v309
      %v1001 = vunpack.c.l.b16 %v310
      %v1002 = vunpack.c.l.b16 %v311
      %v1003 = vunpack.c.l.b16 %v312
      %v1004 = vunpack.c.l.b16 %v313
      %v1005 = vunpack.c.l.b16 %v314
      %v1006 = vunpack.c.l.b16 %v315
      %v1007 = vunpack.c.l.b16 %v316
      %v1008 = vpack.c.b16 %v993, %v992
      %v1009 = vpack.c.b16 %v995, %v994
      %v1010 = vpack.c.b16 %v997, %v996
      %v1011 = vpack.c.b16 %v999, %v998
      %v1012 = vpack.c.b16 %v1001, %v1000
      %v1013 = vpack.c.b16 %v1003, %v1002
      %v1014 = vpack.c.b16 %v1005, %v1004
      %v1015 = vpack.c.b16 %v1007, %v1006
      %1024 = vmatprep.subr.bf16.mxu0 0
      %1025 = vmatpush1.bf16.msra.mxu0 %v1008
      %1026 = vmatprep.subr.bf16.mxu0 0
      %1027 = vmatpush1.bf16.msra.mxu0 %v1009
      %1028 = vmatprep.subr.bf16.mxu0 0
      %1029 = vmatpush1.bf16.msra.mxu0 %v1010
      %1030 = vmatprep.subr.bf16.mxu0 0
      %1031 = vmatpush1.bf16.msra.mxu0 %v1011
      %1032 = vmatprep.subr.bf16.mxu0 0
      %1033 = vmatpush1.bf16.msra.mxu0 %v1012
      %1034 = vmatprep.subr.bf16.mxu0 0
      %1035 = vmatpush1.bf16.msra.mxu0 %v1013
      %1036 = vmatprep.subr.bf16.mxu0 0
      %1037 = vmatpush1.bf16.msra.mxu0 %v1014
      %1038 = vmatprep.subr.bf16.mxu0 0
      %1039 = vmatpush1.bf16.msra.mxu0 %v1015
      %1040 = vmatprep.subr.bf16.mxu0 0
      %1041 = vmatpush1.bf16.msra.mxu0 0
      %1042 = vmatprep.subr.bf16.mxu0 0
      %1043 = vmatpush1.bf16.msra.mxu0 0
      %1044 = vmatprep.subr.bf16.mxu0 0
      %1045 = vmatpush1.bf16.msra.mxu0 0
      %1046 = vmatprep.subr.bf16.mxu0 0
      %1047 = vmatpush1.bf16.msra.mxu0 0
      %1048 = vmatprep.subr.bf16.mxu0 0
      %1049 = vmatpush1.bf16.msra.mxu0 0
      %1050 = vmatprep.subr.bf16.mxu0 0
      %1051 = vmatpush1.bf16.msra.mxu0 0
      %1052 = vmatprep.subr.bf16.mxu0 0
      %1053 = vmatpush1.bf16.msra.mxu0 0
      %1054 = vmatprep.subr.bf16.mxu0 0
      %1055 = vmatpush1.bf16.msra.mxu0 0
      %1056 = vmatprep.mubr.bf16.mxu0 0
      %1057 = vmatmul.mubr.bf16.gmra.mrb[0].mxu0 %v433
      %v1058 = vpop.f32.mrb[0].mxu0
      %v1059 = vadd.f32 %v762, %v1058
      %v1060 = vpop.f32.mrb[0].mxu0
      %v1061 = vpop.f32.mrb[0].mxu0
      %v1062 = vadd.f32 %v765, %v1061
      %v1063 = vpop.f32.mrb[0].mxu0
      %1064 = vmatprep.mubr.bf16.mxu0 0
      %1065 = vmatmul.mubr.bf16.gmra.mrb[0].mxu0 %v434
      %v1066 = vpop.f32.mrb[0].mxu0
      %v1067 = vadd.f32 %v770, %v1066
      %v1068 = vpop.f32.mrb[0].mxu0
      %v1069 = vpop.f32.mrb[0].mxu0
      %v1070 = vadd.f32 %v773, %v1069
      %v1071 = vpop.f32.mrb[0].mxu0
      %1072 = vmatprep.mubr.bf16.mxu0 0
      %1073 = vmatmul.mubr.bf16.gmra.mrb[0].mxu0 %v435
      %v1074 = vpop.f32.mrb[0].mxu0
      %v1075 = vadd.f32 %v778, %v1074
      %v1076 = vpop.f32.mrb[0].mxu0
      %v1077 = vpop.f32.mrb[0].mxu0
      %v1078 = vadd.f32 %v781, %v1077
      %v1079 = vpop.f32.mrb[0].mxu0
      %1080 = vmatprep.mubr.bf16.mxu0 0
      %1081 = vmatmul.mubr.bf16.gmra.mrb[0].mxu0 %v436
      %v1082 = vpop.f32.mrb[0].mxu0
      %v1083 = vadd.f32 %v786, %v1082
      %v1084 = vpop.f32.mrb[0].mxu0
      %v1085 = vpop.f32.mrb[0].mxu0
      %v1086 = vadd.f32 %v789, %v1085
      %v1087 = vpop.f32.mrb[0].mxu0
      %1088 = vmatprep.mubr.bf16.mxu0 0
      %1089 = vmatmul.mubr.bf16.gmra.mrb[0].mxu0 %v437
      %v1090 = vpop.f32.mrb[0].mxu0
      %v1091 = vadd.f32 %v794, %v1090
      %v1092 = vpop.f32.mrb[0].mxu0
      %v1093 = vpop.f32.mrb[0].mxu0
      %v1094 = vadd.f32 %v797, %v1093
      %v1095 = vpop.f32.mrb[0].mxu0
      %1096 = vmatprep.mubr.bf16.mxu0 0
      %1097 = vmatmul.mubr.bf16.gmra.mrb[0].mxu0 %v438
      %v1098 = vpop.f32.mrb[0].mxu0
      %v1099 = vadd.f32 %v802, %v1098
      %v1100 = vpop.f32.mrb[0].mxu0
      %v1101 = vpop.f32.mrb[0].mxu0
      %v1102 = vadd.f32 %v805, %v1101
      %v1103 = vpop.f32.mrb[0].mxu0
      %1104 = vmatprep.mubr.bf16.mxu0 0
      %1105 = vmatmul.mubr.bf16.gmra.mrb[0].mxu0 %v439
      %v1106 = vpop.f32.mrb[0].mxu0
      %v1107 = vadd.f32 %v810, %v1106
      %v1108 = vpop.f32.mrb[0].mxu0
      %v1109 = vpop.f32.mrb[0].mxu0
      %v1110 = vadd.f32 %v813, %v1109
      %v1111 = vpop.f32.mrb[0].mxu0
      %1112 = vmatprep.mubr.bf16.mxu0 0
      %1113 = vmatmul.mubr.bf16.gmra.mrb[0].mxu0 %v440
      %v1114 = vpop.f32.mrb[0].mxu0
      %v1115 = vadd.f32 %v818, %v1114
      %v1116 = vpop.f32.mrb[0].mxu0
      %v1117 = vpop.f32.mrb[0].mxu0
      %v1118 = vadd.f32 %v821, %v1117
      %v1119 = vpop.f32.mrb[0].mxu0
      %1120 = vmatprep.mubr.bf16.mxu0 0
      %1121 = vmatmul.mubr.bf16.gmra.mrb[0].mxu0 %v441
      %v1122 = vpop.f32.mrb[0].mxu0
      %v1123 = vadd.f32 %v826, %v1122
      %v1124 = vpop.f32.mrb[0].mxu0
      %v1125 = vpop.f32.mrb[0].mxu0
      %v1126 = vadd.f32 %v829, %v1125
      %v1127 = vpop.f32.mrb[0].mxu0
      %1128 = vmatprep.mubr.bf16.mxu0 0
      %1129 = vmatmul.mubr.bf16.gmra.mrb[0].mxu0 %v442
      %v1130 = vpop.f32.mrb[0].mxu0
      %v1131 = vadd.f32 %v834, %v1130
      %v1132 = vpop.f32.mrb[0].mxu0
      %v1133 = vpop.f32.mrb[0].mxu0
      %v1134 = vadd.f32 %v837, %v1133
      %v1135 = vpop.f32.mrb[0].mxu0
      %1136 = vmatprep.mubr.bf16.mxu0 0
      %1137 = vmatmul.mubr.bf16.gmra.mrb[0].mxu0 %v443
      %v1138 = vpop.f32.mrb[0].mxu0
      %v1139 = vadd.f32 %v842, %v1138
      %v1140 = vpop.f32.mrb[0].mxu0
      %v1141 = vpop.f32.mrb[0].mxu0
      %v1142 = vadd.f32 %v845, %v1141
      %v1143 = vpop.f32.mrb[0].mxu0
      %1144 = vmatprep.mubr.bf16.mxu0 0
      %1145 = vmatmul.mubr.bf16.gmra.mrb[0].mxu0 %v444
      %v1146 = vpop.f32.mrb[0].mxu0
      %v1147 = vadd.f32 %v850, %v1146
      %v1148 = vpop.f32.mrb[0].mxu0
      %v1149 = vpop.f32.mrb[0].mxu0
      %v1150 = vadd.f32 %v853, %v1149
      %v1151 = vpop.f32.mrb[0].mxu0
      %1152 = vmatprep.mubr.bf16.mxu0 0
      %1153 = vmatmul.mubr.bf16.gmra.mrb[0].mxu0 %v445
      %v1154 = vpop.f32.mrb[0].mxu0
      %v1155 = vadd.f32 %v858, %v1154
      %v1156 = vpop.f32.mrb[0].mxu0
      %v1157 = vpop.f32.mrb[0].mxu0
      %v1158 = vadd.f32 %v861, %v1157
      %v1159 = vpop.f32.mrb[0].mxu0
      %1160 = vmatprep.mubr.bf16.mxu0 0
      %1161 = vmatmul.mubr.bf16.gmra.mrb[0].mxu0 %v446
      %v1162 = vpop.f32.mrb[0].mxu0
      %v1163 = vadd.f32 %v866, %v1162
      %v1164 = vpop.f32.mrb[0].mxu0
      %v1165 = vpop.f32.mrb[0].mxu0
      %v1166 = vadd.f32 %v869, %v1165
      %v1167 = vpop.f32.mrb[0].mxu0
      %1168 = vmatprep.mubr.bf16.mxu0 0
      %1169 = vmatmul.mubr.bf16.gmra.mrb[0].mxu0 %v447
      %v1170 = vpop.f32.mrb[0].mxu0
      %v1171 = vadd.f32 %v874, %v1170
      %v1172 = vpop.f32.mrb[0].mxu0
      %v1173 = vpop.f32.mrb[0].mxu0
      %v1174 = vadd.f32 %v877, %v1173
      %v1175 = vpop.f32.mrb[0].mxu0
      %1176 = vmatprep.mubr.bf16.mxu0 0
      %1177 = vmatmul.mubr.bf16.gmra.mrb[0].mxu0 %v448
      %v1178 = vpop.f32.mrb[0].mxu0
      %v1179 = vadd.f32 %v882, %v1178
      %v1180 = vpop.f32.mrb[0].mxu0
      %v1181 = vpop.f32.mrb[0].mxu0
      %v1182 = vadd.f32 %v885, %v1181
      %v1183 = vpop.f32.mrb[0].mxu0
      %1184 = vmatprep.mubr.bf16.mxu0 0
      %1185 = vmatmul.mubr.bf16.gmra.mrb[0].mxu0 %v449
      %v1186 = vpop.f32.mrb[0].mxu0
      %v1187 = vadd.f32 %v890, %v1186
      %v1188 = vpop.f32.mrb[0].mxu0
      %v1189 = vpop.f32.mrb[0].mxu0
      %v1190 = vadd.f32 %v893, %v1189
      %v1191 = vpop.f32.mrb[0].mxu0
      %1192 = vmatprep.mubr.bf16.mxu0 0
      %1193 = vmatmul.mubr.bf16.gmra.mrb[0].mxu0 %v450
      %v1194 = vpop.f32.mrb[0].mxu0
      %v1195 = vadd.f32 %v898, %v1194
      %v1196 = vpop.f32.mrb[0].mxu0
      %v1197 = vpop.f32.mrb[0].mxu0
      %v1198 = vadd.f32 %v901, %v1197
      %v1199 = vpop.f32.mrb[0].mxu0
      %1200 = vmatprep.mubr.bf16.mxu0 0
      %1201 = vmatmul.mubr.bf16.gmra.mrb[0].mxu0 %v451
      %v1202 = vpop.f32.mrb[0].mxu0
      %v1203 = vadd.f32 %v906, %v1202
      %v1204 = vpop.f32.mrb[0].mxu0
      %v1205 = vpop.f32.mrb[0].mxu0
      %v1206 = vadd.f32 %v909, %v1205
      %v1207 = vpop.f32.mrb[0].mxu0
      %1208 = vmatprep.mubr.bf16.mxu0 0
      %1209 = vmatmul.mubr.bf16.gmra.mrb[0].mxu0 %v452
      %v1210 = vpop.f32.mrb[0].mxu0
      %v1211 = vadd.f32 %v914, %v1210
      %v1212 = vpop.f32.mrb[0].mxu0
      %v1213 = vpop.f32.mrb[0].mxu0
      %v1214 = vadd.f32 %v917, %v1213
      %v1215 = vpop.f32.mrb[0].mxu0
      %1216 = vmatprep.mubr.bf16.mxu0 0
      %1217 = vmatmul.mubr.bf16.gmra.mrb[0].mxu0 %v453
      %v1218 = vpop.f32.mrb[0].mxu0
      %v1219 = vadd.f32 %v922, %v1218
      %v1220 = vpop.f32.mrb[0].mxu0
      %v1221 = vpop.f32.mrb[0].mxu0
      %v1222 = vadd.f32 %v925, %v1221
      %v1223 = vpop.f32.mrb[0].mxu0
      %1224 = vmatprep.mubr.bf16.mxu0 0
      %1225 = vmatmul.mubr.bf16.gmra.mrb[0].mxu0 %v454
      %v1226 = vpop.f32.mrb[0].mxu0
      %v1227 = vadd.f32 %v930, %v1226
      %v1228 = vpop.f32.mrb[0].mxu0
      %v1229 = vpop.f32.mrb[0].mxu0
      %v1230 = vadd.f32 %v933, %v1229
      %v1231 = vpop.f32.mrb[0].mxu0
      %1232 = vmatprep.mubr.bf16.mxu0 0
      %1233 = vmatmul.mubr.bf16.gmra.mrb[0].mxu0 %v455
      %v1234 = vpop.f32.mrb[0].mxu0
      %v1235 = vadd.f32 %v938, %v1234
      %v1236 = vpop.f32.mrb[0].mxu0
      %v1237 = vpop.f32.mrb[0].mxu0
      %v1238 = vadd.f32 %v941, %v1237
      %v1239 = vpop.f32.mrb[0].mxu0
      %1240 = vmatprep.mubr.bf16.mxu0 0
      %1241 = vmatmul.mubr.bf16.gmra.mrb[0].mxu0 %v456
      %v1242 = vpop.f32.mrb[0].mxu0
      %v1243 = vadd.f32 %v946, %v1242
      %v1244 = vpop.f32.mrb[0].mxu0
      %v1245 = vpop.f32.mrb[0].mxu0
      %v1246 = vadd.f32 %v949, %v1245
      %v1247 = vpop.f32.mrb[0].mxu0
      %1248 = vdwg.mxu0
      %v1249 = vld [vmem:[%s246] sm:$0xe]
      %s1250 = scalar_lea.vmem %s1, 128
      %v1251 = vld [vmem:[%s1250] sm:$0xf]
      %v1252 = vld [vmem:[%s1250 + $0x4] sm:$0xf]
      %v1253 = vld [vmem:[%s1250 + $0x8] sm:$0xf]
      %v1254 = vld [vmem:[%s1250 + $0xc] sm:$0xf]
      %v1255 = vld [vmem:[%s1250 + $0x10] sm:$0xf]
      %v1256 = vld [vmem:[%s1250 + $0x14] sm:$0xf]
      %v1257 = vld [vmem:[%s1250 + $0x18] sm:$0xf]
      %v1258 = vld [vmem:[%s1250 + $0x1c] sm:$0xf]
      %v1259 = vld [vmem:[%s1250 + $0x20] sm:$0xf]
      %v1260 = vld [vmem:[%s1250 + $0x24] sm:$0xf]
      %v1261 = vld [vmem:[%s1250 + $0x28] sm:$0xf]
      %v1262 = vld [vmem:[%s1250 + $0x2c] sm:$0xf]
      %v1263 = vld [vmem:[%s1250 + $0x30] sm:$0xf]
      %v1264 = vld [vmem:[%s1250 + $0x34] sm:$0xf]
      %v1265 = vld [vmem:[%s1250 + $0x38] sm:$0xf]
      %v1266 = vld [vmem:[%s1250 + $0x3c] sm:$0xf]
      %v1268 = vunpack.c.l.b16 %v1249
      %v1269 = vpack.c.b16 %v385, %v1268
      %vm1270 = vcmask 1046528
      %v1271 = vrot.slane %v1269, 1
      %v1272 = vrot.slane %v434, 1
      %v1273 = vsel %vm1270, %v1271, %v1272
      %v1274 = vrot.slane %v435, 1
      %v1275 = vsel %vm1270, %v1272, %v1274
      %v1276 = vrot.slane %v436, 1
      %v1277 = vsel %vm1270, %v1274, %v1276
      %v1278 = vrot.slane %v437, 1
      %v1279 = vsel %vm1270, %v1276, %v1278
      %v1280 = vrot.slane %v438, 1
      %v1281 = vsel %vm1270, %v1278, %v1280
      %v1282 = vrot.slane %v439, 1
      %v1283 = vsel %vm1270, %v1280, %v1282
      %v1284 = vrot.slane %v440, 1
      %v1285 = vsel %vm1270, %v1282, %v1284
      %v1286 = vrot.slane %v441, 1
      %v1287 = vsel %vm1270, %v1284, %v1286
      %v1288 = vrot.slane %v442, 1
      %v1289 = vsel %vm1270, %v1286, %v1288
      %v1290 = vrot.slane %v443, 1
      %v1291 = vsel %vm1270, %v1288, %v1290
      %v1292 = vrot.slane %v444, 1
      %v1293 = vsel %vm1270, %v1290, %v1292
      %v1294 = vrot.slane %v445, 1
      %v1295 = vsel %vm1270, %v1292, %v1294
      %v1296 = vrot.slane %v446, 1
      %v1297 = vsel %vm1270, %v1294, %v1296
      %v1298 = vrot.slane %v447, 1
      %v1299 = vsel %vm1270, %v1296, %v1298
      %v1300 = vrot.slane %v448, 1
      %v1301 = vsel %vm1270, %v1298, %v1300
      %v1302 = vrot.slane %v449, 1
      %v1303 = vsel %vm1270, %v1300, %v1302
      %v1304 = vrot.slane %v450, 1
      %v1305 = vsel %vm1270, %v1302, %v1304
      %v1306 = vrot.slane %v451, 1
      %v1307 = vsel %vm1270, %v1304, %v1306
      %v1308 = vrot.slane %v452, 1
      %v1309 = vsel %vm1270, %v1306, %v1308
      %v1310 = vrot.slane %v453, 1
      %v1311 = vsel %vm1270, %v1308, %v1310
      %v1312 = vrot.slane %v454, 1
      %v1313 = vsel %vm1270, %v1310, %v1312
      %v1314 = vrot.slane %v455, 1
      %v1315 = vsel %vm1270, %v1312, %v1314
      %v1316 = vrot.slane %v456, 1
      %v1317 = vsel %vm1270, %v1314, %v1316
      %v1318 = vrot.slane %v457, 1
      %v1319 = vsel %vm1270, %v1316, %v1318
      %v1360 = vunpack.c.l.b16 %v1251
      %v1361 = vunpack.c.l.b16 %v1252
      %v1362 = vunpack.c.l.b16 %v1253
      %v1363 = vunpack.c.l.b16 %v1254
      %v1364 = vunpack.c.l.b16 %v1255
      %v1365 = vunpack.c.l.b16 %v1256
      %v1366 = vunpack.c.l.b16 %v1257
      %v1367 = vunpack.c.l.b16 %v1258
      %v1368 = vunpack.c.l.b16 %v1259
      %v1369 = vunpack.c.l.b16 %v1260
      %v1370 = vunpack.c.l.b16 %v1261
      %v1371 = vunpack.c.l.b16 %v1262
      %v1372 = vunpack.c.l.b16 %v1263
      %v1373 = vunpack.c.l.b16 %v1264
      %v1374 = vunpack.c.l.b16 %v1265
      %v1375 = vunpack.c.l.b16 %v1266
      %v1376 = vpack.c.b16 %v1361, %v1360
      %v1377 = vpack.c.b16 %v1363, %v1362
      %v1378 = vpack.c.b16 %v1365, %v1364
      %v1379 = vpack.c.b16 %v1367, %v1366
      %v1380 = vpack.c.b16 %v1369, %v1368
      %v1381 = vpack.c.b16 %v1371, %v1370
      %v1382 = vpack.c.b16 %v1373, %v1372
      %v1383 = vpack.c.b16 %v1375, %v1374
      %1392 = vmatprep.subr.bf16.mxu0 0
      %1393 = vmatpush1.bf16.msra.mxu0 %v1376
      %1394 = vmatprep.subr.bf16.mxu0 0
      %1395 = vmatpush1.bf16.msra.mxu0 %v1377
      %1396 = vmatprep.subr.bf16.mxu0 0
      %1397 = vmatpush1.bf16.msra.mxu0 %v1378
      %1398 = vmatprep.subr.bf16.mxu0 0
      %1399 = vmatpush1.bf16.msra.mxu0 %v1379
      %1400 = vmatprep.subr.bf16.mxu0 0
      %1401 = vmatpush1.bf16.msra.mxu0 %v1380
      %1402 = vmatprep.subr.bf16.mxu0 0
      %1403 = vmatpush1.bf16.msra.mxu0 %v1381
      %1404 = vmatprep.subr.bf16.mxu0 0
      %1405 = vmatpush1.bf16.msra.mxu0 %v1382
      %1406 = vmatprep.subr.bf16.mxu0 0
      %1407 = vmatpush1.bf16.msra.mxu0 %v1383
      %1408 = vmatprep.subr.bf16.mxu0 0
      %1409 = vmatpush1.bf16.msra.mxu0 0
      %1410 = vmatprep.subr.bf16.mxu0 0
      %1411 = vmatpush1.bf16.msra.mxu0 0
      %1412 = vmatprep.subr.bf16.mxu0 0
      %1413 = vmatpush1.bf16.msra.mxu0 0
      %1414 = vmatprep.subr.bf16.mxu0 0
      %1415 = vmatpush1.bf16.msra.mxu0 0
      %1416 = vmatprep.subr.bf16.mxu0 0
      %1417 = vmatpush1.bf16.msra.mxu0 0
      %1418 = vmatprep.subr.bf16.mxu0 0
      %1419 = vmatpush1.bf16.msra.mxu0 0
      %1420 = vmatprep.subr.bf16.mxu0 0
      %1421 = vmatpush1.bf16.msra.mxu0 0
      %1422 = vmatprep.subr.bf16.mxu0 0
      %1423 = vmatpush1.bf16.msra.mxu0 0
      %1424 = vmatprep.mubr.bf16.mxu0 0
      %1425 = vmatmul.mubr.bf16.gmra.mrb[0].mxu0 %v1273
      %v1426 = vpop.f32.mrb[0].mxu0
      %v1427 = vadd.f32 0.0, %v1426
      %v1428 = vpop.f32.mrb[0].mxu0
      %v1429 = vpop.f32.mrb[0].mxu0
      %v1430 = vadd.f32 0.0, %v1429
      %v1431 = vpop.f32.mrb[0].mxu0
      %1432 = vmatprep.mubr.bf16.mxu0 0
      %1433 = vmatmul.mubr.bf16.gmra.mrb[0].mxu0 %v1275
      %v1434 = vpop.f32.mrb[0].mxu0
      %v1435 = vadd.f32 0.0, %v1434
      %v1436 = vpop.f32.mrb[0].mxu0
      %v1437 = vpop.f32.mrb[0].mxu0
      %v1438 = vadd.f32 0.0, %v1437
      %v1439 = vpop.f32.mrb[0].mxu0
      %1440 = vmatprep.mubr.bf16.mxu0 0
      %1441 = vmatmul.mubr.bf16.gmra.mrb[0].mxu0 %v1277
      %v1442 = vpop.f32.mrb[0].mxu0
      %v1443 = vadd.f32 0.0, %v1442
      %v1444 = vpop.f32.mrb[0].mxu0
      %v1445 = vpop.f32.mrb[0].mxu0
      %v1446 = vadd.f32 0.0, %v1445
      %v1447 = vpop.f32.mrb[0].mxu0
      %1448 = vmatprep.mubr.bf16.mxu0 0
      %1449 = vmatmul.mubr.bf16.gmra.mrb[0].mxu0 %v1279
      %v1450 = vpop.f32.mrb[0].mxu0
      %v1451 = vadd.f32 0.0, %v1450
      %v1452 = vpop.f32.mrb[0].mxu0
      %v1453 = vpop.f32.mrb[0].mxu0
      %v1454 = vadd.f32 0.0, %v1453
      %v1455 = vpop.f32.mrb[0].mxu0
      %1456 = vmatprep.mubr.bf16.mxu0 0
      %1457 = vmatmul.mubr.bf16.gmra.mrb[0].mxu0 %v1281
      %v1458 = vpop.f32.mrb[0].mxu0
      %v1459 = vadd.f32 0.0, %v1458
      %v1460 = vpop.f32.mrb[0].mxu0
      %v1461 = vpop.f32.mrb[0].mxu0
      %v1462 = vadd.f32 0.0, %v1461
      %v1463 = vpop.f32.mrb[0].mxu0
      %1464 = vmatprep.mubr.bf16.mxu0 0
      %1465 = vmatmul.mubr.bf16.gmra.mrb[0].mxu0 %v1283
      %v1466 = vpop.f32.mrb[0].mxu0
      %v1467 = vadd.f32 0.0, %v1466
      %v1468 = vpop.f32.mrb[0].mxu0
      %v1469 = vpop.f32.mrb[0].mxu0
      %v1470 = vadd.f32 0.0, %v1469
      %v1471 = vpop.f32.mrb[0].mxu0
      %1472 = vmatprep.mubr.bf16.mxu0 0
      %1473 = vmatmul.mubr.bf16.gmra.mrb[0].mxu0 %v1285
      %v1474 = vpop.f32.mrb[0].mxu0
      %v1475 = vadd.f32 0.0, %v1474
      %v1476 = vpop.f32.mrb[0].mxu0
      %v1477 = vpop.f32.mrb[0].mxu0
      %v1478 = vadd.f32 0.0, %v1477
      %v1479 = vpop.f32.mrb[0].mxu0
      %1480 = vmatprep.mubr.bf16.mxu0 0
      %1481 = vmatmul.mubr.bf16.gmra.mrb[0].mxu0 %v1287
      %v1482 = vpop.f32.mrb[0].mxu0
      %v1483 = vadd.f32 0.0, %v1482
      %v1484 = vpop.f32.mrb[0].mxu0
      %v1485 = vpop.f32.mrb[0].mxu0
      %v1486 = vadd.f32 0.0, %v1485
      %v1487 = vpop.f32.mrb[0].mxu0
      %1488 = vmatprep.mubr.bf16.mxu0 0
      %1489 = vmatmul.mubr.bf16.gmra.mrb[0].mxu0 %v1289
      %v1490 = vpop.f32.mrb[0].mxu0
      %v1491 = vadd.f32 0.0, %v1490
      %v1492 = vpop.f32.mrb[0].mxu0
      %v1493 = vpop.f32.mrb[0].mxu0
      %v1494 = vadd.f32 0.0, %v1493
      %v1495 = vpop.f32.mrb[0].mxu0
      %1496 = vmatprep.mubr.bf16.mxu0 0
      %1497 = vmatmul.mubr.bf16.gmra.mrb[0].mxu0 %v1291
      %v1498 = vpop.f32.mrb[0].mxu0
      %v1499 = vadd.f32 0.0, %v1498
      %v1500 = vpop.f32.mrb[0].mxu0
      %v1501 = vpop.f32.mrb[0].mxu0
      %v1502 = vadd.f32 0.0, %v1501
      %v1503 = vpop.f32.mrb[0].mxu0
      %1504 = vmatprep.mubr.bf16.mxu0 0
      %1505 = vmatmul.mubr.bf16.gmra.mrb[0].mxu0 %v1293
      %v1506 = vpop.f32.mrb[0].mxu0
      %v1507 = vadd.f32 0.0, %v1506
      %v1508 = vpop.f32.mrb[0].mxu0
      %v1509 = vpop.f32.mrb[0].mxu0
      %v1510 = vadd.f32 0.0, %v1509
      %v1511 = vpop.f32.mrb[0].mxu0
      %1512 = vmatprep.mubr.bf16.mxu0 0
      %1513 = vmatmul.mubr.bf16.gmra.mrb[0].mxu0 %v1295
      %v1514 = vpop.f32.mrb[0].mxu0
      %v1515 = vadd.f32 0.0, %v1514
      %v1516 = vpop.f32.mrb[0].mxu0
      %v1517 = vpop.f32.mrb[0].mxu0
      %v1518 = vadd.f32 0.0, %v1517
      %v1519 = vpop.f32.mrb[0].mxu0
      %1520 = vmatprep.mubr.bf16.mxu0 0
      %1521 = vmatmul.mubr.bf16.gmra.mrb[0].mxu0 %v1297
      %v1522 = vpop.f32.mrb[0].mxu0
      %v1523 = vadd.f32 0.0, %v1522
      %v1524 = vpop.f32.mrb[0].mxu0
      %v1525 = vpop.f32.mrb[0].mxu0
      %v1526 = vadd.f32 0.0, %v1525
      %v1527 = vpop.f32.mrb[0].mxu0
      %1528 = vmatprep.mubr.bf16.mxu0 0
      %1529 = vmatmul.mubr.bf16.gmra.mrb[0].mxu0 %v1299
      %v1530 = vpop.f32.mrb[0].mxu0
      %v1531 = vadd.f32 0.0, %v1530
      %v1532 = vpop.f32.mrb[0].mxu0
      %v1533 = vpop.f32.mrb[0].mxu0
      %v1534 = vadd.f32 0.0, %v1533
      %v1535 = vpop.f32.mrb[0].mxu0
      %1536 = vmatprep.mubr.bf16.mxu0 0
      %1537 = vmatmul.mubr.bf16.gmra.mrb[0].mxu0 %v1301
      %v1538 = vpop.f32.mrb[0].mxu0
      %v1539 = vadd.f32 0.0, %v1538
      %v1540 = vpop.f32.mrb[0].mxu0
      %v1541 = vpop.f32.mrb[0].mxu0
      %v1542 = vadd.f32 0.0, %v1541
      %v1543 = vpop.f32.mrb[0].mxu0
      %1544 = vmatprep.mubr.bf16.mxu0 0
      %1545 = vmatmul.mubr.bf16.gmra.mrb[0].mxu0 %v1303
      %v1546 = vpop.f32.mrb[0].mxu0
      %v1547 = vadd.f32 0.0, %v1546
      %v1548 = vpop.f32.mrb[0].mxu0
      %v1549 = vpop.f32.mrb[0].mxu0
      %v1550 = vadd.f32 0.0, %v1549
      %v1551 = vpop.f32.mrb[0].mxu0
      %1552 = vmatprep.mubr.bf16.mxu0 0
      %1553 = vmatmul.mubr.bf16.gmra.mrb[0].mxu0 %v1305
      %v1554 = vpop.f32.mrb[0].mxu0
      %v1555 = vadd.f32 0.0, %v1554
      %v1556 = vpop.f32.mrb[0].mxu0
      %v1557 = vpop.f32.mrb[0].mxu0
      %v1558 = vadd.f32 0.0, %v1557
      %v1559 = vpop.f32.mrb[0].mxu0
      %1560 = vmatprep.mubr.bf16.mxu0 0
      %1561 = vmatmul.mubr.bf16.gmra.mrb[0].mxu0 %v1307
      %v1562 = vpop.f32.mrb[0].mxu0
      %v1563 = vadd.f32 0.0, %v1562
      %v1564 = vpop.f32.mrb[0].mxu0
      %v1565 = vpop.f32.mrb[0].mxu0
      %v1566 = vadd.f32 0.0, %v1565
      %v1567 = vpop.f32.mrb[0].mxu0
      %1568 = vmatprep.mubr.bf16.mxu0 0
      %1569 = vmatmul.mubr.bf16.gmra.mrb[0].mxu0 %v1309
      %v1570 = vpop.f32.mrb[0].mxu0
      %v1571 = vadd.f32 0.0, %v1570
      %v1572 = vpop.f32.mrb[0].mxu0
      %v1573 = vpop.f32.mrb[0].mxu0
      %v1574 = vadd.f32 0.0, %v1573
      %v1575 = vpop.f32.mrb[0].mxu0
      %1576 = vmatprep.mubr.bf16.mxu0 0
      %1577 = vmatmul.mubr.bf16.gmra.mrb[0].mxu0 %v1311
      %v1578 = vpop.f32.mrb[0].mxu0
      %v1579 = vadd.f32 0.0, %v1578
      %v1580 = vpop.f32.mrb[0].mxu0
      %v1581 = vpop.f32.mrb[0].mxu0
      %v1582 = vadd.f32 0.0, %v1581
      %v1583 = vpop.f32.mrb[0].mxu0
      %1584 = vmatprep.mubr.bf16.mxu0 0
      %1585 = vmatmul.mubr.bf16.gmra.mrb[0].mxu0 %v1313
      %v1586 = vpop.f32.mrb[0].mxu0
      %v1587 = vadd.f32 0.0, %v1586
      %v1588 = vpop.f32.mrb[0].mxu0
      %v1589 = vpop.f32.mrb[0].mxu0
      %v1590 = vadd.f32 0.0, %v1589
      %v1591 = vpop.f32.mrb[0].mxu0
      %1592 = vmatprep.mubr.bf16.mxu0 0
      %1593 = vmatmul.mubr.bf16.gmra.mrb[0].mxu0 %v1315
      %v1594 = vpop.f32.mrb[0].mxu0
      %v1595 = vadd.f32 0.0, %v1594
      %v1596 = vpop.f32.mrb[0].mxu0
      %v1597 = vpop.f32.mrb[0].mxu0
      %v1598 = vadd.f32 0.0, %v1597
      %v1599 = vpop.f32.mrb[0].mxu0
      %1600 = vmatprep.mubr.bf16.mxu0 0
      %1601 = vmatmul.mubr.bf16.gmra.mrb[0].mxu0 %v1317
      %v1602 = vpop.f32.mrb[0].mxu0
      %v1603 = vadd.f32 0.0, %v1602
      %v1604 = vpop.f32.mrb[0].mxu0
      %v1605 = vpop.f32.mrb[0].mxu0
      %v1606 = vadd.f32 0.0, %v1605
      %v1607 = vpop.f32.mrb[0].mxu0
      %1608 = vmatprep.mubr.bf16.mxu0 0
      %1609 = vmatmul.mubr.bf16.gmra.mrb[0].mxu0 %v1319
      %v1610 = vpop.f32.mrb[0].mxu0
      %v1611 = vadd.f32 0.0, %v1610
      %v1612 = vpop.f32.mrb[0].mxu0
      %v1613 = vpop.f32.mrb[0].mxu0
      %v1614 = vadd.f32 0.0, %v1613
      %v1615 = vpop.f32.mrb[0].mxu0
      %1616 = vdwg.mxu0
      %v1617 = vadd.f32 %v1059, %v1427
      %v1618 = vadd.f32 %v1062, %v1430
      %v1619 = vadd.f32 %v1067, %v1435
      %v1620 = vadd.f32 %v1070, %v1438
      %v1621 = vadd.f32 %v1075, %v1443
      %v1622 = vadd.f32 %v1078, %v1446
      %v1623 = vadd.f32 %v1083, %v1451
      %v1624 = vadd.f32 %v1086, %v1454
      %v1625 = vadd.f32 %v1091, %v1459
      %v1626 = vadd.f32 %v1094, %v1462
      %v1627 = vadd.f32 %v1099, %v1467
      %v1628 = vadd.f32 %v1102, %v1470
      %v1629 = vadd.f32 %v1107, %v1475
      %v1630 = vadd.f32 %v1110, %v1478
      %v1631 = vadd.f32 %v1115, %v1483
      %v1632 = vadd.f32 %v1118, %v1486
      %v1633 = vadd.f32 %v1123, %v1491
      %v1634 = vadd.f32 %v1126, %v1494
      %v1635 = vadd.f32 %v1131, %v1499
      %v1636 = vadd.f32 %v1134, %v1502
      %v1637 = vadd.f32 %v1139, %v1507
      %v1638 = vadd.f32 %v1142, %v1510
      %v1639 = vadd.f32 %v1147, %v1515
      %v1640 = vadd.f32 %v1150, %v1518
      %v1641 = vadd.f32 %v1155, %v1523
      %v1642 = vadd.f32 %v1158, %v1526
      %v1643 = vadd.f32 %v1163, %v1531
      %v1644 = vadd.f32 %v1166, %v1534
      %v1645 = vadd.f32 %v1171, %v1539
      %v1646 = vadd.f32 %v1174, %v1542
      %v1647 = vadd.f32 %v1179, %v1547
      %v1648 = vadd.f32 %v1182, %v1550
      %v1649 = vadd.f32 %v1187, %v1555
      %v1650 = vadd.f32 %v1190, %v1558
      %v1651 = vadd.f32 %v1195, %v1563
      %v1652 = vadd.f32 %v1198, %v1566
      %v1653 = vadd.f32 %v1203, %v1571
      %v1654 = vadd.f32 %v1206, %v1574
      %v1655 = vadd.f32 %v1211, %v1579
      %v1656 = vadd.f32 %v1214, %v1582
      %v1657 = vadd.f32 %v1219, %v1587
      %v1658 = vadd.f32 %v1222, %v1590
      %v1659 = vadd.f32 %v1227, %v1595
      %v1660 = vadd.f32 %v1230, %v1598
      %v1661 = vadd.f32 %v1235, %v1603
      %v1662 = vadd.f32 %v1238, %v1606
      %v1663 = vadd.f32 %v1243, %v1611
      %v1664 = vadd.f32 %v1246, %v1614
      %v1665 = vld [vmem:[%s246 + $0xc] sm:$0xf]
      %v1666 = vld [vmem:[%s246 + $0x10] sm:$0xf]
      %v1667 = vld [vmem:[%s246 + $0x14] sm:$0xf]
      %v1668 = vld [vmem:[%s246 + $0x18] sm:$0xf]
      %v1669 = vld [vmem:[%s246 + $0x1c] sm:$0xf]
      %v1670 = vld [vmem:[%s246 + $0x20] sm:$0xf]
      %v1671 = vld [vmem:[%s246 + $0x24] sm:$0xf]
      %v1672 = vld [vmem:[%s246 + $0x28] sm:$0xf]
      %v1673 = vld [vmem:[%s246 + $0x2c] sm:$0xf]
      %v1674 = vld [vmem:[%s246 + $0x30] sm:$0xf]
      %v1675 = vld [vmem:[%s246 + $0x34] sm:$0xf]
      %v1676 = vld [vmem:[%s246 + $0x38] sm:$0xf]
      %v1677 = vld [vmem:[%s246 + $0x3c] sm:$0xf]
      %v1678 = vld [vmem:[%s246 + $0x40] sm:$0xf]
      %v1679 = vld [vmem:[%s246 + $0x44] sm:$0xf]
      %v1680 = vld [vmem:[%s246 + $0x48] sm:$0xf]
      %v1681 = vld [vmem:[%s246 + $0x4c] sm:$0xf]
      %v1682 = vld [vmem:[%s246 + $0x50] sm:$0xf]
      %v1683 = vld [vmem:[%s246 + $0x54] sm:$0xf]
      %v1684 = vld [vmem:[%s246 + $0x58] sm:$0xf]
      %v1685 = vld [vmem:[%s246 + $0x5c] sm:$0xf]
      %v1686 = vld [vmem:[%s246 + $0x60] sm:$0xf]
      %v1687 = vld [vmem:[%s246 + $0x64] sm:$0xf]
      %v1688 = vld [vmem:[%s246 + $0x68] sm:$0xf]
      %v1689 = vld [vmem:[%s246 + $0x6c] sm:$0xf]
      %v1690 = vld [vmem:[%s246 + $0x70] sm:$0xf]
      %v1691 = vld [vmem:[%s246 + $0x74] sm:$0xf]
      %v1692 = vld [vmem:[%s246 + $0x78] sm:$0xf]
      %v1693 = vld [vmem:[%s246 + $0x7c] sm:$0xf]
      %v1694 = vld [vmem:[%s246 + $0x80] sm:$0xf]
      %v1695 = vld [vmem:[%s246 + $0x84] sm:$0xf]
      %v1696 = vld [vmem:[%s246 + $0x88] sm:$0xf]
      %v1697 = vld [vmem:[%s246 + $0x8c] sm:$0xf]
      %v1698 = vld [vmem:[%s246 + $0x90] sm:$0xf]
      %v1699 = vld [vmem:[%s246 + $0x94] sm:$0xf]
      %v1700 = vld [vmem:[%s246 + $0x98] sm:$0xf]
      %v1701 = vld [vmem:[%s246 + $0x9c] sm:$0xf]
      %v1702 = vld [vmem:[%s246 + $0xa0] sm:$0xf]
      %v1703 = vld [vmem:[%s246 + $0xa4] sm:$0xf]
      %v1704 = vld [vmem:[%s246 + $0xa8] sm:$0xf]
      %v1705 = vld [vmem:[%s246 + $0xac] sm:$0xf]
      %v1706 = vld [vmem:[%s246 + $0xb0] sm:$0xf]
      %v1707 = vld [vmem:[%s246 + $0xb4] sm:$0xf]
      %v1708 = vld [vmem:[%s246 + $0xb8] sm:$0xf]
      %v1709 = vld [vmem:[%s246 + $0xbc] sm:$0xf]
      %v1710 = vld [vmem:[%s246 + $0xc0] sm:$0xf]
      %v1711 = vld [vmem:[%s246 + $0xc4] sm:$0xf]
      %v1712 = vld [vmem:[%s246 + $0xc8] sm:$0xf]
      %s1713 = scalar_lea.vmem %s1, 192
      %v1714 = vld [vmem:[%s1713] sm:$0xf]
      %v1715 = vld [vmem:[%s1713 + $0x4] sm:$0xf]
      %v1716 = vld [vmem:[%s1713 + $0x8] sm:$0xf]
      %v1717 = vld [vmem:[%s1713 + $0xc] sm:$0xf]
      %v1718 = vld [vmem:[%s1713 + $0x10] sm:$0xf]
      %v1719 = vld [vmem:[%s1713 + $0x14] sm:$0xf]
      %v1720 = vld [vmem:[%s1713 + $0x18] sm:$0xf]
      %v1721 = vld [vmem:[%s1713 + $0x1c] sm:$0xf]
      %v1722 = vld [vmem:[%s1713 + $0x20] sm:$0xf]
      %v1723 = vld [vmem:[%s1713 + $0x24] sm:$0xf]
      %v1724 = vld [vmem:[%s1713 + $0x28] sm:$0xf]
      %v1725 = vld [vmem:[%s1713 + $0x2c] sm:$0xf]
      %v1726 = vld [vmem:[%s1713 + $0x30] sm:$0xf]
      %v1727 = vld [vmem:[%s1713 + $0x34] sm:$0xf]
      %v1728 = vld [vmem:[%s1713 + $0x38] sm:$0xf]
      %v1729 = vld [vmem:[%s1713 + $0x3c] sm:$0xf]
      %v1778 = vunpack.c.l.b16 %v1665
      %v1779 = vunpack.c.l.b16 %v1666
      %v1780 = vunpack.c.l.b16 %v1667
      %v1781 = vunpack.c.l.b16 %v1668
      %v1782 = vunpack.c.l.b16 %v1669
      %v1783 = vunpack.c.l.b16 %v1670
      %v1784 = vunpack.c.l.b16 %v1671
      %v1785 = vunpack.c.l.b16 %v1672
      %v1786 = vunpack.c.l.b16 %v1673
      %v1787 = vunpack.c.l.b16 %v1674
      %v1788 = vunpack.c.l.b16 %v1675
      %v1789 = vunpack.c.l.b16 %v1676
      %v1790 = vunpack.c.l.b16 %v1677
      %v1791 = vunpack.c.l.b16 %v1678
      %v1792 = vunpack.c.l.b16 %v1679
      %v1793 = vunpack.c.l.b16 %v1680
      %v1794 = vunpack.c.l.b16 %v1681
      %v1795 = vunpack.c.l.b16 %v1682
      %v1796 = vunpack.c.l.b16 %v1683
      %v1797 = vunpack.c.l.b16 %v1684
      %v1798 = vunpack.c.l.b16 %v1685
      %v1799 = vunpack.c.l.b16 %v1686
      %v1800 = vunpack.c.l.b16 %v1687
      %v1801 = vunpack.c.l.b16 %v1688
      %v1802 = vunpack.c.l.b16 %v1689
      %v1803 = vunpack.c.l.b16 %v1690
      %v1804 = vunpack.c.l.b16 %v1691
      %v1805 = vunpack.c.l.b16 %v1692
      %v1806 = vunpack.c.l.b16 %v1693
      %v1807 = vunpack.c.l.b16 %v1694
      %v1808 = vunpack.c.l.b16 %v1695
      %v1809 = vunpack.c.l.b16 %v1696
      %v1810 = vunpack.c.l.b16 %v1697
      %v1811 = vunpack.c.l.b16 %v1698
      %v1812 = vunpack.c.l.b16 %v1699
      %v1813 = vunpack.c.l.b16 %v1700
      %v1814 = vunpack.c.l.b16 %v1701
      %v1815 = vunpack.c.l.b16 %v1702
      %v1816 = vunpack.c.l.b16 %v1703
      %v1817 = vunpack.c.l.b16 %v1704
      %v1818 = vunpack.c.l.b16 %v1705
      %v1819 = vunpack.c.l.b16 %v1706
      %v1820 = vunpack.c.l.b16 %v1707
      %v1821 = vunpack.c.l.b16 %v1708
      %v1822 = vunpack.c.l.b16 %v1709
      %v1823 = vunpack.c.l.b16 %v1710
      %v1824 = vunpack.c.l.b16 %v1711
      %v1825 = vunpack.c.l.b16 %v1712
      %v1826 = vpack.c.b16 %v1779, %v1778
      %v1827 = vpack.c.b16 %v1781, %v1780
      %v1828 = vpack.c.b16 %v1783, %v1782
      %v1829 = vpack.c.b16 %v1785, %v1784
      %v1830 = vpack.c.b16 %v1787, %v1786
      %v1831 = vpack.c.b16 %v1789, %v1788
      %v1832 = vpack.c.b16 %v1791, %v1790
      %v1833 = vpack.c.b16 %v1793, %v1792
      %v1834 = vpack.c.b16 %v1795, %v1794
      %v1835 = vpack.c.b16 %v1797, %v1796
      %v1836 = vpack.c.b16 %v1799, %v1798
      %v1837 = vpack.c.b16 %v1801, %v1800
      %v1838 = vpack.c.b16 %v1803, %v1802
      %v1839 = vpack.c.b16 %v1805, %v1804
      %v1840 = vpack.c.b16 %v1807, %v1806
      %v1841 = vpack.c.b16 %v1809, %v1808
      %v1842 = vpack.c.b16 %v1811, %v1810
      %v1843 = vpack.c.b16 %v1813, %v1812
      %v1844 = vpack.c.b16 %v1815, %v1814
      %v1845 = vpack.c.b16 %v1817, %v1816
      %v1846 = vpack.c.b16 %v1819, %v1818
      %v1847 = vpack.c.b16 %v1821, %v1820
      %v1848 = vpack.c.b16 %v1823, %v1822
      %v1849 = vpack.c.b16 %v1825, %v1824
      %v1890 = vunpack.c.l.b16 %v1714
      %v1891 = vunpack.c.l.b16 %v1715
      %v1892 = vunpack.c.l.b16 %v1716
      %v1893 = vunpack.c.l.b16 %v1717
      %v1894 = vunpack.c.l.b16 %v1718
      %v1895 = vunpack.c.l.b16 %v1719
      %v1896 = vunpack.c.l.b16 %v1720
      %v1897 = vunpack.c.l.b16 %v1721
      %v1898 = vunpack.c.l.b16 %v1722
      %v1899 = vunpack.c.l.b16 %v1723
      %v1900 = vunpack.c.l.b16 %v1724
      %v1901 = vunpack.c.l.b16 %v1725
      %v1902 = vunpack.c.l.b16 %v1726
      %v1903 = vunpack.c.l.b16 %v1727
      %v1904 = vunpack.c.l.b16 %v1728
      %v1905 = vunpack.c.l.b16 %v1729
      %v1906 = vpack.c.b16 %v1891, %v1890
      %v1907 = vpack.c.b16 %v1893, %v1892
      %v1908 = vpack.c.b16 %v1895, %v1894
      %v1909 = vpack.c.b16 %v1897, %v1896
      %v1910 = vpack.c.b16 %v1899, %v1898
      %v1911 = vpack.c.b16 %v1901, %v1900
      %v1912 = vpack.c.b16 %v1903, %v1902
      %v1913 = vpack.c.b16 %v1905, %v1904
      %1922 = vmatprep.subr.bf16.mxu0 0
      %1923 = vmatpush1.bf16.msra.mxu0 %v1906
      %1924 = vmatprep.subr.bf16.mxu0 0
      %1925 = vmatpush1.bf16.msra.mxu0 %v1907
      %1926 = vmatprep.subr.bf16.mxu0 0
      %1927 = vmatpush1.bf16.msra.mxu0 %v1908
      %1928 = vmatprep.subr.bf16.mxu0 0
      %1929 = vmatpush1.bf16.msra.mxu0 %v1909
      %1930 = vmatprep.subr.bf16.mxu0 0
      %1931 = vmatpush1.bf16.msra.mxu0 %v1910
      %1932 = vmatprep.subr.bf16.mxu0 0
      %1933 = vmatpush1.bf16.msra.mxu0 %v1911
      %1934 = vmatprep.subr.bf16.mxu0 0
      %1935 = vmatpush1.bf16.msra.mxu0 %v1912
      %1936 = vmatprep.subr.bf16.mxu0 0
      %1937 = vmatpush1.bf16.msra.mxu0 %v1913
      %1938 = vmatprep.subr.bf16.mxu0 0
      %1939 = vmatpush1.bf16.msra.mxu0 0
      %1940 = vmatprep.subr.bf16.mxu0 0
      %1941 = vmatpush1.bf16.msra.mxu0 0
      %1942 = vmatprep.subr.bf16.mxu0 0
      %1943 = vmatpush1.bf16.msra.mxu0 0
      %1944 = vmatprep.subr.bf16.mxu0 0
      %1945 = vmatpush1.bf16.msra.mxu0 0
      %1946 = vmatprep.subr.bf16.mxu0 0
      %1947 = vmatpush1.bf16.msra.mxu0 0
      %1948 = vmatprep.subr.bf16.mxu0 0
      %1949 = vmatpush1.bf16.msra.mxu0 0
      %1950 = vmatprep.subr.bf16.mxu0 0
      %1951 = vmatpush1.bf16.msra.mxu0 0
      %1952 = vmatprep.subr.bf16.mxu0 0
      %1953 = vmatpush1.bf16.msra.mxu0 0
      %1954 = vmatprep.mubr.bf16.mxu0 0
      %1955 = vmatmul.mubr.bf16.gmra.mrb[0].mxu0 %v1826
      %v1956 = vpop.f32.mrb[0].mxu0
      %v1957 = vadd.f32 0.0, %v1956
      %v1958 = vpop.f32.mrb[0].mxu0
      %v1959 = vpop.f32.mrb[0].mxu0
      %v1960 = vadd.f32 0.0, %v1959
      %v1961 = vpop.f32.mrb[0].mxu0
      %1962 = vmatprep.mubr.bf16.mxu0 0
      %1963 = vmatmul.mubr.bf16.gmra.mrb[0].mxu0 %v1827
      %v1964 = vpop.f32.mrb[0].mxu0
      %v1965 = vadd.f32 0.0, %v1964
      %v1966 = vpop.f32.mrb[0].mxu0
      %v1967 = vpop.f32.mrb[0].mxu0
      %v1968 = vadd.f32 0.0, %v1967
      %v1969 = vpop.f32.mrb[0].mxu0
      %1970 = vmatprep.mubr.bf16.mxu0 0
      %1971 = vmatmul.mubr.bf16.gmra.mrb[0].mxu0 %v1828
      %v1972 = vpop.f32.mrb[0].mxu0
      %v1973 = vadd.f32 0.0, %v1972
      %v1974 = vpop.f32.mrb[0].mxu0
      %v1975 = vpop.f32.mrb[0].mxu0
      %v1976 = vadd.f32 0.0, %v1975
      %v1977 = vpop.f32.mrb[0].mxu0
      %1978 = vmatprep.mubr.bf16.mxu0 0
      %1979 = vmatmul.mubr.bf16.gmra.mrb[0].mxu0 %v1829
      %v1980 = vpop.f32.mrb[0].mxu0
      %v1981 = vadd.f32 0.0, %v1980
      %v1982 = vpop.f32.mrb[0].mxu0
      %v1983 = vpop.f32.mrb[0].mxu0
      %v1984 = vadd.f32 0.0, %v1983
      %v1985 = vpop.f32.mrb[0].mxu0
      %1986 = vmatprep.mubr.bf16.mxu0 0
      %1987 = vmatmul.mubr.bf16.gmra.mrb[0].mxu0 %v1830
      %v1988 = vpop.f32.mrb[0].mxu0
      %v1989 = vadd.f32 0.0, %v1988
      %v1990 = vpop.f32.mrb[0].mxu0
      %v1991 = vpop.f32.mrb[0].mxu0
      %v1992 = vadd.f32 0.0, %v1991
      %v1993 = vpop.f32.mrb[0].mxu0
      %1994 = vmatprep.mubr.bf16.mxu0 0
      %1995 = vmatmul.mubr.bf16.gmra.mrb[0].mxu0 %v1831
      %v1996 = vpop.f32.mrb[0].mxu0
      %v1997 = vadd.f32 0.0, %v1996
      %v1998 = vpop.f32.mrb[0].mxu0
      %v1999 = vpop.f32.mrb[0].mxu0
      %v2000 = vadd.f32 0.0, %v1999
      %v2001 = vpop.f32.mrb[0].mxu0
      %2002 = vmatprep.mubr.bf16.mxu0 0
      %2003 = vmatmul.mubr.bf16.gmra.mrb[0].mxu0 %v1832
      %v2004 = vpop.f32.mrb[0].mxu0
      %v2005 = vadd.f32 0.0, %v2004
      %v2006 = vpop.f32.mrb[0].mxu0
      %v2007 = vpop.f32.mrb[0].mxu0
      %v2008 = vadd.f32 0.0, %v2007
      %v2009 = vpop.f32.mrb[0].mxu0
      %2010 = vmatprep.mubr.bf16.mxu0 0
      %2011 = vmatmul.mubr.bf16.gmra.mrb[0].mxu0 %v1833
      %v2012 = vpop.f32.mrb[0].mxu0
      %v2013 = vadd.f32 0.0, %v2012
      %v2014 = vpop.f32.mrb[0].mxu0
      %v2015 = vpop.f32.mrb[0].mxu0
      %v2016 = vadd.f32 0.0, %v2015
      %v2017 = vpop.f32.mrb[0].mxu0
      %2018 = vmatprep.mubr.bf16.mxu0 0
      %2019 = vmatmul.mubr.bf16.gmra.mrb[0].mxu0 %v1834
      %v2020 = vpop.f32.mrb[0].mxu0
      %v2021 = vadd.f32 0.0, %v2020
      %v2022 = vpop.f32.mrb[0].mxu0
      %v2023 = vpop.f32.mrb[0].mxu0
      %v2024 = vadd.f32 0.0, %v2023
      %v2025 = vpop.f32.mrb[0].mxu0
      %2026 = vmatprep.mubr.bf16.mxu0 0
      %2027 = vmatmul.mubr.bf16.gmra.mrb[0].mxu0 %v1835
      %v2028 = vpop.f32.mrb[0].mxu0
      %v2029 = vadd.f32 0.0, %v2028
      %v2030 = vpop.f32.mrb[0].mxu0
      %v2031 = vpop.f32.mrb[0].mxu0
      %v2032 = vadd.f32 0.0, %v2031
      %v2033 = vpop.f32.mrb[0].mxu0
      %2034 = vmatprep.mubr.bf16.mxu0 0
      %2035 = vmatmul.mubr.bf16.gmra.mrb[0].mxu0 %v1836
      %v2036 = vpop.f32.mrb[0].mxu0
      %v2037 = vadd.f32 0.0, %v2036
      %v2038 = vpop.f32.mrb[0].mxu0
      %v2039 = vpop.f32.mrb[0].mxu0
      %v2040 = vadd.f32 0.0, %v2039
      %v2041 = vpop.f32.mrb[0].mxu0
      %2042 = vmatprep.mubr.bf16.mxu0 0
      %2043 = vmatmul.mubr.bf16.gmra.mrb[0].mxu0 %v1837
      %v2044 = vpop.f32.mrb[0].mxu0
      %v2045 = vadd.f32 0.0, %v2044
      %v2046 = vpop.f32.mrb[0].mxu0
      %v2047 = vpop.f32.mrb[0].mxu0
      %v2048 = vadd.f32 0.0, %v2047
      %v2049 = vpop.f32.mrb[0].mxu0
      %2050 = vmatprep.mubr.bf16.mxu0 0
      %2051 = vmatmul.mubr.bf16.gmra.mrb[0].mxu0 %v1838
      %v2052 = vpop.f32.mrb[0].mxu0
      %v2053 = vadd.f32 0.0, %v2052
      %v2054 = vpop.f32.mrb[0].mxu0
      %v2055 = vpop.f32.mrb[0].mxu0
      %v2056 = vadd.f32 0.0, %v2055
      %v2057 = vpop.f32.mrb[0].mxu0
      %2058 = vmatprep.mubr.bf16.mxu0 0
      %2059 = vmatmul.mubr.bf16.gmra.mrb[0].mxu0 %v1839
      %v2060 = vpop.f32.mrb[0].mxu0
      %v2061 = vadd.f32 0.0, %v2060
      %v2062 = vpop.f32.mrb[0].mxu0
      %v2063 = vpop.f32.mrb[0].mxu0
      %v2064 = vadd.f32 0.0, %v2063
      %v2065 = vpop.f32.mrb[0].mxu0
      %2066 = vmatprep.mubr.bf16.mxu0 0
      %2067 = vmatmul.mubr.bf16.gmra.mrb[0].mxu0 %v1840
      %v2068 = vpop.f32.mrb[0].mxu0
      %v2069 = vadd.f32 0.0, %v2068
      %v2070 = vpop.f32.mrb[0].mxu0
      %v2071 = vpop.f32.mrb[0].mxu0
      %v2072 = vadd.f32 0.0, %v2071
      %v2073 = vpop.f32.mrb[0].mxu0
      %2074 = vmatprep.mubr.bf16.mxu0 0
      %2075 = vmatmul.mubr.bf16.gmra.mrb[0].mxu0 %v1841
      %v2076 = vpop.f32.mrb[0].mxu0
      %v2077 = vadd.f32 0.0, %v2076
      %v2078 = vpop.f32.mrb[0].mxu0
      %v2079 = vpop.f32.mrb[0].mxu0
      %v2080 = vadd.f32 0.0, %v2079
      %v2081 = vpop.f32.mrb[0].mxu0
      %2082 = vmatprep.mubr.bf16.mxu0 0
      %2083 = vmatmul.mubr.bf16.gmra.mrb[0].mxu0 %v1842
      %v2084 = vpop.f32.mrb[0].mxu0
      %v2085 = vadd.f32 0.0, %v2084
      %v2086 = vpop.f32.mrb[0].mxu0
      %v2087 = vpop.f32.mrb[0].mxu0
      %v2088 = vadd.f32 0.0, %v2087
      %v2089 = vpop.f32.mrb[0].mxu0
      %2090 = vmatprep.mubr.bf16.mxu0 0
      %2091 = vmatmul.mubr.bf16.gmra.mrb[0].mxu0 %v1843
      %v2092 = vpop.f32.mrb[0].mxu0
      %v2093 = vadd.f32 0.0, %v2092
      %v2094 = vpop.f32.mrb[0].mxu0
      %v2095 = vpop.f32.mrb[0].mxu0
      %v2096 = vadd.f32 0.0, %v2095
      %v2097 = vpop.f32.mrb[0].mxu0
      %2098 = vmatprep.mubr.bf16.mxu0 0
      %2099 = vmatmul.mubr.bf16.gmra.mrb[0].mxu0 %v1844
      %v2100 = vpop.f32.mrb[0].mxu0
      %v2101 = vadd.f32 0.0, %v2100
      %v2102 = vpop.f32.mrb[0].mxu0
      %v2103 = vpop.f32.mrb[0].mxu0
      %v2104 = vadd.f32 0.0, %v2103
      %v2105 = vpop.f32.mrb[0].mxu0
      %2106 = vmatprep.mubr.bf16.mxu0 0
      %2107 = vmatmul.mubr.bf16.gmra.mrb[0].mxu0 %v1845
      %v2108 = vpop.f32.mrb[0].mxu0
      %v2109 = vadd.f32 0.0, %v2108
      %v2110 = vpop.f32.mrb[0].mxu0
      %v2111 = vpop.f32.mrb[0].mxu0
      %v2112 = vadd.f32 0.0, %v2111
      %v2113 = vpop.f32.mrb[0].mxu0
      %2114 = vmatprep.mubr.bf16.mxu0 0
      %2115 = vmatmul.mubr.bf16.gmra.mrb[0].mxu0 %v1846
      %v2116 = vpop.f32.mrb[0].mxu0
      %v2117 = vadd.f32 0.0, %v2116
      %v2118 = vpop.f32.mrb[0].mxu0
      %v2119 = vpop.f32.mrb[0].mxu0
      %v2120 = vadd.f32 0.0, %v2119
      %v2121 = vpop.f32.mrb[0].mxu0
      %2122 = vmatprep.mubr.bf16.mxu0 0
      %2123 = vmatmul.mubr.bf16.gmra.mrb[0].mxu0 %v1847
      %v2124 = vpop.f32.mrb[0].mxu0
      %v2125 = vadd.f32 0.0, %v2124
      %v2126 = vpop.f32.mrb[0].mxu0
      %v2127 = vpop.f32.mrb[0].mxu0
      %v2128 = vadd.f32 0.0, %v2127
      %v2129 = vpop.f32.mrb[0].mxu0
      %2130 = vmatprep.mubr.bf16.mxu0 0
      %2131 = vmatmul.mubr.bf16.gmra.mrb[0].mxu0 %v1848
      %v2132 = vpop.f32.mrb[0].mxu0
      %v2133 = vadd.f32 0.0, %v2132
      %v2134 = vpop.f32.mrb[0].mxu0
      %v2135 = vpop.f32.mrb[0].mxu0
      %v2136 = vadd.f32 0.0, %v2135
      %v2137 = vpop.f32.mrb[0].mxu0
      %2138 = vmatprep.mubr.bf16.mxu0 0
      %2139 = vmatmul.mubr.bf16.gmra.mrb[0].mxu0 %v1849
      %v2140 = vpop.f32.mrb[0].mxu0
      %v2141 = vadd.f32 0.0, %v2140
      %v2142 = vpop.f32.mrb[0].mxu0
      %v2143 = vpop.f32.mrb[0].mxu0
      %v2144 = vadd.f32 0.0, %v2143
      %v2145 = vpop.f32.mrb[0].mxu0
      %2146 = vdwg.mxu0
      %v2147 = vadd.f32 %v1617, %v1957
      %v2148 = vadd.f32 %v1618, %v1960
      %v2149 = vadd.f32 %v1619, %v1965
      %v2150 = vadd.f32 %v1620, %v1968
      %v2151 = vadd.f32 %v1621, %v1973
      %v2152 = vadd.f32 %v1622, %v1976
      %v2153 = vadd.f32 %v1623, %v1981
      %v2154 = vadd.f32 %v1624, %v1984
      %v2155 = vadd.f32 %v1625, %v1989
      %v2156 = vadd.f32 %v1626, %v1992
      %v2157 = vadd.f32 %v1627, %v1997
      %v2158 = vadd.f32 %v1628, %v2000
      %v2159 = vadd.f32 %v1629, %v2005
      %v2160 = vadd.f32 %v1630, %v2008
      %v2161 = vadd.f32 %v1631, %v2013
      %v2162 = vadd.f32 %v1632, %v2016
      %v2163 = vadd.f32 %v1633, %v2021
      %v2164 = vadd.f32 %v1634, %v2024
      %v2165 = vadd.f32 %v1635, %v2029
      %v2166 = vadd.f32 %v1636, %v2032
      %v2167 = vadd.f32 %v1637, %v2037
      %v2168 = vadd.f32 %v1638, %v2040
      %v2169 = vadd.f32 %v1639, %v2045
      %v2170 = vadd.f32 %v1640, %v2048
      %v2171 = vadd.f32 %v1641, %v2053
      %v2172 = vadd.f32 %v1642, %v2056
      %v2173 = vadd.f32 %v1643, %v2061
      %v2174 = vadd.f32 %v1644, %v2064
      %v2175 = vadd.f32 %v1645, %v2069
      %v2176 = vadd.f32 %v1646, %v2072
      %v2177 = vadd.f32 %v1647, %v2077
      %v2178 = vadd.f32 %v1648, %v2080
      %v2179 = vadd.f32 %v1649, %v2085
      %v2180 = vadd.f32 %v1650, %v2088
      %v2181 = vadd.f32 %v1651, %v2093
      %v2182 = vadd.f32 %v1652, %v2096
      %v2183 = vadd.f32 %v1653, %v2101
      %v2184 = vadd.f32 %v1654, %v2104
      %v2185 = vadd.f32 %v1655, %v2109
      %v2186 = vadd.f32 %v1656, %v2112
      %v2187 = vadd.f32 %v1657, %v2117
      %v2188 = vadd.f32 %v1658, %v2120
      %v2189 = vadd.f32 %v1659, %v2125
      %v2190 = vadd.f32 %v1660, %v2128
      %v2191 = vadd.f32 %v1661, %v2133
      %v2192 = vadd.f32 %v1662, %v2136
      %v2193 = vadd.f32 %v1663, %v2141
      %v2194 = vadd.f32 %v1664, %v2144
      %v2195 = vld [vmem:[%s246 + $0xc] sm:$0xf]
      %v2196 = vld [vmem:[%s246 + $0x10] sm:$0xf]
      %v2197 = vld [vmem:[%s246 + $0x14] sm:$0xf]
      %v2198 = vld [vmem:[%s246 + $0x18] sm:$0xf]
      %v2199 = vld [vmem:[%s246 + $0x1c] sm:$0xf]
      %v2200 = vld [vmem:[%s246 + $0x20] sm:$0xf]
      %v2201 = vld [vmem:[%s246 + $0x24] sm:$0xf]
      %v2202 = vld [vmem:[%s246 + $0x28] sm:$0xf]
      %v2203 = vld [vmem:[%s246 + $0x2c] sm:$0xf]
      %v2204 = vld [vmem:[%s246 + $0x30] sm:$0xf]
      %v2205 = vld [vmem:[%s246 + $0x34] sm:$0xf]
      %v2206 = vld [vmem:[%s246 + $0x38] sm:$0xf]
      %v2207 = vld [vmem:[%s246 + $0x3c] sm:$0xf]
      %v2208 = vld [vmem:[%s246 + $0x40] sm:$0xf]
      %v2209 = vld [vmem:[%s246 + $0x44] sm:$0xf]
      %v2210 = vld [vmem:[%s246 + $0x48] sm:$0xf]
      %v2211 = vld [vmem:[%s246 + $0x4c] sm:$0xf]
      %v2212 = vld [vmem:[%s246 + $0x50] sm:$0xf]
      %v2213 = vld [vmem:[%s246 + $0x54] sm:$0xf]
      %v2214 = vld [vmem:[%s246 + $0x58] sm:$0xf]
      %v2215 = vld [vmem:[%s246 + $0x5c] sm:$0xf]
      %v2216 = vld [vmem:[%s246 + $0x60] sm:$0xf]
      %v2217 = vld [vmem:[%s246 + $0x64] sm:$0xf]
      %v2218 = vld [vmem:[%s246 + $0x68] sm:$0xf]
      %v2219 = vld [vmem:[%s246 + $0x6c] sm:$0xf]
      %v2220 = vld [vmem:[%s246 + $0x70] sm:$0xf]
      %v2221 = vld [vmem:[%s246 + $0x74] sm:$0xf]
      %v2222 = vld [vmem:[%s246 + $0x78] sm:$0xf]
      %v2223 = vld [vmem:[%s246 + $0x7c] sm:$0xf]
      %v2224 = vld [vmem:[%s246 + $0x80] sm:$0xf]
      %v2225 = vld [vmem:[%s246 + $0x84] sm:$0xf]
      %v2226 = vld [vmem:[%s246 + $0x88] sm:$0xf]
      %v2227 = vld [vmem:[%s246 + $0x8c] sm:$0xf]
      %v2228 = vld [vmem:[%s246 + $0x90] sm:$0xf]
      %v2229 = vld [vmem:[%s246 + $0x94] sm:$0xf]
      %v2230 = vld [vmem:[%s246 + $0x98] sm:$0xf]
      %v2231 = vld [vmem:[%s246 + $0x9c] sm:$0xf]
      %v2232 = vld [vmem:[%s246 + $0xa0] sm:$0xf]
      %v2233 = vld [vmem:[%s246 + $0xa4] sm:$0xf]
      %v2234 = vld [vmem:[%s246 + $0xa8] sm:$0xf]
      %v2235 = vld [vmem:[%s246 + $0xac] sm:$0xf]
      %v2236 = vld [vmem:[%s246 + $0xb0] sm:$0xf]
      %v2237 = vld [vmem:[%s246 + $0xb4] sm:$0xf]
      %v2238 = vld [vmem:[%s246 + $0xb8] sm:$0xf]
      %v2239 = vld [vmem:[%s246 + $0xbc] sm:$0xf]
      %v2240 = vld [vmem:[%s246 + $0xc0] sm:$0xf]
      %v2241 = vld [vmem:[%s246 + $0xc4] sm:$0xf]
      %v2242 = vld [vmem:[%s246 + $0xc8] sm:$0xf]
      %v2243 = vld [vmem:[%s246 + $0xcc] sm:$0x1]
      %s2244 = scalar_lea.vmem %s1, 256
      %v2245 = vld [vmem:[%s2244] sm:$0xf]
      %v2246 = vld [vmem:[%s2244 + $0x4] sm:$0xf]
      %v2247 = vld [vmem:[%s2244 + $0x8] sm:$0xf]
      %v2248 = vld [vmem:[%s2244 + $0xc] sm:$0xf]
      %v2249 = vld [vmem:[%s2244 + $0x10] sm:$0xf]
      %v2250 = vld [vmem:[%s2244 + $0x14] sm:$0xf]
      %v2251 = vld [vmem:[%s2244 + $0x18] sm:$0xf]
      %v2252 = vld [vmem:[%s2244 + $0x1c] sm:$0xf]
      %v2253 = vld [vmem:[%s2244 + $0x20] sm:$0xf]
      %v2254 = vld [vmem:[%s2244 + $0x24] sm:$0xf]
      %v2255 = vld [vmem:[%s2244 + $0x28] sm:$0xf]
      %v2256 = vld [vmem:[%s2244 + $0x2c] sm:$0xf]
      %v2257 = vld [vmem:[%s2244 + $0x30] sm:$0xf]
      %v2258 = vld [vmem:[%s2244 + $0x34] sm:$0xf]
      %v2259 = vld [vmem:[%s2244 + $0x38] sm:$0xf]
      %v2260 = vld [vmem:[%s2244 + $0x3c] sm:$0xf]
      %v2310 = vunpack.c.l.b16 %v2195
      %v2311 = vunpack.c.l.b16 %v2196
      %v2312 = vunpack.c.l.b16 %v2197
      %v2313 = vunpack.c.l.b16 %v2198
      %v2314 = vunpack.c.l.b16 %v2199
      %v2315 = vunpack.c.l.b16 %v2200
      %v2316 = vunpack.c.l.b16 %v2201
      %v2317 = vunpack.c.l.b16 %v2202
      %v2318 = vunpack.c.l.b16 %v2203
      %v2319 = vunpack.c.l.b16 %v2204
      %v2320 = vunpack.c.l.b16 %v2205
      %v2321 = vunpack.c.l.b16 %v2206
      %v2322 = vunpack.c.l.b16 %v2207
      %v2323 = vunpack.c.l.b16 %v2208
      %v2324 = vunpack.c.l.b16 %v2209
      %v2325 = vunpack.c.l.b16 %v2210
      %v2326 = vunpack.c.l.b16 %v2211
      %v2327 = vunpack.c.l.b16 %v2212
      %v2328 = vunpack.c.l.b16 %v2213
      %v2329 = vunpack.c.l.b16 %v2214
      %v2330 = vunpack.c.l.b16 %v2215
      %v2331 = vunpack.c.l.b16 %v2216
      %v2332 = vunpack.c.l.b16 %v2217
      %v2333 = vunpack.c.l.b16 %v2218
      %v2334 = vunpack.c.l.b16 %v2219
      %v2335 = vunpack.c.l.b16 %v2220
      %v2336 = vunpack.c.l.b16 %v2221
      %v2337 = vunpack.c.l.b16 %v2222
      %v2338 = vunpack.c.l.b16 %v2223
      %v2339 = vunpack.c.l.b16 %v2224
      %v2340 = vunpack.c.l.b16 %v2225
      %v2341 = vunpack.c.l.b16 %v2226
      %v2342 = vunpack.c.l.b16 %v2227
      %v2343 = vunpack.c.l.b16 %v2228
      %v2344 = vunpack.c.l.b16 %v2229
      %v2345 = vunpack.c.l.b16 %v2230
      %v2346 = vunpack.c.l.b16 %v2231
      %v2347 = vunpack.c.l.b16 %v2232
      %v2348 = vunpack.c.l.b16 %v2233
      %v2349 = vunpack.c.l.b16 %v2234
      %v2350 = vunpack.c.l.b16 %v2235
      %v2351 = vunpack.c.l.b16 %v2236
      %v2352 = vunpack.c.l.b16 %v2237
      %v2353 = vunpack.c.l.b16 %v2238
      %v2354 = vunpack.c.l.b16 %v2239
      %v2355 = vunpack.c.l.b16 %v2240
      %v2356 = vunpack.c.l.b16 %v2241
      %v2357 = vunpack.c.l.b16 %v2242
      %v2358 = vunpack.c.l.b16 %v2243
      %v2359 = vpack.c.b16 %v2311, %v2310
      %v2360 = vpack.c.b16 %v2313, %v2312
      %v2361 = vpack.c.b16 %v2315, %v2314
      %v2362 = vpack.c.b16 %v2317, %v2316
      %v2363 = vpack.c.b16 %v2319, %v2318
      %v2364 = vpack.c.b16 %v2321, %v2320
      %v2365 = vpack.c.b16 %v2323, %v2322
      %v2366 = vpack.c.b16 %v2325, %v2324
      %v2367 = vpack.c.b16 %v2327, %v2326
      %v2368 = vpack.c.b16 %v2329, %v2328
      %v2369 = vpack.c.b16 %v2331, %v2330
      %v2370 = vpack.c.b16 %v2333, %v2332
      %v2371 = vpack.c.b16 %v2335, %v2334
      %v2372 = vpack.c.b16 %v2337, %v2336
      %v2373 = vpack.c.b16 %v2339, %v2338
      %v2374 = vpack.c.b16 %v2341, %v2340
      %v2375 = vpack.c.b16 %v2343, %v2342
      %v2376 = vpack.c.b16 %v2345, %v2344
      %v2377 = vpack.c.b16 %v2347, %v2346
      %v2378 = vpack.c.b16 %v2349, %v2348
      %v2379 = vpack.c.b16 %v2351, %v2350
      %v2380 = vpack.c.b16 %v2353, %v2352
      %v2381 = vpack.c.b16 %v2355, %v2354
      %v2382 = vpack.c.b16 %v2357, %v2356
      %v2383 = vpack.c.b16 %v2358, %v2358
      %v2385 = vshrl.u32 %v2359, 16
      %v2387 = vshll.u32 %v2359, 16
      %v2389 = vrot.slane %v2387, 1
      %v2390 = vor.u32 %v2385, %v2389
      %v2392 = vshll.u32 %v2360, 16
      %v2394 = vrot.slane %v2392, 1
      %v2395 = vsel %vm458, %v2390, %v2394
      %v2396 = vshrl.u32 %v2360, 16
      %v2398 = vor.u32 %v2396, %v2394
      %v2400 = vshll.u32 %v2361, 16
      %v2402 = vrot.slane %v2400, 1
      %v2403 = vsel %vm458, %v2398, %v2402
      %v2404 = vshrl.u32 %v2361, 16
      %v2406 = vor.u32 %v2404, %v2402
      %v2408 = vshll.u32 %v2362, 16
      %v2410 = vrot.slane %v2408, 1
      %v2411 = vsel %vm458, %v2406, %v2410
      %v2412 = vshrl.u32 %v2362, 16
      %v2414 = vor.u32 %v2412, %v2410
      %v2416 = vshll.u32 %v2363, 16
      %v2418 = vrot.slane %v2416, 1
      %v2419 = vsel %vm458, %v2414, %v2418
      %v2420 = vshrl.u32 %v2363, 16
      %v2422 = vor.u32 %v2420, %v2418
      %v2424 = vshll.u32 %v2364, 16
      %v2426 = vrot.slane %v2424, 1
      %v2427 = vsel %vm458, %v2422, %v2426
      %v2428 = vshrl.u32 %v2364, 16
      %v2430 = vor.u32 %v2428, %v2426
      %v2432 = vshll.u32 %v2365, 16
      %v2434 = vrot.slane %v2432, 1
      %v2435 = vsel %vm458, %v2430, %v2434
      %v2436 = vshrl.u32 %v2365, 16
      %v2438 = vor.u32 %v2436, %v2434
      %v2440 = vshll.u32 %v2366, 16
      %v2442 = vrot.slane %v2440, 1
      %v2443 = vsel %vm458, %v2438, %v2442
      %v2444 = vshrl.u32 %v2366, 16
      %v2446 = vor.u32 %v2444, %v2442
      %v2448 = vshll.u32 %v2367, 16
      %v2450 = vrot.slane %v2448, 1
      %v2451 = vsel %vm458, %v2446, %v2450
      %v2452 = vshrl.u32 %v2367, 16
      %v2454 = vor.u32 %v2452, %v2450
      %v2456 = vshll.u32 %v2368, 16
      %v2458 = vrot.slane %v2456, 1
      %v2459 = vsel %vm458, %v2454, %v2458
      %v2460 = vshrl.u32 %v2368, 16
      %v2462 = vor.u32 %v2460, %v2458
      %v2464 = vshll.u32 %v2369, 16
      %v2466 = vrot.slane %v2464, 1
      %v2467 = vsel %vm458, %v2462, %v2466
      %v2468 = vshrl.u32 %v2369, 16
      %v2470 = vor.u32 %v2468, %v2466
      %v2472 = vshll.u32 %v2370, 16
      %v2474 = vrot.slane %v2472, 1
      %v2475 = vsel %vm458, %v2470, %v2474
      %v2476 = vshrl.u32 %v2370, 16
      %v2478 = vor.u32 %v2476, %v2474
      %v2480 = vshll.u32 %v2371, 16
      %v2482 = vrot.slane %v2480, 1
      %v2483 = vsel %vm458, %v2478, %v2482
      %v2484 = vshrl.u32 %v2371, 16
      %v2486 = vor.u32 %v2484, %v2482
      %v2488 = vshll.u32 %v2372, 16
      %v2490 = vrot.slane %v2488, 1
      %v2491 = vsel %vm458, %v2486, %v2490
      %v2492 = vshrl.u32 %v2372, 16
      %v2494 = vor.u32 %v2492, %v2490
      %v2496 = vshll.u32 %v2373, 16
      %v2498 = vrot.slane %v2496, 1
      %v2499 = vsel %vm458, %v2494, %v2498
      %v2500 = vshrl.u32 %v2373, 16
      %v2502 = vor.u32 %v2500, %v2498
      %v2504 = vshll.u32 %v2374, 16
      %v2506 = vrot.slane %v2504, 1
      %v2507 = vsel %vm458, %v2502, %v2506
      %v2508 = vshrl.u32 %v2374, 16
      %v2510 = vor.u32 %v2508, %v2506
      %v2512 = vshll.u32 %v2375, 16
      %v2514 = vrot.slane %v2512, 1
      %v2515 = vsel %vm458, %v2510, %v2514
      %v2516 = vshrl.u32 %v2375, 16
      %v2518 = vor.u32 %v2516, %v2514
      %v2520 = vshll.u32 %v2376, 16
      %v2522 = vrot.slane %v2520, 1
      %v2523 = vsel %vm458, %v2518, %v2522
      %v2524 = vshrl.u32 %v2376, 16
      %v2526 = vor.u32 %v2524, %v2522
      %v2528 = vshll.u32 %v2377, 16
      %v2530 = vrot.slane %v2528, 1
      %v2531 = vsel %vm458, %v2526, %v2530
      %v2532 = vshrl.u32 %v2377, 16
      %v2534 = vor.u32 %v2532, %v2530
      %v2536 = vshll.u32 %v2378, 16
      %v2538 = vrot.slane %v2536, 1
      %v2539 = vsel %vm458, %v2534, %v2538
      %v2540 = vshrl.u32 %v2378, 16
      %v2542 = vor.u32 %v2540, %v2538
      %v2544 = vshll.u32 %v2379, 16
      %v2546 = vrot.slane %v2544, 1
      %v2547 = vsel %vm458, %v2542, %v2546
      %v2548 = vshrl.u32 %v2379, 16
      %v2550 = vor.u32 %v2548, %v2546
      %v2552 = vshll.u32 %v2380, 16
      %v2554 = vrot.slane %v2552, 1
      %v2555 = vsel %vm458, %v2550, %v2554
      %v2556 = vshrl.u32 %v2380, 16
      %v2558 = vor.u32 %v2556, %v2554
      %v2560 = vshll.u32 %v2381, 16
      %v2562 = vrot.slane %v2560, 1
      %v2563 = vsel %vm458, %v2558, %v2562
      %v2564 = vshrl.u32 %v2381, 16
      %v2566 = vor.u32 %v2564, %v2562
      %v2568 = vshll.u32 %v2382, 16
      %v2570 = vrot.slane %v2568, 1
      %v2571 = vsel %vm458, %v2566, %v2570
      %v2572 = vshrl.u32 %v2382, 16
      %v2574 = vor.u32 %v2572, %v2570
      %v2576 = vshll.u32 %v2383, 16
      %v2578 = vrot.slane %v2576, 1
      %v2579 = vsel %vm458, %v2574, %v2578
      %v2620 = vunpack.c.l.b16 %v2245
      %v2621 = vunpack.c.l.b16 %v2246
      %v2622 = vunpack.c.l.b16 %v2247
      %v2623 = vunpack.c.l.b16 %v2248
      %v2624 = vunpack.c.l.b16 %v2249
      %v2625 = vunpack.c.l.b16 %v2250
      %v2626 = vunpack.c.l.b16 %v2251
      %v2627 = vunpack.c.l.b16 %v2252
      %v2628 = vunpack.c.l.b16 %v2253
      %v2629 = vunpack.c.l.b16 %v2254
      %v2630 = vunpack.c.l.b16 %v2255
      %v2631 = vunpack.c.l.b16 %v2256
      %v2632 = vunpack.c.l.b16 %v2257
      %v2633 = vunpack.c.l.b16 %v2258
      %v2634 = vunpack.c.l.b16 %v2259
      %v2635 = vunpack.c.l.b16 %v2260
      %v2636 = vpack.c.b16 %v2621, %v2620
      %v2637 = vpack.c.b16 %v2623, %v2622
      %v2638 = vpack.c.b16 %v2625, %v2624
      %v2639 = vpack.c.b16 %v2627, %v2626
      %v2640 = vpack.c.b16 %v2629, %v2628
      %v2641 = vpack.c.b16 %v2631, %v2630
      %v2642 = vpack.c.b16 %v2633, %v2632
      %v2643 = vpack.c.b16 %v2635, %v2634
      %2652 = vmatprep.subr.bf16.mxu0 0
      %2653 = vmatpush1.bf16.msra.mxu0 %v2636
      %2654 = vmatprep.subr.bf16.mxu0 0
      %2655 = vmatpush1.bf16.msra.mxu0 %v2637
      %2656 = vmatprep.subr.bf16.mxu0 0
      %2657 = vmatpush1.bf16.msra.mxu0 %v2638
      %2658 = vmatprep.subr.bf16.mxu0 0
      %2659 = vmatpush1.bf16.msra.mxu0 %v2639
      %2660 = vmatprep.subr.bf16.mxu0 0
      %2661 = vmatpush1.bf16.msra.mxu0 %v2640
      %2662 = vmatprep.subr.bf16.mxu0 0
      %2663 = vmatpush1.bf16.msra.mxu0 %v2641
      %2664 = vmatprep.subr.bf16.mxu0 0
      %2665 = vmatpush1.bf16.msra.mxu0 %v2642
      %2666 = vmatprep.subr.bf16.mxu0 0
      %2667 = vmatpush1.bf16.msra.mxu0 %v2643
      %2668 = vmatprep.subr.bf16.mxu0 0
      %2669 = vmatpush1.bf16.msra.mxu0 0
      %2670 = vmatprep.subr.bf16.mxu0 0
      %2671 = vmatpush1.bf16.msra.mxu0 0
      %2672 = vmatprep.subr.bf16.mxu0 0
      %2673 = vmatpush1.bf16.msra.mxu0 0
      %2674 = vmatprep.subr.bf16.mxu0 0
      %2675 = vmatpush1.bf16.msra.mxu0 0
      %2676 = vmatprep.subr.bf16.mxu0 0
      %2677 = vmatpush1.bf16.msra.mxu0 0
      %2678 = vmatprep.subr.bf16.mxu0 0
      %2679 = vmatpush1.bf16.msra.mxu0 0
      %2680 = vmatprep.subr.bf16.mxu0 0
      %2681 = vmatpush1.bf16.msra.mxu0 0
      %2682 = vmatprep.subr.bf16.mxu0 0
      %2683 = vmatpush1.bf16.msra.mxu0 0
      %2684 = vmatprep.mubr.bf16.mxu0 0
      %2685 = vmatmul.mubr.bf16.gmra.mrb[0].mxu0 %v2395
      %v2686 = vpop.f32.mrb[0].mxu0
      %v2687 = vadd.f32 0.0, %v2686
      %v2688 = vpop.f32.mrb[0].mxu0
      %v2689 = vpop.f32.mrb[0].mxu0
      %v2690 = vadd.f32 0.0, %v2689
      %v2691 = vpop.f32.mrb[0].mxu0
      %2692 = vmatprep.mubr.bf16.mxu0 0
      %2693 = vmatmul.mubr.bf16.gmra.mrb[0].mxu0 %v2403
      %v2694 = vpop.f32.mrb[0].mxu0
      %v2695 = vadd.f32 0.0, %v2694
      %v2696 = vpop.f32.mrb[0].mxu0
      %v2697 = vpop.f32.mrb[0].mxu0
      %v2698 = vadd.f32 0.0, %v2697
      %v2699 = vpop.f32.mrb[0].mxu0
      %2700 = vmatprep.mubr.bf16.mxu0 0
      %2701 = vmatmul.mubr.bf16.gmra.mrb[0].mxu0 %v2411
      %v2702 = vpop.f32.mrb[0].mxu0
      %v2703 = vadd.f32 0.0, %v2702
      %v2704 = vpop.f32.mrb[0].mxu0
      %v2705 = vpop.f32.mrb[0].mxu0
      %v2706 = vadd.f32 0.0, %v2705
      %v2707 = vpop.f32.mrb[0].mxu0
      %2708 = vmatprep.mubr.bf16.mxu0 0
      %2709 = vmatmul.mubr.bf16.gmra.mrb[0].mxu0 %v2419
      %v2710 = vpop.f32.mrb[0].mxu0
      %v2711 = vadd.f32 0.0, %v2710
      %v2712 = vpop.f32.mrb[0].mxu0
      %v2713 = vpop.f32.mrb[0].mxu0
      %v2714 = vadd.f32 0.0, %v2713
      %v2715 = vpop.f32.mrb[0].mxu0
      %2716 = vmatprep.mubr.bf16.mxu0 0
      %2717 = vmatmul.mubr.bf16.gmra.mrb[0].mxu0 %v2427
      %v2718 = vpop.f32.mrb[0].mxu0
      %v2719 = vadd.f32 0.0, %v2718
      %v2720 = vpop.f32.mrb[0].mxu0
      %v2721 = vpop.f32.mrb[0].mxu0
      %v2722 = vadd.f32 0.0, %v2721
      %v2723 = vpop.f32.mrb[0].mxu0
      %2724 = vmatprep.mubr.bf16.mxu0 0
      %2725 = vmatmul.mubr.bf16.gmra.mrb[0].mxu0 %v2435
      %v2726 = vpop.f32.mrb[0].mxu0
      %v2727 = vadd.f32 0.0, %v2726
      %v2728 = vpop.f32.mrb[0].mxu0
      %v2729 = vpop.f32.mrb[0].mxu0
      %v2730 = vadd.f32 0.0, %v2729
      %v2731 = vpop.f32.mrb[0].mxu0
      %2732 = vmatprep.mubr.bf16.mxu0 0
      %2733 = vmatmul.mubr.bf16.gmra.mrb[0].mxu0 %v2443
      %v2734 = vpop.f32.mrb[0].mxu0
      %v2735 = vadd.f32 0.0, %v2734
      %v2736 = vpop.f32.mrb[0].mxu0
      %v2737 = vpop.f32.mrb[0].mxu0
      %v2738 = vadd.f32 0.0, %v2737
      %v2739 = vpop.f32.mrb[0].mxu0
      %2740 = vmatprep.mubr.bf16.mxu0 0
      %2741 = vmatmul.mubr.bf16.gmra.mrb[0].mxu0 %v2451
      %v2742 = vpop.f32.mrb[0].mxu0
      %v2743 = vadd.f32 0.0, %v2742
      %v2744 = vpop.f32.mrb[0].mxu0
      %v2745 = vpop.f32.mrb[0].mxu0
      %v2746 = vadd.f32 0.0, %v2745
      %v2747 = vpop.f32.mrb[0].mxu0
      %2748 = vmatprep.mubr.bf16.mxu0 0
      %2749 = vmatmul.mubr.bf16.gmra.mrb[0].mxu0 %v2459
      %v2750 = vpop.f32.mrb[0].mxu0
      %v2751 = vadd.f32 0.0, %v2750
      %v2752 = vpop.f32.mrb[0].mxu0
      %v2753 = vpop.f32.mrb[0].mxu0
      %v2754 = vadd.f32 0.0, %v2753
      %v2755 = vpop.f32.mrb[0].mxu0
      %2756 = vmatprep.mubr.bf16.mxu0 0
      %2757 = vmatmul.mubr.bf16.gmra.mrb[0].mxu0 %v2467
      %v2758 = vpop.f32.mrb[0].mxu0
      %v2759 = vadd.f32 0.0, %v2758
      %v2760 = vpop.f32.mrb[0].mxu0
      %v2761 = vpop.f32.mrb[0].mxu0
      %v2762 = vadd.f32 0.0, %v2761
      %v2763 = vpop.f32.mrb[0].mxu0
      %2764 = vmatprep.mubr.bf16.mxu0 0
      %2765 = vmatmul.mubr.bf16.gmra.mrb[0].mxu0 %v2475
      %v2766 = vpop.f32.mrb[0].mxu0
      %v2767 = vadd.f32 0.0, %v2766
      %v2768 = vpop.f32.mrb[0].mxu0
      %v2769 = vpop.f32.mrb[0].mxu0
      %v2770 = vadd.f32 0.0, %v2769
      %v2771 = vpop.f32.mrb[0].mxu0
      %2772 = vmatprep.mubr.bf16.mxu0 0
      %2773 = vmatmul.mubr.bf16.gmra.mrb[0].mxu0 %v2483
      %v2774 = vpop.f32.mrb[0].mxu0
      %v2775 = vadd.f32 0.0, %v2774
      %v2776 = vpop.f32.mrb[0].mxu0
      %v2777 = vpop.f32.mrb[0].mxu0
      %v2778 = vadd.f32 0.0, %v2777
      %v2779 = vpop.f32.mrb[0].mxu0
      %2780 = vmatprep.mubr.bf16.mxu0 0
      %2781 = vmatmul.mubr.bf16.gmra.mrb[0].mxu0 %v2491
      %v2782 = vpop.f32.mrb[0].mxu0
      %v2783 = vadd.f32 0.0, %v2782
      %v2784 = vpop.f32.mrb[0].mxu0
      %v2785 = vpop.f32.mrb[0].mxu0
      %v2786 = vadd.f32 0.0, %v2785
      %v2787 = vpop.f32.mrb[0].mxu0
      %2788 = vmatprep.mubr.bf16.mxu0 0
      %2789 = vmatmul.mubr.bf16.gmra.mrb[0].mxu0 %v2499
      %v2790 = vpop.f32.mrb[0].mxu0
      %v2791 = vadd.f32 0.0, %v2790
      %v2792 = vpop.f32.mrb[0].mxu0
      %v2793 = vpop.f32.mrb[0].mxu0
      %v2794 = vadd.f32 0.0, %v2793
      %v2795 = vpop.f32.mrb[0].mxu0
      %2796 = vmatprep.mubr.bf16.mxu0 0
      %2797 = vmatmul.mubr.bf16.gmra.mrb[0].mxu0 %v2507
      %v2798 = vpop.f32.mrb[0].mxu0
      %v2799 = vadd.f32 0.0, %v2798
      %v2800 = vpop.f32.mrb[0].mxu0
      %v2801 = vpop.f32.mrb[0].mxu0
      %v2802 = vadd.f32 0.0, %v2801
      %v2803 = vpop.f32.mrb[0].mxu0
      %2804 = vmatprep.mubr.bf16.mxu0 0
      %2805 = vmatmul.mubr.bf16.gmra.mrb[0].mxu0 %v2515
      %v2806 = vpop.f32.mrb[0].mxu0
      %v2807 = vadd.f32 0.0, %v2806
      %v2808 = vpop.f32.mrb[0].mxu0
      %v2809 = vpop.f32.mrb[0].mxu0
      %v2810 = vadd.f32 0.0, %v2809
      %v2811 = vpop.f32.mrb[0].mxu0
      %2812 = vmatprep.mubr.bf16.mxu0 0
      %2813 = vmatmul.mubr.bf16.gmra.mrb[0].mxu0 %v2523
      %v2814 = vpop.f32.mrb[0].mxu0
      %v2815 = vadd.f32 0.0, %v2814
      %v2816 = vpop.f32.mrb[0].mxu0
      %v2817 = vpop.f32.mrb[0].mxu0
      %v2818 = vadd.f32 0.0, %v2817
      %v2819 = vpop.f32.mrb[0].mxu0
      %2820 = vmatprep.mubr.bf16.mxu0 0
      %2821 = vmatmul.mubr.bf16.gmra.mrb[0].mxu0 %v2531
      %v2822 = vpop.f32.mrb[0].mxu0
      %v2823 = vadd.f32 0.0, %v2822
      %v2824 = vpop.f32.mrb[0].mxu0
      %v2825 = vpop.f32.mrb[0].mxu0
      %v2826 = vadd.f32 0.0, %v2825
      %v2827 = vpop.f32.mrb[0].mxu0
      %2828 = vmatprep.mubr.bf16.mxu0 0
      %2829 = vmatmul.mubr.bf16.gmra.mrb[0].mxu0 %v2539
      %v2830 = vpop.f32.mrb[0].mxu0
      %v2831 = vadd.f32 0.0, %v2830
      %v2832 = vpop.f32.mrb[0].mxu0
      %v2833 = vpop.f32.mrb[0].mxu0
      %v2834 = vadd.f32 0.0, %v2833
      %v2835 = vpop.f32.mrb[0].mxu0
      %2836 = vmatprep.mubr.bf16.mxu0 0
      %2837 = vmatmul.mubr.bf16.gmra.mrb[0].mxu0 %v2547
      %v2838 = vpop.f32.mrb[0].mxu0
      %v2839 = vadd.f32 0.0, %v2838
      %v2840 = vpop.f32.mrb[0].mxu0
      %v2841 = vpop.f32.mrb[0].mxu0
      %v2842 = vadd.f32 0.0, %v2841
      %v2843 = vpop.f32.mrb[0].mxu0
      %2844 = vmatprep.mubr.bf16.mxu0 0
      %2845 = vmatmul.mubr.bf16.gmra.mrb[0].mxu0 %v2555
      %v2846 = vpop.f32.mrb[0].mxu0
      %v2847 = vadd.f32 0.0, %v2846
      %v2848 = vpop.f32.mrb[0].mxu0
      %v2849 = vpop.f32.mrb[0].mxu0
      %v2850 = vadd.f32 0.0, %v2849
      %v2851 = vpop.f32.mrb[0].mxu0
      %2852 = vmatprep.mubr.bf16.mxu0 0
      %2853 = vmatmul.mubr.bf16.gmra.mrb[0].mxu0 %v2563
      %v2854 = vpop.f32.mrb[0].mxu0
      %v2855 = vadd.f32 0.0, %v2854
      %v2856 = vpop.f32.mrb[0].mxu0
      %v2857 = vpop.f32.mrb[0].mxu0
      %v2858 = vadd.f32 0.0, %v2857
      %v2859 = vpop.f32.mrb[0].mxu0
      %2860 = vmatprep.mubr.bf16.mxu0 0
      %2861 = vmatmul.mubr.bf16.gmra.mrb[0].mxu0 %v2571
      %v2862 = vpop.f32.mrb[0].mxu0
      %v2863 = vadd.f32 0.0, %v2862
      %v2864 = vpop.f32.mrb[0].mxu0
      %v2865 = vpop.f32.mrb[0].mxu0
      %v2866 = vadd.f32 0.0, %v2865
      %v2867 = vpop.f32.mrb[0].mxu0
      %2868 = vmatprep.mubr.bf16.mxu0 0
      %2869 = vmatmul.mubr.bf16.gmra.mrb[0].mxu0 %v2579
      %v2870 = vpop.f32.mrb[0].mxu0
      %v2871 = vadd.f32 0.0, %v2870
      %v2872 = vpop.f32.mrb[0].mxu0
      %v2873 = vpop.f32.mrb[0].mxu0
      %v2874 = vadd.f32 0.0, %v2873
      %v2875 = vpop.f32.mrb[0].mxu0
      %2876 = vdwg.mxu0
      %v2877 = vadd.f32 %v2147, %v2687
      %v2878 = vadd.f32 %v2148, %v2690
      %v2879 = vadd.f32 %v2149, %v2695
      %v2880 = vadd.f32 %v2150, %v2698
      %v2881 = vadd.f32 %v2151, %v2703
      %v2882 = vadd.f32 %v2152, %v2706
      %v2883 = vadd.f32 %v2153, %v2711
      %v2884 = vadd.f32 %v2154, %v2714
      %v2885 = vadd.f32 %v2155, %v2719
      %v2886 = vadd.f32 %v2156, %v2722
      %v2887 = vadd.f32 %v2157, %v2727
      %v2888 = vadd.f32 %v2158, %v2730
      %v2889 = vadd.f32 %v2159, %v2735
      %v2890 = vadd.f32 %v2160, %v2738
      %v2891 = vadd.f32 %v2161, %v2743
      %v2892 = vadd.f32 %v2162, %v2746
      %v2893 = vadd.f32 %v2163, %v2751
      %v2894 = vadd.f32 %v2164, %v2754
      %v2895 = vadd.f32 %v2165, %v2759
      %v2896 = vadd.f32 %v2166, %v2762
      %v2897 = vadd.f32 %v2167, %v2767
      %v2898 = vadd.f32 %v2168, %v2770
      %v2899 = vadd.f32 %v2169, %v2775
      %v2900 = vadd.f32 %v2170, %v2778
      %v2901 = vadd.f32 %v2171, %v2783
      %v2902 = vadd.f32 %v2172, %v2786
      %v2903 = vadd.f32 %v2173, %v2791
      %v2904 = vadd.f32 %v2174, %v2794
      %v2905 = vadd.f32 %v2175, %v2799
      %v2906 = vadd.f32 %v2176, %v2802
      %v2907 = vadd.f32 %v2177, %v2807
      %v2908 = vadd.f32 %v2178, %v2810
      %v2909 = vadd.f32 %v2179, %v2815
      %v2910 = vadd.f32 %v2180, %v2818
      %v2911 = vadd.f32 %v2181, %v2823
      %v2912 = vadd.f32 %v2182, %v2826
      %v2913 = vadd.f32 %v2183, %v2831
      %v2914 = vadd.f32 %v2184, %v2834
      %v2915 = vadd.f32 %v2185, %v2839
      %v2916 = vadd.f32 %v2186, %v2842
      %v2917 = vadd.f32 %v2187, %v2847
      %v2918 = vadd.f32 %v2188, %v2850
      %v2919 = vadd.f32 %v2189, %v2855
      %v2920 = vadd.f32 %v2190, %v2858
      %v2921 = vadd.f32 %v2191, %v2863
      %v2922 = vadd.f32 %v2192, %v2866
      %v2923 = vadd.f32 %v2193, %v2871
      %v2924 = vadd.f32 %v2194, %v2874
      %v2925 = vld [vmem:[%s246 + $0xc] sm:$0xe]
      %s2926 = scalar_lea.vmem %s1, 320
      %v2927 = vld [vmem:[%s2926] sm:$0xf]
      %v2928 = vld [vmem:[%s2926 + $0x4] sm:$0xf]
      %v2929 = vld [vmem:[%s2926 + $0x8] sm:$0xf]
      %v2930 = vld [vmem:[%s2926 + $0xc] sm:$0xf]
      %v2931 = vld [vmem:[%s2926 + $0x10] sm:$0xf]
      %v2932 = vld [vmem:[%s2926 + $0x14] sm:$0xf]
      %v2933 = vld [vmem:[%s2926 + $0x18] sm:$0xf]
      %v2934 = vld [vmem:[%s2926 + $0x1c] sm:$0xf]
      %v2935 = vld [vmem:[%s2926 + $0x20] sm:$0xf]
      %v2936 = vld [vmem:[%s2926 + $0x24] sm:$0xf]
      %v2937 = vld [vmem:[%s2926 + $0x28] sm:$0xf]
      %v2938 = vld [vmem:[%s2926 + $0x2c] sm:$0xf]
      %v2939 = vld [vmem:[%s2926 + $0x30] sm:$0xf]
      %v2940 = vld [vmem:[%s2926 + $0x34] sm:$0xf]
      %v2941 = vld [vmem:[%s2926 + $0x38] sm:$0xf]
      %v2942 = vld [vmem:[%s2926 + $0x3c] sm:$0xf]
      %v2944 = vunpack.c.l.b16 %v2925
      %v2945 = vpack.c.b16 %v2311, %v2944
      %v2946 = vrot.slane %v2945, 1
      %v2947 = vrot.slane %v2360, 1
      %v2948 = vsel %vm1270, %v2946, %v2947
      %v2949 = vrot.slane %v2361, 1
      %v2950 = vsel %vm1270, %v2947, %v2949
      %v2951 = vrot.slane %v2362, 1
      %v2952 = vsel %vm1270, %v2949, %v2951
      %v2953 = vrot.slane %v2363, 1
      %v2954 = vsel %vm1270, %v2951, %v2953
      %v2955 = vrot.slane %v2364, 1
      %v2956 = vsel %vm1270, %v2953, %v2955
      %v2957 = vrot.slane %v2365, 1
      %v2958 = vsel %vm1270, %v2955, %v2957
      %v2959 = vrot.slane %v2366, 1
      %v2960 = vsel %vm1270, %v2957, %v2959
      %v2961 = vrot.slane %v2367, 1
      %v2962 = vsel %vm1270, %v2959, %v2961
      %v2963 = vrot.slane %v2368, 1
      %v2964 = vsel %vm1270, %v2961, %v2963
      %v2965 = vrot.slane %v2369, 1
      %v2966 = vsel %vm1270, %v2963, %v2965
      %v2967 = vrot.slane %v2370, 1
      %v2968 = vsel %vm1270, %v2965, %v2967
      %v2969 = vrot.slane %v2371, 1
      %v2970 = vsel %vm1270, %v2967, %v2969
      %v2971 = vrot.slane %v2372, 1
      %v2972 = vsel %vm1270, %v2969, %v2971
      %v2973 = vrot.slane %v2373, 1
      %v2974 = vsel %vm1270, %v2971, %v2973
      %v2975 = vrot.slane %v2374, 1
      %v2976 = vsel %vm1270, %v2973, %v2975
      %v2977 = vrot.slane %v2375, 1
      %v2978 = vsel %vm1270, %v2975, %v2977
      %v2979 = vrot.slane %v2376, 1
      %v2980 = vsel %vm1270, %v2977, %v2979
      %v2981 = vrot.slane %v2377, 1
      %v2982 = vsel %vm1270, %v2979, %v2981
      %v2983 = vrot.slane %v2378, 1
      %v2984 = vsel %vm1270, %v2981, %v2983
      %v2985 = vrot.slane %v2379, 1
      %v2986 = vsel %vm1270, %v2983, %v2985
      %v2987 = vrot.slane %v2380, 1
      %v2988 = vsel %vm1270, %v2985, %v2987
      %v2989 = vrot.slane %v2381, 1
      %v2990 = vsel %vm1270, %v2987, %v2989
      %v2991 = vrot.slane %v2382, 1
      %v2992 = vsel %vm1270, %v2989, %v2991
      %v2993 = vrot.slane %v2383, 1
      %v2994 = vsel %vm1270, %v2991, %v2993
      %v3035 = vunpack.c.l.b16 %v2927
      %v3036 = vunpack.c.l.b16 %v2928
      %v3037 = vunpack.c.l.b16 %v2929
      %v3038 = vunpack.c.l.b16 %v2930
      %v3039 = vunpack.c.l.b16 %v2931
      %v3040 = vunpack.c.l.b16 %v2932
      %v3041 = vunpack.c.l.b16 %v2933
      %v3042 = vunpack.c.l.b16 %v2934
      %v3043 = vunpack.c.l.b16 %v2935
      %v3044 = vunpack.c.l.b16 %v2936
      %v3045 = vunpack.c.l.b16 %v2937
      %v3046 = vunpack.c.l.b16 %v2938
      %v3047 = vunpack.c.l.b16 %v2939
      %v3048 = vunpack.c.l.b16 %v2940
      %v3049 = vunpack.c.l.b16 %v2941
      %v3050 = vunpack.c.l.b16 %v2942
      %v3051 = vpack.c.b16 %v3036, %v3035
      %v3052 = vpack.c.b16 %v3038, %v3037
      %v3053 = vpack.c.b16 %v3040, %v3039
      %v3054 = vpack.c.b16 %v3042, %v3041
      %v3055 = vpack.c.b16 %v3044, %v3043
      %v3056 = vpack.c.b16 %v3046, %v3045
      %v3057 = vpack.c.b16 %v3048, %v3047
      %v3058 = vpack.c.b16 %v3050, %v3049
      %3067 = vmatprep.subr.bf16.mxu0 0
      %3068 = vmatpush1.bf16.msra.mxu0 %v3051
      %3069 = vmatprep.subr.bf16.mxu0 0
      %3070 = vmatpush1.bf16.msra.mxu0 %v3052
      %3071 = vmatprep.subr.bf16.mxu0 0
      %3072 = vmatpush1.bf16.msra.mxu0 %v3053
      %3073 = vmatprep.subr.bf16.mxu0 0
      %3074 = vmatpush1.bf16.msra.mxu0 %v3054
      %3075 = vmatprep.subr.bf16.mxu0 0
      %3076 = vmatpush1.bf16.msra.mxu0 %v3055
      %3077 = vmatprep.subr.bf16.mxu0 0
      %3078 = vmatpush1.bf16.msra.mxu0 %v3056
      %3079 = vmatprep.subr.bf16.mxu0 0
      %3080 = vmatpush1.bf16.msra.mxu0 %v3057
      %3081 = vmatprep.subr.bf16.mxu0 0
      %3082 = vmatpush1.bf16.msra.mxu0 %v3058
      %3083 = vmatprep.subr.bf16.mxu0 0
      %3084 = vmatpush1.bf16.msra.mxu0 0
      %3085 = vmatprep.subr.bf16.mxu0 0
      %3086 = vmatpush1.bf16.msra.mxu0 0
      %3087 = vmatprep.subr.bf16.mxu0 0
      %3088 = vmatpush1.bf16.msra.mxu0 0
      %3089 = vmatprep.subr.bf16.mxu0 0
      %3090 = vmatpush1.bf16.msra.mxu0 0
      %3091 = vmatprep.subr.bf16.mxu0 0
      %3092 = vmatpush1.bf16.msra.mxu0 0
      %3093 = vmatprep.subr.bf16.mxu0 0
      %3094 = vmatpush1.bf16.msra.mxu0 0
      %3095 = vmatprep.subr.bf16.mxu0 0
      %3096 = vmatpush1.bf16.msra.mxu0 0
      %3097 = vmatprep.subr.bf16.mxu0 0
      %3098 = vmatpush1.bf16.msra.mxu0 0
      %3099 = vmatprep.mubr.bf16.mxu0 0
      %3100 = vmatmul.mubr.bf16.gmra.mrb[0].mxu0 %v2948
      %v3101 = vpop.f32.mrb[0].mxu0
      %v3102 = vadd.f32 0.0, %v3101
      %v3103 = vpop.f32.mrb[0].mxu0
      %v3104 = vpop.f32.mrb[0].mxu0
      %v3105 = vadd.f32 0.0, %v3104
      %v3106 = vpop.f32.mrb[0].mxu0
      %3107 = vmatprep.mubr.bf16.mxu0 0
      %3108 = vmatmul.mubr.bf16.gmra.mrb[0].mxu0 %v2950
      %v3109 = vpop.f32.mrb[0].mxu0
      %v3110 = vadd.f32 0.0, %v3109
      %v3111 = vpop.f32.mrb[0].mxu0
      %v3112 = vpop.f32.mrb[0].mxu0
      %v3113 = vadd.f32 0.0, %v3112
      %v3114 = vpop.f32.mrb[0].mxu0
      %3115 = vmatprep.mubr.bf16.mxu0 0
      %3116 = vmatmul.mubr.bf16.gmra.mrb[0].mxu0 %v2952
      %v3117 = vpop.f32.mrb[0].mxu0
      %v3118 = vadd.f32 0.0, %v3117
      %v3119 = vpop.f32.mrb[0].mxu0
      %v3120 = vpop.f32.mrb[0].mxu0
      %v3121 = vadd.f32 0.0, %v3120
      %v3122 = vpop.f32.mrb[0].mxu0
      %3123 = vmatprep.mubr.bf16.mxu0 0
      %3124 = vmatmul.mubr.bf16.gmra.mrb[0].mxu0 %v2954
      %v3125 = vpop.f32.mrb[0].mxu0
      %v3126 = vadd.f32 0.0, %v3125
      %v3127 = vpop.f32.mrb[0].mxu0
      %v3128 = vpop.f32.mrb[0].mxu0
      %v3129 = vadd.f32 0.0, %v3128
      %v3130 = vpop.f32.mrb[0].mxu0
      %3131 = vmatprep.mubr.bf16.mxu0 0
      %3132 = vmatmul.mubr.bf16.gmra.mrb[0].mxu0 %v2956
      %v3133 = vpop.f32.mrb[0].mxu0
      %v3134 = vadd.f32 0.0, %v3133
      %v3135 = vpop.f32.mrb[0].mxu0
      %v3136 = vpop.f32.mrb[0].mxu0
      %v3137 = vadd.f32 0.0, %v3136
      %v3138 = vpop.f32.mrb[0].mxu0
      %3139 = vmatprep.mubr.bf16.mxu0 0
      %3140 = vmatmul.mubr.bf16.gmra.mrb[0].mxu0 %v2958
      %v3141 = vpop.f32.mrb[0].mxu0
      %v3142 = vadd.f32 0.0, %v3141
      %v3143 = vpop.f32.mrb[0].mxu0
      %v3144 = vpop.f32.mrb[0].mxu0
      %v3145 = vadd.f32 0.0, %v3144
      %v3146 = vpop.f32.mrb[0].mxu0
      %3147 = vmatprep.mubr.bf16.mxu0 0
      %3148 = vmatmul.mubr.bf16.gmra.mrb[0].mxu0 %v2960
      %v3149 = vpop.f32.mrb[0].mxu0
      %v3150 = vadd.f32 0.0, %v3149
      %v3151 = vpop.f32.mrb[0].mxu0
      %v3152 = vpop.f32.mrb[0].mxu0
      %v3153 = vadd.f32 0.0, %v3152
      %v3154 = vpop.f32.mrb[0].mxu0
      %3155 = vmatprep.mubr.bf16.mxu0 0
      %3156 = vmatmul.mubr.bf16.gmra.mrb[0].mxu0 %v2962
      %v3157 = vpop.f32.mrb[0].mxu0
      %v3158 = vadd.f32 0.0, %v3157
      %v3159 = vpop.f32.mrb[0].mxu0
      %v3160 = vpop.f32.mrb[0].mxu0
      %v3161 = vadd.f32 0.0, %v3160
      %v3162 = vpop.f32.mrb[0].mxu0
      %3163 = vmatprep.mubr.bf16.mxu0 0
      %3164 = vmatmul.mubr.bf16.gmra.mrb[0].mxu0 %v2964
      %v3165 = vpop.f32.mrb[0].mxu0
      %v3166 = vadd.f32 0.0, %v3165
      %v3167 = vpop.f32.mrb[0].mxu0
      %v3168 = vpop.f32.mrb[0].mxu0
      %v3169 = vadd.f32 0.0, %v3168
      %v3170 = vpop.f32.mrb[0].mxu0
      %3171 = vmatprep.mubr.bf16.mxu0 0
      %3172 = vmatmul.mubr.bf16.gmra.mrb[0].mxu0 %v2966
      %v3173 = vpop.f32.mrb[0].mxu0
      %v3174 = vadd.f32 0.0, %v3173
      %v3175 = vpop.f32.mrb[0].mxu0
      %v3176 = vpop.f32.mrb[0].mxu0
      %v3177 = vadd.f32 0.0, %v3176
      %v3178 = vpop.f32.mrb[0].mxu0
      %3179 = vmatprep.mubr.bf16.mxu0 0
      %3180 = vmatmul.mubr.bf16.gmra.mrb[0].mxu0 %v2968
      %v3181 = vpop.f32.mrb[0].mxu0
      %v3182 = vadd.f32 0.0, %v3181
      %v3183 = vpop.f32.mrb[0].mxu0
      %v3184 = vpop.f32.mrb[0].mxu0
      %v3185 = vadd.f32 0.0, %v3184
      %v3186 = vpop.f32.mrb[0].mxu0
      %3187 = vmatprep.mubr.bf16.mxu0 0
      %3188 = vmatmul.mubr.bf16.gmra.mrb[0].mxu0 %v2970
      %v3189 = vpop.f32.mrb[0].mxu0
      %v3190 = vadd.f32 0.0, %v3189
      %v3191 = vpop.f32.mrb[0].mxu0
      %v3192 = vpop.f32.mrb[0].mxu0
      %v3193 = vadd.f32 0.0, %v3192
      %v3194 = vpop.f32.mrb[0].mxu0
      %3195 = vmatprep.mubr.bf16.mxu0 0
      %3196 = vmatmul.mubr.bf16.gmra.mrb[0].mxu0 %v2972
      %v3197 = vpop.f32.mrb[0].mxu0
      %v3198 = vadd.f32 0.0, %v3197
      %v3199 = vpop.f32.mrb[0].mxu0
      %v3200 = vpop.f32.mrb[0].mxu0
      %v3201 = vadd.f32 0.0, %v3200
      %v3202 = vpop.f32.mrb[0].mxu0
      %3203 = vmatprep.mubr.bf16.mxu0 0
      %3204 = vmatmul.mubr.bf16.gmra.mrb[0].mxu0 %v2974
      %v3205 = vpop.f32.mrb[0].mxu0
      %v3206 = vadd.f32 0.0, %v3205
      %v3207 = vpop.f32.mrb[0].mxu0
      %v3208 = vpop.f32.mrb[0].mxu0
      %v3209 = vadd.f32 0.0, %v3208
      %v3210 = vpop.f32.mrb[0].mxu0
      %3211 = vmatprep.mubr.bf16.mxu0 0
      %3212 = vmatmul.mubr.bf16.gmra.mrb[0].mxu0 %v2976
      %v3213 = vpop.f32.mrb[0].mxu0
      %v3214 = vadd.f32 0.0, %v3213
      %v3215 = vpop.f32.mrb[0].mxu0
      %v3216 = vpop.f32.mrb[0].mxu0
      %v3217 = vadd.f32 0.0, %v3216
      %v3218 = vpop.f32.mrb[0].mxu0
      %3219 = vmatprep.mubr.bf16.mxu0 0
      %3220 = vmatmul.mubr.bf16.gmra.mrb[0].mxu0 %v2978
      %v3221 = vpop.f32.mrb[0].mxu0
      %v3222 = vadd.f32 0.0, %v3221
      %v3223 = vpop.f32.mrb[0].mxu0
      %v3224 = vpop.f32.mrb[0].mxu0
      %v3225 = vadd.f32 0.0, %v3224
      %v3226 = vpop.f32.mrb[0].mxu0
      %3227 = vmatprep.mubr.bf16.mxu0 0
      %3228 = vmatmul.mubr.bf16.gmra.mrb[0].mxu0 %v2980
      %v3229 = vpop.f32.mrb[0].mxu0
      %v3230 = vadd.f32 0.0, %v3229
      %v3231 = vpop.f32.mrb[0].mxu0
      %v3232 = vpop.f32.mrb[0].mxu0
      %v3233 = vadd.f32 0.0, %v3232
      %v3234 = vpop.f32.mrb[0].mxu0
      %3235 = vmatprep.mubr.bf16.mxu0 0
      %3236 = vmatmul.mubr.bf16.gmra.mrb[0].mxu0 %v2982
      %v3237 = vpop.f32.mrb[0].mxu0
      %v3238 = vadd.f32 0.0, %v3237
      %v3239 = vpop.f32.mrb[0].mxu0
      %v3240 = vpop.f32.mrb[0].mxu0
      %v3241 = vadd.f32 0.0, %v3240
      %v3242 = vpop.f32.mrb[0].mxu0
      %3243 = vmatprep.mubr.bf16.mxu0 0
      %3244 = vmatmul.mubr.bf16.gmra.mrb[0].mxu0 %v2984
      %v3245 = vpop.f32.mrb[0].mxu0
      %v3246 = vadd.f32 0.0, %v3245
      %v3247 = vpop.f32.mrb[0].mxu0
      %v3248 = vpop.f32.mrb[0].mxu0
      %v3249 = vadd.f32 0.0, %v3248
      %v3250 = vpop.f32.mrb[0].mxu0
      %3251 = vmatprep.mubr.bf16.mxu0 0
      %3252 = vmatmul.mubr.bf16.gmra.mrb[0].mxu0 %v2986
      %v3253 = vpop.f32.mrb[0].mxu0
      %v3254 = vadd.f32 0.0, %v3253
      %v3255 = vpop.f32.mrb[0].mxu0
      %v3256 = vpop.f32.mrb[0].mxu0
      %v3257 = vadd.f32 0.0, %v3256
      %v3258 = vpop.f32.mrb[0].mxu0
      %3259 = vmatprep.mubr.bf16.mxu0 0
      %3260 = vmatmul.mubr.bf16.gmra.mrb[0].mxu0 %v2988
      %v3261 = vpop.f32.mrb[0].mxu0
      %v3262 = vadd.f32 0.0, %v3261
      %v3263 = vpop.f32.mrb[0].mxu0
      %v3264 = vpop.f32.mrb[0].mxu0
      %v3265 = vadd.f32 0.0, %v3264
      %v3266 = vpop.f32.mrb[0].mxu0
      %3267 = vmatprep.mubr.bf16.mxu0 0
      %3268 = vmatmul.mubr.bf16.gmra.mrb[0].mxu0 %v2990
      %v3269 = vpop.f32.mrb[0].mxu0
      %v3270 = vadd.f32 0.0, %v3269
      %v3271 = vpop.f32.mrb[0].mxu0
      %v3272 = vpop.f32.mrb[0].mxu0
      %v3273 = vadd.f32 0.0, %v3272
      %v3274 = vpop.f32.mrb[0].mxu0
      %3275 = vmatprep.mubr.bf16.mxu0 0
      %3276 = vmatmul.mubr.bf16.gmra.mrb[0].mxu0 %v2992
      %v3277 = vpop.f32.mrb[0].mxu0
      %v3278 = vadd.f32 0.0, %v3277
      %v3279 = vpop.f32.mrb[0].mxu0
      %v3280 = vpop.f32.mrb[0].mxu0
      %v3281 = vadd.f32 0.0, %v3280
      %v3282 = vpop.f32.mrb[0].mxu0
      %3283 = vmatprep.mubr.bf16.mxu0 0
      %3284 = vmatmul.mubr.bf16.gmra.mrb[0].mxu0 %v2994
      %v3285 = vpop.f32.mrb[0].mxu0
      %v3286 = vadd.f32 0.0, %v3285
      %v3287 = vpop.f32.mrb[0].mxu0
      %v3288 = vpop.f32.mrb[0].mxu0
      %v3289 = vadd.f32 0.0, %v3288
      %v3290 = vpop.f32.mrb[0].mxu0
      %3291 = vdwg.mxu0
      %v3292 = vadd.f32 %v2877, %v3102
      %v3293 = vadd.f32 %v2878, %v3105
      %v3294 = vadd.f32 %v2879, %v3110
      %v3295 = vadd.f32 %v2880, %v3113
      %v3296 = vadd.f32 %v2881, %v3118
      %v3297 = vadd.f32 %v2882, %v3121
      %v3298 = vadd.f32 %v2883, %v3126
      %v3299 = vadd.f32 %v2884, %v3129
      %v3300 = vadd.f32 %v2885, %v3134
      %v3301 = vadd.f32 %v2886, %v3137
      %v3302 = vadd.f32 %v2887, %v3142
      %v3303 = vadd.f32 %v2888, %v3145
      %v3304 = vadd.f32 %v2889, %v3150
      %v3305 = vadd.f32 %v2890, %v3153
      %v3306 = vadd.f32 %v2891, %v3158
      %v3307 = vadd.f32 %v2892, %v3161
      %v3308 = vadd.f32 %v2893, %v3166
      %v3309 = vadd.f32 %v2894, %v3169
      %v3310 = vadd.f32 %v2895, %v3174
      %v3311 = vadd.f32 %v2896, %v3177
      %v3312 = vadd.f32 %v2897, %v3182
      %v3313 = vadd.f32 %v2898, %v3185
      %v3314 = vadd.f32 %v2899, %v3190
      %v3315 = vadd.f32 %v2900, %v3193
      %v3316 = vadd.f32 %v2901, %v3198
      %v3317 = vadd.f32 %v2902, %v3201
      %v3318 = vadd.f32 %v2903, %v3206
      %v3319 = vadd.f32 %v2904, %v3209
      %v3320 = vadd.f32 %v2905, %v3214
      %v3321 = vadd.f32 %v2906, %v3217
      %v3322 = vadd.f32 %v2907, %v3222
      %v3323 = vadd.f32 %v2908, %v3225
      %v3324 = vadd.f32 %v2909, %v3230
      %v3325 = vadd.f32 %v2910, %v3233
      %v3326 = vadd.f32 %v2911, %v3238
      %v3327 = vadd.f32 %v2912, %v3241
      %v3328 = vadd.f32 %v2913, %v3246
      %v3329 = vadd.f32 %v2914, %v3249
      %v3330 = vadd.f32 %v2915, %v3254
      %v3331 = vadd.f32 %v2916, %v3257
      %v3332 = vadd.f32 %v2917, %v3262
      %v3333 = vadd.f32 %v2918, %v3265
      %v3334 = vadd.f32 %v2919, %v3270
      %v3335 = vadd.f32 %v2920, %v3273
      %v3336 = vadd.f32 %v2921, %v3278
      %v3337 = vadd.f32 %v2922, %v3281
      %v3338 = vadd.f32 %v2923, %v3286
      %v3339 = vadd.f32 %v2924, %v3289
      %v3340 = vld [vmem:[%s246 + $0x18] sm:$0xf]
      %v3341 = vld [vmem:[%s246 + $0x1c] sm:$0xf]
      %v3342 = vld [vmem:[%s246 + $0x20] sm:$0xf]
      %v3343 = vld [vmem:[%s246 + $0x24] sm:$0xf]
      %v3344 = vld [vmem:[%s246 + $0x28] sm:$0xf]
      %v3345 = vld [vmem:[%s246 + $0x2c] sm:$0xf]
      %v3346 = vld [vmem:[%s246 + $0x30] sm:$0xf]
      %v3347 = vld [vmem:[%s246 + $0x34] sm:$0xf]
      %v3348 = vld [vmem:[%s246 + $0x38] sm:$0xf]
      %v3349 = vld [vmem:[%s246 + $0x3c] sm:$0xf]
      %v3350 = vld [vmem:[%s246 + $0x40] sm:$0xf]
      %v3351 = vld [vmem:[%s246 + $0x44] sm:$0xf]
      %v3352 = vld [vmem:[%s246 + $0x48] sm:$0xf]
      %v3353 = vld [vmem:[%s246 + $0x4c] sm:$0xf]
      %v3354 = vld [vmem:[%s246 + $0x50] sm:$0xf]
      %v3355 = vld [vmem:[%s246 + $0x54] sm:$0xf]
      %v3356 = vld [vmem:[%s246 + $0x58] sm:$0xf]
      %v3357 = vld [vmem:[%s246 + $0x5c] sm:$0xf]
      %v3358 = vld [vmem:[%s246 + $0x60] sm:$0xf]
      %v3359 = vld [vmem:[%s246 + $0x64] sm:$0xf]
      %v3360 = vld [vmem:[%s246 + $0x68] sm:$0xf]
      %v3361 = vld [vmem:[%s246 + $0x6c] sm:$0xf]
      %v3362 = vld [vmem:[%s246 + $0x70] sm:$0xf]
      %v3363 = vld [vmem:[%s246 + $0x74] sm:$0xf]
      %v3364 = vld [vmem:[%s246 + $0x78] sm:$0xf]
      %v3365 = vld [vmem:[%s246 + $0x7c] sm:$0xf]
      %v3366 = vld [vmem:[%s246 + $0x80] sm:$0xf]
      %v3367 = vld [vmem:[%s246 + $0x84] sm:$0xf]
      %v3368 = vld [vmem:[%s246 + $0x88] sm:$0xf]
      %v3369 = vld [vmem:[%s246 + $0x8c] sm:$0xf]
      %v3370 = vld [vmem:[%s246 + $0x90] sm:$0xf]
      %v3371 = vld [vmem:[%s246 + $0x94] sm:$0xf]
      %v3372 = vld [vmem:[%s246 + $0x98] sm:$0xf]
      %v3373 = vld [vmem:[%s246 + $0x9c] sm:$0xf]
      %v3374 = vld [vmem:[%s246 + $0xa0] sm:$0xf]
      %v3375 = vld [vmem:[%s246 + $0xa4] sm:$0xf]
      %v3376 = vld [vmem:[%s246 + $0xa8] sm:$0xf]
      %v3377 = vld [vmem:[%s246 + $0xac] sm:$0xf]
      %v3378 = vld [vmem:[%s246 + $0xb0] sm:$0xf]
      %v3379 = vld [vmem:[%s246 + $0xb4] sm:$0xf]
      %v3380 = vld [vmem:[%s246 + $0xb8] sm:$0xf]
      %v3381 = vld [vmem:[%s246 + $0xbc] sm:$0xf]
      %v3382 = vld [vmem:[%s246 + $0xc0] sm:$0xf]
      %v3383 = vld [vmem:[%s246 + $0xc4] sm:$0xf]
      %v3384 = vld [vmem:[%s246 + $0xc8] sm:$0xf]
      %v3385 = vld [vmem:[%s246 + $0xcc] sm:$0xf]
      %v3386 = vld [vmem:[%s246 + $0xd0] sm:$0xf]
      %v3387 = vld [vmem:[%s246 + $0xd4] sm:$0xf]
      %s3388 = scalar_lea.vmem %s1, 384
      %v3389 = vld [vmem:[%s3388] sm:$0xf]
      %v3390 = vld [vmem:[%s3388 + $0x4] sm:$0xf]
      %v3391 = vld [vmem:[%s3388 + $0x8] sm:$0xf]
      %v3392 = vld [vmem:[%s3388 + $0xc] sm:$0xf]
      %v3393 = vld [vmem:[%s3388 + $0x10] sm:$0xf]
      %v3394 = vld [vmem:[%s3388 + $0x14] sm:$0xf]
      %v3395 = vld [vmem:[%s3388 + $0x18] sm:$0xf]
      %v3396 = vld [vmem:[%s3388 + $0x1c] sm:$0xf]
      %v3397 = vld [vmem:[%s3388 + $0x20] sm:$0xf]
      %v3398 = vld [vmem:[%s3388 + $0x24] sm:$0xf]
      %v3399 = vld [vmem:[%s3388 + $0x28] sm:$0xf]
      %v3400 = vld [vmem:[%s3388 + $0x2c] sm:$0xf]
      %v3401 = vld [vmem:[%s3388 + $0x30] sm:$0xf]
      %v3402 = vld [vmem:[%s3388 + $0x34] sm:$0xf]
      %v3403 = vld [vmem:[%s3388 + $0x38] sm:$0xf]
      %v3404 = vld [vmem:[%s3388 + $0x3c] sm:$0xf]
      %v3453 = vunpack.c.l.b16 %v3340
      %v3454 = vunpack.c.l.b16 %v3341
      %v3455 = vunpack.c.l.b16 %v3342
      %v3456 = vunpack.c.l.b16 %v3343
      %v3457 = vunpack.c.l.b16 %v3344
      %v3458 = vunpack.c.l.b16 %v3345
      %v3459 = vunpack.c.l.b16 %v3346
      %v3460 = vunpack.c.l.b16 %v3347
      %v3461 = vunpack.c.l.b16 %v3348
      %v3462 = vunpack.c.l.b16 %v3349
      %v3463 = vunpack.c.l.b16 %v3350
      %v3464 = vunpack.c.l.b16 %v3351
      %v3465 = vunpack.c.l.b16 %v3352
      %v3466 = vunpack.c.l.b16 %v3353
      %v3467 = vunpack.c.l.b16 %v3354
      %v3468 = vunpack.c.l.b16 %v3355
      %v3469 = vunpack.c.l.b16 %v3356
      %v3470 = vunpack.c.l.b16 %v3357
      %v3471 = vunpack.c.l.b16 %v3358
      %v3472 = vunpack.c.l.b16 %v3359
      %v3473 = vunpack.c.l.b16 %v3360
      %v3474 = vunpack.c.l.b16 %v3361
      %v3475 = vunpack.c.l.b16 %v3362
      %v3476 = vunpack.c.l.b16 %v3363
      %v3477 = vunpack.c.l.b16 %v3364
      %v3478 = vunpack.c.l.b16 %v3365
      %v3479 = vunpack.c.l.b16 %v3366
      %v3480 = vunpack.c.l.b16 %v3367
      %v3481 = vunpack.c.l.b16 %v3368
      %v3482 = vunpack.c.l.b16 %v3369
      %v3483 = vunpack.c.l.b16 %v3370
      %v3484 = vunpack.c.l.b16 %v3371
      %v3485 = vunpack.c.l.b16 %v3372
      %v3486 = vunpack.c.l.b16 %v3373
      %v3487 = vunpack.c.l.b16 %v3374
      %v3488 = vunpack.c.l.b16 %v3375
      %v3489 = vunpack.c.l.b16 %v3376
      %v3490 = vunpack.c.l.b16 %v3377
      %v3491 = vunpack.c.l.b16 %v3378
      %v3492 = vunpack.c.l.b16 %v3379
      %v3493 = vunpack.c.l.b16 %v3380
      %v3494 = vunpack.c.l.b16 %v3381
      %v3495 = vunpack.c.l.b16 %v3382
      %v3496 = vunpack.c.l.b16 %v3383
      %v3497 = vunpack.c.l.b16 %v3384
      %v3498 = vunpack.c.l.b16 %v3385
      %v3499 = vunpack.c.l.b16 %v3386
      %v3500 = vunpack.c.l.b16 %v3387
      %v3501 = vpack.c.b16 %v3454, %v3453
      %v3502 = vpack.c.b16 %v3456, %v3455
      %v3503 = vpack.c.b16 %v3458, %v3457
      %v3504 = vpack.c.b16 %v3460, %v3459
      %v3505 = vpack.c.b16 %v3462, %v3461
      %v3506 = vpack.c.b16 %v3464, %v3463
      %v3507 = vpack.c.b16 %v3466, %v3465
      %v3508 = vpack.c.b16 %v3468, %v3467
      %v3509 = vpack.c.b16 %v3470, %v3469
      %v3510 = vpack.c.b16 %v3472, %v3471
      %v3511 = vpack.c.b16 %v3474, %v3473
      %v3512 = vpack.c.b16 %v3476, %v3475
      %v3513 = vpack.c.b16 %v3478, %v3477
      %v3514 = vpack.c.b16 %v3480, %v3479
      %v3515 = vpack.c.b16 %v3482, %v3481
      %v3516 = vpack.c.b16 %v3484, %v3483
      %v3517 = vpack.c.b16 %v3486, %v3485
      %v3518 = vpack.c.b16 %v3488, %v3487
      %v3519 = vpack.c.b16 %v3490, %v3489
      %v3520 = vpack.c.b16 %v3492, %v3491
      %v3521 = vpack.c.b16 %v3494, %v3493
      %v3522 = vpack.c.b16 %v3496, %v3495
      %v3523 = vpack.c.b16 %v3498, %v3497
      %v3524 = vpack.c.b16 %v3500, %v3499
      %v3565 = vunpack.c.l.b16 %v3389
      %v3566 = vunpack.c.l.b16 %v3390
      %v3567 = vunpack.c.l.b16 %v3391
      %v3568 = vunpack.c.l.b16 %v3392
      %v3569 = vunpack.c.l.b16 %v3393
      %v3570 = vunpack.c.l.b16 %v3394
      %v3571 = vunpack.c.l.b16 %v3395
      %v3572 = vunpack.c.l.b16 %v3396
      %v3573 = vunpack.c.l.b16 %v3397
      %v3574 = vunpack.c.l.b16 %v3398
      %v3575 = vunpack.c.l.b16 %v3399
      %v3576 = vunpack.c.l.b16 %v3400
      %v3577 = vunpack.c.l.b16 %v3401
      %v3578 = vunpack.c.l.b16 %v3402
      %v3579 = vunpack.c.l.b16 %v3403
      %v3580 = vunpack.c.l.b16 %v3404
      %v3581 = vpack.c.b16 %v3566, %v3565
      %v3582 = vpack.c.b16 %v3568, %v3567
      %v3583 = vpack.c.b16 %v3570, %v3569
      %v3584 = vpack.c.b16 %v3572, %v3571
      %v3585 = vpack.c.b16 %v3574, %v3573
      %v3586 = vpack.c.b16 %v3576, %v3575
      %v3587 = vpack.c.b16 %v3578, %v3577
      %v3588 = vpack.c.b16 %v3580, %v3579
      %3597 = vmatprep.subr.bf16.mxu0 0
      %3598 = vmatpush1.bf16.msra.mxu0 %v3581
      %3599 = vmatprep.subr.bf16.mxu0 0
      %3600 = vmatpush1.bf16.msra.mxu0 %v3582
      %3601 = vmatprep.subr.bf16.mxu0 0
      %3602 = vmatpush1.bf16.msra.mxu0 %v3583
      %3603 = vmatprep.subr.bf16.mxu0 0
      %3604 = vmatpush1.bf16.msra.mxu0 %v3584
      %3605 = vmatprep.subr.bf16.mxu0 0
      %3606 = vmatpush1.bf16.msra.mxu0 %v3585
      %3607 = vmatprep.subr.bf16.mxu0 0
      %3608 = vmatpush1.bf16.msra.mxu0 %v3586
      %3609 = vmatprep.subr.bf16.mxu0 0
      %3610 = vmatpush1.bf16.msra.mxu0 %v3587
      %3611 = vmatprep.subr.bf16.mxu0 0
      %3612 = vmatpush1.bf16.msra.mxu0 %v3588
      %3613 = vmatprep.subr.bf16.mxu0 0
      %3614 = vmatpush1.bf16.msra.mxu0 0
      %3615 = vmatprep.subr.bf16.mxu0 0
      %3616 = vmatpush1.bf16.msra.mxu0 0
      %3617 = vmatprep.subr.bf16.mxu0 0
      %3618 = vmatpush1.bf16.msra.mxu0 0
      %3619 = vmatprep.subr.bf16.mxu0 0
      %3620 = vmatpush1.bf16.msra.mxu0 0
      %3621 = vmatprep.subr.bf16.mxu0 0
      %3622 = vmatpush1.bf16.msra.mxu0 0
      %3623 = vmatprep.subr.bf16.mxu0 0
      %3624 = vmatpush1.bf16.msra.mxu0 0
      %3625 = vmatprep.subr.bf16.mxu0 0
      %3626 = vmatpush1.bf16.msra.mxu0 0
      %3627 = vmatprep.subr.bf16.mxu0 0
      %3628 = vmatpush1.bf16.msra.mxu0 0
      %3629 = vmatprep.mubr.bf16.mxu0 0
      %3630 = vmatmul.mubr.bf16.gmra.mrb[0].mxu0 %v3501
      %v3631 = vpop.f32.mrb[0].mxu0
      %v3632 = vadd.f32 0.0, %v3631
      %v3633 = vpop.f32.mrb[0].mxu0
      %v3634 = vpop.f32.mrb[0].mxu0
      %v3635 = vadd.f32 0.0, %v3634
      %v3636 = vpop.f32.mrb[0].mxu0
      %3637 = vmatprep.mubr.bf16.mxu0 0
      %3638 = vmatmul.mubr.bf16.gmra.mrb[0].mxu0 %v3502
      %v3639 = vpop.f32.mrb[0].mxu0
      %v3640 = vadd.f32 0.0, %v3639
      %v3641 = vpop.f32.mrb[0].mxu0
      %v3642 = vpop.f32.mrb[0].mxu0
      %v3643 = vadd.f32 0.0, %v3642
      %v3644 = vpop.f32.mrb[0].mxu0
      %3645 = vmatprep.mubr.bf16.mxu0 0
      %3646 = vmatmul.mubr.bf16.gmra.mrb[0].mxu0 %v3503
      %v3647 = vpop.f32.mrb[0].mxu0
      %v3648 = vadd.f32 0.0, %v3647
      %v3649 = vpop.f32.mrb[0].mxu0
      %v3650 = vpop.f32.mrb[0].mxu0
      %v3651 = vadd.f32 0.0, %v3650
      %v3652 = vpop.f32.mrb[0].mxu0
      %3653 = vmatprep.mubr.bf16.mxu0 0
      %3654 = vmatmul.mubr.bf16.gmra.mrb[0].mxu0 %v3504
      %v3655 = vpop.f32.mrb[0].mxu0
      %v3656 = vadd.f32 0.0, %v3655
      %v3657 = vpop.f32.mrb[0].mxu0
      %v3658 = vpop.f32.mrb[0].mxu0
      %v3659 = vadd.f32 0.0, %v3658
      %v3660 = vpop.f32.mrb[0].mxu0
      %3661 = vmatprep.mubr.bf16.mxu0 0
      %3662 = vmatmul.mubr.bf16.gmra.mrb[0].mxu0 %v3505
      %v3663 = vpop.f32.mrb[0].mxu0
      %v3664 = vadd.f32 0.0, %v3663
      %v3665 = vpop.f32.mrb[0].mxu0
      %v3666 = vpop.f32.mrb[0].mxu0
      %v3667 = vadd.f32 0.0, %v3666
      %v3668 = vpop.f32.mrb[0].mxu0
      %3669 = vmatprep.mubr.bf16.mxu0 0
      %3670 = vmatmul.mubr.bf16.gmra.mrb[0].mxu0 %v3506
      %v3671 = vpop.f32.mrb[0].mxu0
      %v3672 = vadd.f32 0.0, %v3671
      %v3673 = vpop.f32.mrb[0].mxu0
      %v3674 = vpop.f32.mrb[0].mxu0
      %v3675 = vadd.f32 0.0, %v3674
      %v3676 = vpop.f32.mrb[0].mxu0
      %3677 = vmatprep.mubr.bf16.mxu0 0
      %3678 = vmatmul.mubr.bf16.gmra.mrb[0].mxu0 %v3507
      %v3679 = vpop.f32.mrb[0].mxu0
      %v3680 = vadd.f32 0.0, %v3679
      %v3681 = vpop.f32.mrb[0].mxu0
      %v3682 = vpop.f32.mrb[0].mxu0
      %v3683 = vadd.f32 0.0, %v3682
      %v3684 = vpop.f32.mrb[0].mxu0
      %3685 = vmatprep.mubr.bf16.mxu0 0
      %3686 = vmatmul.mubr.bf16.gmra.mrb[0].mxu0 %v3508
      %v3687 = vpop.f32.mrb[0].mxu0
      %v3688 = vadd.f32 0.0, %v3687
      %v3689 = vpop.f32.mrb[0].mxu0
      %v3690 = vpop.f32.mrb[0].mxu0
      %v3691 = vadd.f32 0.0, %v3690
      %v3692 = vpop.f32.mrb[0].mxu0
      %3693 = vmatprep.mubr.bf16.mxu0 0
      %3694 = vmatmul.mubr.bf16.gmra.mrb[0].mxu0 %v3509
      %v3695 = vpop.f32.mrb[0].mxu0
      %v3696 = vadd.f32 0.0, %v3695
      %v3697 = vpop.f32.mrb[0].mxu0
      %v3698 = vpop.f32.mrb[0].mxu0
      %v3699 = vadd.f32 0.0, %v3698
      %v3700 = vpop.f32.mrb[0].mxu0
      %3701 = vmatprep.mubr.bf16.mxu0 0
      %3702 = vmatmul.mubr.bf16.gmra.mrb[0].mxu0 %v3510
      %v3703 = vpop.f32.mrb[0].mxu0
      %v3704 = vadd.f32 0.0, %v3703
      %v3705 = vpop.f32.mrb[0].mxu0
      %v3706 = vpop.f32.mrb[0].mxu0
      %v3707 = vadd.f32 0.0, %v3706
      %v3708 = vpop.f32.mrb[0].mxu0
      %3709 = vmatprep.mubr.bf16.mxu0 0
      %3710 = vmatmul.mubr.bf16.gmra.mrb[0].mxu0 %v3511
      %v3711 = vpop.f32.mrb[0].mxu0
      %v3712 = vadd.f32 0.0, %v3711
      %v3713 = vpop.f32.mrb[0].mxu0
      %v3714 = vpop.f32.mrb[0].mxu0
      %v3715 = vadd.f32 0.0, %v3714
      %v3716 = vpop.f32.mrb[0].mxu0
      %3717 = vmatprep.mubr.bf16.mxu0 0
      %3718 = vmatmul.mubr.bf16.gmra.mrb[0].mxu0 %v3512
      %v3719 = vpop.f32.mrb[0].mxu0
      %v3720 = vadd.f32 0.0, %v3719
      %v3721 = vpop.f32.mrb[0].mxu0
      %v3722 = vpop.f32.mrb[0].mxu0
      %v3723 = vadd.f32 0.0, %v3722
      %v3724 = vpop.f32.mrb[0].mxu0
      %3725 = vmatprep.mubr.bf16.mxu0 0
      %3726 = vmatmul.mubr.bf16.gmra.mrb[0].mxu0 %v3513
      %v3727 = vpop.f32.mrb[0].mxu0
      %v3728 = vadd.f32 0.0, %v3727
      %v3729 = vpop.f32.mrb[0].mxu0
      %v3730 = vpop.f32.mrb[0].mxu0
      %v3731 = vadd.f32 0.0, %v3730
      %v3732 = vpop.f32.mrb[0].mxu0
      %3733 = vmatprep.mubr.bf16.mxu0 0
      %3734 = vmatmul.mubr.bf16.gmra.mrb[0].mxu0 %v3514
      %v3735 = vpop.f32.mrb[0].mxu0
      %v3736 = vadd.f32 0.0, %v3735
      %v3737 = vpop.f32.mrb[0].mxu0
      %v3738 = vpop.f32.mrb[0].mxu0
      %v3739 = vadd.f32 0.0, %v3738
      %v3740 = vpop.f32.mrb[0].mxu0
      %3741 = vmatprep.mubr.bf16.mxu0 0
      %3742 = vmatmul.mubr.bf16.gmra.mrb[0].mxu0 %v3515
      %v3743 = vpop.f32.mrb[0].mxu0
      %v3744 = vadd.f32 0.0, %v3743
      %v3745 = vpop.f32.mrb[0].mxu0
      %v3746 = vpop.f32.mrb[0].mxu0
      %v3747 = vadd.f32 0.0, %v3746
      %v3748 = vpop.f32.mrb[0].mxu0
      %3749 = vmatprep.mubr.bf16.mxu0 0
      %3750 = vmatmul.mubr.bf16.gmra.mrb[0].mxu0 %v3516
      %v3751 = vpop.f32.mrb[0].mxu0
      %v3752 = vadd.f32 0.0, %v3751
      %v3753 = vpop.f32.mrb[0].mxu0
      %v3754 = vpop.f32.mrb[0].mxu0
      %v3755 = vadd.f32 0.0, %v3754
      %v3756 = vpop.f32.mrb[0].mxu0
      %3757 = vmatprep.mubr.bf16.mxu0 0
      %3758 = vmatmul.mubr.bf16.gmra.mrb[0].mxu0 %v3517
      %v3759 = vpop.f32.mrb[0].mxu0
      %v3760 = vadd.f32 0.0, %v3759
      %v3761 = vpop.f32.mrb[0].mxu0
      %v3762 = vpop.f32.mrb[0].mxu0
      %v3763 = vadd.f32 0.0, %v3762
      %v3764 = vpop.f32.mrb[0].mxu0
      %3765 = vmatprep.mubr.bf16.mxu0 0
      %3766 = vmatmul.mubr.bf16.gmra.mrb[0].mxu0 %v3518
      %v3767 = vpop.f32.mrb[0].mxu0
      %v3768 = vadd.f32 0.0, %v3767
      %v3769 = vpop.f32.mrb[0].mxu0
      %v3770 = vpop.f32.mrb[0].mxu0
      %v3771 = vadd.f32 0.0, %v3770
      %v3772 = vpop.f32.mrb[0].mxu0
      %3773 = vmatprep.mubr.bf16.mxu0 0
      %3774 = vmatmul.mubr.bf16.gmra.mrb[0].mxu0 %v3519
      %v3775 = vpop.f32.mrb[0].mxu0
      %v3776 = vadd.f32 0.0, %v3775
      %v3777 = vpop.f32.mrb[0].mxu0
      %v3778 = vpop.f32.mrb[0].mxu0
      %v3779 = vadd.f32 0.0, %v3778
      %v3780 = vpop.f32.mrb[0].mxu0
      %3781 = vmatprep.mubr.bf16.mxu0 0
      %3782 = vmatmul.mubr.bf16.gmra.mrb[0].mxu0 %v3520
      %v3783 = vpop.f32.mrb[0].mxu0
      %v3784 = vadd.f32 0.0, %v3783
      %v3785 = vpop.f32.mrb[0].mxu0
      %v3786 = vpop.f32.mrb[0].mxu0
      %v3787 = vadd.f32 0.0, %v3786
      %v3788 = vpop.f32.mrb[0].mxu0
      %3789 = vmatprep.mubr.bf16.mxu0 0
      %3790 = vmatmul.mubr.bf16.gmra.mrb[0].mxu0 %v3521
      %v3791 = vpop.f32.mrb[0].mxu0
      %v3792 = vadd.f32 0.0, %v3791
      %v3793 = vpop.f32.mrb[0].mxu0
      %v3794 = vpop.f32.mrb[0].mxu0
      %v3795 = vadd.f32 0.0, %v3794
      %v3796 = vpop.f32.mrb[0].mxu0
      %3797 = vmatprep.mubr.bf16.mxu0 0
      %3798 = vmatmul.mubr.bf16.gmra.mrb[0].mxu0 %v3522
      %v3799 = vpop.f32.mrb[0].mxu0
      %v3800 = vadd.f32 0.0, %v3799
      %v3801 = vpop.f32.mrb[0].mxu0
      %v3802 = vpop.f32.mrb[0].mxu0
      %v3803 = vadd.f32 0.0, %v3802
      %v3804 = vpop.f32.mrb[0].mxu0
      %3805 = vmatprep.mubr.bf16.mxu0 0
      %3806 = vmatmul.mubr.bf16.gmra.mrb[0].mxu0 %v3523
      %v3807 = vpop.f32.mrb[0].mxu0
      %v3808 = vadd.f32 0.0, %v3807
      %v3809 = vpop.f32.mrb[0].mxu0
      %v3810 = vpop.f32.mrb[0].mxu0
      %v3811 = vadd.f32 0.0, %v3810
      %v3812 = vpop.f32.mrb[0].mxu0
      %3813 = vmatprep.mubr.bf16.mxu0 0
      %3814 = vmatmul.mubr.bf16.gmra.mrb[0].mxu0 %v3524
      %v3815 = vpop.f32.mrb[0].mxu0
      %v3816 = vadd.f32 0.0, %v3815
      %v3817 = vpop.f32.mrb[0].mxu0
      %v3818 = vpop.f32.mrb[0].mxu0
      %v3819 = vadd.f32 0.0, %v3818
      %v3820 = vpop.f32.mrb[0].mxu0
      %3821 = vdwg.mxu0
      %v3822 = vadd.f32 %v3292, %v3632
      %v3823 = vadd.f32 %v3293, %v3635
      %v3824 = vadd.f32 %v3294, %v3640
      %v3825 = vadd.f32 %v3295, %v3643
      %v3826 = vadd.f32 %v3296, %v3648
      %v3827 = vadd.f32 %v3297, %v3651
      %v3828 = vadd.f32 %v3298, %v3656
      %v3829 = vadd.f32 %v3299, %v3659
      %v3830 = vadd.f32 %v3300, %v3664
      %v3831 = vadd.f32 %v3301, %v3667
      %v3832 = vadd.f32 %v3302, %v3672
      %v3833 = vadd.f32 %v3303, %v3675
      %v3834 = vadd.f32 %v3304, %v3680
      %v3835 = vadd.f32 %v3305, %v3683
      %v3836 = vadd.f32 %v3306, %v3688
      %v3837 = vadd.f32 %v3307, %v3691
      %v3838 = vadd.f32 %v3308, %v3696
      %v3839 = vadd.f32 %v3309, %v3699
      %v3840 = vadd.f32 %v3310, %v3704
      %v3841 = vadd.f32 %v3311, %v3707
      %v3842 = vadd.f32 %v3312, %v3712
      %v3843 = vadd.f32 %v3313, %v3715
      %v3844 = vadd.f32 %v3314, %v3720
      %v3845 = vadd.f32 %v3315, %v3723
      %v3846 = vadd.f32 %v3316, %v3728
      %v3847 = vadd.f32 %v3317, %v3731
      %v3848 = vadd.f32 %v3318, %v3736
      %v3849 = vadd.f32 %v3319, %v3739
      %v3850 = vadd.f32 %v3320, %v3744
      %v3851 = vadd.f32 %v3321, %v3747
      %v3852 = vadd.f32 %v3322, %v3752
      %v3853 = vadd.f32 %v3323, %v3755
      %v3854 = vadd.f32 %v3324, %v3760
      %v3855 = vadd.f32 %v3325, %v3763
      %v3856 = vadd.f32 %v3326, %v3768
      %v3857 = vadd.f32 %v3327, %v3771
      %v3858 = vadd.f32 %v3328, %v3776
      %v3859 = vadd.f32 %v3329, %v3779
      %v3860 = vadd.f32 %v3330, %v3784
      %v3861 = vadd.f32 %v3331, %v3787
      %v3862 = vadd.f32 %v3332, %v3792
      %v3863 = vadd.f32 %v3333, %v3795
      %v3864 = vadd.f32 %v3334, %v3800
      %v3865 = vadd.f32 %v3335, %v3803
      %v3866 = vadd.f32 %v3336, %v3808
      %v3867 = vadd.f32 %v3337, %v3811
      %v3868 = vadd.f32 %v3338, %v3816
      %v3869 = vadd.f32 %v3339, %v3819
      %v3870 = vld [vmem:[%s246 + $0x18] sm:$0xf]
      %v3871 = vld [vmem:[%s246 + $0x1c] sm:$0xf]
      %v3872 = vld [vmem:[%s246 + $0x20] sm:$0xf]
      %v3873 = vld [vmem:[%s246 + $0x24] sm:$0xf]
      %v3874 = vld [vmem:[%s246 + $0x28] sm:$0xf]
      %v3875 = vld [vmem:[%s246 + $0x2c] sm:$0xf]
      %v3876 = vld [vmem:[%s246 + $0x30] sm:$0xf]
      %v3877 = vld [vmem:[%s246 + $0x34] sm:$0xf]
      %v3878 = vld [vmem:[%s246 + $0x38] sm:$0xf]
      %v3879 = vld [vmem:[%s246 + $0x3c] sm:$0xf]
      %v3880 = vld [vmem:[%s246 + $0x40] sm:$0xf]
      %v3881 = vld [vmem:[%s246 + $0x44] sm:$0xf]
      %v3882 = vld [vmem:[%s246 + $0x48] sm:$0xf]
      %v3883 = vld [vmem:[%s246 + $0x4c] sm:$0xf]
      %v3884 = vld [vmem:[%s246 + $0x50] sm:$0xf]
      %v3885 = vld [vmem:[%s246 + $0x54] sm:$0xf]
      %v3886 = vld [vmem:[%s246 + $0x58] sm:$0xf]
      %v3887 = vld [vmem:[%s246 + $0x5c] sm:$0xf]
      %v3888 = vld [vmem:[%s246 + $0x60] sm:$0xf]
      %v3889 = vld [vmem:[%s246 + $0x64] sm:$0xf]
      %v3890 = vld [vmem:[%s246 + $0x68] sm:$0xf]
      %v3891 = vld [vmem:[%s246 + $0x6c] sm:$0xf]
      %v3892 = vld [vmem:[%s246 + $0x70] sm:$0xf]
      %v3893 = vld [vmem:[%s246 + $0x74] sm:$0xf]
      %v3894 = vld [vmem:[%s246 + $0x78] sm:$0xf]
      %v3895 = vld [vmem:[%s246 + $0x7c] sm:$0xf]
      %v3896 = vld [vmem:[%s246 + $0x80] sm:$0xf]
      %v3897 = vld [vmem:[%s246 + $0x84] sm:$0xf]
      %v3898 = vld [vmem:[%s246 + $0x88] sm:$0xf]
      %v3899 = vld [vmem:[%s246 + $0x8c] sm:$0xf]
      %v3900 = vld [vmem:[%s246 + $0x90] sm:$0xf]
      %v3901 = vld [vmem:[%s246 + $0x94] sm:$0xf]
      %v3902 = vld [vmem:[%s246 + $0x98] sm:$0xf]
      %v3903 = vld [vmem:[%s246 + $0x9c] sm:$0xf]
      %v3904 = vld [vmem:[%s246 + $0xa0] sm:$0xf]
      %v3905 = vld [vmem:[%s246 + $0xa4] sm:$0xf]
      %v3906 = vld [vmem:[%s246 + $0xa8] sm:$0xf]
      %v3907 = vld [vmem:[%s246 + $0xac] sm:$0xf]
      %v3908 = vld [vmem:[%s246 + $0xb0] sm:$0xf]
      %v3909 = vld [vmem:[%s246 + $0xb4] sm:$0xf]
      %v3910 = vld [vmem:[%s246 + $0xb8] sm:$0xf]
      %v3911 = vld [vmem:[%s246 + $0xbc] sm:$0xf]
      %v3912 = vld [vmem:[%s246 + $0xc0] sm:$0xf]
      %v3913 = vld [vmem:[%s246 + $0xc4] sm:$0xf]
      %v3914 = vld [vmem:[%s246 + $0xc8] sm:$0xf]
      %v3915 = vld [vmem:[%s246 + $0xcc] sm:$0xf]
      %v3916 = vld [vmem:[%s246 + $0xd0] sm:$0xf]
      %v3917 = vld [vmem:[%s246 + $0xd4] sm:$0xf]
      %v3918 = vld [vmem:[%s246 + $0xd8] sm:$0x1]
      %s3919 = scalar_lea.vmem %s1, 448
      %v3920 = vld [vmem:[%s3919] sm:$0xf]
      %v3921 = vld [vmem:[%s3919 + $0x4] sm:$0xf]
      %v3922 = vld [vmem:[%s3919 + $0x8] sm:$0xf]
      %v3923 = vld [vmem:[%s3919 + $0xc] sm:$0xf]
      %v3924 = vld [vmem:[%s3919 + $0x10] sm:$0xf]
      %v3925 = vld [vmem:[%s3919 + $0x14] sm:$0xf]
      %v3926 = vld [vmem:[%s3919 + $0x18] sm:$0xf]
      %v3927 = vld [vmem:[%s3919 + $0x1c] sm:$0xf]
      %v3928 = vld [vmem:[%s3919 + $0x20] sm:$0xf]
      %v3929 = vld [vmem:[%s3919 + $0x24] sm:$0xf]
      %v3930 = vld [vmem:[%s3919 + $0x28] sm:$0xf]
      %v3931 = vld [vmem:[%s3919 + $0x2c] sm:$0xf]
      %v3932 = vld [vmem:[%s3919 + $0x30] sm:$0xf]
      %v3933 = vld [vmem:[%s3919 + $0x34] sm:$0xf]
      %v3934 = vld [vmem:[%s3919 + $0x38] sm:$0xf]
      %v3935 = vld [vmem:[%s3919 + $0x3c] sm:$0xf]
      %v3985 = vunpack.c.l.b16 %v3870
      %v3986 = vunpack.c.l.b16 %v3871
      %v3987 = vunpack.c.l.b16 %v3872
      %v3988 = vunpack.c.l.b16 %v3873
      %v3989 = vunpack.c.l.b16 %v3874
      %v3990 = vunpack.c.l.b16 %v3875
      %v3991 = vunpack.c.l.b16 %v3876
      %v3992 = vunpack.c.l.b16 %v3877
      %v3993 = vunpack.c.l.b16 %v3878
      %v3994 = vunpack.c.l.b16 %v3879
      %v3995 = vunpack.c.l.b16 %v3880
      %v3996 = vunpack.c.l.b16 %v3881
      %v3997 = vunpack.c.l.b16 %v3882
      %v3998 = vunpack.c.l.b16 %v3883
      %v3999 = vunpack.c.l.b16 %v3884
      %v4000 = vunpack.c.l.b16 %v3885
      %v4001 = vunpack.c.l.b16 %v3886
      %v4002 = vunpack.c.l.b16 %v3887
      %v4003 = vunpack.c.l.b16 %v3888
      %v4004 = vunpack.c.l.b16 %v3889
      %v4005 = vunpack.c.l.b16 %v3890
      %v4006 = vunpack.c.l.b16 %v3891
      %v4007 = vunpack.c.l.b16 %v3892
      %v4008 = vunpack.c.l.b16 %v3893
      %v4009 = vunpack.c.l.b16 %v3894
      %v4010 = vunpack.c.l.b16 %v3895
      %v4011 = vunpack.c.l.b16 %v3896
      %v4012 = vunpack.c.l.b16 %v3897
      %v4013 = vunpack.c.l.b16 %v3898
      %v4014 = vunpack.c.l.b16 %v3899
      %v4015 = vunpack.c.l.b16 %v3900
      %v4016 = vunpack.c.l.b16 %v3901
      %v4017 = vunpack.c.l.b16 %v3902
      %v4018 = vunpack.c.l.b16 %v3903
      %v4019 = vunpack.c.l.b16 %v3904
      %v4020 = vunpack.c.l.b16 %v3905
      %v4021 = vunpack.c.l.b16 %v3906
      %v4022 = vunpack.c.l.b16 %v3907
      %v4023 = vunpack.c.l.b16 %v3908
      %v4024 = vunpack.c.l.b16 %v3909
      %v4025 = vunpack.c.l.b16 %v3910
      %v4026 = vunpack.c.l.b16 %v3911
      %v4027 = vunpack.c.l.b16 %v3912
      %v4028 = vunpack.c.l.b16 %v3913
      %v4029 = vunpack.c.l.b16 %v3914
      %v4030 = vunpack.c.l.b16 %v3915
      %v4031 = vunpack.c.l.b16 %v3916
      %v4032 = vunpack.c.l.b16 %v3917
      %v4033 = vunpack.c.l.b16 %v3918
      %v4034 = vpack.c.b16 %v3986, %v3985
      %v4035 = vpack.c.b16 %v3988, %v3987
      %v4036 = vpack.c.b16 %v3990, %v3989
      %v4037 = vpack.c.b16 %v3992, %v3991
      %v4038 = vpack.c.b16 %v3994, %v3993
      %v4039 = vpack.c.b16 %v3996, %v3995
      %v4040 = vpack.c.b16 %v3998, %v3997
      %v4041 = vpack.c.b16 %v4000, %v3999
      %v4042 = vpack.c.b16 %v4002, %v4001
      %v4043 = vpack.c.b16 %v4004, %v4003
      %v4044 = vpack.c.b16 %v4006, %v4005
      %v4045 = vpack.c.b16 %v4008, %v4007
      %v4046 = vpack.c.b16 %v4010, %v4009
      %v4047 = vpack.c.b16 %v4012, %v4011
      %v4048 = vpack.c.b16 %v4014, %v4013
      %v4049 = vpack.c.b16 %v4016, %v4015
      %v4050 = vpack.c.b16 %v4018, %v4017
      %v4051 = vpack.c.b16 %v4020, %v4019
      %v4052 = vpack.c.b16 %v4022, %v4021
      %v4053 = vpack.c.b16 %v4024, %v4023
      %v4054 = vpack.c.b16 %v4026, %v4025
      %v4055 = vpack.c.b16 %v4028, %v4027
      %v4056 = vpack.c.b16 %v4030, %v4029
      %v4057 = vpack.c.b16 %v4032, %v4031
      %v4058 = vpack.c.b16 %v4033, %v4033
      %v4060 = vshrl.u32 %v4034, 16
      %v4062 = vshll.u32 %v4034, 16
      %v4064 = vrot.slane %v4062, 1
      %v4065 = vor.u32 %v4060, %v4064
      %v4067 = vshll.u32 %v4035, 16
      %v4069 = vrot.slane %v4067, 1
      %v4070 = vsel %vm458, %v4065, %v4069
      %v4071 = vshrl.u32 %v4035, 16
      %v4073 = vor.u32 %v4071, %v4069
      %v4075 = vshll.u32 %v4036, 16
      %v4077 = vrot.slane %v4075, 1
      %v4078 = vsel %vm458, %v4073, %v4077
      %v4079 = vshrl.u32 %v4036, 16
      %v4081 = vor.u32 %v4079, %v4077
      %v4083 = vshll.u32 %v4037, 16
      %v4085 = vrot.slane %v4083, 1
      %v4086 = vsel %vm458, %v4081, %v4085
      %v4087 = vshrl.u32 %v4037, 16
      %v4089 = vor.u32 %v4087, %v4085
      %v4091 = vshll.u32 %v4038, 16
      %v4093 = vrot.slane %v4091, 1
      %v4094 = vsel %vm458, %v4089, %v4093
      %v4095 = vshrl.u32 %v4038, 16
      %v4097 = vor.u32 %v4095, %v4093
      %v4099 = vshll.u32 %v4039, 16
      %v4101 = vrot.slane %v4099, 1
      %v4102 = vsel %vm458, %v4097, %v4101
      %v4103 = vshrl.u32 %v4039, 16
      %v4105 = vor.u32 %v4103, %v4101
      %v4107 = vshll.u32 %v4040, 16
      %v4109 = vrot.slane %v4107, 1
      %v4110 = vsel %vm458, %v4105, %v4109
      %v4111 = vshrl.u32 %v4040, 16
      %v4113 = vor.u32 %v4111, %v4109
      %v4115 = vshll.u32 %v4041, 16
      %v4117 = vrot.slane %v4115, 1
      %v4118 = vsel %vm458, %v4113, %v4117
      %v4119 = vshrl.u32 %v4041, 16
      %v4121 = vor.u32 %v4119, %v4117
      %v4123 = vshll.u32 %v4042, 16
      %v4125 = vrot.slane %v4123, 1
      %v4126 = vsel %vm458, %v4121, %v4125
      %v4127 = vshrl.u32 %v4042, 16
      %v4129 = vor.u32 %v4127, %v4125
      %v4131 = vshll.u32 %v4043, 16
      %v4133 = vrot.slane %v4131, 1
      %v4134 = vsel %vm458, %v4129, %v4133
      %v4135 = vshrl.u32 %v4043, 16
      %v4137 = vor.u32 %v4135, %v4133
      %v4139 = vshll.u32 %v4044, 16
      %v4141 = vrot.slane %v4139, 1
      %v4142 = vsel %vm458, %v4137, %v4141
      %v4143 = vshrl.u32 %v4044, 16
      %v4145 = vor.u32 %v4143, %v4141
      %v4147 = vshll.u32 %v4045, 16
      %v4149 = vrot.slane %v4147, 1
      %v4150 = vsel %vm458, %v4145, %v4149
      %v4151 = vshrl.u32 %v4045, 16
      %v4153 = vor.u32 %v4151, %v4149
      %v4155 = vshll.u32 %v4046, 16
      %v4157 = vrot.slane %v4155, 1
      %v4158 = vsel %vm458, %v4153, %v4157
      %v4159 = vshrl.u32 %v4046, 16
      %v4161 = vor.u32 %v4159, %v4157
      %v4163 = vshll.u32 %v4047, 16
      %v4165 = vrot.slane %v4163, 1
      %v4166 = vsel %vm458, %v4161, %v4165
      %v4167 = vshrl.u32 %v4047, 16
      %v4169 = vor.u32 %v4167, %v4165
      %v4171 = vshll.u32 %v4048, 16
      %v4173 = vrot.slane %v4171, 1
      %v4174 = vsel %vm458, %v4169, %v4173
      %v4175 = vshrl.u32 %v4048, 16
      %v4177 = vor.u32 %v4175, %v4173
      %v4179 = vshll.u32 %v4049, 16
      %v4181 = vrot.slane %v4179, 1
      %v4182 = vsel %vm458, %v4177, %v4181
      %v4183 = vshrl.u32 %v4049, 16
      %v4185 = vor.u32 %v4183, %v4181
      %v4187 = vshll.u32 %v4050, 16
      %v4189 = vrot.slane %v4187, 1
      %v4190 = vsel %vm458, %v4185, %v4189
      %v4191 = vshrl.u32 %v4050, 16
      %v4193 = vor.u32 %v4191, %v4189
      %v4195 = vshll.u32 %v4051, 16
      %v4197 = vrot.slane %v4195, 1
      %v4198 = vsel %vm458, %v4193, %v4197
      %v4199 = vshrl.u32 %v4051, 16
      %v4201 = vor.u32 %v4199, %v4197
      %v4203 = vshll.u32 %v4052, 16
      %v4205 = vrot.slane %v4203, 1
      %v4206 = vsel %vm458, %v4201, %v4205
      %v4207 = vshrl.u32 %v4052, 16
      %v4209 = vor.u32 %v4207, %v4205
      %v4211 = vshll.u32 %v4053, 16
      %v4213 = vrot.slane %v4211, 1
      %v4214 = vsel %vm458, %v4209, %v4213
      %v4215 = vshrl.u32 %v4053, 16
      %v4217 = vor.u32 %v4215, %v4213
      %v4219 = vshll.u32 %v4054, 16
      %v4221 = vrot.slane %v4219, 1
      %v4222 = vsel %vm458, %v4217, %v4221
      %v4223 = vshrl.u32 %v4054, 16
      %v4225 = vor.u32 %v4223, %v4221
      %v4227 = vshll.u32 %v4055, 16
      %v4229 = vrot.slane %v4227, 1
      %v4230 = vsel %vm458, %v4225, %v4229
      %v4231 = vshrl.u32 %v4055, 16
      %v4233 = vor.u32 %v4231, %v4229
      %v4235 = vshll.u32 %v4056, 16
      %v4237 = vrot.slane %v4235, 1
      %v4238 = vsel %vm458, %v4233, %v4237
      %v4239 = vshrl.u32 %v4056, 16
      %v4241 = vor.u32 %v4239, %v4237
      %v4243 = vshll.u32 %v4057, 16
      %v4245 = vrot.slane %v4243, 1
      %v4246 = vsel %vm458, %v4241, %v4245
      %v4247 = vshrl.u32 %v4057, 16
      %v4249 = vor.u32 %v4247, %v4245
      %v4251 = vshll.u32 %v4058, 16
      %v4253 = vrot.slane %v4251, 1
      %v4254 = vsel %vm458, %v4249, %v4253
      %v4295 = vunpack.c.l.b16 %v3920
      %v4296 = vunpack.c.l.b16 %v3921
      %v4297 = vunpack.c.l.b16 %v3922
      %v4298 = vunpack.c.l.b16 %v3923
      %v4299 = vunpack.c.l.b16 %v3924
      %v4300 = vunpack.c.l.b16 %v3925
      %v4301 = vunpack.c.l.b16 %v3926
      %v4302 = vunpack.c.l.b16 %v3927
      %v4303 = vunpack.c.l.b16 %v3928
      %v4304 = vunpack.c.l.b16 %v3929
      %v4305 = vunpack.c.l.b16 %v3930
      %v4306 = vunpack.c.l.b16 %v3931
      %v4307 = vunpack.c.l.b16 %v3932
      %v4308 = vunpack.c.l.b16 %v3933
      %v4309 = vunpack.c.l.b16 %v3934
      %v4310 = vunpack.c.l.b16 %v3935
      %v4311 = vpack.c.b16 %v4296, %v4295
      %v4312 = vpack.c.b16 %v4298, %v4297
      %v4313 = vpack.c.b16 %v4300, %v4299
      %v4314 = vpack.c.b16 %v4302, %v4301
      %v4315 = vpack.c.b16 %v4304, %v4303
      %v4316 = vpack.c.b16 %v4306, %v4305
      %v4317 = vpack.c.b16 %v4308, %v4307
      %v4318 = vpack.c.b16 %v4310, %v4309
      %4327 = vmatprep.subr.bf16.mxu0 0
      %4328 = vmatpush1.bf16.msra.mxu0 %v4311
      %4329 = vmatprep.subr.bf16.mxu0 0
      %4330 = vmatpush1.bf16.msra.mxu0 %v4312
      %4331 = vmatprep.subr.bf16.mxu0 0
      %4332 = vmatpush1.bf16.msra.mxu0 %v4313
      %4333 = vmatprep.subr.bf16.mxu0 0
      %4334 = vmatpush1.bf16.msra.mxu0 %v4314
      %4335 = vmatprep.subr.bf16.mxu0 0
      %4336 = vmatpush1.bf16.msra.mxu0 %v4315
      %4337 = vmatprep.subr.bf16.mxu0 0
      %4338 = vmatpush1.bf16.msra.mxu0 %v4316
      %4339 = vmatprep.subr.bf16.mxu0 0
      %4340 = vmatpush1.bf16.msra.mxu0 %v4317
      %4341 = vmatprep.subr.bf16.mxu0 0
      %4342 = vmatpush1.bf16.msra.mxu0 %v4318
      %4343 = vmatprep.subr.bf16.mxu0 0
      %4344 = vmatpush1.bf16.msra.mxu0 0
      %4345 = vmatprep.subr.bf16.mxu0 0
      %4346 = vmatpush1.bf16.msra.mxu0 0
      %4347 = vmatprep.subr.bf16.mxu0 0
      %4348 = vmatpush1.bf16.msra.mxu0 0
      %4349 = vmatprep.subr.bf16.mxu0 0
      %4350 = vmatpush1.bf16.msra.mxu0 0
      %4351 = vmatprep.subr.bf16.mxu0 0
      %4352 = vmatpush1.bf16.msra.mxu0 0
      %4353 = vmatprep.subr.bf16.mxu0 0
      %4354 = vmatpush1.bf16.msra.mxu0 0
      %4355 = vmatprep.subr.bf16.mxu0 0
      %4356 = vmatpush1.bf16.msra.mxu0 0
      %4357 = vmatprep.subr.bf16.mxu0 0
      %4358 = vmatpush1.bf16.msra.mxu0 0
      %4359 = vmatprep.mubr.bf16.mxu0 0
      %4360 = vmatmul.mubr.bf16.gmra.mrb[0].mxu0 %v4070
      %v4361 = vpop.f32.mrb[0].mxu0
      %v4362 = vadd.f32 0.0, %v4361
      %v4363 = vpop.f32.mrb[0].mxu0
      %v4364 = vpop.f32.mrb[0].mxu0
      %v4365 = vadd.f32 0.0, %v4364
      %v4366 = vpop.f32.mrb[0].mxu0
      %4367 = vmatprep.mubr.bf16.mxu0 0
      %4368 = vmatmul.mubr.bf16.gmra.mrb[0].mxu0 %v4078
      %v4369 = vpop.f32.mrb[0].mxu0
      %v4370 = vadd.f32 0.0, %v4369
      %v4371 = vpop.f32.mrb[0].mxu0
      %v4372 = vpop.f32.mrb[0].mxu0
      %v4373 = vadd.f32 0.0, %v4372
      %v4374 = vpop.f32.mrb[0].mxu0
      %4375 = vmatprep.mubr.bf16.mxu0 0
      %4376 = vmatmul.mubr.bf16.gmra.mrb[0].mxu0 %v4086
      %v4377 = vpop.f32.mrb[0].mxu0
      %v4378 = vadd.f32 0.0, %v4377
      %v4379 = vpop.f32.mrb[0].mxu0
      %v4380 = vpop.f32.mrb[0].mxu0
      %v4381 = vadd.f32 0.0, %v4380
      %v4382 = vpop.f32.mrb[0].mxu0
      %4383 = vmatprep.mubr.bf16.mxu0 0
      %4384 = vmatmul.mubr.bf16.gmra.mrb[0].mxu0 %v4094
      %v4385 = vpop.f32.mrb[0].mxu0
      %v4386 = vadd.f32 0.0, %v4385
      %v4387 = vpop.f32.mrb[0].mxu0
      %v4388 = vpop.f32.mrb[0].mxu0
      %v4389 = vadd.f32 0.0, %v4388
      %v4390 = vpop.f32.mrb[0].mxu0
      %4391 = vmatprep.mubr.bf16.mxu0 0
      %4392 = vmatmul.mubr.bf16.gmra.mrb[0].mxu0 %v4102
      %v4393 = vpop.f32.mrb[0].mxu0
      %v4394 = vadd.f32 0.0, %v4393
      %v4395 = vpop.f32.mrb[0].mxu0
      %v4396 = vpop.f32.mrb[0].mxu0
      %v4397 = vadd.f32 0.0, %v4396
      %v4398 = vpop.f32.mrb[0].mxu0
      %4399 = vmatprep.mubr.bf16.mxu0 0
      %4400 = vmatmul.mubr.bf16.gmra.mrb[0].mxu0 %v4110
      %v4401 = vpop.f32.mrb[0].mxu0
      %v4402 = vadd.f32 0.0, %v4401
      %v4403 = vpop.f32.mrb[0].mxu0
      %v4404 = vpop.f32.mrb[0].mxu0
      %v4405 = vadd.f32 0.0, %v4404
      %v4406 = vpop.f32.mrb[0].mxu0
      %4407 = vmatprep.mubr.bf16.mxu0 0
      %4408 = vmatmul.mubr.bf16.gmra.mrb[0].mxu0 %v4118
      %v4409 = vpop.f32.mrb[0].mxu0
      %v4410 = vadd.f32 0.0, %v4409
      %v4411 = vpop.f32.mrb[0].mxu0
      %v4412 = vpop.f32.mrb[0].mxu0
      %v4413 = vadd.f32 0.0, %v4412
      %v4414 = vpop.f32.mrb[0].mxu0
      %4415 = vmatprep.mubr.bf16.mxu0 0
      %4416 = vmatmul.mubr.bf16.gmra.mrb[0].mxu0 %v4126
      %v4417 = vpop.f32.mrb[0].mxu0
      %v4418 = vadd.f32 0.0, %v4417
      %v4419 = vpop.f32.mrb[0].mxu0
      %v4420 = vpop.f32.mrb[0].mxu0
      %v4421 = vadd.f32 0.0, %v4420
      %v4422 = vpop.f32.mrb[0].mxu0
      %4423 = vmatprep.mubr.bf16.mxu0 0
      %4424 = vmatmul.mubr.bf16.gmra.mrb[0].mxu0 %v4134
      %v4425 = vpop.f32.mrb[0].mxu0
      %v4426 = vadd.f32 0.0, %v4425
      %v4427 = vpop.f32.mrb[0].mxu0
      %v4428 = vpop.f32.mrb[0].mxu0
      %v4429 = vadd.f32 0.0, %v4428
      %v4430 = vpop.f32.mrb[0].mxu0
      %4431 = vmatprep.mubr.bf16.mxu0 0
      %4432 = vmatmul.mubr.bf16.gmra.mrb[0].mxu0 %v4142
      %v4433 = vpop.f32.mrb[0].mxu0
      %v4434 = vadd.f32 0.0, %v4433
      %v4435 = vpop.f32.mrb[0].mxu0
      %v4436 = vpop.f32.mrb[0].mxu0
      %v4437 = vadd.f32 0.0, %v4436
      %v4438 = vpop.f32.mrb[0].mxu0
      %4439 = vmatprep.mubr.bf16.mxu0 0
      %4440 = vmatmul.mubr.bf16.gmra.mrb[0].mxu0 %v4150
      %v4441 = vpop.f32.mrb[0].mxu0
      %v4442 = vadd.f32 0.0, %v4441
      %v4443 = vpop.f32.mrb[0].mxu0
      %v4444 = vpop.f32.mrb[0].mxu0
      %v4445 = vadd.f32 0.0, %v4444
      %v4446 = vpop.f32.mrb[0].mxu0
      %4447 = vmatprep.mubr.bf16.mxu0 0
      %4448 = vmatmul.mubr.bf16.gmra.mrb[0].mxu0 %v4158
      %v4449 = vpop.f32.mrb[0].mxu0
      %v4450 = vadd.f32 0.0, %v4449
      %v4451 = vpop.f32.mrb[0].mxu0
      %v4452 = vpop.f32.mrb[0].mxu0
      %v4453 = vadd.f32 0.0, %v4452
      %v4454 = vpop.f32.mrb[0].mxu0
      %4455 = vmatprep.mubr.bf16.mxu0 0
      %4456 = vmatmul.mubr.bf16.gmra.mrb[0].mxu0 %v4166
      %v4457 = vpop.f32.mrb[0].mxu0
      %v4458 = vadd.f32 0.0, %v4457
      %v4459 = vpop.f32.mrb[0].mxu0
      %v4460 = vpop.f32.mrb[0].mxu0
      %v4461 = vadd.f32 0.0, %v4460
      %v4462 = vpop.f32.mrb[0].mxu0
      %4463 = vmatprep.mubr.bf16.mxu0 0
      %4464 = vmatmul.mubr.bf16.gmra.mrb[0].mxu0 %v4174
      %v4465 = vpop.f32.mrb[0].mxu0
      %v4466 = vadd.f32 0.0, %v4465
      %v4467 = vpop.f32.mrb[0].mxu0
      %v4468 = vpop.f32.mrb[0].mxu0
      %v4469 = vadd.f32 0.0, %v4468
      %v4470 = vpop.f32.mrb[0].mxu0
      %4471 = vmatprep.mubr.bf16.mxu0 0
      %4472 = vmatmul.mubr.bf16.gmra.mrb[0].mxu0 %v4182
      %v4473 = vpop.f32.mrb[0].mxu0
      %v4474 = vadd.f32 0.0, %v4473
      %v4475 = vpop.f32.mrb[0].mxu0
      %v4476 = vpop.f32.mrb[0].mxu0
      %v4477 = vadd.f32 0.0, %v4476
      %v4478 = vpop.f32.mrb[0].mxu0
      %4479 = vmatprep.mubr.bf16.mxu0 0
      %4480 = vmatmul.mubr.bf16.gmra.mrb[0].mxu0 %v4190
      %v4481 = vpop.f32.mrb[0].mxu0
      %v4482 = vadd.f32 0.0, %v4481
      %v4483 = vpop.f32.mrb[0].mxu0
      %v4484 = vpop.f32.mrb[0].mxu0
      %v4485 = vadd.f32 0.0, %v4484
      %v4486 = vpop.f32.mrb[0].mxu0
      %4487 = vmatprep.mubr.bf16.mxu0 0
      %4488 = vmatmul.mubr.bf16.gmra.mrb[0].mxu0 %v4198
      %v4489 = vpop.f32.mrb[0].mxu0
      %v4490 = vadd.f32 0.0, %v4489
      %v4491 = vpop.f32.mrb[0].mxu0
      %v4492 = vpop.f32.mrb[0].mxu0
      %v4493 = vadd.f32 0.0, %v4492
      %v4494 = vpop.f32.mrb[0].mxu0
      %4495 = vmatprep.mubr.bf16.mxu0 0
      %4496 = vmatmul.mubr.bf16.gmra.mrb[0].mxu0 %v4206
      %v4497 = vpop.f32.mrb[0].mxu0
      %v4498 = vadd.f32 0.0, %v4497
      %v4499 = vpop.f32.mrb[0].mxu0
      %v4500 = vpop.f32.mrb[0].mxu0
      %v4501 = vadd.f32 0.0, %v4500
      %v4502 = vpop.f32.mrb[0].mxu0
      %4503 = vmatprep.mubr.bf16.mxu0 0
      %4504 = vmatmul.mubr.bf16.gmra.mrb[0].mxu0 %v4214
      %v4505 = vpop.f32.mrb[0].mxu0
      %v4506 = vadd.f32 0.0, %v4505
      %v4507 = vpop.f32.mrb[0].mxu0
      %v4508 = vpop.f32.mrb[0].mxu0
      %v4509 = vadd.f32 0.0, %v4508
      %v4510 = vpop.f32.mrb[0].mxu0
      %4511 = vmatprep.mubr.bf16.mxu0 0
      %4512 = vmatmul.mubr.bf16.gmra.mrb[0].mxu0 %v4222
      %v4513 = vpop.f32.mrb[0].mxu0
      %v4514 = vadd.f32 0.0, %v4513
      %v4515 = vpop.f32.mrb[0].mxu0
      %v4516 = vpop.f32.mrb[0].mxu0
      %v4517 = vadd.f32 0.0, %v4516
      %v4518 = vpop.f32.mrb[0].mxu0
      %4519 = vmatprep.mubr.bf16.mxu0 0
      %4520 = vmatmul.mubr.bf16.gmra.mrb[0].mxu0 %v4230
      %v4521 = vpop.f32.mrb[0].mxu0
      %v4522 = vadd.f32 0.0, %v4521
      %v4523 = vpop.f32.mrb[0].mxu0
      %v4524 = vpop.f32.mrb[0].mxu0
      %v4525 = vadd.f32 0.0, %v4524
      %v4526 = vpop.f32.mrb[0].mxu0
      %4527 = vmatprep.mubr.bf16.mxu0 0
      %4528 = vmatmul.mubr.bf16.gmra.mrb[0].mxu0 %v4238
      %v4529 = vpop.f32.mrb[0].mxu0
      %v4530 = vadd.f32 0.0, %v4529
      %v4531 = vpop.f32.mrb[0].mxu0
      %v4532 = vpop.f32.mrb[0].mxu0
      %v4533 = vadd.f32 0.0, %v4532
      %v4534 = vpop.f32.mrb[0].mxu0
      %4535 = vmatprep.mubr.bf16.mxu0 0
      %4536 = vmatmul.mubr.bf16.gmra.mrb[0].mxu0 %v4246
      %v4537 = vpop.f32.mrb[0].mxu0
      %v4538 = vadd.f32 0.0, %v4537
      %v4539 = vpop.f32.mrb[0].mxu0
      %v4540 = vpop.f32.mrb[0].mxu0
      %v4541 = vadd.f32 0.0, %v4540
      %v4542 = vpop.f32.mrb[0].mxu0
      %4543 = vmatprep.mubr.bf16.mxu0 0
      %4544 = vmatmul.mubr.bf16.gmra.mrb[0].mxu0 %v4254
      %v4545 = vpop.f32.mrb[0].mxu0
      %v4546 = vadd.f32 0.0, %v4545
      %v4547 = vpop.f32.mrb[0].mxu0
      %v4548 = vpop.f32.mrb[0].mxu0
      %v4549 = vadd.f32 0.0, %v4548
      %v4550 = vpop.f32.mrb[0].mxu0
      %4551 = vdwg.mxu0
      %v4552 = vadd.f32 %v3822, %v4362
      %v4553 = vadd.f32 %v3823, %v4365
      %v4554 = vadd.f32 %v3824, %v4370
      %v4555 = vadd.f32 %v3825, %v4373
      %v4556 = vadd.f32 %v3826, %v4378
      %v4557 = vadd.f32 %v3827, %v4381
      %v4558 = vadd.f32 %v3828, %v4386
      %v4559 = vadd.f32 %v3829, %v4389
      %v4560 = vadd.f32 %v3830, %v4394
      %v4561 = vadd.f32 %v3831, %v4397
      %v4562 = vadd.f32 %v3832, %v4402
      %v4563 = vadd.f32 %v3833, %v4405
      %v4564 = vadd.f32 %v3834, %v4410
      %v4565 = vadd.f32 %v3835, %v4413
      %v4566 = vadd.f32 %v3836, %v4418
      %v4567 = vadd.f32 %v3837, %v4421
      %v4568 = vadd.f32 %v3838, %v4426
      %v4569 = vadd.f32 %v3839, %v4429
      %v4570 = vadd.f32 %v3840, %v4434
      %v4571 = vadd.f32 %v3841, %v4437
      %v4572 = vadd.f32 %v3842, %v4442
      %v4573 = vadd.f32 %v3843, %v4445
      %v4574 = vadd.f32 %v3844, %v4450
      %v4575 = vadd.f32 %v3845, %v4453
      %v4576 = vadd.f32 %v3846, %v4458
      %v4577 = vadd.f32 %v3847, %v4461
      %v4578 = vadd.f32 %v3848, %v4466
      %v4579 = vadd.f32 %v3849, %v4469
      %v4580 = vadd.f32 %v3850, %v4474
      %v4581 = vadd.f32 %v3851, %v4477
      %v4582 = vadd.f32 %v3852, %v4482
      %v4583 = vadd.f32 %v3853, %v4485
      %v4584 = vadd.f32 %v3854, %v4490
      %v4585 = vadd.f32 %v3855, %v4493
      %v4586 = vadd.f32 %v3856, %v4498
      %v4587 = vadd.f32 %v3857, %v4501
      %v4588 = vadd.f32 %v3858, %v4506
      %v4589 = vadd.f32 %v3859, %v4509
      %v4590 = vadd.f32 %v3860, %v4514
      %v4591 = vadd.f32 %v3861, %v4517
      %v4592 = vadd.f32 %v3862, %v4522
      %v4593 = vadd.f32 %v3863, %v4525
      %v4594 = vadd.f32 %v3864, %v4530
      %v4595 = vadd.f32 %v3865, %v4533
      %v4596 = vadd.f32 %v3866, %v4538
      %v4597 = vadd.f32 %v3867, %v4541
      %v4598 = vadd.f32 %v3868, %v4546
      %v4599 = vadd.f32 %v3869, %v4549
      %v4600 = vld [vmem:[%s246 + $0x18] sm:$0xe]
      %s4601 = scalar_lea.vmem %s1, 512
      %v4602 = vld [vmem:[%s4601] sm:$0xf]
      %v4603 = vld [vmem:[%s4601 + $0x4] sm:$0xf]
      %v4604 = vld [vmem:[%s4601 + $0x8] sm:$0xf]
      %v4605 = vld [vmem:[%s4601 + $0xc] sm:$0xf]
      %v4606 = vld [vmem:[%s4601 + $0x10] sm:$0xf]
      %v4607 = vld [vmem:[%s4601 + $0x14] sm:$0xf]
      %v4608 = vld [vmem:[%s4601 + $0x18] sm:$0xf]
      %v4609 = vld [vmem:[%s4601 + $0x1c] sm:$0xf]
      %v4610 = vld [vmem:[%s4601 + $0x20] sm:$0xf]
      %v4611 = vld [vmem:[%s4601 + $0x24] sm:$0xf]
      %v4612 = vld [vmem:[%s4601 + $0x28] sm:$0xf]
      %v4613 = vld [vmem:[%s4601 + $0x2c] sm:$0xf]
      %v4614 = vld [vmem:[%s4601 + $0x30] sm:$0xf]
      %v4615 = vld [vmem:[%s4601 + $0x34] sm:$0xf]
      %v4616 = vld [vmem:[%s4601 + $0x38] sm:$0xf]
      %v4617 = vld [vmem:[%s4601 + $0x3c] sm:$0xf]
      %v4619 = vunpack.c.l.b16 %v4600
      %v4620 = vpack.c.b16 %v3986, %v4619
      %v4621 = vrot.slane %v4620, 1
      %v4622 = vrot.slane %v4035, 1
      %v4623 = vsel %vm1270, %v4621, %v4622
      %v4624 = vrot.slane %v4036, 1
      %v4625 = vsel %vm1270, %v4622, %v4624
      %v4626 = vrot.slane %v4037, 1
      %v4627 = vsel %vm1270, %v4624, %v4626
      %v4628 = vrot.slane %v4038, 1
      %v4629 = vsel %vm1270, %v4626, %v4628
      %v4630 = vrot.slane %v4039, 1
      %v4631 = vsel %vm1270, %v4628, %v4630
      %v4632 = vrot.slane %v4040, 1
      %v4633 = vsel %vm1270, %v4630, %v4632
      %v4634 = vrot.slane %v4041, 1
      %v4635 = vsel %vm1270, %v4632, %v4634
      %v4636 = vrot.slane %v4042, 1
      %v4637 = vsel %vm1270, %v4634, %v4636
      %v4638 = vrot.slane %v4043, 1
      %v4639 = vsel %vm1270, %v4636, %v4638
      %v4640 = vrot.slane %v4044, 1
      %v4641 = vsel %vm1270, %v4638, %v4640
      %v4642 = vrot.slane %v4045, 1
      %v4643 = vsel %vm1270, %v4640, %v4642
      %v4644 = vrot.slane %v4046, 1
      %v4645 = vsel %vm1270, %v4642, %v4644
      %v4646 = vrot.slane %v4047, 1
      %v4647 = vsel %vm1270, %v4644, %v4646
      %v4648 = vrot.slane %v4048, 1
      %v4649 = vsel %vm1270, %v4646, %v4648
      %v4650 = vrot.slane %v4049, 1
      %v4651 = vsel %vm1270, %v4648, %v4650
      %v4652 = vrot.slane %v4050, 1
      %v4653 = vsel %vm1270, %v4650, %v4652
      %v4654 = vrot.slane %v4051, 1
      %v4655 = vsel %vm1270, %v4652, %v4654
      %v4656 = vrot.slane %v4052, 1
      %v4657 = vsel %vm1270, %v4654, %v4656
      %v4658 = vrot.slane %v4053, 1
      %v4659 = vsel %vm1270, %v4656, %v4658
      %v4660 = vrot.slane %v4054, 1
      %v4661 = vsel %vm1270, %v4658, %v4660
      %v4662 = vrot.slane %v4055, 1
      %v4663 = vsel %vm1270, %v4660, %v4662
      %v4664 = vrot.slane %v4056, 1
      %v4665 = vsel %vm1270, %v4662, %v4664
      %v4666 = vrot.slane %v4057, 1
      %v4667 = vsel %vm1270, %v4664, %v4666
      %v4668 = vrot.slane %v4058, 1
      %v4669 = vsel %vm1270, %v4666, %v4668
      %v4710 = vunpack.c.l.b16 %v4602
      %v4711 = vunpack.c.l.b16 %v4603
      %v4712 = vunpack.c.l.b16 %v4604
      %v4713 = vunpack.c.l.b16 %v4605
      %v4714 = vunpack.c.l.b16 %v4606
      %v4715 = vunpack.c.l.b16 %v4607
      %v4716 = vunpack.c.l.b16 %v4608
      %v4717 = vunpack.c.l.b16 %v4609
      %v4718 = vunpack.c.l.b16 %v4610
      %v4719 = vunpack.c.l.b16 %v4611
      %v4720 = vunpack.c.l.b16 %v4612
      %v4721 = vunpack.c.l.b16 %v4613
      %v4722 = vunpack.c.l.b16 %v4614
      %v4723 = vunpack.c.l.b16 %v4615
      %v4724 = vunpack.c.l.b16 %v4616
      %v4725 = vunpack.c.l.b16 %v4617
      %v4726 = vpack.c.b16 %v4711, %v4710
      %v4727 = vpack.c.b16 %v4713, %v4712
      %v4728 = vpack.c.b16 %v4715, %v4714
      %v4729 = vpack.c.b16 %v4717, %v4716
      %v4730 = vpack.c.b16 %v4719, %v4718
      %v4731 = vpack.c.b16 %v4721, %v4720
      %v4732 = vpack.c.b16 %v4723, %v4722
      %v4733 = vpack.c.b16 %v4725, %v4724
      %4742 = vmatprep.subr.bf16.mxu0 0
      %4743 = vmatpush1.bf16.msra.mxu0 %v4726
      %4744 = vmatprep.subr.bf16.mxu0 0
      %4745 = vmatpush1.bf16.msra.mxu0 %v4727
      %4746 = vmatprep.subr.bf16.mxu0 0
      %4747 = vmatpush1.bf16.msra.mxu0 %v4728
      %4748 = vmatprep.subr.bf16.mxu0 0
      %4749 = vmatpush1.bf16.msra.mxu0 %v4729
      %4750 = vmatprep.subr.bf16.mxu0 0
      %4751 = vmatpush1.bf16.msra.mxu0 %v4730
      %4752 = vmatprep.subr.bf16.mxu0 0
      %4753 = vmatpush1.bf16.msra.mxu0 %v4731
      %4754 = vmatprep.subr.bf16.mxu0 0
      %4755 = vmatpush1.bf16.msra.mxu0 %v4732
      %4756 = vmatprep.subr.bf16.mxu0 0
      %4757 = vmatpush1.bf16.msra.mxu0 %v4733
      %4758 = vmatprep.subr.bf16.mxu0 0
      %4759 = vmatpush1.bf16.msra.mxu0 0
      %4760 = vmatprep.subr.bf16.mxu0 0
      %4761 = vmatpush1.bf16.msra.mxu0 0
      %4762 = vmatprep.subr.bf16.mxu0 0
      %4763 = vmatpush1.bf16.msra.mxu0 0
      %4764 = vmatprep.subr.bf16.mxu0 0
      %4765 = vmatpush1.bf16.msra.mxu0 0
      %4766 = vmatprep.subr.bf16.mxu0 0
      %4767 = vmatpush1.bf16.msra.mxu0 0
      %4768 = vmatprep.subr.bf16.mxu0 0
      %4769 = vmatpush1.bf16.msra.mxu0 0
      %4770 = vmatprep.subr.bf16.mxu0 0
      %4771 = vmatpush1.bf16.msra.mxu0 0
      %4772 = vmatprep.subr.bf16.mxu0 0
      %4773 = vmatpush1.bf16.msra.mxu0 0
      %4774 = vmatprep.mubr.bf16.mxu0 0
      %4775 = vmatmul.mubr.bf16.gmra.mrb[0].mxu0 %v4623
      %v4776 = vpop.f32.mrb[0].mxu0
      %v4777 = vadd.f32 0.0, %v4776
      %v4778 = vpop.f32.mrb[0].mxu0
      %v4779 = vpop.f32.mrb[0].mxu0
      %v4780 = vadd.f32 0.0, %v4779
      %v4781 = vpop.f32.mrb[0].mxu0
      %4782 = vmatprep.mubr.bf16.mxu0 0
      %4783 = vmatmul.mubr.bf16.gmra.mrb[0].mxu0 %v4625
      %v4784 = vpop.f32.mrb[0].mxu0
      %v4785 = vadd.f32 0.0, %v4784
      %v4786 = vpop.f32.mrb[0].mxu0
      %v4787 = vpop.f32.mrb[0].mxu0
      %v4788 = vadd.f32 0.0, %v4787
      %v4789 = vpop.f32.mrb[0].mxu0
      %4790 = vmatprep.mubr.bf16.mxu0 0
      %4791 = vmatmul.mubr.bf16.gmra.mrb[0].mxu0 %v4627
      %v4792 = vpop.f32.mrb[0].mxu0
      %v4793 = vadd.f32 0.0, %v4792
      %v4794 = vpop.f32.mrb[0].mxu0
      %v4795 = vpop.f32.mrb[0].mxu0
      %v4796 = vadd.f32 0.0, %v4795
      %v4797 = vpop.f32.mrb[0].mxu0
      %4798 = vmatprep.mubr.bf16.mxu0 0
      %4799 = vmatmul.mubr.bf16.gmra.mrb[0].mxu0 %v4629
      %v4800 = vpop.f32.mrb[0].mxu0
      %v4801 = vadd.f32 0.0, %v4800
      %v4802 = vpop.f32.mrb[0].mxu0
      %v4803 = vpop.f32.mrb[0].mxu0
      %v4804 = vadd.f32 0.0, %v4803
      %v4805 = vpop.f32.mrb[0].mxu0
      %4806 = vmatprep.mubr.bf16.mxu0 0
      %4807 = vmatmul.mubr.bf16.gmra.mrb[0].mxu0 %v4631
      %v4808 = vpop.f32.mrb[0].mxu0
      %v4809 = vadd.f32 0.0, %v4808
      %v4810 = vpop.f32.mrb[0].mxu0
      %v4811 = vpop.f32.mrb[0].mxu0
      %v4812 = vadd.f32 0.0, %v4811
      %v4813 = vpop.f32.mrb[0].mxu0
      %4814 = vmatprep.mubr.bf16.mxu0 0
      %4815 = vmatmul.mubr.bf16.gmra.mrb[0].mxu0 %v4633
      %v4816 = vpop.f32.mrb[0].mxu0
      %v4817 = vadd.f32 0.0, %v4816
      %v4818 = vpop.f32.mrb[0].mxu0
      %v4819 = vpop.f32.mrb[0].mxu0
      %v4820 = vadd.f32 0.0, %v4819
      %v4821 = vpop.f32.mrb[0].mxu0
      %4822 = vmatprep.mubr.bf16.mxu0 0
      %4823 = vmatmul.mubr.bf16.gmra.mrb[0].mxu0 %v4635
      %v4824 = vpop.f32.mrb[0].mxu0
      %v4825 = vadd.f32 0.0, %v4824
      %v4826 = vpop.f32.mrb[0].mxu0
      %v4827 = vpop.f32.mrb[0].mxu0
      %v4828 = vadd.f32 0.0, %v4827
      %v4829 = vpop.f32.mrb[0].mxu0
      %4830 = vmatprep.mubr.bf16.mxu0 0
      %4831 = vmatmul.mubr.bf16.gmra.mrb[0].mxu0 %v4637
      %v4832 = vpop.f32.mrb[0].mxu0
      %v4833 = vadd.f32 0.0, %v4832
      %v4834 = vpop.f32.mrb[0].mxu0
      %v4835 = vpop.f32.mrb[0].mxu0
      %v4836 = vadd.f32 0.0, %v4835
      %v4837 = vpop.f32.mrb[0].mxu0
      %4838 = vmatprep.mubr.bf16.mxu0 0
      %4839 = vmatmul.mubr.bf16.gmra.mrb[0].mxu0 %v4639
      %v4840 = vpop.f32.mrb[0].mxu0
      %v4841 = vadd.f32 0.0, %v4840
      %v4842 = vpop.f32.mrb[0].mxu0
      %v4843 = vpop.f32.mrb[0].mxu0
      %v4844 = vadd.f32 0.0, %v4843
      %v4845 = vpop.f32.mrb[0].mxu0
      %4846 = vmatprep.mubr.bf16.mxu0 0
      %4847 = vmatmul.mubr.bf16.gmra.mrb[0].mxu0 %v4641
      %v4848 = vpop.f32.mrb[0].mxu0
      %v4849 = vadd.f32 0.0, %v4848
      %v4850 = vpop.f32.mrb[0].mxu0
      %v4851 = vpop.f32.mrb[0].mxu0
      %v4852 = vadd.f32 0.0, %v4851
      %v4853 = vpop.f32.mrb[0].mxu0
      %4854 = vmatprep.mubr.bf16.mxu0 0
      %4855 = vmatmul.mubr.bf16.gmra.mrb[0].mxu0 %v4643
      %v4856 = vpop.f32.mrb[0].mxu0
      %v4857 = vadd.f32 0.0, %v4856
      %v4858 = vpop.f32.mrb[0].mxu0
      %v4859 = vpop.f32.mrb[0].mxu0
      %v4860 = vadd.f32 0.0, %v4859
      %v4861 = vpop.f32.mrb[0].mxu0
      %4862 = vmatprep.mubr.bf16.mxu0 0
      %4863 = vmatmul.mubr.bf16.gmra.mrb[0].mxu0 %v4645
      %v4864 = vpop.f32.mrb[0].mxu0
      %v4865 = vadd.f32 0.0, %v4864
      %v4866 = vpop.f32.mrb[0].mxu0
      %v4867 = vpop.f32.mrb[0].mxu0
      %v4868 = vadd.f32 0.0, %v4867
      %v4869 = vpop.f32.mrb[0].mxu0
      %4870 = vmatprep.mubr.bf16.mxu0 0
      %4871 = vmatmul.mubr.bf16.gmra.mrb[0].mxu0 %v4647
      %v4872 = vpop.f32.mrb[0].mxu0
      %v4873 = vadd.f32 0.0, %v4872
      %v4874 = vpop.f32.mrb[0].mxu0
      %v4875 = vpop.f32.mrb[0].mxu0
      %v4876 = vadd.f32 0.0, %v4875
      %v4877 = vpop.f32.mrb[0].mxu0
      %4878 = vmatprep.mubr.bf16.mxu0 0
      %4879 = vmatmul.mubr.bf16.gmra.mrb[0].mxu0 %v4649
      %v4880 = vpop.f32.mrb[0].mxu0
      %v4881 = vadd.f32 0.0, %v4880
      %v4882 = vpop.f32.mrb[0].mxu0
      %v4883 = vpop.f32.mrb[0].mxu0
      %v4884 = vadd.f32 0.0, %v4883
      %v4885 = vpop.f32.mrb[0].mxu0
      %4886 = vmatprep.mubr.bf16.mxu0 0
      %4887 = vmatmul.mubr.bf16.gmra.mrb[0].mxu0 %v4651
      %v4888 = vpop.f32.mrb[0].mxu0
      %v4889 = vadd.f32 0.0, %v4888
      %v4890 = vpop.f32.mrb[0].mxu0
      %v4891 = vpop.f32.mrb[0].mxu0
      %v4892 = vadd.f32 0.0, %v4891
      %v4893 = vpop.f32.mrb[0].mxu0
      %4894 = vmatprep.mubr.bf16.mxu0 0
      %4895 = vmatmul.mubr.bf16.gmra.mrb[0].mxu0 %v4653
      %v4896 = vpop.f32.mrb[0].mxu0
      %v4897 = vadd.f32 0.0, %v4896
      %v4898 = vpop.f32.mrb[0].mxu0
      %v4899 = vpop.f32.mrb[0].mxu0
      %v4900 = vadd.f32 0.0, %v4899
      %v4901 = vpop.f32.mrb[0].mxu0
      %4902 = vmatprep.mubr.bf16.mxu0 0
      %4903 = vmatmul.mubr.bf16.gmra.mrb[0].mxu0 %v4655
      %v4904 = vpop.f32.mrb[0].mxu0
      %v4905 = vadd.f32 0.0, %v4904
      %v4906 = vpop.f32.mrb[0].mxu0
      %v4907 = vpop.f32.mrb[0].mxu0
      %v4908 = vadd.f32 0.0, %v4907
      %v4909 = vpop.f32.mrb[0].mxu0
      %4910 = vmatprep.mubr.bf16.mxu0 0
      %4911 = vmatmul.mubr.bf16.gmra.mrb[0].mxu0 %v4657
      %v4912 = vpop.f32.mrb[0].mxu0
      %v4913 = vadd.f32 0.0, %v4912
      %v4914 = vpop.f32.mrb[0].mxu0
      %v4915 = vpop.f32.mrb[0].mxu0
      %v4916 = vadd.f32 0.0, %v4915
      %v4917 = vpop.f32.mrb[0].mxu0
      %4918 = vmatprep.mubr.bf16.mxu0 0
      %4919 = vmatmul.mubr.bf16.gmra.mrb[0].mxu0 %v4659
      %v4920 = vpop.f32.mrb[0].mxu0
      %v4921 = vadd.f32 0.0, %v4920
      %v4922 = vpop.f32.mrb[0].mxu0
      %v4923 = vpop.f32.mrb[0].mxu0
      %v4924 = vadd.f32 0.0, %v4923
      %v4925 = vpop.f32.mrb[0].mxu0
      %4926 = vmatprep.mubr.bf16.mxu0 0
      %4927 = vmatmul.mubr.bf16.gmra.mrb[0].mxu0 %v4661
      %v4928 = vpop.f32.mrb[0].mxu0
      %v4929 = vadd.f32 0.0, %v4928
      %v4930 = vpop.f32.mrb[0].mxu0
      %v4931 = vpop.f32.mrb[0].mxu0
      %v4932 = vadd.f32 0.0, %v4931
      %v4933 = vpop.f32.mrb[0].mxu0
      %4934 = vmatprep.mubr.bf16.mxu0 0
      %4935 = vmatmul.mubr.bf16.gmra.mrb[0].mxu0 %v4663
      %v4936 = vpop.f32.mrb[0].mxu0
      %v4937 = vadd.f32 0.0, %v4936
      %v4938 = vpop.f32.mrb[0].mxu0
      %v4939 = vpop.f32.mrb[0].mxu0
      %v4940 = vadd.f32 0.0, %v4939
      %v4941 = vpop.f32.mrb[0].mxu0
      %4942 = vmatprep.mubr.bf16.mxu0 0
      %4943 = vmatmul.mubr.bf16.gmra.mrb[0].mxu0 %v4665
      %v4944 = vpop.f32.mrb[0].mxu0
      %v4945 = vadd.f32 0.0, %v4944
      %v4946 = vpop.f32.mrb[0].mxu0
      %v4947 = vpop.f32.mrb[0].mxu0
      %v4948 = vadd.f32 0.0, %v4947
      %v4949 = vpop.f32.mrb[0].mxu0
      %4950 = vmatprep.mubr.bf16.mxu0 0
      %4951 = vmatmul.mubr.bf16.gmra.mrb[0].mxu0 %v4667
      %v4952 = vpop.f32.mrb[0].mxu0
      %v4953 = vadd.f32 0.0, %v4952
      %v4954 = vpop.f32.mrb[0].mxu0
      %v4955 = vpop.f32.mrb[0].mxu0
      %v4956 = vadd.f32 0.0, %v4955
      %v4957 = vpop.f32.mrb[0].mxu0
      %4958 = vmatprep.mubr.bf16.mxu0 0
      %4959 = vmatmul.mubr.bf16.gmra.mrb[0].mxu0 %v4669
      %v4960 = vpop.f32.mrb[0].mxu0
      %v4961 = vadd.f32 0.0, %v4960
      %v4962 = vpop.f32.mrb[0].mxu0
      %v4963 = vpop.f32.mrb[0].mxu0
      %v4964 = vadd.f32 0.0, %v4963
      %v4965 = vpop.f32.mrb[0].mxu0
      %4966 = vdwg.mxu0
      %v4967 = vadd.f32 %v4552, %v4777
      %v4968 = vadd.f32 %v4553, %v4780
      %v4969 = vadd.f32 %v4554, %v4785
      %v4970 = vadd.f32 %v4555, %v4788
      %v4971 = vadd.f32 %v4556, %v4793
      %v4972 = vadd.f32 %v4557, %v4796
      %v4973 = vadd.f32 %v4558, %v4801
      %v4974 = vadd.f32 %v4559, %v4804
      %v4975 = vadd.f32 %v4560, %v4809
      %v4976 = vadd.f32 %v4561, %v4812
      %v4977 = vadd.f32 %v4562, %v4817
      %v4978 = vadd.f32 %v4563, %v4820
      %v4979 = vadd.f32 %v4564, %v4825
      %v4980 = vadd.f32 %v4565, %v4828
      %v4981 = vadd.f32 %v4566, %v4833
      %v4982 = vadd.f32 %v4567, %v4836
      %v4983 = vadd.f32 %v4568, %v4841
      %v4984 = vadd.f32 %v4569, %v4844
      %v4985 = vadd.f32 %v4570, %v4849
      %v4986 = vadd.f32 %v4571, %v4852
      %v4987 = vadd.f32 %v4572, %v4857
      %v4988 = vadd.f32 %v4573, %v4860
      %v4989 = vadd.f32 %v4574, %v4865
      %v4990 = vadd.f32 %v4575, %v4868
      %v4991 = vadd.f32 %v4576, %v4873
      %v4992 = vadd.f32 %v4577, %v4876
      %v4993 = vadd.f32 %v4578, %v4881
      %v4994 = vadd.f32 %v4579, %v4884
      %v4995 = vadd.f32 %v4580, %v4889
      %v4996 = vadd.f32 %v4581, %v4892
      %v4997 = vadd.f32 %v4582, %v4897
      %v4998 = vadd.f32 %v4583, %v4900
      %v4999 = vadd.f32 %v4584, %v4905
      %v5000 = vadd.f32 %v4585, %v4908
      %v5001 = vadd.f32 %v4586, %v4913
      %v5002 = vadd.f32 %v4587, %v4916
      %v5003 = vadd.f32 %v4588, %v4921
      %v5004 = vadd.f32 %v4589, %v4924
      %v5005 = vadd.f32 %v4590, %v4929
      %v5006 = vadd.f32 %v4591, %v4932
      %v5007 = vadd.f32 %v4592, %v4937
      %v5008 = vadd.f32 %v4593, %v4940
      %v5009 = vadd.f32 %v4594, %v4945
      %v5010 = vadd.f32 %v4595, %v4948
      %v5011 = vadd.f32 %v4596, %v4953
      %v5012 = vadd.f32 %v4597, %v4956
      %v5013 = vadd.f32 %v4598, %v4961
      %v5014 = vadd.f32 %v4599, %v4964
      %v5015 = vld [vmem:[%s2] sm:$0x1]
      %v5017 = vlaneseq
      %v5018 = vshrl.u32 %v5017, 7
      %v5019 = vsub.s32 0, %v5018
      %v5020 = vrot.slane %v5015, %v5019
      %v5022 = vadd.f32 %v4967, %v5020
      %v5023 = vadd.f32 %v4968, %v5020
      %v5024 = vadd.f32 %v4969, %v5020
      %v5025 = vadd.f32 %v4970, %v5020
      %v5026 = vadd.f32 %v4971, %v5020
      %v5027 = vadd.f32 %v4972, %v5020
      %v5028 = vadd.f32 %v4973, %v5020
      %v5029 = vadd.f32 %v4974, %v5020
      %v5030 = vadd.f32 %v4975, %v5020
      %v5031 = vadd.f32 %v4976, %v5020
      %v5032 = vadd.f32 %v4977, %v5020
      %v5033 = vadd.f32 %v4978, %v5020
      %v5034 = vadd.f32 %v4979, %v5020
      %v5035 = vadd.f32 %v4980, %v5020
      %v5036 = vadd.f32 %v4981, %v5020
      %v5037 = vadd.f32 %v4982, %v5020
      %v5038 = vadd.f32 %v4983, %v5020
      %v5039 = vadd.f32 %v4984, %v5020
      %v5040 = vadd.f32 %v4985, %v5020
      %v5041 = vadd.f32 %v4986, %v5020
      %v5042 = vadd.f32 %v4987, %v5020
      %v5043 = vadd.f32 %v4988, %v5020
      %v5044 = vadd.f32 %v4989, %v5020
      %v5045 = vadd.f32 %v4990, %v5020
      %v5046 = vadd.f32 %v4991, %v5020
      %v5047 = vadd.f32 %v4992, %v5020
      %v5048 = vadd.f32 %v4993, %v5020
      %v5049 = vadd.f32 %v4994, %v5020
      %v5050 = vadd.f32 %v4995, %v5020
      %v5051 = vadd.f32 %v4996, %v5020
      %v5052 = vadd.f32 %v4997, %v5020
      %v5053 = vadd.f32 %v4998, %v5020
      %v5054 = vadd.f32 %v4999, %v5020
      %v5055 = vadd.f32 %v5000, %v5020
      %v5056 = vadd.f32 %v5001, %v5020
      %v5057 = vadd.f32 %v5002, %v5020
      %v5058 = vadd.f32 %v5003, %v5020
      %v5059 = vadd.f32 %v5004, %v5020
      %v5060 = vadd.f32 %v5005, %v5020
      %v5061 = vadd.f32 %v5006, %v5020
      %v5062 = vadd.f32 %v5007, %v5020
      %v5063 = vadd.f32 %v5008, %v5020
      %v5064 = vadd.f32 %v5009, %v5020
      %v5065 = vadd.f32 %v5010, %v5020
      %v5066 = vadd.f32 %v5011, %v5020
      %v5067 = vadd.f32 %v5012, %v5020
      %v5068 = vadd.f32 %v5013, %v5020
      %v5069 = vadd.f32 %v5014, %v5020
      %v5070 = vmax.f32 %v5022, 0.0
      %v5071 = vmax.f32 %v5023, 0.0
      %v5072 = vmax.f32 %v5024, 0.0
      %v5073 = vmax.f32 %v5025, 0.0
      %v5074 = vmax.f32 %v5026, 0.0
      %v5075 = vmax.f32 %v5027, 0.0
      %v5076 = vmax.f32 %v5028, 0.0
      %v5077 = vmax.f32 %v5029, 0.0
      %v5078 = vmax.f32 %v5030, 0.0
      %v5079 = vmax.f32 %v5031, 0.0
      %v5080 = vmax.f32 %v5032, 0.0
      %v5081 = vmax.f32 %v5033, 0.0
      %v5082 = vmax.f32 %v5034, 0.0
      %v5083 = vmax.f32 %v5035, 0.0
      %v5084 = vmax.f32 %v5036, 0.0
      %v5085 = vmax.f32 %v5037, 0.0
      %v5086 = vmax.f32 %v5038, 0.0
      %v5087 = vmax.f32 %v5039, 0.0
      %v5088 = vmax.f32 %v5040, 0.0
      %v5089 = vmax.f32 %v5041, 0.0
      %v5090 = vmax.f32 %v5042, 0.0
      %v5091 = vmax.f32 %v5043, 0.0
      %v5092 = vmax.f32 %v5044, 0.0
      %v5093 = vmax.f32 %v5045, 0.0
      %v5094 = vmax.f32 %v5046, 0.0
      %v5095 = vmax.f32 %v5047, 0.0
      %v5096 = vmax.f32 %v5048, 0.0
      %v5097 = vmax.f32 %v5049, 0.0
      %v5098 = vmax.f32 %v5050, 0.0
      %v5099 = vmax.f32 %v5051, 0.0
      %v5100 = vmax.f32 %v5052, 0.0
      %v5101 = vmax.f32 %v5053, 0.0
      %v5102 = vmax.f32 %v5054, 0.0
      %v5103 = vmax.f32 %v5055, 0.0
      %v5104 = vmax.f32 %v5056, 0.0
      %v5105 = vmax.f32 %v5057, 0.0
      %v5106 = vmax.f32 %v5058, 0.0
      %v5107 = vmax.f32 %v5059, 0.0
      %v5108 = vmax.f32 %v5060, 0.0
      %v5109 = vmax.f32 %v5061, 0.0
      %v5110 = vmax.f32 %v5062, 0.0
      %v5111 = vmax.f32 %v5063, 0.0
      %v5112 = vmax.f32 %v5064, 0.0
      %v5113 = vmax.f32 %v5065, 0.0
      %v5114 = vmax.f32 %v5066, 0.0
      %v5115 = vmax.f32 %v5067, 0.0
      %v5116 = vmax.f32 %v5068, 0.0
      %v5117 = vmax.f32 %v5069, 0.0
      %v5118 = vlaneseq
      %v5119 = vshrl.u32 %v5118, 7
      %v5120 = vadd.s32 %v5119, 8
      %v5121 = vadd.s32 %v5119, 16
      %v5122 = vadd.s32 %v5119, 24
      %v5123 = vadd.s32 %v5119, 32
      %v5124 = vadd.s32 %v5119, 40
      %v5125 = vadd.s32 %v5119, 48
      %v5126 = vadd.s32 %v5119, 56
      %v5127 = vadd.s32 %v5119, 64
      %v5128 = vadd.s32 %v5119, 72
      %v5129 = vadd.s32 %v5119, 80
      %v5130 = vadd.s32 %v5119, 88
      %v5131 = vadd.s32 %v5119, 96
      %v5132 = vadd.s32 %v5119, 104
      %v5133 = vadd.s32 %v5119, 112
      %v5134 = vadd.s32 %v5119, 120
      %v5135 = vadd.s32 %v5119, 128
      %v5136 = vadd.s32 %v5119, 136
      %v5137 = vadd.s32 %v5119, 144
      %v5138 = vadd.s32 %v5119, 152
      %v5139 = vadd.s32 %v5119, 160
      %v5140 = vadd.s32 %v5119, 168
      %v5141 = vadd.s32 %v5119, 176
      %v5142 = vadd.s32 %v5119, 184
      %v5143 = vadd.s32 %v5119, 192
      %v5144 = vadd.s32 %v5119, 200
      %v5145 = vadd.s32 %v5119, 208
      %v5146 = vadd.s32 %v5119, 216
      %v5147 = vadd.s32 %v5119, 224
      %v5148 = vadd.s32 %v5119, 232
      %v5149 = vadd.s32 %v5119, 240
      %v5150 = vadd.s32 %v5119, 248
      %v5151 = vadd.s32 %v5119, 256
      %v5152 = vadd.s32 %v5119, 264
      %v5153 = vadd.s32 %v5119, 272
      %v5154 = vadd.s32 %v5119, 280
      %v5155 = vadd.s32 %v5119, 288
      %v5156 = vadd.s32 %v5119, 296
      %v5157 = vadd.s32 %v5119, 304
      %v5158 = vadd.s32 %v5119, 312
      %v5159 = vadd.s32 %v5119, 320
      %v5160 = vadd.s32 %v5119, 328
      %v5161 = vadd.s32 %v5119, 336
      %v5162 = vadd.s32 %v5119, 344
      %v5163 = vadd.s32 %v5119, 352
      %v5164 = vadd.s32 %v5119, 360
      %v5165 = vadd.s32 %v5119, 368
      %v5166 = vadd.s32 %v5119, 376
      %vm5167 = vcmp.lt.s32.totalorder %v5119, 0
      %v5168 = vsub.s32 0, %v5119
      %v5169 = vsel %vm5167, %v5168, %v5119
      %v5170 = vmul.u32.u64.compose %v5169, 2863311531
      %v5171 = vextract.low.u32 %v5170
      %v5172 = vextract.high.u32 %v5170
      %v5173 = vshrl.u32 %v5172, 4
      %v5174 = vmul.u32 %v5173, 24
      %v5175 = vsub.s32 %v5169, %v5174
      %v5176 = vsub.s32 0, %v5175
      %v5177 = vsel %vm5167, %v5176, %v5175
      %vm5178 = vcmp.lt.s32.totalorder %v5120, 0
      %v5179 = vsub.s32 0, %v5120
      %v5180 = vsel %vm5178, %v5179, %v5120
      %v5181 = vmul.u32.u64.compose %v5180, 2863311531
      %v5182 = vextract.low.u32 %v5181
      %v5183 = vextract.high.u32 %v5181
      %v5184 = vshrl.u32 %v5183, 4
      %v5185 = vmul.u32 %v5184, 24
      %v5186 = vsub.s32 %v5180, %v5185
      %v5187 = vsub.s32 0, %v5186
      %v5188 = vsel %vm5178, %v5187, %v5186
      %vm5189 = vcmp.lt.s32.totalorder %v5121, 0
      %v5190 = vsub.s32 0, %v5121
      %v5191 = vsel %vm5189, %v5190, %v5121
      %v5192 = vmul.u32.u64.compose %v5191, 2863311531
      %v5193 = vextract.low.u32 %v5192
      %v5194 = vextract.high.u32 %v5192
      %v5195 = vshrl.u32 %v5194, 4
      %v5196 = vmul.u32 %v5195, 24
      %v5197 = vsub.s32 %v5191, %v5196
      %v5198 = vsub.s32 0, %v5197
      %v5199 = vsel %vm5189, %v5198, %v5197
      %vm5200 = vcmp.lt.s32.totalorder %v5122, 0
      %v5201 = vsub.s32 0, %v5122
      %v5202 = vsel %vm5200, %v5201, %v5122
      %v5203 = vmul.u32.u64.compose %v5202, 2863311531
      %v5204 = vextract.low.u32 %v5203
      %v5205 = vextract.high.u32 %v5203
      %v5206 = vshrl.u32 %v5205, 4
      %v5207 = vmul.u32 %v5206, 24
      %v5208 = vsub.s32 %v5202, %v5207
      %v5209 = vsub.s32 0, %v5208
      %v5210 = vsel %vm5200, %v5209, %v5208
      %vm5211 = vcmp.lt.s32.totalorder %v5123, 0
      %v5212 = vsub.s32 0, %v5123
      %v5213 = vsel %vm5211, %v5212, %v5123
      %v5214 = vmul.u32.u64.compose %v5213, 2863311531
      %v5215 = vextract.low.u32 %v5214
      %v5216 = vextract.high.u32 %v5214
      %v5217 = vshrl.u32 %v5216, 4
      %v5218 = vmul.u32 %v5217, 24
      %v5219 = vsub.s32 %v5213, %v5218
      %v5220 = vsub.s32 0, %v5219
      %v5221 = vsel %vm5211, %v5220, %v5219
      %vm5222 = vcmp.lt.s32.totalorder %v5124, 0
      %v5223 = vsub.s32 0, %v5124
      %v5224 = vsel %vm5222, %v5223, %v5124
      %v5225 = vmul.u32.u64.compose %v5224, 2863311531
      %v5226 = vextract.low.u32 %v5225
      %v5227 = vextract.high.u32 %v5225
      %v5228 = vshrl.u32 %v5227, 4
      %v5229 = vmul.u32 %v5228, 24
      %v5230 = vsub.s32 %v5224, %v5229
      %v5231 = vsub.s32 0, %v5230
      %v5232 = vsel %vm5222, %v5231, %v5230
      %vm5233 = vcmp.lt.s32.totalorder %v5125, 0
      %v5234 = vsub.s32 0, %v5125
      %v5235 = vsel %vm5233, %v5234, %v5125
      %v5236 = vmul.u32.u64.compose %v5235, 2863311531
      %v5237 = vextract.low.u32 %v5236
      %v5238 = vextract.high.u32 %v5236
      %v5239 = vshrl.u32 %v5238, 4
      %v5240 = vmul.u32 %v5239, 24
      %v5241 = vsub.s32 %v5235, %v5240
      %v5242 = vsub.s32 0, %v5241
      %v5243 = vsel %vm5233, %v5242, %v5241
      %vm5244 = vcmp.lt.s32.totalorder %v5126, 0
      %v5245 = vsub.s32 0, %v5126
      %v5246 = vsel %vm5244, %v5245, %v5126
      %v5247 = vmul.u32.u64.compose %v5246, 2863311531
      %v5248 = vextract.low.u32 %v5247
      %v5249 = vextract.high.u32 %v5247
      %v5250 = vshrl.u32 %v5249, 4
      %v5251 = vmul.u32 %v5250, 24
      %v5252 = vsub.s32 %v5246, %v5251
      %v5253 = vsub.s32 0, %v5252
      %v5254 = vsel %vm5244, %v5253, %v5252
      %vm5255 = vcmp.lt.s32.totalorder %v5127, 0
      %v5256 = vsub.s32 0, %v5127
      %v5257 = vsel %vm5255, %v5256, %v5127
      %v5258 = vmul.u32.u64.compose %v5257, 2863311531
      %v5259 = vextract.low.u32 %v5258
      %v5260 = vextract.high.u32 %v5258
      %v5261 = vshrl.u32 %v5260, 4
      %v5262 = vmul.u32 %v5261, 24
      %v5263 = vsub.s32 %v5257, %v5262
      %v5264 = vsub.s32 0, %v5263
      %v5265 = vsel %vm5255, %v5264, %v5263
      %vm5266 = vcmp.lt.s32.totalorder %v5128, 0
      %v5267 = vsub.s32 0, %v5128
      %v5268 = vsel %vm5266, %v5267, %v5128
      %v5269 = vmul.u32.u64.compose %v5268, 2863311531
      %v5270 = vextract.low.u32 %v5269
      %v5271 = vextract.high.u32 %v5269
      %v5272 = vshrl.u32 %v5271, 4
      %v5273 = vmul.u32 %v5272, 24
      %v5274 = vsub.s32 %v5268, %v5273
      %v5275 = vsub.s32 0, %v5274
      %v5276 = vsel %vm5266, %v5275, %v5274
      %vm5277 = vcmp.lt.s32.totalorder %v5129, 0
      %v5278 = vsub.s32 0, %v5129
      %v5279 = vsel %vm5277, %v5278, %v5129
      %v5280 = vmul.u32.u64.compose %v5279, 2863311531
      %v5281 = vextract.low.u32 %v5280
      %v5282 = vextract.high.u32 %v5280
      %v5283 = vshrl.u32 %v5282, 4
      %v5284 = vmul.u32 %v5283, 24
      %v5285 = vsub.s32 %v5279, %v5284
      %v5286 = vsub.s32 0, %v5285
      %v5287 = vsel %vm5277, %v5286, %v5285
      %vm5288 = vcmp.lt.s32.totalorder %v5130, 0
      %v5289 = vsub.s32 0, %v5130
      %v5290 = vsel %vm5288, %v5289, %v5130
      %v5291 = vmul.u32.u64.compose %v5290, 2863311531
      %v5292 = vextract.low.u32 %v5291
      %v5293 = vextract.high.u32 %v5291
      %v5294 = vshrl.u32 %v5293, 4
      %v5295 = vmul.u32 %v5294, 24
      %v5296 = vsub.s32 %v5290, %v5295
      %v5297 = vsub.s32 0, %v5296
      %v5298 = vsel %vm5288, %v5297, %v5296
      %vm5299 = vcmp.lt.s32.totalorder %v5131, 0
      %v5300 = vsub.s32 0, %v5131
      %v5301 = vsel %vm5299, %v5300, %v5131
      %v5302 = vmul.u32.u64.compose %v5301, 2863311531
      %v5303 = vextract.low.u32 %v5302
      %v5304 = vextract.high.u32 %v5302
      %v5305 = vshrl.u32 %v5304, 4
      %v5306 = vmul.u32 %v5305, 24
      %v5307 = vsub.s32 %v5301, %v5306
      %v5308 = vsub.s32 0, %v5307
      %v5309 = vsel %vm5299, %v5308, %v5307
      %vm5310 = vcmp.lt.s32.totalorder %v5132, 0
      %v5311 = vsub.s32 0, %v5132
      %v5312 = vsel %vm5310, %v5311, %v5132
      %v5313 = vmul.u32.u64.compose %v5312, 2863311531
      %v5314 = vextract.low.u32 %v5313
      %v5315 = vextract.high.u32 %v5313
      %v5316 = vshrl.u32 %v5315, 4
      %v5317 = vmul.u32 %v5316, 24
      %v5318 = vsub.s32 %v5312, %v5317
      %v5319 = vsub.s32 0, %v5318
      %v5320 = vsel %vm5310, %v5319, %v5318
      %vm5321 = vcmp.lt.s32.totalorder %v5133, 0
      %v5322 = vsub.s32 0, %v5133
      %v5323 = vsel %vm5321, %v5322, %v5133
      %v5324 = vmul.u32.u64.compose %v5323, 2863311531
      %v5325 = vextract.low.u32 %v5324
      %v5326 = vextract.high.u32 %v5324
      %v5327 = vshrl.u32 %v5326, 4
      %v5328 = vmul.u32 %v5327, 24
      %v5329 = vsub.s32 %v5323, %v5328
      %v5330 = vsub.s32 0, %v5329
      %v5331 = vsel %vm5321, %v5330, %v5329
      %vm5332 = vcmp.lt.s32.totalorder %v5134, 0
      %v5333 = vsub.s32 0, %v5134
      %v5334 = vsel %vm5332, %v5333, %v5134
      %v5335 = vmul.u32.u64.compose %v5334, 2863311531
      %v5336 = vextract.low.u32 %v5335
      %v5337 = vextract.high.u32 %v5335
      %v5338 = vshrl.u32 %v5337, 4
      %v5339 = vmul.u32 %v5338, 24
      %v5340 = vsub.s32 %v5334, %v5339
      %v5341 = vsub.s32 0, %v5340
      %v5342 = vsel %vm5332, %v5341, %v5340
      %vm5343 = vcmp.lt.s32.totalorder %v5135, 0
      %v5344 = vsub.s32 0, %v5135
      %v5345 = vsel %vm5343, %v5344, %v5135
      %v5346 = vmul.u32.u64.compose %v5345, 2863311531
      %v5347 = vextract.low.u32 %v5346
      %v5348 = vextract.high.u32 %v5346
      %v5349 = vshrl.u32 %v5348, 4
      %v5350 = vmul.u32 %v5349, 24
      %v5351 = vsub.s32 %v5345, %v5350
      %v5352 = vsub.s32 0, %v5351
      %v5353 = vsel %vm5343, %v5352, %v5351
      %vm5354 = vcmp.lt.s32.totalorder %v5136, 0
      %v5355 = vsub.s32 0, %v5136
      %v5356 = vsel %vm5354, %v5355, %v5136
      %v5357 = vmul.u32.u64.compose %v5356, 2863311531
      %v5358 = vextract.low.u32 %v5357
      %v5359 = vextract.high.u32 %v5357
      %v5360 = vshrl.u32 %v5359, 4
      %v5361 = vmul.u32 %v5360, 24
      %v5362 = vsub.s32 %v5356, %v5361
      %v5363 = vsub.s32 0, %v5362
      %v5364 = vsel %vm5354, %v5363, %v5362
      %vm5365 = vcmp.lt.s32.totalorder %v5137, 0
      %v5366 = vsub.s32 0, %v5137
      %v5367 = vsel %vm5365, %v5366, %v5137
      %v5368 = vmul.u32.u64.compose %v5367, 2863311531
      %v5369 = vextract.low.u32 %v5368
      %v5370 = vextract.high.u32 %v5368
      %v5371 = vshrl.u32 %v5370, 4
      %v5372 = vmul.u32 %v5371, 24
      %v5373 = vsub.s32 %v5367, %v5372
      %v5374 = vsub.s32 0, %v5373
      %v5375 = vsel %vm5365, %v5374, %v5373
      %vm5376 = vcmp.lt.s32.totalorder %v5138, 0
      %v5377 = vsub.s32 0, %v5138
      %v5378 = vsel %vm5376, %v5377, %v5138
      %v5379 = vmul.u32.u64.compose %v5378, 2863311531
      %v5380 = vextract.low.u32 %v5379
      %v5381 = vextract.high.u32 %v5379
      %v5382 = vshrl.u32 %v5381, 4
      %v5383 = vmul.u32 %v5382, 24
      %v5384 = vsub.s32 %v5378, %v5383
      %v5385 = vsub.s32 0, %v5384
      %v5386 = vsel %vm5376, %v5385, %v5384
      %vm5387 = vcmp.lt.s32.totalorder %v5139, 0
      %v5388 = vsub.s32 0, %v5139
      %v5389 = vsel %vm5387, %v5388, %v5139
      %v5390 = vmul.u32.u64.compose %v5389, 2863311531
      %v5391 = vextract.low.u32 %v5390
      %v5392 = vextract.high.u32 %v5390
      %v5393 = vshrl.u32 %v5392, 4
      %v5394 = vmul.u32 %v5393, 24
      %v5395 = vsub.s32 %v5389, %v5394
      %v5396 = vsub.s32 0, %v5395
      %v5397 = vsel %vm5387, %v5396, %v5395
      %vm5398 = vcmp.lt.s32.totalorder %v5140, 0
      %v5399 = vsub.s32 0, %v5140
      %v5400 = vsel %vm5398, %v5399, %v5140
      %v5401 = vmul.u32.u64.compose %v5400, 2863311531
      %v5402 = vextract.low.u32 %v5401
      %v5403 = vextract.high.u32 %v5401
      %v5404 = vshrl.u32 %v5403, 4
      %v5405 = vmul.u32 %v5404, 24
      %v5406 = vsub.s32 %v5400, %v5405
      %v5407 = vsub.s32 0, %v5406
      %v5408 = vsel %vm5398, %v5407, %v5406
      %vm5409 = vcmp.lt.s32.totalorder %v5141, 0
      %v5410 = vsub.s32 0, %v5141
      %v5411 = vsel %vm5409, %v5410, %v5141
      %v5412 = vmul.u32.u64.compose %v5411, 2863311531
      %v5413 = vextract.low.u32 %v5412
      %v5414 = vextract.high.u32 %v5412
      %v5415 = vshrl.u32 %v5414, 4
      %v5416 = vmul.u32 %v5415, 24
      %v5417 = vsub.s32 %v5411, %v5416
      %v5418 = vsub.s32 0, %v5417
      %v5419 = vsel %vm5409, %v5418, %v5417
      %vm5420 = vcmp.lt.s32.totalorder %v5142, 0
      %v5421 = vsub.s32 0, %v5142
      %v5422 = vsel %vm5420, %v5421, %v5142
      %v5423 = vmul.u32.u64.compose %v5422, 2863311531
      %v5424 = vextract.low.u32 %v5423
      %v5425 = vextract.high.u32 %v5423
      %v5426 = vshrl.u32 %v5425, 4
      %v5427 = vmul.u32 %v5426, 24
      %v5428 = vsub.s32 %v5422, %v5427
      %v5429 = vsub.s32 0, %v5428
      %v5430 = vsel %vm5420, %v5429, %v5428
      %vm5431 = vcmp.lt.s32.totalorder %v5143, 0
      %v5432 = vsub.s32 0, %v5143
      %v5433 = vsel %vm5431, %v5432, %v5143
      %v5434 = vmul.u32.u64.compose %v5433, 2863311531
      %v5435 = vextract.low.u32 %v5434
      %v5436 = vextract.high.u32 %v5434
      %v5437 = vshrl.u32 %v5436, 4
      %v5438 = vmul.u32 %v5437, 24
      %v5439 = vsub.s32 %v5433, %v5438
      %v5440 = vsub.s32 0, %v5439
      %v5441 = vsel %vm5431, %v5440, %v5439
      %vm5442 = vcmp.lt.s32.totalorder %v5144, 0
      %v5443 = vsub.s32 0, %v5144
      %v5444 = vsel %vm5442, %v5443, %v5144
      %v5445 = vmul.u32.u64.compose %v5444, 2863311531
      %v5446 = vextract.low.u32 %v5445
      %v5447 = vextract.high.u32 %v5445
      %v5448 = vshrl.u32 %v5447, 4
      %v5449 = vmul.u32 %v5448, 24
      %v5450 = vsub.s32 %v5444, %v5449
      %v5451 = vsub.s32 0, %v5450
      %v5452 = vsel %vm5442, %v5451, %v5450
      %vm5453 = vcmp.lt.s32.totalorder %v5145, 0
      %v5454 = vsub.s32 0, %v5145
      %v5455 = vsel %vm5453, %v5454, %v5145
      %v5456 = vmul.u32.u64.compose %v5455, 2863311531
      %v5457 = vextract.low.u32 %v5456
      %v5458 = vextract.high.u32 %v5456
      %v5459 = vshrl.u32 %v5458, 4
      %v5460 = vmul.u32 %v5459, 24
      %v5461 = vsub.s32 %v5455, %v5460
      %v5462 = vsub.s32 0, %v5461
      %v5463 = vsel %vm5453, %v5462, %v5461
      %vm5464 = vcmp.lt.s32.totalorder %v5146, 0
      %v5465 = vsub.s32 0, %v5146
      %v5466 = vsel %vm5464, %v5465, %v5146
      %v5467 = vmul.u32.u64.compose %v5466, 2863311531
      %v5468 = vextract.low.u32 %v5467
      %v5469 = vextract.high.u32 %v5467
      %v5470 = vshrl.u32 %v5469, 4
      %v5471 = vmul.u32 %v5470, 24
      %v5472 = vsub.s32 %v5466, %v5471
      %v5473 = vsub.s32 0, %v5472
      %v5474 = vsel %vm5464, %v5473, %v5472
      %vm5475 = vcmp.lt.s32.totalorder %v5147, 0
      %v5476 = vsub.s32 0, %v5147
      %v5477 = vsel %vm5475, %v5476, %v5147
      %v5478 = vmul.u32.u64.compose %v5477, 2863311531
      %v5479 = vextract.low.u32 %v5478
      %v5480 = vextract.high.u32 %v5478
      %v5481 = vshrl.u32 %v5480, 4
      %v5482 = vmul.u32 %v5481, 24
      %v5483 = vsub.s32 %v5477, %v5482
      %v5484 = vsub.s32 0, %v5483
      %v5485 = vsel %vm5475, %v5484, %v5483
      %vm5486 = vcmp.lt.s32.totalorder %v5148, 0
      %v5487 = vsub.s32 0, %v5148
      %v5488 = vsel %vm5486, %v5487, %v5148
      %v5489 = vmul.u32.u64.compose %v5488, 2863311531
      %v5490 = vextract.low.u32 %v5489
      %v5491 = vextract.high.u32 %v5489
      %v5492 = vshrl.u32 %v5491, 4
      %v5493 = vmul.u32 %v5492, 24
      %v5494 = vsub.s32 %v5488, %v5493
      %v5495 = vsub.s32 0, %v5494
      %v5496 = vsel %vm5486, %v5495, %v5494
      %vm5497 = vcmp.lt.s32.totalorder %v5149, 0
      %v5498 = vsub.s32 0, %v5149
      %v5499 = vsel %vm5497, %v5498, %v5149
      %v5500 = vmul.u32.u64.compose %v5499, 2863311531
      %v5501 = vextract.low.u32 %v5500
      %v5502 = vextract.high.u32 %v5500
      %v5503 = vshrl.u32 %v5502, 4
      %v5504 = vmul.u32 %v5503, 24
      %v5505 = vsub.s32 %v5499, %v5504
      %v5506 = vsub.s32 0, %v5505
      %v5507 = vsel %vm5497, %v5506, %v5505
      %vm5508 = vcmp.lt.s32.totalorder %v5150, 0
      %v5509 = vsub.s32 0, %v5150
      %v5510 = vsel %vm5508, %v5509, %v5150
      %v5511 = vmul.u32.u64.compose %v5510, 2863311531
      %v5512 = vextract.low.u32 %v5511
      %v5513 = vextract.high.u32 %v5511
      %v5514 = vshrl.u32 %v5513, 4
      %v5515 = vmul.u32 %v5514, 24
      %v5516 = vsub.s32 %v5510, %v5515
      %v5517 = vsub.s32 0, %v5516
      %v5518 = vsel %vm5508, %v5517, %v5516
      %vm5519 = vcmp.lt.s32.totalorder %v5151, 0
      %v5520 = vsub.s32 0, %v5151
      %v5521 = vsel %vm5519, %v5520, %v5151
      %v5522 = vmul.u32.u64.compose %v5521, 2863311531
      %v5523 = vextract.low.u32 %v5522
      %v5524 = vextract.high.u32 %v5522
      %v5525 = vshrl.u32 %v5524, 4
      %v5526 = vmul.u32 %v5525, 24
      %v5527 = vsub.s32 %v5521, %v5526
      %v5528 = vsub.s32 0, %v5527
      %v5529 = vsel %vm5519, %v5528, %v5527
      %vm5530 = vcmp.lt.s32.totalorder %v5152, 0
      %v5531 = vsub.s32 0, %v5152
      %v5532 = vsel %vm5530, %v5531, %v5152
      %v5533 = vmul.u32.u64.compose %v5532, 2863311531
      %v5534 = vextract.low.u32 %v5533
      %v5535 = vextract.high.u32 %v5533
      %v5536 = vshrl.u32 %v5535, 4
      %v5537 = vmul.u32 %v5536, 24
      %v5538 = vsub.s32 %v5532, %v5537
      %v5539 = vsub.s32 0, %v5538
      %v5540 = vsel %vm5530, %v5539, %v5538
      %vm5541 = vcmp.lt.s32.totalorder %v5153, 0
      %v5542 = vsub.s32 0, %v5153
      %v5543 = vsel %vm5541, %v5542, %v5153
      %v5544 = vmul.u32.u64.compose %v5543, 2863311531
      %v5545 = vextract.low.u32 %v5544
      %v5546 = vextract.high.u32 %v5544
      %v5547 = vshrl.u32 %v5546, 4
      %v5548 = vmul.u32 %v5547, 24
      %v5549 = vsub.s32 %v5543, %v5548
      %v5550 = vsub.s32 0, %v5549
      %v5551 = vsel %vm5541, %v5550, %v5549
      %vm5552 = vcmp.lt.s32.totalorder %v5154, 0
      %v5553 = vsub.s32 0, %v5154
      %v5554 = vsel %vm5552, %v5553, %v5154
      %v5555 = vmul.u32.u64.compose %v5554, 2863311531
      %v5556 = vextract.low.u32 %v5555
      %v5557 = vextract.high.u32 %v5555
      %v5558 = vshrl.u32 %v5557, 4
      %v5559 = vmul.u32 %v5558, 24
      %v5560 = vsub.s32 %v5554, %v5559
      %v5561 = vsub.s32 0, %v5560
      %v5562 = vsel %vm5552, %v5561, %v5560
      %vm5563 = vcmp.lt.s32.totalorder %v5155, 0
      %v5564 = vsub.s32 0, %v5155
      %v5565 = vsel %vm5563, %v5564, %v5155
      %v5566 = vmul.u32.u64.compose %v5565, 2863311531
      %v5567 = vextract.low.u32 %v5566
      %v5568 = vextract.high.u32 %v5566
      %v5569 = vshrl.u32 %v5568, 4
      %v5570 = vmul.u32 %v5569, 24
      %v5571 = vsub.s32 %v5565, %v5570
      %v5572 = vsub.s32 0, %v5571
      %v5573 = vsel %vm5563, %v5572, %v5571
      %vm5574 = vcmp.lt.s32.totalorder %v5156, 0
      %v5575 = vsub.s32 0, %v5156
      %v5576 = vsel %vm5574, %v5575, %v5156
      %v5577 = vmul.u32.u64.compose %v5576, 2863311531
      %v5578 = vextract.low.u32 %v5577
      %v5579 = vextract.high.u32 %v5577
      %v5580 = vshrl.u32 %v5579, 4
      %v5581 = vmul.u32 %v5580, 24
      %v5582 = vsub.s32 %v5576, %v5581
      %v5583 = vsub.s32 0, %v5582
      %v5584 = vsel %vm5574, %v5583, %v5582
      %vm5585 = vcmp.lt.s32.totalorder %v5157, 0
      %v5586 = vsub.s32 0, %v5157
      %v5587 = vsel %vm5585, %v5586, %v5157
      %v5588 = vmul.u32.u64.compose %v5587, 2863311531
      %v5589 = vextract.low.u32 %v5588
      %v5590 = vextract.high.u32 %v5588
      %v5591 = vshrl.u32 %v5590, 4
      %v5592 = vmul.u32 %v5591, 24
      %v5593 = vsub.s32 %v5587, %v5592
      %v5594 = vsub.s32 0, %v5593
      %v5595 = vsel %vm5585, %v5594, %v5593
      %vm5596 = vcmp.lt.s32.totalorder %v5158, 0
      %v5597 = vsub.s32 0, %v5158
      %v5598 = vsel %vm5596, %v5597, %v5158
      %v5599 = vmul.u32.u64.compose %v5598, 2863311531
      %v5600 = vextract.low.u32 %v5599
      %v5601 = vextract.high.u32 %v5599
      %v5602 = vshrl.u32 %v5601, 4
      %v5603 = vmul.u32 %v5602, 24
      %v5604 = vsub.s32 %v5598, %v5603
      %v5605 = vsub.s32 0, %v5604
      %v5606 = vsel %vm5596, %v5605, %v5604
      %vm5607 = vcmp.lt.s32.totalorder %v5159, 0
      %v5608 = vsub.s32 0, %v5159
      %v5609 = vsel %vm5607, %v5608, %v5159
      %v5610 = vmul.u32.u64.compose %v5609, 2863311531
      %v5611 = vextract.low.u32 %v5610
      %v5612 = vextract.high.u32 %v5610
      %v5613 = vshrl.u32 %v5612, 4
      %v5614 = vmul.u32 %v5613, 24
      %v5615 = vsub.s32 %v5609, %v5614
      %v5616 = vsub.s32 0, %v5615
      %v5617 = vsel %vm5607, %v5616, %v5615
      %vm5618 = vcmp.lt.s32.totalorder %v5160, 0
      %v5619 = vsub.s32 0, %v5160
      %v5620 = vsel %vm5618, %v5619, %v5160
      %v5621 = vmul.u32.u64.compose %v5620, 2863311531
      %v5622 = vextract.low.u32 %v5621
      %v5623 = vextract.high.u32 %v5621
      %v5624 = vshrl.u32 %v5623, 4
      %v5625 = vmul.u32 %v5624, 24
      %v5626 = vsub.s32 %v5620, %v5625
      %v5627 = vsub.s32 0, %v5626
      %v5628 = vsel %vm5618, %v5627, %v5626
      %vm5629 = vcmp.lt.s32.totalorder %v5161, 0
      %v5630 = vsub.s32 0, %v5161
      %v5631 = vsel %vm5629, %v5630, %v5161
      %v5632 = vmul.u32.u64.compose %v5631, 2863311531
      %v5633 = vextract.low.u32 %v5632
      %v5634 = vextract.high.u32 %v5632
      %v5635 = vshrl.u32 %v5634, 4
      %v5636 = vmul.u32 %v5635, 24
      %v5637 = vsub.s32 %v5631, %v5636
      %v5638 = vsub.s32 0, %v5637
      %v5639 = vsel %vm5629, %v5638, %v5637
      %vm5640 = vcmp.lt.s32.totalorder %v5162, 0
      %v5641 = vsub.s32 0, %v5162
      %v5642 = vsel %vm5640, %v5641, %v5162
      %v5643 = vmul.u32.u64.compose %v5642, 2863311531
      %v5644 = vextract.low.u32 %v5643
      %v5645 = vextract.high.u32 %v5643
      %v5646 = vshrl.u32 %v5645, 4
      %v5647 = vmul.u32 %v5646, 24
      %v5648 = vsub.s32 %v5642, %v5647
      %v5649 = vsub.s32 0, %v5648
      %v5650 = vsel %vm5640, %v5649, %v5648
      %vm5651 = vcmp.lt.s32.totalorder %v5163, 0
      %v5652 = vsub.s32 0, %v5163
      %v5653 = vsel %vm5651, %v5652, %v5163
      %v5654 = vmul.u32.u64.compose %v5653, 2863311531
      %v5655 = vextract.low.u32 %v5654
      %v5656 = vextract.high.u32 %v5654
      %v5657 = vshrl.u32 %v5656, 4
      %v5658 = vmul.u32 %v5657, 24
      %v5659 = vsub.s32 %v5653, %v5658
      %v5660 = vsub.s32 0, %v5659
      %v5661 = vsel %vm5651, %v5660, %v5659
      %vm5662 = vcmp.lt.s32.totalorder %v5164, 0
      %v5663 = vsub.s32 0, %v5164
      %v5664 = vsel %vm5662, %v5663, %v5164
      %v5665 = vmul.u32.u64.compose %v5664, 2863311531
      %v5666 = vextract.low.u32 %v5665
      %v5667 = vextract.high.u32 %v5665
      %v5668 = vshrl.u32 %v5667, 4
      %v5669 = vmul.u32 %v5668, 24
      %v5670 = vsub.s32 %v5664, %v5669
      %v5671 = vsub.s32 0, %v5670
      %v5672 = vsel %vm5662, %v5671, %v5670
      %vm5673 = vcmp.lt.s32.totalorder %v5165, 0
      %v5674 = vsub.s32 0, %v5165
      %v5675 = vsel %vm5673, %v5674, %v5165
      %v5676 = vmul.u32.u64.compose %v5675, 2863311531
      %v5677 = vextract.low.u32 %v5676
      %v5678 = vextract.high.u32 %v5676
      %v5679 = vshrl.u32 %v5678, 4
      %v5680 = vmul.u32 %v5679, 24
      %v5681 = vsub.s32 %v5675, %v5680
      %v5682 = vsub.s32 0, %v5681
      %v5683 = vsel %vm5673, %v5682, %v5681
      %vm5684 = vcmp.lt.s32.totalorder %v5166, 0
      %v5685 = vsub.s32 0, %v5166
      %v5686 = vsel %vm5684, %v5685, %v5166
      %v5687 = vmul.u32.u64.compose %v5686, 2863311531
      %v5688 = vextract.low.u32 %v5687
      %v5689 = vextract.high.u32 %v5687
      %v5690 = vshrl.u32 %v5689, 4
      %v5691 = vmul.u32 %v5690, 24
      %v5692 = vsub.s32 %v5686, %v5691
      %v5693 = vsub.s32 0, %v5692
      %v5694 = vsel %vm5684, %v5693, %v5692
      %vm5695 = vcmp.ne.s32.totalorder %v5177, 0
      %vm5696 = vcmp.ne.s32.totalorder %v5188, 0
      %vm5697 = vcmp.ne.s32.totalorder %v5199, 0
      %vm5698 = vcmp.ne.s32.totalorder %v5210, 0
      %vm5699 = vcmp.ne.s32.totalorder %v5221, 0
      %vm5700 = vcmp.ne.s32.totalorder %v5232, 0
      %vm5701 = vcmp.ne.s32.totalorder %v5243, 0
      %vm5702 = vcmp.ne.s32.totalorder %v5254, 0
      %vm5703 = vcmp.ne.s32.totalorder %v5265, 0
      %vm5704 = vcmp.ne.s32.totalorder %v5276, 0
      %vm5705 = vcmp.ne.s32.totalorder %v5287, 0
      %vm5706 = vcmp.ne.s32.totalorder %v5298, 0
      %vm5707 = vcmp.ne.s32.totalorder %v5309, 0
      %vm5708 = vcmp.ne.s32.totalorder %v5320, 0
      %vm5709 = vcmp.ne.s32.totalorder %v5331, 0
      %vm5710 = vcmp.ne.s32.totalorder %v5342, 0
      %vm5711 = vcmp.ne.s32.totalorder %v5353, 0
      %vm5712 = vcmp.ne.s32.totalorder %v5364, 0
      %vm5713 = vcmp.ne.s32.totalorder %v5375, 0
      %vm5714 = vcmp.ne.s32.totalorder %v5386, 0
      %vm5715 = vcmp.ne.s32.totalorder %v5397, 0
      %vm5716 = vcmp.ne.s32.totalorder %v5408, 0
      %vm5717 = vcmp.ne.s32.totalorder %v5419, 0
      %vm5718 = vcmp.ne.s32.totalorder %v5430, 0
      %vm5719 = vcmp.ne.s32.totalorder %v5441, 0
      %vm5720 = vcmp.ne.s32.totalorder %v5452, 0
      %vm5721 = vcmp.ne.s32.totalorder %v5463, 0
      %vm5722 = vcmp.ne.s32.totalorder %v5474, 0
      %vm5723 = vcmp.ne.s32.totalorder %v5485, 0
      %vm5724 = vcmp.ne.s32.totalorder %v5496, 0
      %vm5725 = vcmp.ne.s32.totalorder %v5507, 0
      %vm5726 = vcmp.ne.s32.totalorder %v5518, 0
      %vm5727 = vcmp.ne.s32.totalorder %v5529, 0
      %vm5728 = vcmp.ne.s32.totalorder %v5540, 0
      %vm5729 = vcmp.ne.s32.totalorder %v5551, 0
      %vm5730 = vcmp.ne.s32.totalorder %v5562, 0
      %vm5731 = vcmp.ne.s32.totalorder %v5573, 0
      %vm5732 = vcmp.ne.s32.totalorder %v5584, 0
      %vm5733 = vcmp.ne.s32.totalorder %v5595, 0
      %vm5734 = vcmp.ne.s32.totalorder %v5606, 0
      %vm5735 = vcmp.ne.s32.totalorder %v5617, 0
      %vm5736 = vcmp.ne.s32.totalorder %v5628, 0
      %vm5737 = vcmp.ne.s32.totalorder %v5639, 0
      %vm5738 = vcmp.ne.s32.totalorder %v5650, 0
      %vm5739 = vcmp.ne.s32.totalorder %v5661, 0
      %vm5740 = vcmp.ne.s32.totalorder %v5672, 0
      %vm5741 = vcmp.ne.s32.totalorder %v5683, 0
      %vm5742 = vcmp.ne.s32.totalorder %v5694, 0
      %vm5743 = vcmp.lt.s32.totalorder %v5177, 0
      %vm5744 = vcmp.lt.s32.totalorder %v5188, 0
      %vm5745 = vcmp.lt.s32.totalorder %v5199, 0
      %vm5746 = vcmp.lt.s32.totalorder %v5210, 0
      %vm5747 = vcmp.lt.s32.totalorder %v5221, 0
      %vm5748 = vcmp.lt.s32.totalorder %v5232, 0
      %vm5749 = vcmp.lt.s32.totalorder %v5243, 0
      %vm5750 = vcmp.lt.s32.totalorder %v5254, 0
      %vm5751 = vcmp.lt.s32.totalorder %v5265, 0
      %vm5752 = vcmp.lt.s32.totalorder %v5276, 0
      %vm5753 = vcmp.lt.s32.totalorder %v5287, 0
      %vm5754 = vcmp.lt.s32.totalorder %v5298, 0
      %vm5755 = vcmp.lt.s32.totalorder %v5309, 0
      %vm5756 = vcmp.lt.s32.totalorder %v5320, 0
      %vm5757 = vcmp.lt.s32.totalorder %v5331, 0
      %vm5758 = vcmp.lt.s32.totalorder %v5342, 0
      %vm5759 = vcmp.lt.s32.totalorder %v5353, 0
      %vm5760 = vcmp.lt.s32.totalorder %v5364, 0
      %vm5761 = vcmp.lt.s32.totalorder %v5375, 0
      %vm5762 = vcmp.lt.s32.totalorder %v5386, 0
      %vm5763 = vcmp.lt.s32.totalorder %v5397, 0
      %vm5764 = vcmp.lt.s32.totalorder %v5408, 0
      %vm5765 = vcmp.lt.s32.totalorder %v5419, 0
      %vm5766 = vcmp.lt.s32.totalorder %v5430, 0
      %vm5767 = vcmp.lt.s32.totalorder %v5441, 0
      %vm5768 = vcmp.lt.s32.totalorder %v5452, 0
      %vm5769 = vcmp.lt.s32.totalorder %v5463, 0
      %vm5770 = vcmp.lt.s32.totalorder %v5474, 0
      %vm5771 = vcmp.lt.s32.totalorder %v5485, 0
      %vm5772 = vcmp.lt.s32.totalorder %v5496, 0
      %vm5773 = vcmp.lt.s32.totalorder %v5507, 0
      %vm5774 = vcmp.lt.s32.totalorder %v5518, 0
      %vm5775 = vcmp.lt.s32.totalorder %v5529, 0
      %vm5776 = vcmp.lt.s32.totalorder %v5540, 0
      %vm5777 = vcmp.lt.s32.totalorder %v5551, 0
      %vm5778 = vcmp.lt.s32.totalorder %v5562, 0
      %vm5779 = vcmp.lt.s32.totalorder %v5573, 0
      %vm5780 = vcmp.lt.s32.totalorder %v5584, 0
      %vm5781 = vcmp.lt.s32.totalorder %v5595, 0
      %vm5782 = vcmp.lt.s32.totalorder %v5606, 0
      %vm5783 = vcmp.lt.s32.totalorder %v5617, 0
      %vm5784 = vcmp.lt.s32.totalorder %v5628, 0
      %vm5785 = vcmp.lt.s32.totalorder %v5639, 0
      %vm5786 = vcmp.lt.s32.totalorder %v5650, 0
      %vm5787 = vcmp.lt.s32.totalorder %v5661, 0
      %vm5788 = vcmp.lt.s32.totalorder %v5672, 0
      %vm5789 = vcmp.lt.s32.totalorder %v5683, 0
      %vm5790 = vcmp.lt.s32.totalorder %v5694, 0
      %vm5791 = vmand %vm5743, %vm5695
      %vm5792 = vmand %vm5744, %vm5696
      %vm5793 = vmand %vm5745, %vm5697
      %vm5794 = vmand %vm5746, %vm5698
      %vm5795 = vmand %vm5747, %vm5699
      %vm5796 = vmand %vm5748, %vm5700
      %vm5797 = vmand %vm5749, %vm5701
      %vm5798 = vmand %vm5750, %vm5702
      %vm5799 = vmand %vm5751, %vm5703
      %vm5800 = vmand %vm5752, %vm5704
      %vm5801 = vmand %vm5753, %vm5705
      %vm5802 = vmand %vm5754, %vm5706
      %vm5803 = vmand %vm5755, %vm5707
      %vm5804 = vmand %vm5756, %vm5708
      %vm5805 = vmand %vm5757, %vm5709
      %vm5806 = vmand %vm5758, %vm5710
      %vm5807 = vmand %vm5759, %vm5711
      %vm5808 = vmand %vm5760, %vm5712
      %vm5809 = vmand %vm5761, %vm5713
      %vm5810 = vmand %vm5762, %vm5714
      %vm5811 = vmand %vm5763, %vm5715
      %vm5812 = vmand %vm5764, %vm5716
      %vm5813 = vmand %vm5765, %vm5717
      %vm5814 = vmand %vm5766, %vm5718
      %vm5815 = vmand %vm5767, %vm5719
      %vm5816 = vmand %vm5768, %vm5720
      %vm5817 = vmand %vm5769, %vm5721
      %vm5818 = vmand %vm5770, %vm5722
      %vm5819 = vmand %vm5771, %vm5723
      %vm5820 = vmand %vm5772, %vm5724
      %vm5821 = vmand %vm5773, %vm5725
      %vm5822 = vmand %vm5774, %vm5726
      %vm5823 = vmand %vm5775, %vm5727
      %vm5824 = vmand %vm5776, %vm5728
      %vm5825 = vmand %vm5777, %vm5729
      %vm5826 = vmand %vm5778, %vm5730
      %vm5827 = vmand %vm5779, %vm5731
      %vm5828 = vmand %vm5780, %vm5732
      %vm5829 = vmand %vm5781, %vm5733
      %vm5830 = vmand %vm5782, %vm5734
      %vm5831 = vmand %vm5783, %vm5735
      %vm5832 = vmand %vm5784, %vm5736
      %vm5833 = vmand %vm5785, %vm5737
      %vm5834 = vmand %vm5786, %vm5738
      %vm5835 = vmand %vm5787, %vm5739
      %vm5836 = vmand %vm5788, %vm5740
      %vm5837 = vmand %vm5789, %vm5741
      %vm5838 = vmand %vm5790, %vm5742
      %v5839 = vadd.s32 %v5177, 24
      %v5840 = vadd.s32 %v5188, 24
      %v5841 = vadd.s32 %v5199, 24
      %v5842 = vadd.s32 %v5210, 24
      %v5843 = vadd.s32 %v5221, 24
      %v5844 = vadd.s32 %v5232, 24
      %v5845 = vadd.s32 %v5243, 24
      %v5846 = vadd.s32 %v5254, 24
      %v5847 = vadd.s32 %v5265, 24
      %v5848 = vadd.s32 %v5276, 24
      %v5849 = vadd.s32 %v5287, 24
      %v5850 = vadd.s32 %v5298, 24
      %v5851 = vadd.s32 %v5309, 24
      %v5852 = vadd.s32 %v5320, 24
      %v5853 = vadd.s32 %v5331, 24
      %v5854 = vadd.s32 %v5342, 24
      %v5855 = vadd.s32 %v5353, 24
      %v5856 = vadd.s32 %v5364, 24
      %v5857 = vadd.s32 %v5375, 24
      %v5858 = vadd.s32 %v5386, 24
      %v5859 = vadd.s32 %v5397, 24
      %v5860 = vadd.s32 %v5408, 24
      %v5861 = vadd.s32 %v5419, 24
      %v5862 = vadd.s32 %v5430, 24
      %v5863 = vadd.s32 %v5441, 24
      %v5864 = vadd.s32 %v5452, 24
      %v5865 = vadd.s32 %v5463, 24
      %v5866 = vadd.s32 %v5474, 24
      %v5867 = vadd.s32 %v5485, 24
      %v5868 = vadd.s32 %v5496, 24
      %v5869 = vadd.s32 %v5507, 24
      %v5870 = vadd.s32 %v5518, 24
      %v5871 = vadd.s32 %v5529, 24
      %v5872 = vadd.s32 %v5540, 24
      %v5873 = vadd.s32 %v5551, 24
      %v5874 = vadd.s32 %v5562, 24
      %v5875 = vadd.s32 %v5573, 24
      %v5876 = vadd.s32 %v5584, 24
      %v5877 = vadd.s32 %v5595, 24
      %v5878 = vadd.s32 %v5606, 24
      %v5879 = vadd.s32 %v5617, 24
      %v5880 = vadd.s32 %v5628, 24
      %v5881 = vadd.s32 %v5639, 24
      %v5882 = vadd.s32 %v5650, 24
      %v5883 = vadd.s32 %v5661, 24
      %v5884 = vadd.s32 %v5672, 24
      %v5885 = vadd.s32 %v5683, 24
      %v5886 = vadd.s32 %v5694, 24
      %v5887 = vsel %vm5791, %v5839, %v5177
      %v5888 = vsel %vm5792, %v5840, %v5188
      %v5889 = vsel %vm5793, %v5841, %v5199
      %v5890 = vsel %vm5794, %v5842, %v5210
      %v5891 = vsel %vm5795, %v5843, %v5221
      %v5892 = vsel %vm5796, %v5844, %v5232
      %v5893 = vsel %vm5797, %v5845, %v5243
      %v5894 = vsel %vm5798, %v5846, %v5254
      %v5895 = vsel %vm5799, %v5847, %v5265
      %v5896 = vsel %vm5800, %v5848, %v5276
      %v5897 = vsel %vm5801, %v5849, %v5287
      %v5898 = vsel %vm5802, %v5850, %v5298
      %v5899 = vsel %vm5803, %v5851, %v5309
      %v5900 = vsel %vm5804, %v5852, %v5320
      %v5901 = vsel %vm5805, %v5853, %v5331
      %v5902 = vsel %vm5806, %v5854, %v5342
      %v5903 = vsel %vm5807, %v5855, %v5353
      %v5904 = vsel %vm5808, %v5856, %v5364
      %v5905 = vsel %vm5809, %v5857, %v5375
      %v5906 = vsel %vm5810, %v5858, %v5386
      %v5907 = vsel %vm5811, %v5859, %v5397
      %v5908 = vsel %vm5812, %v5860, %v5408
      %v5909 = vsel %vm5813, %v5861, %v5419
      %v5910 = vsel %vm5814, %v5862, %v5430
      %v5911 = vsel %vm5815, %v5863, %v5441
      %v5912 = vsel %vm5816, %v5864, %v5452
      %v5913 = vsel %vm5817, %v5865, %v5463
      %v5914 = vsel %vm5818, %v5866, %v5474
      %v5915 = vsel %vm5819, %v5867, %v5485
      %v5916 = vsel %vm5820, %v5868, %v5496
      %v5917 = vsel %vm5821, %v5869, %v5507
      %v5918 = vsel %vm5822, %v5870, %v5518
      %v5919 = vsel %vm5823, %v5871, %v5529
      %v5920 = vsel %vm5824, %v5872, %v5540
      %v5921 = vsel %vm5825, %v5873, %v5551
      %v5922 = vsel %vm5826, %v5874, %v5562
      %v5923 = vsel %vm5827, %v5875, %v5573
      %v5924 = vsel %vm5828, %v5876, %v5584
      %v5925 = vsel %vm5829, %v5877, %v5595
      %v5926 = vsel %vm5830, %v5878, %v5606
      %v5927 = vsel %vm5831, %v5879, %v5617
      %v5928 = vsel %vm5832, %v5880, %v5628
      %v5929 = vsel %vm5833, %v5881, %v5639
      %v5930 = vsel %vm5834, %v5882, %v5650
      %v5931 = vsel %vm5835, %v5883, %v5661
      %v5932 = vsel %vm5836, %v5884, %v5672
      %v5933 = vsel %vm5837, %v5885, %v5683
      %v5934 = vsel %vm5838, %v5886, %v5694
      %vm5935 = vcmp.lt.s32.totalorder %v5887, 16
      %vm5936 = vcmp.lt.s32.totalorder %v5888, 16
      %vm5937 = vcmp.lt.s32.totalorder %v5889, 16
      %vm5938 = vcmp.lt.s32.totalorder %v5890, 16
      %vm5939 = vcmp.lt.s32.totalorder %v5891, 16
      %vm5940 = vcmp.lt.s32.totalorder %v5892, 16
      %vm5941 = vcmp.lt.s32.totalorder %v5893, 16
      %vm5942 = vcmp.lt.s32.totalorder %v5894, 16
      %vm5943 = vcmp.lt.s32.totalorder %v5895, 16
      %vm5944 = vcmp.lt.s32.totalorder %v5896, 16
      %vm5945 = vcmp.lt.s32.totalorder %v5897, 16
      %vm5946 = vcmp.lt.s32.totalorder %v5898, 16
      %vm5947 = vcmp.lt.s32.totalorder %v5899, 16
      %vm5948 = vcmp.lt.s32.totalorder %v5900, 16
      %vm5949 = vcmp.lt.s32.totalorder %v5901, 16
      %vm5950 = vcmp.lt.s32.totalorder %v5902, 16
      %vm5951 = vcmp.lt.s32.totalorder %v5903, 16
      %vm5952 = vcmp.lt.s32.totalorder %v5904, 16
      %vm5953 = vcmp.lt.s32.totalorder %v5905, 16
      %vm5954 = vcmp.lt.s32.totalorder %v5906, 16
      %vm5955 = vcmp.lt.s32.totalorder %v5907, 16
      %vm5956 = vcmp.lt.s32.totalorder %v5908, 16
      %vm5957 = vcmp.lt.s32.totalorder %v5909, 16
      %vm5958 = vcmp.lt.s32.totalorder %v5910, 16
      %vm5959 = vcmp.lt.s32.totalorder %v5911, 16
      %vm5960 = vcmp.lt.s32.totalorder %v5912, 16
      %vm5961 = vcmp.lt.s32.totalorder %v5913, 16
      %vm5962 = vcmp.lt.s32.totalorder %v5914, 16
      %vm5963 = vcmp.lt.s32.totalorder %v5915, 16
      %vm5964 = vcmp.lt.s32.totalorder %v5916, 16
      %vm5965 = vcmp.lt.s32.totalorder %v5917, 16
      %vm5966 = vcmp.lt.s32.totalorder %v5918, 16
      %vm5967 = vcmp.lt.s32.totalorder %v5919, 16
      %vm5968 = vcmp.lt.s32.totalorder %v5920, 16
      %vm5969 = vcmp.lt.s32.totalorder %v5921, 16
      %vm5970 = vcmp.lt.s32.totalorder %v5922, 16
      %vm5971 = vcmp.lt.s32.totalorder %v5923, 16
      %vm5972 = vcmp.lt.s32.totalorder %v5924, 16
      %vm5973 = vcmp.lt.s32.totalorder %v5925, 16
      %vm5974 = vcmp.lt.s32.totalorder %v5926, 16
      %vm5975 = vcmp.lt.s32.totalorder %v5927, 16
      %vm5976 = vcmp.lt.s32.totalorder %v5928, 16
      %vm5977 = vcmp.lt.s32.totalorder %v5929, 16
      %vm5978 = vcmp.lt.s32.totalorder %v5930, 16
      %vm5979 = vcmp.lt.s32.totalorder %v5931, 16
      %vm5980 = vcmp.lt.s32.totalorder %v5932, 16
      %vm5981 = vcmp.lt.s32.totalorder %v5933, 16
      %vm5982 = vcmp.lt.s32.totalorder %v5934, 16
      %v5983 = vsel %vm5935, 1, 0
      %v5984 = vsel %vm5936, 1, 0
      %v5985 = vsel %vm5937, 1, 0
      %v5986 = vsel %vm5938, 1, 0
      %v5987 = vsel %vm5939, 1, 0
      %v5988 = vsel %vm5940, 1, 0
      %v5989 = vsel %vm5941, 1, 0
      %v5990 = vsel %vm5942, 1, 0
      %v5991 = vsel %vm5943, 1, 0
      %v5992 = vsel %vm5944, 1, 0
      %v5993 = vsel %vm5945, 1, 0
      %v5994 = vsel %vm5946, 1, 0
      %v5995 = vsel %vm5947, 1, 0
      %v5996 = vsel %vm5948, 1, 0
      %v5997 = vsel %vm5949, 1, 0
      %v5998 = vsel %vm5950, 1, 0
      %v5999 = vsel %vm5951, 1, 0
      %v6000 = vsel %vm5952, 1, 0
      %v6001 = vsel %vm5953, 1, 0
      %v6002 = vsel %vm5954, 1, 0
      %v6003 = vsel %vm5955, 1, 0
      %v6004 = vsel %vm5956, 1, 0
      %v6005 = vsel %vm5957, 1, 0
      %v6006 = vsel %vm5958, 1, 0
      %v6007 = vsel %vm5959, 1, 0
      %v6008 = vsel %vm5960, 1, 0
      %v6009 = vsel %vm5961, 1, 0
      %v6010 = vsel %vm5962, 1, 0
      %v6011 = vsel %vm5963, 1, 0
      %v6012 = vsel %vm5964, 1, 0
      %v6013 = vsel %vm5965, 1, 0
      %v6014 = vsel %vm5966, 1, 0
      %v6015 = vsel %vm5967, 1, 0
      %v6016 = vsel %vm5968, 1, 0
      %v6017 = vsel %vm5969, 1, 0
      %v6018 = vsel %vm5970, 1, 0
      %v6019 = vsel %vm5971, 1, 0
      %v6020 = vsel %vm5972, 1, 0
      %v6021 = vsel %vm5973, 1, 0
      %v6022 = vsel %vm5974, 1, 0
      %v6023 = vsel %vm5975, 1, 0
      %v6024 = vsel %vm5976, 1, 0
      %v6025 = vsel %vm5977, 1, 0
      %v6026 = vsel %vm5978, 1, 0
      %v6027 = vsel %vm5979, 1, 0
      %v6028 = vsel %vm5980, 1, 0
      %v6029 = vsel %vm5981, 1, 0
      %v6030 = vsel %vm5982, 1, 0
      %vm6031 = vcmp.eq.s32.totalorder %v5983, 1
      %vm6032 = vcmp.eq.s32.totalorder %v5984, 1
      %vm6033 = vcmp.eq.s32.totalorder %v5985, 1
      %vm6034 = vcmp.eq.s32.totalorder %v5986, 1
      %vm6035 = vcmp.eq.s32.totalorder %v5987, 1
      %vm6036 = vcmp.eq.s32.totalorder %v5988, 1
      %vm6037 = vcmp.eq.s32.totalorder %v5989, 1
      %vm6038 = vcmp.eq.s32.totalorder %v5990, 1
      %vm6039 = vcmp.eq.s32.totalorder %v5991, 1
      %vm6040 = vcmp.eq.s32.totalorder %v5992, 1
      %vm6041 = vcmp.eq.s32.totalorder %v5993, 1
      %vm6042 = vcmp.eq.s32.totalorder %v5994, 1
      %vm6043 = vcmp.eq.s32.totalorder %v5995, 1
      %vm6044 = vcmp.eq.s32.totalorder %v5996, 1
      %vm6045 = vcmp.eq.s32.totalorder %v5997, 1
      %vm6046 = vcmp.eq.s32.totalorder %v5998, 1
      %vm6047 = vcmp.eq.s32.totalorder %v5999, 1
      %vm6048 = vcmp.eq.s32.totalorder %v6000, 1
      %vm6049 = vcmp.eq.s32.totalorder %v6001, 1
      %vm6050 = vcmp.eq.s32.totalorder %v6002, 1
      %vm6051 = vcmp.eq.s32.totalorder %v6003, 1
      %vm6052 = vcmp.eq.s32.totalorder %v6004, 1
      %vm6053 = vcmp.eq.s32.totalorder %v6005, 1
      %vm6054 = vcmp.eq.s32.totalorder %v6006, 1
      %vm6055 = vcmp.eq.s32.totalorder %v6007, 1
      %vm6056 = vcmp.eq.s32.totalorder %v6008, 1
      %vm6057 = vcmp.eq.s32.totalorder %v6009, 1
      %vm6058 = vcmp.eq.s32.totalorder %v6010, 1
      %vm6059 = vcmp.eq.s32.totalorder %v6011, 1
      %vm6060 = vcmp.eq.s32.totalorder %v6012, 1
      %vm6061 = vcmp.eq.s32.totalorder %v6013, 1
      %vm6062 = vcmp.eq.s32.totalorder %v6014, 1
      %vm6063 = vcmp.eq.s32.totalorder %v6015, 1
      %vm6064 = vcmp.eq.s32.totalorder %v6016, 1
      %vm6065 = vcmp.eq.s32.totalorder %v6017, 1
      %vm6066 = vcmp.eq.s32.totalorder %v6018, 1
      %vm6067 = vcmp.eq.s32.totalorder %v6019, 1
      %vm6068 = vcmp.eq.s32.totalorder %v6020, 1
      %vm6069 = vcmp.eq.s32.totalorder %v6021, 1
      %vm6070 = vcmp.eq.s32.totalorder %v6022, 1
      %vm6071 = vcmp.eq.s32.totalorder %v6023, 1
      %vm6072 = vcmp.eq.s32.totalorder %v6024, 1
      %vm6073 = vcmp.eq.s32.totalorder %v6025, 1
      %vm6074 = vcmp.eq.s32.totalorder %v6026, 1
      %vm6075 = vcmp.eq.s32.totalorder %v6027, 1
      %vm6076 = vcmp.eq.s32.totalorder %v6028, 1
      %vm6077 = vcmp.eq.s32.totalorder %v6029, 1
      %vm6078 = vcmp.eq.s32.totalorder %v6030, 1
      %v6079 = vsel %vm6031, %v5070, 0.0
      %v6080 = vsel %vm6032, %v5071, 0.0
      %v6081 = vsel %vm6033, %v5072, 0.0
      %v6082 = vsel %vm6034, %v5073, 0.0
      %v6083 = vsel %vm6035, %v5074, 0.0
      %v6084 = vsel %vm6036, %v5075, 0.0
      %v6085 = vsel %vm6037, %v5076, 0.0
      %v6086 = vsel %vm6038, %v5077, 0.0
      %v6087 = vsel %vm6039, %v5078, 0.0
      %v6088 = vsel %vm6040, %v5079, 0.0
      %v6089 = vsel %vm6041, %v5080, 0.0
      %v6090 = vsel %vm6042, %v5081, 0.0
      %v6091 = vsel %vm6043, %v5082, 0.0
      %v6092 = vsel %vm6044, %v5083, 0.0
      %v6093 = vsel %vm6045, %v5084, 0.0
      %v6094 = vsel %vm6046, %v5085, 0.0
      %v6095 = vsel %vm6047, %v5086, 0.0
      %v6096 = vsel %vm6048, %v5087, 0.0
      %v6097 = vsel %vm6049, %v5088, 0.0
      %v6098 = vsel %vm6050, %v5089, 0.0
      %v6099 = vsel %vm6051, %v5090, 0.0
      %v6100 = vsel %vm6052, %v5091, 0.0
      %v6101 = vsel %vm6053, %v5092, 0.0
      %v6102 = vsel %vm6054, %v5093, 0.0
      %v6103 = vsel %vm6055, %v5094, 0.0
      %v6104 = vsel %vm6056, %v5095, 0.0
      %v6105 = vsel %vm6057, %v5096, 0.0
      %v6106 = vsel %vm6058, %v5097, 0.0
      %v6107 = vsel %vm6059, %v5098, 0.0
      %v6108 = vsel %vm6060, %v5099, 0.0
      %v6109 = vsel %vm6061, %v5100, 0.0
      %v6110 = vsel %vm6062, %v5101, 0.0
      %v6111 = vsel %vm6063, %v5102, 0.0
      %v6112 = vsel %vm6064, %v5103, 0.0
      %v6113 = vsel %vm6065, %v5104, 0.0
      %v6114 = vsel %vm6066, %v5105, 0.0
      %v6115 = vsel %vm6067, %v5106, 0.0
      %v6116 = vsel %vm6068, %v5107, 0.0
      %v6117 = vsel %vm6069, %v5108, 0.0
      %v6118 = vsel %vm6070, %v5109, 0.0
      %v6119 = vsel %vm6071, %v5110, 0.0
      %v6120 = vsel %vm6072, %v5111, 0.0
      %v6121 = vsel %vm6073, %v5112, 0.0
      %v6122 = vsel %vm6074, %v5113, 0.0
      %v6123 = vsel %vm6075, %v5114, 0.0
      %v6124 = vsel %vm6076, %v5115, 0.0
      %v6125 = vsel %vm6077, %v5116, 0.0
      %v6126 = vsel %vm6078, %v5117, 0.0
      %6127 = vst [vmem:[#allocation2] sm:$0xf] 0
      %6128 = vst [vmem:[#allocation2 + $0x4] sm:$0xf] 0
      %6129 = vst [vmem:[#allocation2 + $0x8] sm:$0xf] 0
      %6130 = vst [vmem:[#allocation2 + $0xc] sm:$0xf] 0
      %6131 = vst [vmem:[#allocation2 + $0xcc] sm:$0xf] 0
      %6132 = vst [vmem:[#allocation2 + $0xd0] sm:$0xf] 0
      %6133 = vst [vmem:[#allocation2 + $0xd4] sm:$0xf] 0
      %v6134 = vpack.c.bf16 %v6080, %v6079
      %v6135 = vpack.c.bf16 %v6082, %v6081
      %v6136 = vpack.c.bf16 %v6084, %v6083
      %v6137 = vpack.c.bf16 %v6086, %v6085
      %v6138 = vpack.c.bf16 %v6088, %v6087
      %v6139 = vpack.c.bf16 %v6090, %v6089
      %v6140 = vpack.c.bf16 %v6092, %v6091
      %v6141 = vpack.c.bf16 %v6094, %v6093
      %v6142 = vpack.c.bf16 %v6096, %v6095
      %v6143 = vpack.c.bf16 %v6098, %v6097
      %v6144 = vpack.c.bf16 %v6100, %v6099
      %v6145 = vpack.c.bf16 %v6102, %v6101
      %v6146 = vpack.c.bf16 %v6104, %v6103
      %v6147 = vpack.c.bf16 %v6106, %v6105
      %v6148 = vpack.c.bf16 %v6108, %v6107
      %v6149 = vpack.c.bf16 %v6110, %v6109
      %v6150 = vpack.c.bf16 %v6112, %v6111
      %v6151 = vpack.c.bf16 %v6114, %v6113
      %v6152 = vpack.c.bf16 %v6116, %v6115
      %v6153 = vpack.c.bf16 %v6118, %v6117
      %v6154 = vpack.c.bf16 %v6120, %v6119
      %v6155 = vpack.c.bf16 %v6122, %v6121
      %v6156 = vpack.c.bf16 %v6124, %v6123
      %v6157 = vpack.c.bf16 %v6126, %v6125
      %v6182 = vunpack.c.l.b16 %v6134
      %v6183 = vunpack.c.h.b16 %v6134
      %v6184 = vunpack.c.l.b16 %v6135
      %v6185 = vunpack.c.h.b16 %v6135
      %v6186 = vunpack.c.l.b16 %v6136
      %v6187 = vunpack.c.h.b16 %v6136
      %v6188 = vunpack.c.l.b16 %v6137
      %v6189 = vunpack.c.h.b16 %v6137
      %v6190 = vunpack.c.l.b16 %v6138
      %v6191 = vunpack.c.h.b16 %v6138
      %v6192 = vunpack.c.l.b16 %v6139
      %v6193 = vunpack.c.h.b16 %v6139
      %v6194 = vunpack.c.l.b16 %v6140
      %v6195 = vunpack.c.h.b16 %v6140
      %v6196 = vunpack.c.l.b16 %v6141
      %v6197 = vunpack.c.h.b16 %v6141
      %v6198 = vunpack.c.l.b16 %v6142
      %v6199 = vunpack.c.h.b16 %v6142
      %v6200 = vunpack.c.l.b16 %v6143
      %v6201 = vunpack.c.h.b16 %v6143
      %v6202 = vunpack.c.l.b16 %v6144
      %v6203 = vunpack.c.h.b16 %v6144
      %v6204 = vunpack.c.l.b16 %v6145
      %v6205 = vunpack.c.h.b16 %v6145
      %v6206 = vunpack.c.l.b16 %v6146
      %v6207 = vunpack.c.h.b16 %v6146
      %v6208 = vunpack.c.l.b16 %v6147
      %v6209 = vunpack.c.h.b16 %v6147
      %v6210 = vunpack.c.l.b16 %v6148
      %v6211 = vunpack.c.h.b16 %v6148
      %v6212 = vunpack.c.l.b16 %v6149
      %v6213 = vunpack.c.h.b16 %v6149
      %v6214 = vunpack.c.l.b16 %v6150
      %v6215 = vunpack.c.h.b16 %v6150
      %v6216 = vunpack.c.l.b16 %v6151
      %v6217 = vunpack.c.h.b16 %v6151
      %v6218 = vunpack.c.l.b16 %v6152
      %v6219 = vunpack.c.h.b16 %v6152
      %v6220 = vunpack.c.l.b16 %v6153
      %v6221 = vunpack.c.h.b16 %v6153
      %v6222 = vunpack.c.l.b16 %v6154
      %v6223 = vunpack.c.h.b16 %v6154
      %v6224 = vunpack.c.l.b16 %v6155
      %v6225 = vunpack.c.h.b16 %v6155
      %v6226 = vunpack.c.l.b16 %v6156
      %v6227 = vunpack.c.h.b16 %v6156
      %v6228 = vunpack.c.l.b16 %v6157
      %v6229 = vunpack.c.h.b16 %v6157
      %v6230 = vpack.c.b16 %v6182, %v6182
      %v6231 = vpack.c.b16 %v6183, %v6183
      %v6232 = vpack.c.b16 %v6184, %v6184
      %v6233 = vpack.c.b16 %v6185, %v6185
      %v6234 = vpack.c.b16 %v6186, %v6186
      %v6235 = vpack.c.b16 %v6187, %v6187
      %v6236 = vpack.c.b16 %v6188, %v6188
      %v6237 = vpack.c.b16 %v6189, %v6189
      %v6238 = vpack.c.b16 %v6190, %v6190
      %v6239 = vpack.c.b16 %v6191, %v6191
      %v6240 = vpack.c.b16 %v6192, %v6192
      %v6241 = vpack.c.b16 %v6193, %v6193
      %v6242 = vpack.c.b16 %v6194, %v6194
      %v6243 = vpack.c.b16 %v6195, %v6195
      %v6244 = vpack.c.b16 %v6196, %v6196
      %v6245 = vpack.c.b16 %v6197, %v6197
      %v6246 = vpack.c.b16 %v6198, %v6198
      %v6247 = vpack.c.b16 %v6199, %v6199
      %v6248 = vpack.c.b16 %v6200, %v6200
      %v6249 = vpack.c.b16 %v6201, %v6201
      %v6250 = vpack.c.b16 %v6202, %v6202
      %v6251 = vpack.c.b16 %v6203, %v6203
      %v6252 = vpack.c.b16 %v6204, %v6204
      %v6253 = vpack.c.b16 %v6205, %v6205
      %v6254 = vpack.c.b16 %v6206, %v6206
      %v6255 = vpack.c.b16 %v6207, %v6207
      %v6256 = vpack.c.b16 %v6208, %v6208
      %v6257 = vpack.c.b16 %v6209, %v6209
      %v6258 = vpack.c.b16 %v6210, %v6210
      %v6259 = vpack.c.b16 %v6211, %v6211
      %v6260 = vpack.c.b16 %v6212, %v6212
      %v6261 = vpack.c.b16 %v6213, %v6213
      %v6262 = vpack.c.b16 %v6214, %v6214
      %v6263 = vpack.c.b16 %v6215, %v6215
      %v6264 = vpack.c.b16 %v6216, %v6216
      %v6265 = vpack.c.b16 %v6217, %v6217
      %v6266 = vpack.c.b16 %v6218, %v6218
      %v6267 = vpack.c.b16 %v6219, %v6219
      %v6268 = vpack.c.b16 %v6220, %v6220
      %v6269 = vpack.c.b16 %v6221, %v6221
      %v6270 = vpack.c.b16 %v6222, %v6222
      %v6271 = vpack.c.b16 %v6223, %v6223
      %v6272 = vpack.c.b16 %v6224, %v6224
      %v6273 = vpack.c.b16 %v6225, %v6225
      %v6274 = vpack.c.b16 %v6226, %v6226
      %v6275 = vpack.c.b16 %v6227, %v6227
      %v6276 = vpack.c.b16 %v6228, %v6228
      %v6277 = vpack.c.b16 %v6229, %v6229
      %vm6278 = vsmask.f32 256
      %vm6279 = vsmask.f32 4368
      %vm6280 = vmor %vm6278, %vm6279
      %v6282 = vshrl.u32 %v6230, 16
      %v6284 = vrot.slane %v6282, 7
      %v6285 = vshll.u32 %v6230, 16
      %v6287 = vor.u32 %v6284, %v6285
      %v6288 = vrot.slane %v6284, 4
      %v6290 = vshrl.u32 %v6231, 16
      %v6292 = vrot.slane %v6290, 7
      %v6293 = vshll.u32 %v6231, 16
      %v6295 = vor.u32 %v6292, %v6293
      %v6296 = vsel %vm6280, %v6288, %v6295
      %v6297 = vrot.slane %v6292, 4
      %v6299 = vshrl.u32 %v6232, 16
      %v6301 = vrot.slane %v6299, 7
      %v6302 = vshll.u32 %v6232, 16
      %v6304 = vor.u32 %v6301, %v6302
      %v6305 = vsel %vm6280, %v6297, %v6304
      %v6306 = vrot.slane %v6301, 4
      %v6308 = vshrl.u32 %v6233, 16
      %v6310 = vrot.slane %v6308, 7
      %v6311 = vshll.u32 %v6233, 16
      %v6313 = vor.u32 %v6310, %v6311
      %v6314 = vsel %vm6280, %v6306, %v6313
      %v6315 = vrot.slane %v6310, 4
      %v6317 = vshrl.u32 %v6234, 16
      %v6319 = vrot.slane %v6317, 7
      %v6320 = vshll.u32 %v6234, 16
      %v6322 = vor.u32 %v6319, %v6320
      %v6323 = vsel %vm6280, %v6315, %v6322
      %v6324 = vrot.slane %v6319, 4
      %v6326 = vshrl.u32 %v6235, 16
      %v6328 = vrot.slane %v6326, 7
      %v6329 = vshll.u32 %v6235, 16
      %v6331 = vor.u32 %v6328, %v6329
      %v6332 = vsel %vm6280, %v6324, %v6331
      %v6333 = vrot.slane %v6328, 4
      %v6335 = vshrl.u32 %v6236, 16
      %v6337 = vrot.slane %v6335, 7
      %v6338 = vshll.u32 %v6236, 16
      %v6340 = vor.u32 %v6337, %v6338
      %v6341 = vsel %vm6280, %v6333, %v6340
      %v6342 = vrot.slane %v6337, 4
      %v6344 = vshrl.u32 %v6237, 16
      %v6346 = vrot.slane %v6344, 7
      %v6347 = vshll.u32 %v6237, 16
      %v6349 = vor.u32 %v6346, %v6347
      %v6350 = vsel %vm6280, %v6342, %v6349
      %v6351 = vrot.slane %v6346, 4
      %v6353 = vshrl.u32 %v6238, 16
      %v6355 = vrot.slane %v6353, 7
      %v6356 = vshll.u32 %v6238, 16
      %v6358 = vor.u32 %v6355, %v6356
      %v6359 = vsel %vm6280, %v6351, %v6358
      %v6360 = vrot.slane %v6355, 4
      %v6362 = vshrl.u32 %v6239, 16
      %v6364 = vrot.slane %v6362, 7
      %v6365 = vshll.u32 %v6239, 16
      %v6367 = vor.u32 %v6364, %v6365
      %v6368 = vsel %vm6280, %v6360, %v6367
      %v6369 = vrot.slane %v6364, 4
      %v6371 = vshrl.u32 %v6240, 16
      %v6373 = vrot.slane %v6371, 7
      %v6374 = vshll.u32 %v6240, 16
      %v6376 = vor.u32 %v6373, %v6374
      %v6377 = vsel %vm6280, %v6369, %v6376
      %v6378 = vrot.slane %v6373, 4
      %v6380 = vshrl.u32 %v6241, 16
      %v6382 = vrot.slane %v6380, 7
      %v6383 = vshll.u32 %v6241, 16
      %v6385 = vor.u32 %v6382, %v6383
      %v6386 = vsel %vm6280, %v6378, %v6385
      %v6387 = vrot.slane %v6382, 4
      %v6389 = vshrl.u32 %v6242, 16
      %v6391 = vrot.slane %v6389, 7
      %v6392 = vshll.u32 %v6242, 16
      %v6394 = vor.u32 %v6391, %v6392
      %v6395 = vsel %vm6280, %v6387, %v6394
      %v6396 = vrot.slane %v6391, 4
      %v6398 = vshrl.u32 %v6243, 16
      %v6400 = vrot.slane %v6398, 7
      %v6401 = vshll.u32 %v6243, 16
      %v6403 = vor.u32 %v6400, %v6401
      %v6404 = vsel %vm6280, %v6396, %v6403
      %v6405 = vrot.slane %v6400, 4
      %v6407 = vshrl.u32 %v6244, 16
      %v6409 = vrot.slane %v6407, 7
      %v6410 = vshll.u32 %v6244, 16
      %v6412 = vor.u32 %v6409, %v6410
      %v6413 = vsel %vm6280, %v6405, %v6412
      %v6414 = vrot.slane %v6409, 4
      %v6416 = vshrl.u32 %v6245, 16
      %v6418 = vrot.slane %v6416, 7
      %v6419 = vshll.u32 %v6245, 16
      %v6421 = vor.u32 %v6418, %v6419
      %v6422 = vsel %vm6280, %v6414, %v6421
      %v6423 = vrot.slane %v6418, 4
      %v6425 = vshrl.u32 %v6246, 16
      %v6427 = vrot.slane %v6425, 7
      %v6428 = vshll.u32 %v6246, 16
      %v6430 = vor.u32 %v6427, %v6428
      %v6431 = vsel %vm6280, %v6423, %v6430
      %v6432 = vrot.slane %v6427, 4
      %v6434 = vshrl.u32 %v6247, 16
      %v6436 = vrot.slane %v6434, 7
      %v6437 = vshll.u32 %v6247, 16
      %v6439 = vor.u32 %v6436, %v6437
      %v6440 = vsel %vm6280, %v6432, %v6439
      %v6441 = vrot.slane %v6436, 4
      %v6443 = vshrl.u32 %v6248, 16
      %v6445 = vrot.slane %v6443, 7
      %v6446 = vshll.u32 %v6248, 16
      %v6448 = vor.u32 %v6445, %v6446
      %v6449 = vsel %vm6280, %v6441, %v6448
      %v6450 = vrot.slane %v6445, 4
      %v6452 = vshrl.u32 %v6249, 16
      %v6454 = vrot.slane %v6452, 7
      %v6455 = vshll.u32 %v6249, 16
      %v6457 = vor.u32 %v6454, %v6455
      %v6458 = vsel %vm6280, %v6450, %v6457
      %v6459 = vrot.slane %v6454, 4
      %v6461 = vshrl.u32 %v6250, 16
      %v6463 = vrot.slane %v6461, 7
      %v6464 = vshll.u32 %v6250, 16
      %v6466 = vor.u32 %v6463, %v6464
      %v6467 = vsel %vm6280, %v6459, %v6466
      %v6468 = vrot.slane %v6463, 4
      %v6470 = vshrl.u32 %v6251, 16
      %v6472 = vrot.slane %v6470, 7
      %v6473 = vshll.u32 %v6251, 16
      %v6475 = vor.u32 %v6472, %v6473
      %v6476 = vsel %vm6280, %v6468, %v6475
      %v6477 = vrot.slane %v6472, 4
      %v6479 = vshrl.u32 %v6252, 16
      %v6481 = vrot.slane %v6479, 7
      %v6482 = vshll.u32 %v6252, 16
      %v6484 = vor.u32 %v6481, %v6482
      %v6485 = vsel %vm6280, %v6477, %v6484
      %v6486 = vrot.slane %v6481, 4
      %v6488 = vshrl.u32 %v6253, 16
      %v6490 = vrot.slane %v6488, 7
      %v6491 = vshll.u32 %v6253, 16
      %v6493 = vor.u32 %v6490, %v6491
      %v6494 = vsel %vm6280, %v6486, %v6493
      %v6495 = vrot.slane %v6490, 4
      %v6497 = vshrl.u32 %v6254, 16
      %v6499 = vrot.slane %v6497, 7
      %v6500 = vshll.u32 %v6254, 16
      %v6502 = vor.u32 %v6499, %v6500
      %v6503 = vsel %vm6280, %v6495, %v6502
      %v6504 = vrot.slane %v6499, 4
      %v6506 = vshrl.u32 %v6255, 16
      %v6508 = vrot.slane %v6506, 7
      %v6509 = vshll.u32 %v6255, 16
      %v6511 = vor.u32 %v6508, %v6509
      %v6512 = vsel %vm6280, %v6504, %v6511
      %v6513 = vrot.slane %v6508, 4
      %v6515 = vshrl.u32 %v6256, 16
      %v6517 = vrot.slane %v6515, 7
      %v6518 = vshll.u32 %v6256, 16
      %v6520 = vor.u32 %v6517, %v6518
      %v6521 = vsel %vm6280, %v6513, %v6520
      %v6522 = vrot.slane %v6517, 4
      %v6524 = vshrl.u32 %v6257, 16
      %v6526 = vrot.slane %v6524, 7
      %v6527 = vshll.u32 %v6257, 16
      %v6529 = vor.u32 %v6526, %v6527
      %v6530 = vsel %vm6280, %v6522, %v6529
      %v6531 = vrot.slane %v6526, 4
      %v6533 = vshrl.u32 %v6258, 16
      %v6535 = vrot.slane %v6533, 7
      %v6536 = vshll.u32 %v6258, 16
      %v6538 = vor.u32 %v6535, %v6536
      %v6539 = vsel %vm6280, %v6531, %v6538
      %v6540 = vrot.slane %v6535, 4
      %v6542 = vshrl.u32 %v6259, 16
      %v6544 = vrot.slane %v6542, 7
      %v6545 = vshll.u32 %v6259, 16
      %v6547 = vor.u32 %v6544, %v6545
      %v6548 = vsel %vm6280, %v6540, %v6547
      %v6549 = vrot.slane %v6544, 4
      %v6551 = vshrl.u32 %v6260, 16
      %v6553 = vrot.slane %v6551, 7
      %v6554 = vshll.u32 %v6260, 16
      %v6556 = vor.u32 %v6553, %v6554
      %v6557 = vsel %vm6280, %v6549, %v6556
      %v6558 = vrot.slane %v6553, 4
      %v6560 = vshrl.u32 %v6261, 16
      %v6562 = vrot.slane %v6560, 7
      %v6563 = vshll.u32 %v6261, 16
      %v6565 = vor.u32 %v6562, %v6563
      %v6566 = vsel %vm6280, %v6558, %v6565
      %v6567 = vrot.slane %v6562, 4
      %v6569 = vshrl.u32 %v6262, 16
      %v6571 = vrot.slane %v6569, 7
      %v6572 = vshll.u32 %v6262, 16
      %v6574 = vor.u32 %v6571, %v6572
      %v6575 = vsel %vm6280, %v6567, %v6574
      %v6576 = vrot.slane %v6571, 4
      %v6578 = vshrl.u32 %v6263, 16
      %v6580 = vrot.slane %v6578, 7
      %v6581 = vshll.u32 %v6263, 16
      %v6583 = vor.u32 %v6580, %v6581
      %v6584 = vsel %vm6280, %v6576, %v6583
      %v6585 = vrot.slane %v6580, 4
      %v6587 = vshrl.u32 %v6264, 16
      %v6589 = vrot.slane %v6587, 7
      %v6590 = vshll.u32 %v6264, 16
      %v6592 = vor.u32 %v6589, %v6590
      %v6593 = vsel %vm6280, %v6585, %v6592
      %v6594 = vrot.slane %v6589, 4
      %v6596 = vshrl.u32 %v6265, 16
      %v6598 = vrot.slane %v6596, 7
      %v6599 = vshll.u32 %v6265, 16
      %v6601 = vor.u32 %v6598, %v6599
      %v6602 = vsel %vm6280, %v6594, %v6601
      %v6603 = vrot.slane %v6598, 4
      %v6605 = vshrl.u32 %v6266, 16
      %v6607 = vrot.slane %v6605, 7
      %v6608 = vshll.u32 %v6266, 16
      %v6610 = vor.u32 %v6607, %v6608
      %v6611 = vsel %vm6280, %v6603, %v6610
      %v6612 = vrot.slane %v6607, 4
      %v6614 = vshrl.u32 %v6267, 16
      %v6616 = vrot.slane %v6614, 7
      %v6617 = vshll.u32 %v6267, 16
      %v6619 = vor.u32 %v6616, %v6617
      %v6620 = vsel %vm6280, %v6612, %v6619
      %v6621 = vrot.slane %v6616, 4
      %v6623 = vshrl.u32 %v6268, 16
      %v6625 = vrot.slane %v6623, 7
      %v6626 = vshll.u32 %v6268, 16
      %v6628 = vor.u32 %v6625, %v6626
      %v6629 = vsel %vm6280, %v6621, %v6628
      %v6630 = vrot.slane %v6625, 4
      %v6632 = vshrl.u32 %v6269, 16
      %v6634 = vrot.slane %v6632, 7
      %v6635 = vshll.u32 %v6269, 16
      %v6637 = vor.u32 %v6634, %v6635
      %v6638 = vsel %vm6280, %v6630, %v6637
      %v6639 = vrot.slane %v6634, 4
      %v6641 = vshrl.u32 %v6270, 16
      %v6643 = vrot.slane %v6641, 7
      %v6644 = vshll.u32 %v6270, 16
      %v6646 = vor.u32 %v6643, %v6644
      %v6647 = vsel %vm6280, %v6639, %v6646
      %v6648 = vrot.slane %v6643, 4
      %v6650 = vshrl.u32 %v6271, 16
      %v6652 = vrot.slane %v6650, 7
      %v6653 = vshll.u32 %v6271, 16
      %v6655 = vor.u32 %v6652, %v6653
      %v6656 = vsel %vm6280, %v6648, %v6655
      %v6657 = vrot.slane %v6652, 4
      %v6659 = vshrl.u32 %v6272, 16
      %v6661 = vrot.slane %v6659, 7
      %v6662 = vshll.u32 %v6272, 16
      %v6664 = vor.u32 %v6661, %v6662
      %v6665 = vsel %vm6280, %v6657, %v6664
      %v6666 = vrot.slane %v6661, 4
      %v6668 = vshrl.u32 %v6273, 16
      %v6670 = vrot.slane %v6668, 7
      %v6671 = vshll.u32 %v6273, 16
      %v6673 = vor.u32 %v6670, %v6671
      %v6674 = vsel %vm6280, %v6666, %v6673
      %v6675 = vrot.slane %v6670, 4
      %v6677 = vshrl.u32 %v6274, 16
      %v6679 = vrot.slane %v6677, 7
      %v6680 = vshll.u32 %v6274, 16
      %v6682 = vor.u32 %v6679, %v6680
      %v6683 = vsel %vm6280, %v6675, %v6682
      %v6684 = vrot.slane %v6679, 4
      %v6686 = vshrl.u32 %v6275, 16
      %v6688 = vrot.slane %v6686, 7
      %v6689 = vshll.u32 %v6275, 16
      %v6691 = vor.u32 %v6688, %v6689
      %v6692 = vsel %vm6280, %v6684, %v6691
      %v6693 = vrot.slane %v6688, 4
      %v6695 = vshrl.u32 %v6276, 16
      %v6697 = vrot.slane %v6695, 7
      %v6698 = vshll.u32 %v6276, 16
      %v6700 = vor.u32 %v6697, %v6698
      %v6701 = vsel %vm6280, %v6693, %v6700
      %v6702 = vrot.slane %v6697, 4
      %v6704 = vshrl.u32 %v6277, 16
      %v6706 = vrot.slane %v6704, 7
      %v6707 = vshll.u32 %v6277, 16
      %v6709 = vor.u32 %v6706, %v6707
      %v6710 = vsel %vm6280, %v6702, %v6709
      %v6711 = vrot.slane %v6706, 4
      %vm6761 = vcmask 1043456
      %vm6762 = vsmask.f32 7938
      %vm6763 = vmand %vm6761, %vm6762
      %v6764 = vld [vmem:[#allocation2 + $0xc] sm:$0xf]
      %v6765 = vsel %vm6763, %v6287, %v6764
      %6766 = vst [vmem:[#allocation2 + $0xc] sm:$0xf] %v6765
      %6767 = vst [vmem:[#allocation2 + $0x10] sm:$0xf] %v6296
      %6768 = vst [vmem:[#allocation2 + $0x14] sm:$0xf] %v6305
      %6769 = vst [vmem:[#allocation2 + $0x18] sm:$0xf] %v6314
      %6770 = vst [vmem:[#allocation2 + $0x1c] sm:$0xf] %v6323
      %6771 = vst [vmem:[#allocation2 + $0x20] sm:$0xf] %v6332
      %6772 = vst [vmem:[#allocation2 + $0x24] sm:$0xf] %v6341
      %6773 = vst [vmem:[#allocation2 + $0x28] sm:$0xf] %v6350
      %6774 = vst [vmem:[#allocation2 + $0x2c] sm:$0xf] %v6359
      %6775 = vst [vmem:[#allocation2 + $0x30] sm:$0xf] %v6368
      %6776 = vst [vmem:[#allocation2 + $0x34] sm:$0xf] %v6377
      %6777 = vst [vmem:[#allocation2 + $0x38] sm:$0xf] %v6386
      %6778 = vst [vmem:[#allocation2 + $0x3c] sm:$0xf] %v6395
      %6779 = vst [vmem:[#allocation2 + $0x40] sm:$0xf] %v6404
      %6780 = vst [vmem:[#allocation2 + $0x44] sm:$0xf] %v6413
      %6781 = vst [vmem:[#allocation2 + $0x48] sm:$0xf] %v6422
      %6782 = vst [vmem:[#allocation2 + $0x4c] sm:$0xf] %v6431
      %6783 = vst [vmem:[#allocation2 + $0x50] sm:$0xf] %v6440
      %6784 = vst [vmem:[#allocation2 + $0x54] sm:$0xf] %v6449
      %6785 = vst [vmem:[#allocation2 + $0x58] sm:$0xf] %v6458
      %6786 = vst [vmem:[#allocation2 + $0x5c] sm:$0xf] %v6467
      %6787 = vst [vmem:[#allocation2 + $0x60] sm:$0xf] %v6476
      %6788 = vst [vmem:[#allocation2 + $0x64] sm:$0xf] %v6485
      %6789 = vst [vmem:[#allocation2 + $0x68] sm:$0xf] %v6494
      %6790 = vst [vmem:[#allocation2 + $0x6c] sm:$0xf] %v6503
      %6791 = vst [vmem:[#allocation2 + $0x70] sm:$0xf] %v6512
      %6792 = vst [vmem:[#allocation2 + $0x74] sm:$0xf] %v6521
      %6793 = vst [vmem:[#allocation2 + $0x78] sm:$0xf] %v6530
      %6794 = vst [vmem:[#allocation2 + $0x7c] sm:$0xf] %v6539
      %6795 = vst [vmem:[#allocation2 + $0x80] sm:$0xf] %v6548
      %6796 = vst [vmem:[#allocation2 + $0x84] sm:$0xf] %v6557
      %6797 = vst [vmem:[#allocation2 + $0x88] sm:$0xf] %v6566
      %6798 = vst [vmem:[#allocation2 + $0x8c] sm:$0xf] %v6575
      %6799 = vst [vmem:[#allocation2 + $0x90] sm:$0xf] %v6584
      %6800 = vst [vmem:[#allocation2 + $0x94] sm:$0xf] %v6593
      %6801 = vst [vmem:[#allocation2 + $0x98] sm:$0xf] %v6602
      %6802 = vst [vmem:[#allocation2 + $0x9c] sm:$0xf] %v6611
      %6803 = vst [vmem:[#allocation2 + $0xa0] sm:$0xf] %v6620
      %6804 = vst [vmem:[#allocation2 + $0xa4] sm:$0xf] %v6629
      %6805 = vst [vmem:[#allocation2 + $0xa8] sm:$0xf] %v6638
      %6806 = vst [vmem:[#allocation2 + $0xac] sm:$0xf] %v6647
      %6807 = vst [vmem:[#allocation2 + $0xb0] sm:$0xf] %v6656
      %6808 = vst [vmem:[#allocation2 + $0xb4] sm:$0xf] %v6665
      %6809 = vst [vmem:[#allocation2 + $0xb8] sm:$0xf] %v6674
      %6810 = vst [vmem:[#allocation2 + $0xbc] sm:$0xf] %v6683
      %6811 = vst [vmem:[#allocation2 + $0xc0] sm:$0xf] %v6692
      %6812 = vst [vmem:[#allocation2 + $0xc4] sm:$0xf] %v6701
      %6813 = vst [vmem:[#allocation2 + $0xc8] sm:$0xf] %v6710
      %vm6814 = vcmask 1040384
      %vm6815 = vmand %vm6814, %vm6278
      %v6816 = vld [vmem:[#allocation2 + $0xcc] sm:$0x1]
      %v6817 = vsel %vm6815, %v6711, %v6816
      %6818 = vst [vmem:[#allocation2 + $0xcc] sm:$0x1] %v6817
      %v6819 = vld [vmem:[%s246 + $0xc] sm:$0xf]
      %v6820 = vld [vmem:[%s246 + $0x10] sm:$0xf]
      %v6821 = vld [vmem:[%s246 + $0x14] sm:$0xf]
      %v6822 = vld [vmem:[%s246 + $0x18] sm:$0xf]
      %v6823 = vld [vmem:[%s246 + $0x1c] sm:$0xf]
      %v6824 = vld [vmem:[%s246 + $0x20] sm:$0xf]
      %v6825 = vld [vmem:[%s246 + $0x24] sm:$0xf]
      %v6826 = vld [vmem:[%s246 + $0x28] sm:$0xf]
      %v6827 = vld [vmem:[%s246 + $0x2c] sm:$0xf]
      %v6828 = vld [vmem:[%s246 + $0x30] sm:$0xf]
      %v6829 = vld [vmem:[%s246 + $0x34] sm:$0xf]
      %v6830 = vld [vmem:[%s246 + $0x38] sm:$0xf]
      %v6831 = vld [vmem:[%s246 + $0x3c] sm:$0xf]
      %v6832 = vld [vmem:[%s246 + $0x40] sm:$0xf]
      %v6833 = vld [vmem:[%s246 + $0x44] sm:$0xf]
      %v6834 = vld [vmem:[%s246 + $0x48] sm:$0xf]
      %v6835 = vld [vmem:[%s246 + $0x4c] sm:$0xf]
      %v6836 = vld [vmem:[%s246 + $0x50] sm:$0xf]
      %v6837 = vld [vmem:[%s246 + $0x54] sm:$0xf]
      %v6838 = vld [vmem:[%s246 + $0x58] sm:$0xf]
      %v6839 = vld [vmem:[%s246 + $0x5c] sm:$0xf]
      %v6840 = vld [vmem:[%s246 + $0x60] sm:$0xf]
      %v6841 = vld [vmem:[%s246 + $0x64] sm:$0xf]
      %v6842 = vld [vmem:[%s246 + $0x68] sm:$0xf]
      %v6843 = vld [vmem:[%s246 + $0x6c] sm:$0xf]
      %v6844 = vld [vmem:[%s246 + $0x70] sm:$0xf]
      %v6845 = vld [vmem:[%s246 + $0x74] sm:$0xf]
      %v6846 = vld [vmem:[%s246 + $0x78] sm:$0xf]
      %v6847 = vld [vmem:[%s246 + $0x7c] sm:$0xf]
      %v6848 = vld [vmem:[%s246 + $0x80] sm:$0xf]
      %v6849 = vld [vmem:[%s246 + $0x84] sm:$0xf]
      %v6850 = vld [vmem:[%s246 + $0x88] sm:$0xf]
      %v6851 = vld [vmem:[%s246 + $0x8c] sm:$0xf]
      %v6852 = vld [vmem:[%s246 + $0x90] sm:$0xf]
      %v6853 = vld [vmem:[%s246 + $0x94] sm:$0xf]
      %v6854 = vld [vmem:[%s246 + $0x98] sm:$0xf]
      %v6855 = vld [vmem:[%s246 + $0x9c] sm:$0xf]
      %v6856 = vld [vmem:[%s246 + $0xa0] sm:$0xf]
      %v6857 = vld [vmem:[%s246 + $0xa4] sm:$0xf]
      %v6858 = vld [vmem:[%s246 + $0xa8] sm:$0xf]
      %v6859 = vld [vmem:[%s246 + $0xac] sm:$0xf]
      %v6860 = vld [vmem:[%s246 + $0xb0] sm:$0xf]
      %v6861 = vld [vmem:[%s246 + $0xb4] sm:$0xf]
      %v6862 = vld [vmem:[%s246 + $0xb8] sm:$0xf]
      %v6863 = vld [vmem:[%s246 + $0xbc] sm:$0xf]
      %v6864 = vld [vmem:[%s246 + $0xc0] sm:$0xf]
      %v6865 = vld [vmem:[%s246 + $0xc4] sm:$0xf]
      %v6866 = vld [vmem:[%s246 + $0xc8] sm:$0xf]
      %v6867 = vld [vmem:[%s246 + $0xcc] sm:$0x1]
      %v6868 = vld [vmem:[%s5] sm:$0xf]
      %v6869 = vld [vmem:[%s5 + $0x4] sm:$0xf]
      %v6870 = vld [vmem:[%s5 + $0x8] sm:$0xf]
      %v6871 = vld [vmem:[%s5 + $0xc] sm:$0xf]
      %v6872 = vld [vmem:[%s5 + $0x10] sm:$0xf]
      %v6873 = vld [vmem:[%s5 + $0x14] sm:$0xf]
      %v6874 = vld [vmem:[%s5 + $0x18] sm:$0xf]
      %v6875 = vld [vmem:[%s5 + $0x1c] sm:$0xf]
      %v6876 = vld [vmem:[%s5 + $0x20] sm:$0xf]
      %v6877 = vld [vmem:[%s5 + $0x24] sm:$0xf]
      %v6878 = vld [vmem:[%s5 + $0x28] sm:$0xf]
      %v6879 = vld [vmem:[%s5 + $0x2c] sm:$0xf]
      %v6880 = vld [vmem:[%s5 + $0x30] sm:$0xf]
      %v6881 = vld [vmem:[%s5 + $0x34] sm:$0xf]
      %v6882 = vld [vmem:[%s5 + $0x38] sm:$0xf]
      %v6883 = vld [vmem:[%s5 + $0x3c] sm:$0xf]
      %v6884 = vld [vmem:[#allocation2] sm:$0xf]
      %v6885 = vld [vmem:[#allocation2 + $0x4] sm:$0xf]
      %v6886 = vld [vmem:[#allocation2 + $0x8] sm:$0xf]
      %v6887 = vld [vmem:[#allocation2 + $0xc] sm:$0xf]
      %v6888 = vld [vmem:[#allocation2 + $0x10] sm:$0xf]
      %v6889 = vld [vmem:[#allocation2 + $0x14] sm:$0xf]
      %v6890 = vld [vmem:[#allocation2 + $0x18] sm:$0xf]
      %v6891 = vld [vmem:[#allocation2 + $0x1c] sm:$0xf]
      %v6892 = vld [vmem:[#allocation2 + $0x20] sm:$0xf]
      %v6893 = vld [vmem:[#allocation2 + $0x24] sm:$0xf]
      %v6894 = vld [vmem:[#allocation2 + $0x28] sm:$0xf]
      %v6895 = vld [vmem:[#allocation2 + $0x2c] sm:$0xf]
      %v6896 = vld [vmem:[#allocation2 + $0x30] sm:$0xf]
      %v6897 = vld [vmem:[#allocation2 + $0x34] sm:$0xf]
      %v6898 = vld [vmem:[#allocation2 + $0x38] sm:$0xf]
      %v6899 = vld [vmem:[#allocation2 + $0x3c] sm:$0xf]
      %v6900 = vld [vmem:[#allocation2 + $0x40] sm:$0xf]
      %v6901 = vld [vmem:[#allocation2 + $0x44] sm:$0xf]
      %v6902 = vld [vmem:[#allocation2 + $0x48] sm:$0xf]
      %v6903 = vld [vmem:[#allocation2 + $0x4c] sm:$0xf]
      %v6904 = vld [vmem:[#allocation2 + $0x50] sm:$0xf]
      %v6905 = vld [vmem:[#allocation2 + $0x54] sm:$0xf]
      %v6906 = vld [vmem:[#allocation2 + $0x58] sm:$0xf]
      %v6907 = vld [vmem:[#allocation2 + $0x5c] sm:$0xf]
      %v6908 = vld [vmem:[#allocation2 + $0x60] sm:$0xf]
      %v6909 = vld [vmem:[#allocation2 + $0x64] sm:$0xf]
      %v6910 = vld [vmem:[#allocation2 + $0x68] sm:$0xf]
      %v6911 = vld [vmem:[#allocation2 + $0x6c] sm:$0xf]
      %v6912 = vld [vmem:[#allocation2 + $0x70] sm:$0xf]
      %v6913 = vld [vmem:[#allocation2 + $0x74] sm:$0xf]
      %v6914 = vld [vmem:[#allocation2 + $0x78] sm:$0xf]
      %v6915 = vld [vmem:[#allocation2 + $0x7c] sm:$0xf]
      %v6916 = vld [vmem:[#allocation2 + $0x80] sm:$0xf]
      %v6917 = vld [vmem:[#allocation2 + $0x84] sm:$0xf]
      %v6918 = vld [vmem:[#allocation2 + $0x88] sm:$0xf]
      %v6919 = vld [vmem:[#allocation2 + $0x8c] sm:$0xf]
      %v6920 = vld [vmem:[#allocation2 + $0x90] sm:$0xf]
      %v6921 = vld [vmem:[#allocation2 + $0x94] sm:$0xf]
      %v6922 = vld [vmem:[#allocation2 + $0x98] sm:$0xf]
      %v6923 = vld [vmem:[#allocation2 + $0x9c] sm:$0xf]
      %v6924 = vld [vmem:[#allocation2 + $0xa0] sm:$0xf]
      %v6925 = vld [vmem:[#allocation2 + $0xa4] sm:$0xf]
      %v6926 = vld [vmem:[#allocation2 + $0xa8] sm:$0xf]
      %v6927 = vld [vmem:[#allocation2 + $0xac] sm:$0xf]
      %v6928 = vld [vmem:[#allocation2 + $0xb0] sm:$0xf]
      %v6929 = vld [vmem:[#allocation2 + $0xb4] sm:$0xf]
      %v6930 = vld [vmem:[#allocation2 + $0xb8] sm:$0xf]
      %v6931 = vld [vmem:[#allocation2 + $0xbc] sm:$0xf]
      %v6932 = vld [vmem:[%s3] sm:$0xf]
      %v6933 = vld [vmem:[%s3 + $0x4] sm:$0xf]
      %v6934 = vld [vmem:[%s3 + $0x8] sm:$0xf]
      %v6935 = vld [vmem:[%s3 + $0xc] sm:$0xf]
      %v6936 = vld [vmem:[%s3 + $0x10] sm:$0xf]
      %v6937 = vld [vmem:[%s3 + $0x14] sm:$0xf]
      %v6938 = vld [vmem:[%s3 + $0x18] sm:$0xf]
      %v6939 = vld [vmem:[%s3 + $0x1c] sm:$0xf]
      %v6940 = vld [vmem:[%s3 + $0x20] sm:$0xf]
      %v6941 = vld [vmem:[%s3 + $0x24] sm:$0xf]
      %v6942 = vld [vmem:[%s3 + $0x28] sm:$0xf]
      %v6943 = vld [vmem:[%s3 + $0x2c] sm:$0xf]
      %v6944 = vld [vmem:[%s3 + $0x30] sm:$0xf]
      %v6945 = vld [vmem:[%s3 + $0x34] sm:$0xf]
      %v6946 = vld [vmem:[%s3 + $0x38] sm:$0xf]
      %v6947 = vld [vmem:[%s3 + $0x3c] sm:$0xf]
      %v6996 = vunpack.c.l.b16 %v6884
      %v6997 = vunpack.c.l.b16 %v6885
      %v6998 = vunpack.c.l.b16 %v6886
      %v6999 = vunpack.c.l.b16 %v6887
      %v7000 = vunpack.c.l.b16 %v6888
      %v7001 = vunpack.c.l.b16 %v6889
      %v7002 = vunpack.c.l.b16 %v6890
      %v7003 = vunpack.c.l.b16 %v6891
      %v7004 = vunpack.c.l.b16 %v6892
      %v7005 = vunpack.c.l.b16 %v6893
      %v7006 = vunpack.c.l.b16 %v6894
      %v7007 = vunpack.c.l.b16 %v6895
      %v7008 = vunpack.c.l.b16 %v6896
      %v7009 = vunpack.c.l.b16 %v6897
      %v7010 = vunpack.c.l.b16 %v6898
      %v7011 = vunpack.c.l.b16 %v6899
      %v7012 = vunpack.c.l.b16 %v6900
      %v7013 = vunpack.c.l.b16 %v6901
      %v7014 = vunpack.c.l.b16 %v6902
      %v7015 = vunpack.c.l.b16 %v6903
      %v7016 = vunpack.c.l.b16 %v6904
      %v7017 = vunpack.c.l.b16 %v6905
      %v7018 = vunpack.c.l.b16 %v6906
      %v7019 = vunpack.c.l.b16 %v6907
      %v7020 = vunpack.c.l.b16 %v6908
      %v7021 = vunpack.c.l.b16 %v6909
      %v7022 = vunpack.c.l.b16 %v6910
      %v7023 = vunpack.c.l.b16 %v6911
      %v7024 = vunpack.c.l.b16 %v6912
      %v7025 = vunpack.c.l.b16 %v6913
      %v7026 = vunpack.c.l.b16 %v6914
      %v7027 = vunpack.c.l.b16 %v6915
      %v7028 = vunpack.c.l.b16 %v6916
      %v7029 = vunpack.c.l.b16 %v6917
      %v7030 = vunpack.c.l.b16 %v6918
      %v7031 = vunpack.c.l.b16 %v6919
      %v7032 = vunpack.c.l.b16 %v6920
      %v7033 = vunpack.c.l.b16 %v6921
      %v7034 = vunpack.c.l.b16 %v6922
      %v7035 = vunpack.c.l.b16 %v6923
      %v7036 = vunpack.c.l.b16 %v6924
      %v7037 = vunpack.c.l.b16 %v6925
      %v7038 = vunpack.c.l.b16 %v6926
      %v7039 = vunpack.c.l.b16 %v6927
      %v7040 = vunpack.c.l.b16 %v6928
      %v7041 = vunpack.c.l.b16 %v6929
      %v7042 = vunpack.c.l.b16 %v6930
      %v7043 = vunpack.c.l.b16 %v6931
      %v7044 = vpack.c.b16 %v6997, %v6996
      %v7045 = vpack.c.b16 %v6999, %v6998
      %v7046 = vpack.c.b16 %v7001, %v7000
      %v7047 = vpack.c.b16 %v7003, %v7002
      %v7048 = vpack.c.b16 %v7005, %v7004
      %v7049 = vpack.c.b16 %v7007, %v7006
      %v7050 = vpack.c.b16 %v7009, %v7008
      %v7051 = vpack.c.b16 %v7011, %v7010
      %v7052 = vpack.c.b16 %v7013, %v7012
      %v7053 = vpack.c.b16 %v7015, %v7014
      %v7054 = vpack.c.b16 %v7017, %v7016
      %v7055 = vpack.c.b16 %v7019, %v7018
      %v7056 = vpack.c.b16 %v7021, %v7020
      %v7057 = vpack.c.b16 %v7023, %v7022
      %v7058 = vpack.c.b16 %v7025, %v7024
      %v7059 = vpack.c.b16 %v7027, %v7026
      %v7060 = vpack.c.b16 %v7029, %v7028
      %v7061 = vpack.c.b16 %v7031, %v7030
      %v7062 = vpack.c.b16 %v7033, %v7032
      %v7063 = vpack.c.b16 %v7035, %v7034
      %v7064 = vpack.c.b16 %v7037, %v7036
      %v7065 = vpack.c.b16 %v7039, %v7038
      %v7066 = vpack.c.b16 %v7041, %v7040
      %v7067 = vpack.c.b16 %v7043, %v7042
      %v7108 = vunpack.c.l.b16 %v6932
      %v7109 = vunpack.c.l.b16 %v6933
      %v7110 = vunpack.c.l.b16 %v6934
      %v7111 = vunpack.c.l.b16 %v6935
      %v7112 = vunpack.c.l.b16 %v6936
      %v7113 = vunpack.c.l.b16 %v6937
      %v7114 = vunpack.c.l.b16 %v6938
      %v7115 = vunpack.c.l.b16 %v6939
      %v7116 = vunpack.c.l.b16 %v6940
      %v7117 = vunpack.c.l.b16 %v6941
      %v7118 = vunpack.c.l.b16 %v6942
      %v7119 = vunpack.c.l.b16 %v6943
      %v7120 = vunpack.c.l.b16 %v6944
      %v7121 = vunpack.c.l.b16 %v6945
      %v7122 = vunpack.c.l.b16 %v6946
      %v7123 = vunpack.c.l.b16 %v6947
      %v7124 = vpack.c.b16 %v7109, %v7108
      %v7125 = vpack.c.b16 %v7111, %v7110
      %v7126 = vpack.c.b16 %v7113, %v7112
      %v7127 = vpack.c.b16 %v7115, %v7114
      %v7128 = vpack.c.b16 %v7117, %v7116
      %v7129 = vpack.c.b16 %v7119, %v7118
      %v7130 = vpack.c.b16 %v7121, %v7120
      %v7131 = vpack.c.b16 %v7123, %v7122
      %7140 = vmatprep.subr.bf16.mxu0 0
      %7141 = vmatpush1.bf16.msra.mxu0 %v7124
      %7142 = vmatprep.subr.bf16.mxu0 0
      %7143 = vmatpush1.bf16.msra.mxu0 %v7125
      %7144 = vmatprep.subr.bf16.mxu0 0
      %7145 = vmatpush1.bf16.msra.mxu0 %v7126
      %7146 = vmatprep.subr.bf16.mxu0 0
      %7147 = vmatpush1.bf16.msra.mxu0 %v7127
      %7148 = vmatprep.subr.bf16.mxu0 0
      %7149 = vmatpush1.bf16.msra.mxu0 %v7128
      %7150 = vmatprep.subr.bf16.mxu0 0
      %7151 = vmatpush1.bf16.msra.mxu0 %v7129
      %7152 = vmatprep.subr.bf16.mxu0 0
      %7153 = vmatpush1.bf16.msra.mxu0 %v7130
      %7154 = vmatprep.subr.bf16.mxu0 0
      %7155 = vmatpush1.bf16.msra.mxu0 %v7131
      %7156 = vmatprep.subr.bf16.mxu0 0
      %7157 = vmatpush1.bf16.msra.mxu0 0
      %7158 = vmatprep.subr.bf16.mxu0 0
      %7159 = vmatpush1.bf16.msra.mxu0 0
      %7160 = vmatprep.subr.bf16.mxu0 0
      %7161 = vmatpush1.bf16.msra.mxu0 0
      %7162 = vmatprep.subr.bf16.mxu0 0
      %7163 = vmatpush1.bf16.msra.mxu0 0
      %7164 = vmatprep.subr.bf16.mxu0 0
      %7165 = vmatpush1.bf16.msra.mxu0 0
      %7166 = vmatprep.subr.bf16.mxu0 0
      %7167 = vmatpush1.bf16.msra.mxu0 0
      %7168 = vmatprep.subr.bf16.mxu0 0
      %7169 = vmatpush1.bf16.msra.mxu0 0
      %7170 = vmatprep.subr.bf16.mxu0 0
      %7171 = vmatpush1.bf16.msra.mxu0 0
      %7172 = vmatprep.mubr.bf16.mxu0 0
      %7173 = vmatmul.mubr.bf16.gmra.mrb[0].mxu0 %v7044
      %v7174 = vpop.f32.mrb[0].mxu0
      %v7175 = vadd.f32 0.0, %v7174
      %v7176 = vpop.f32.mrb[0].mxu0
      %v7177 = vpop.f32.mrb[0].mxu0
      %v7178 = vadd.f32 0.0, %v7177
      %v7179 = vpop.f32.mrb[0].mxu0
      %7180 = vmatprep.mubr.bf16.mxu0 0
      %7181 = vmatmul.mubr.bf16.gmra.mrb[0].mxu0 %v7045
      %v7182 = vpop.f32.mrb[0].mxu0
      %v7183 = vpop.f32.mrb[0].mxu0
      %v7184 = vpop.f32.mrb[0].mxu0
      %v7185 = vadd.f32 0.0, %v7184
      %v7186 = vpop.f32.mrb[0].mxu0
      %7187 = vmatprep.mubr.bf16.mxu0 0
      %7188 = vmatmul.mubr.bf16.gmra.mrb[0].mxu0 %v7046
      %v7189 = vpop.f32.mrb[0].mxu0
      %v7190 = vadd.f32 0.0, %v7189
      %v7191 = vpop.f32.mrb[0].mxu0
      %v7192 = vpop.f32.mrb[0].mxu0
      %v7193 = vpop.f32.mrb[0].mxu0
      %7194 = vmatprep.mubr.bf16.mxu0 0
      %7195 = vmatmul.mubr.bf16.gmra.mrb[0].mxu0 %v7047
      %v7196 = vpop.f32.mrb[0].mxu0
      %v7197 = vadd.f32 0.0, %v7196
      %v7198 = vpop.f32.mrb[0].mxu0
      %v7199 = vpop.f32.mrb[0].mxu0
      %v7200 = vadd.f32 0.0, %v7199
      %v7201 = vpop.f32.mrb[0].mxu0
      %7202 = vmatprep.mubr.bf16.mxu0 0
      %7203 = vmatmul.mubr.bf16.gmra.mrb[0].mxu0 %v7048
      %v7204 = vpop.f32.mrb[0].mxu0
      %v7205 = vpop.f32.mrb[0].mxu0
      %v7206 = vpop.f32.mrb[0].mxu0
      %v7207 = vadd.f32 0.0, %v7206
      %v7208 = vpop.f32.mrb[0].mxu0
      %7209 = vmatprep.mubr.bf16.mxu0 0
      %7210 = vmatmul.mubr.bf16.gmra.mrb[0].mxu0 %v7049
      %v7211 = vpop.f32.mrb[0].mxu0
      %v7212 = vadd.f32 0.0, %v7211
      %v7213 = vpop.f32.mrb[0].mxu0
      %v7214 = vpop.f32.mrb[0].mxu0
      %v7215 = vpop.f32.mrb[0].mxu0
      %7216 = vmatprep.mubr.bf16.mxu0 0
      %7217 = vmatmul.mubr.bf16.gmra.mrb[0].mxu0 %v7050
      %v7218 = vpop.f32.mrb[0].mxu0
      %v7219 = vadd.f32 0.0, %v7218
      %v7220 = vpop.f32.mrb[0].mxu0
      %v7221 = vpop.f32.mrb[0].mxu0
      %v7222 = vadd.f32 0.0, %v7221
      %v7223 = vpop.f32.mrb[0].mxu0
      %7224 = vmatprep.mubr.bf16.mxu0 0
      %7225 = vmatmul.mubr.bf16.gmra.mrb[0].mxu0 %v7051
      %v7226 = vpop.f32.mrb[0].mxu0
      %v7227 = vpop.f32.mrb[0].mxu0
      %v7228 = vpop.f32.mrb[0].mxu0
      %v7229 = vadd.f32 0.0, %v7228
      %v7230 = vpop.f32.mrb[0].mxu0
      %7231 = vmatprep.mubr.bf16.mxu0 0
      %7232 = vmatmul.mubr.bf16.gmra.mrb[0].mxu0 %v7052
      %v7233 = vpop.f32.mrb[0].mxu0
      %v7234 = vadd.f32 0.0, %v7233
      %v7235 = vpop.f32.mrb[0].mxu0
      %v7236 = vpop.f32.mrb[0].mxu0
      %v7237 = vpop.f32.mrb[0].mxu0
      %7238 = vmatprep.mubr.bf16.mxu0 0
      %7239 = vmatmul.mubr.bf16.gmra.mrb[0].mxu0 %v7053
      %v7240 = vpop.f32.mrb[0].mxu0
      %v7241 = vadd.f32 0.0, %v7240
      %v7242 = vpop.f32.mrb[0].mxu0
      %v7243 = vpop.f32.mrb[0].mxu0
      %v7244 = vadd.f32 0.0, %v7243
      %v7245 = vpop.f32.mrb[0].mxu0
      %7246 = vmatprep.mubr.bf16.mxu0 0
      %7247 = vmatmul.mubr.bf16.gmra.mrb[0].mxu0 %v7054
      %v7248 = vpop.f32.mrb[0].mxu0
      %v7249 = vpop.f32.mrb[0].mxu0
      %v7250 = vpop.f32.mrb[0].mxu0
      %v7251 = vadd.f32 0.0, %v7250
      %v7252 = vpop.f32.mrb[0].mxu0
      %7253 = vmatprep.mubr.bf16.mxu0 0
      %7254 = vmatmul.mubr.bf16.gmra.mrb[0].mxu0 %v7055
      %v7255 = vpop.f32.mrb[0].mxu0
      %v7256 = vadd.f32 0.0, %v7255
      %v7257 = vpop.f32.mrb[0].mxu0
      %v7258 = vpop.f32.mrb[0].mxu0
      %v7259 = vpop.f32.mrb[0].mxu0
      %7260 = vmatprep.mubr.bf16.mxu0 0
      %7261 = vmatmul.mubr.bf16.gmra.mrb[0].mxu0 %v7056
      %v7262 = vpop.f32.mrb[0].mxu0
      %v7263 = vadd.f32 0.0, %v7262
      %v7264 = vpop.f32.mrb[0].mxu0
      %v7265 = vpop.f32.mrb[0].mxu0
      %v7266 = vadd.f32 0.0, %v7265
      %v7267 = vpop.f32.mrb[0].mxu0
      %7268 = vmatprep.mubr.bf16.mxu0 0
      %7269 = vmatmul.mubr.bf16.gmra.mrb[0].mxu0 %v7057
      %v7270 = vpop.f32.mrb[0].mxu0
      %v7271 = vpop.f32.mrb[0].mxu0
      %v7272 = vpop.f32.mrb[0].mxu0
      %v7273 = vadd.f32 0.0, %v7272
      %v7274 = vpop.f32.mrb[0].mxu0
      %7275 = vmatprep.mubr.bf16.mxu0 0
      %7276 = vmatmul.mubr.bf16.gmra.mrb[0].mxu0 %v7058
      %v7277 = vpop.f32.mrb[0].mxu0
      %v7278 = vadd.f32 0.0, %v7277
      %v7279 = vpop.f32.mrb[0].mxu0
      %v7280 = vpop.f32.mrb[0].mxu0
      %v7281 = vpop.f32.mrb[0].mxu0
      %7282 = vmatprep.mubr.bf16.mxu0 0
      %7283 = vmatmul.mubr.bf16.gmra.mrb[0].mxu0 %v7059
      %v7284 = vpop.f32.mrb[0].mxu0
      %v7285 = vadd.f32 0.0, %v7284
      %v7286 = vpop.f32.mrb[0].mxu0
      %v7287 = vpop.f32.mrb[0].mxu0
      %v7288 = vadd.f32 0.0, %v7287
      %v7289 = vpop.f32.mrb[0].mxu0
      %7290 = vmatprep.mubr.bf16.mxu0 0
      %7291 = vmatmul.mubr.bf16.gmra.mrb[0].mxu0 %v7060
      %v7292 = vpop.f32.mrb[0].mxu0
      %v7293 = vpop.f32.mrb[0].mxu0
      %v7294 = vpop.f32.mrb[0].mxu0
      %v7295 = vadd.f32 0.0, %v7294
      %v7296 = vpop.f32.mrb[0].mxu0
      %7297 = vmatprep.mubr.bf16.mxu0 0
      %7298 = vmatmul.mubr.bf16.gmra.mrb[0].mxu0 %v7061
      %v7299 = vpop.f32.mrb[0].mxu0
      %v7300 = vadd.f32 0.0, %v7299
      %v7301 = vpop.f32.mrb[0].mxu0
      %v7302 = vpop.f32.mrb[0].mxu0
      %v7303 = vpop.f32.mrb[0].mxu0
      %7304 = vmatprep.mubr.bf16.mxu0 0
      %7305 = vmatmul.mubr.bf16.gmra.mrb[0].mxu0 %v7062
      %v7306 = vpop.f32.mrb[0].mxu0
      %v7307 = vadd.f32 0.0, %v7306
      %v7308 = vpop.f32.mrb[0].mxu0
      %v7309 = vpop.f32.mrb[0].mxu0
      %v7310 = vadd.f32 0.0, %v7309
      %v7311 = vpop.f32.mrb[0].mxu0
      %7312 = vmatprep.mubr.bf16.mxu0 0
      %7313 = vmatmul.mubr.bf16.gmra.mrb[0].mxu0 %v7063
      %v7314 = vpop.f32.mrb[0].mxu0
      %v7315 = vpop.f32.mrb[0].mxu0
      %v7316 = vpop.f32.mrb[0].mxu0
      %v7317 = vadd.f32 0.0, %v7316
      %v7318 = vpop.f32.mrb[0].mxu0
      %7319 = vmatprep.mubr.bf16.mxu0 0
      %7320 = vmatmul.mubr.bf16.gmra.mrb[0].mxu0 %v7064
      %v7321 = vpop.f32.mrb[0].mxu0
      %v7322 = vadd.f32 0.0, %v7321
      %v7323 = vpop.f32.mrb[0].mxu0
      %v7324 = vpop.f32.mrb[0].mxu0
      %v7325 = vpop.f32.mrb[0].mxu0
      %7326 = vmatprep.mubr.bf16.mxu0 0
      %7327 = vmatmul.mubr.bf16.gmra.mrb[0].mxu0 %v7065
      %v7328 = vpop.f32.mrb[0].mxu0
      %v7329 = vadd.f32 0.0, %v7328
      %v7330 = vpop.f32.mrb[0].mxu0
      %v7331 = vpop.f32.mrb[0].mxu0
      %v7332 = vadd.f32 0.0, %v7331
      %v7333 = vpop.f32.mrb[0].mxu0
      %7334 = vmatprep.mubr.bf16.mxu0 0
      %7335 = vmatmul.mubr.bf16.gmra.mrb[0].mxu0 %v7066
      %v7336 = vpop.f32.mrb[0].mxu0
      %v7337 = vpop.f32.mrb[0].mxu0
      %v7338 = vpop.f32.mrb[0].mxu0
      %v7339 = vadd.f32 0.0, %v7338
      %v7340 = vpop.f32.mrb[0].mxu0
      %7341 = vmatprep.mubr.bf16.mxu0 0
      %7342 = vmatmul.mubr.bf16.gmra.mrb[0].mxu0 %v7067
      %v7343 = vpop.f32.mrb[0].mxu0
      %v7344 = vadd.f32 0.0, %v7343
      %v7345 = vpop.f32.mrb[0].mxu0
      %v7346 = vpop.f32.mrb[0].mxu0
      %v7347 = vpop.f32.mrb[0].mxu0
      %7348 = vdwg.mxu0
      %v7398 = vunpack.c.l.b16 %v6819
      %v7399 = vunpack.c.l.b16 %v6820
      %v7400 = vunpack.c.l.b16 %v6821
      %v7401 = vunpack.c.l.b16 %v6822
      %v7402 = vunpack.c.l.b16 %v6823
      %v7403 = vunpack.c.l.b16 %v6824
      %v7404 = vunpack.c.l.b16 %v6825
      %v7405 = vunpack.c.l.b16 %v6826
      %v7406 = vunpack.c.l.b16 %v6827
      %v7407 = vunpack.c.l.b16 %v6828
      %v7408 = vunpack.c.l.b16 %v6829
      %v7409 = vunpack.c.l.b16 %v6830
      %v7410 = vunpack.c.l.b16 %v6831
      %v7411 = vunpack.c.l.b16 %v6832
      %v7412 = vunpack.c.l.b16 %v6833
      %v7413 = vunpack.c.l.b16 %v6834
      %v7414 = vunpack.c.l.b16 %v6835
      %v7415 = vunpack.c.l.b16 %v6836
      %v7416 = vunpack.c.l.b16 %v6837
      %v7417 = vunpack.c.l.b16 %v6838
      %v7418 = vunpack.c.l.b16 %v6839
      %v7419 = vunpack.c.l.b16 %v6840
      %v7420 = vunpack.c.l.b16 %v6841
      %v7421 = vunpack.c.l.b16 %v6842
      %v7422 = vunpack.c.l.b16 %v6843
      %v7423 = vunpack.c.l.b16 %v6844
      %v7424 = vunpack.c.l.b16 %v6845
      %v7425 = vunpack.c.l.b16 %v6846
      %v7426 = vunpack.c.l.b16 %v6847
      %v7427 = vunpack.c.l.b16 %v6848
      %v7428 = vunpack.c.l.b16 %v6849
      %v7429 = vunpack.c.l.b16 %v6850
      %v7430 = vunpack.c.l.b16 %v6851
      %v7431 = vunpack.c.l.b16 %v6852
      %v7432 = vunpack.c.l.b16 %v6853
      %v7433 = vunpack.c.l.b16 %v6854
      %v7434 = vunpack.c.l.b16 %v6855
      %v7435 = vunpack.c.l.b16 %v6856
      %v7436 = vunpack.c.l.b16 %v6857
      %v7437 = vunpack.c.l.b16 %v6858
      %v7438 = vunpack.c.l.b16 %v6859
      %v7439 = vunpack.c.l.b16 %v6860
      %v7440 = vunpack.c.l.b16 %v6861
      %v7441 = vunpack.c.l.b16 %v6862
      %v7442 = vunpack.c.l.b16 %v6863
      %v7443 = vunpack.c.l.b16 %v6864
      %v7444 = vunpack.c.l.b16 %v6865
      %v7445 = vunpack.c.l.b16 %v6866
      %v7446 = vunpack.c.l.b16 %v6867
      %v7447 = vpack.c.b16 %v7399, %v7398
      %v7448 = vpack.c.b16 %v7401, %v7400
      %v7449 = vpack.c.b16 %v7403, %v7402
      %v7450 = vpack.c.b16 %v7405, %v7404
      %v7451 = vpack.c.b16 %v7407, %v7406
      %v7452 = vpack.c.b16 %v7409, %v7408
      %v7453 = vpack.c.b16 %v7411, %v7410
      %v7454 = vpack.c.b16 %v7413, %v7412
      %v7455 = vpack.c.b16 %v7415, %v7414
      %v7456 = vpack.c.b16 %v7417, %v7416
      %v7457 = vpack.c.b16 %v7419, %v7418
      %v7458 = vpack.c.b16 %v7421, %v7420
      %v7459 = vpack.c.b16 %v7423, %v7422
      %v7460 = vpack.c.b16 %v7425, %v7424
      %v7461 = vpack.c.b16 %v7427, %v7426
      %v7462 = vpack.c.b16 %v7429, %v7428
      %v7463 = vpack.c.b16 %v7431, %v7430
      %v7464 = vpack.c.b16 %v7433, %v7432
      %v7465 = vpack.c.b16 %v7435, %v7434
      %v7466 = vpack.c.b16 %v7437, %v7436
      %v7467 = vpack.c.b16 %v7439, %v7438
      %v7468 = vpack.c.b16 %v7441, %v7440
      %v7469 = vpack.c.b16 %v7443, %v7442
      %v7470 = vpack.c.b16 %v7445, %v7444
      %v7471 = vpack.c.b16 %v7446, %v7446
      %v7473 = vshrl.u32 %v7447, 16
      %v7475 = vshll.u32 %v7447, 16
      %v7477 = vrot.slane %v7475, 1
      %v7478 = vor.u32 %v7473, %v7477
      %v7480 = vshll.u32 %v7448, 16
      %v7482 = vrot.slane %v7480, 1
      %v7483 = vsel %vm458, %v7478, %v7482
      %v7484 = vshrl.u32 %v7448, 16
      %v7486 = vor.u32 %v7484, %v7482
      %v7488 = vshll.u32 %v7449, 16
      %v7490 = vrot.slane %v7488, 1
      %v7491 = vsel %vm458, %v7486, %v7490
      %v7492 = vshrl.u32 %v7449, 16
      %v7494 = vor.u32 %v7492, %v7490
      %v7496 = vshll.u32 %v7450, 16
      %v7498 = vrot.slane %v7496, 1
      %v7499 = vsel %vm458, %v7494, %v7498
      %v7500 = vshrl.u32 %v7450, 16
      %v7502 = vor.u32 %v7500, %v7498
      %v7504 = vshll.u32 %v7451, 16
      %v7506 = vrot.slane %v7504, 1
      %v7507 = vsel %vm458, %v7502, %v7506
      %v7508 = vshrl.u32 %v7451, 16
      %v7510 = vor.u32 %v7508, %v7506
      %v7512 = vshll.u32 %v7452, 16
      %v7514 = vrot.slane %v7512, 1
      %v7515 = vsel %vm458, %v7510, %v7514
      %v7516 = vshrl.u32 %v7452, 16
      %v7518 = vor.u32 %v7516, %v7514
      %v7520 = vshll.u32 %v7453, 16
      %v7522 = vrot.slane %v7520, 1
      %v7523 = vsel %vm458, %v7518, %v7522
      %v7524 = vshrl.u32 %v7453, 16
      %v7526 = vor.u32 %v7524, %v7522
      %v7528 = vshll.u32 %v7454, 16
      %v7530 = vrot.slane %v7528, 1
      %v7531 = vsel %vm458, %v7526, %v7530
      %v7532 = vshrl.u32 %v7454, 16
      %v7534 = vor.u32 %v7532, %v7530
      %v7536 = vshll.u32 %v7455, 16
      %v7538 = vrot.slane %v7536, 1
      %v7539 = vsel %vm458, %v7534, %v7538
      %v7540 = vshrl.u32 %v7455, 16
      %v7542 = vor.u32 %v7540, %v7538
      %v7544 = vshll.u32 %v7456, 16
      %v7546 = vrot.slane %v7544, 1
      %v7547 = vsel %vm458, %v7542, %v7546
      %v7548 = vshrl.u32 %v7456, 16
      %v7550 = vor.u32 %v7548, %v7546
      %v7552 = vshll.u32 %v7457, 16
      %v7554 = vrot.slane %v7552, 1
      %v7555 = vsel %vm458, %v7550, %v7554
      %v7556 = vshrl.u32 %v7457, 16
      %v7558 = vor.u32 %v7556, %v7554
      %v7560 = vshll.u32 %v7458, 16
      %v7562 = vrot.slane %v7560, 1
      %v7563 = vsel %vm458, %v7558, %v7562
      %v7564 = vshrl.u32 %v7458, 16
      %v7566 = vor.u32 %v7564, %v7562
      %v7568 = vshll.u32 %v7459, 16
      %v7570 = vrot.slane %v7568, 1
      %v7571 = vsel %vm458, %v7566, %v7570
      %v7572 = vshrl.u32 %v7459, 16
      %v7574 = vor.u32 %v7572, %v7570
      %v7576 = vshll.u32 %v7460, 16
      %v7578 = vrot.slane %v7576, 1
      %v7579 = vsel %vm458, %v7574, %v7578
      %v7580 = vshrl.u32 %v7460, 16
      %v7582 = vor.u32 %v7580, %v7578
      %v7584 = vshll.u32 %v7461, 16
      %v7586 = vrot.slane %v7584, 1
      %v7587 = vsel %vm458, %v7582, %v7586
      %v7588 = vshrl.u32 %v7461, 16
      %v7590 = vor.u32 %v7588, %v7586
      %v7592 = vshll.u32 %v7462, 16
      %v7594 = vrot.slane %v7592, 1
      %v7595 = vsel %vm458, %v7590, %v7594
      %v7596 = vshrl.u32 %v7462, 16
      %v7598 = vor.u32 %v7596, %v7594
      %v7600 = vshll.u32 %v7463, 16
      %v7602 = vrot.slane %v7600, 1
      %v7603 = vsel %vm458, %v7598, %v7602
      %v7604 = vshrl.u32 %v7463, 16
      %v7606 = vor.u32 %v7604, %v7602
      %v7608 = vshll.u32 %v7464, 16
      %v7610 = vrot.slane %v7608, 1
      %v7611 = vsel %vm458, %v7606, %v7610
      %v7612 = vshrl.u32 %v7464, 16
      %v7614 = vor.u32 %v7612, %v7610
      %v7616 = vshll.u32 %v7465, 16
      %v7618 = vrot.slane %v7616, 1
      %v7619 = vsel %vm458, %v7614, %v7618
      %v7620 = vshrl.u32 %v7465, 16
      %v7622 = vor.u32 %v7620, %v7618
      %v7624 = vshll.u32 %v7466, 16
      %v7626 = vrot.slane %v7624, 1
      %v7627 = vsel %vm458, %v7622, %v7626
      %v7628 = vshrl.u32 %v7466, 16
      %v7630 = vor.u32 %v7628, %v7626
      %v7632 = vshll.u32 %v7467, 16
      %v7634 = vrot.slane %v7632, 1
      %v7635 = vsel %vm458, %v7630, %v7634
      %v7636 = vshrl.u32 %v7467, 16
      %v7638 = vor.u32 %v7636, %v7634
      %v7640 = vshll.u32 %v7468, 16
      %v7642 = vrot.slane %v7640, 1
      %v7643 = vsel %vm458, %v7638, %v7642
      %v7644 = vshrl.u32 %v7468, 16
      %v7646 = vor.u32 %v7644, %v7642
      %v7648 = vshll.u32 %v7469, 16
      %v7650 = vrot.slane %v7648, 1
      %v7651 = vsel %vm458, %v7646, %v7650
      %v7652 = vshrl.u32 %v7469, 16
      %v7654 = vor.u32 %v7652, %v7650
      %v7656 = vshll.u32 %v7470, 16
      %v7658 = vrot.slane %v7656, 1
      %v7659 = vsel %vm458, %v7654, %v7658
      %v7660 = vshrl.u32 %v7470, 16
      %v7662 = vor.u32 %v7660, %v7658
      %v7664 = vshll.u32 %v7471, 16
      %v7666 = vrot.slane %v7664, 1
      %v7667 = vsel %vm458, %v7662, %v7666
      %v7708 = vunpack.c.l.b16 %v6868
      %v7709 = vunpack.c.l.b16 %v6869
      %v7710 = vunpack.c.l.b16 %v6870
      %v7711 = vunpack.c.l.b16 %v6871
      %v7712 = vunpack.c.l.b16 %v6872
      %v7713 = vunpack.c.l.b16 %v6873
      %v7714 = vunpack.c.l.b16 %v6874
      %v7715 = vunpack.c.l.b16 %v6875
      %v7716 = vunpack.c.l.b16 %v6876
      %v7717 = vunpack.c.l.b16 %v6877
      %v7718 = vunpack.c.l.b16 %v6878
      %v7719 = vunpack.c.l.b16 %v6879
      %v7720 = vunpack.c.l.b16 %v6880
      %v7721 = vunpack.c.l.b16 %v6881
      %v7722 = vunpack.c.l.b16 %v6882
      %v7723 = vunpack.c.l.b16 %v6883
      %v7724 = vpack.c.b16 %v7709, %v7708
      %v7725 = vpack.c.b16 %v7711, %v7710
      %v7726 = vpack.c.b16 %v7713, %v7712
      %v7727 = vpack.c.b16 %v7715, %v7714
      %v7728 = vpack.c.b16 %v7717, %v7716
      %v7729 = vpack.c.b16 %v7719, %v7718
      %v7730 = vpack.c.b16 %v7721, %v7720
      %v7731 = vpack.c.b16 %v7723, %v7722
      %7740 = vmatprep.subr.bf16.mxu0 0
      %7741 = vmatpush1.bf16.msra.mxu0 %v7724
      %7742 = vmatprep.subr.bf16.mxu0 0
      %7743 = vmatpush1.bf16.msra.mxu0 %v7725
      %7744 = vmatprep.subr.bf16.mxu0 0
      %7745 = vmatpush1.bf16.msra.mxu0 %v7726
      %7746 = vmatprep.subr.bf16.mxu0 0
      %7747 = vmatpush1.bf16.msra.mxu0 %v7727
      %7748 = vmatprep.subr.bf16.mxu0 0
      %7749 = vmatpush1.bf16.msra.mxu0 %v7728
      %7750 = vmatprep.subr.bf16.mxu0 0
      %7751 = vmatpush1.bf16.msra.mxu0 %v7729
      %7752 = vmatprep.subr.bf16.mxu0 0
      %7753 = vmatpush1.bf16.msra.mxu0 %v7730
      %7754 = vmatprep.subr.bf16.mxu0 0
      %7755 = vmatpush1.bf16.msra.mxu0 %v7731
      %7756 = vmatprep.subr.bf16.mxu0 0
      %7757 = vmatpush1.bf16.msra.mxu0 0
      %7758 = vmatprep.subr.bf16.mxu0 0
      %7759 = vmatpush1.bf16.msra.mxu0 0
      %7760 = vmatprep.subr.bf16.mxu0 0
      %7761 = vmatpush1.bf16.msra.mxu0 0
      %7762 = vmatprep.subr.bf16.mxu0 0
      %7763 = vmatpush1.bf16.msra.mxu0 0
      %7764 = vmatprep.subr.bf16.mxu0 0
      %7765 = vmatpush1.bf16.msra.mxu0 0
      %7766 = vmatprep.subr.bf16.mxu0 0
      %7767 = vmatpush1.bf16.msra.mxu0 0
      %7768 = vmatprep.subr.bf16.mxu0 0
      %7769 = vmatpush1.bf16.msra.mxu0 0
      %7770 = vmatprep.subr.bf16.mxu0 0
      %7771 = vmatpush1.bf16.msra.mxu0 0
      %7772 = vmatprep.mubr.bf16.mxu0 0
      %7773 = vmatmul.mubr.bf16.gmra.mrb[0].mxu0 %v7483
      %v7774 = vpop.f32.mrb[0].mxu0
      %v7775 = vadd.f32 %v7175, %v7774
      %v7776 = vpop.f32.mrb[0].mxu0
      %v7777 = vpop.f32.mrb[0].mxu0
      %v7778 = vadd.f32 %v7178, %v7777
      %v7779 = vpop.f32.mrb[0].mxu0
      %7780 = vmatprep.mubr.bf16.mxu0 0
      %7781 = vmatmul.mubr.bf16.gmra.mrb[0].mxu0 %v7491
      %v7782 = vpop.f32.mrb[0].mxu0
      %v7783 = vpop.f32.mrb[0].mxu0
      %v7784 = vpop.f32.mrb[0].mxu0
      %v7785 = vadd.f32 %v7185, %v7784
      %v7786 = vpop.f32.mrb[0].mxu0
      %7787 = vmatprep.mubr.bf16.mxu0 0
      %7788 = vmatmul.mubr.bf16.gmra.mrb[0].mxu0 %v7499
      %v7789 = vpop.f32.mrb[0].mxu0
      %v7790 = vadd.f32 %v7190, %v7789
      %v7791 = vpop.f32.mrb[0].mxu0
      %v7792 = vpop.f32.mrb[0].mxu0
      %v7793 = vpop.f32.mrb[0].mxu0
      %7794 = vmatprep.mubr.bf16.mxu0 0
      %7795 = vmatmul.mubr.bf16.gmra.mrb[0].mxu0 %v7507
      %v7796 = vpop.f32.mrb[0].mxu0
      %v7797 = vadd.f32 %v7197, %v7796
      %v7798 = vpop.f32.mrb[0].mxu0
      %v7799 = vpop.f32.mrb[0].mxu0
      %v7800 = vadd.f32 %v7200, %v7799
      %v7801 = vpop.f32.mrb[0].mxu0
      %7802 = vmatprep.mubr.bf16.mxu0 0
      %7803 = vmatmul.mubr.bf16.gmra.mrb[0].mxu0 %v7515
      %v7804 = vpop.f32.mrb[0].mxu0
      %v7805 = vpop.f32.mrb[0].mxu0
      %v7806 = vpop.f32.mrb[0].mxu0
      %v7807 = vadd.f32 %v7207, %v7806
      %v7808 = vpop.f32.mrb[0].mxu0
      %7809 = vmatprep.mubr.bf16.mxu0 0
      %7810 = vmatmul.mubr.bf16.gmra.mrb[0].mxu0 %v7523
      %v7811 = vpop.f32.mrb[0].mxu0
      %v7812 = vadd.f32 %v7212, %v7811
      %v7813 = vpop.f32.mrb[0].mxu0
      %v7814 = vpop.f32.mrb[0].mxu0
      %v7815 = vpop.f32.mrb[0].mxu0
      %7816 = vmatprep.mubr.bf16.mxu0 0
      %7817 = vmatmul.mubr.bf16.gmra.mrb[0].mxu0 %v7531
      %v7818 = vpop.f32.mrb[0].mxu0
      %v7819 = vadd.f32 %v7219, %v7818
      %v7820 = vpop.f32.mrb[0].mxu0
      %v7821 = vpop.f32.mrb[0].mxu0
      %v7822 = vadd.f32 %v7222, %v7821
      %v7823 = vpop.f32.mrb[0].mxu0
      %7824 = vmatprep.mubr.bf16.mxu0 0
      %7825 = vmatmul.mubr.bf16.gmra.mrb[0].mxu0 %v7539
      %v7826 = vpop.f32.mrb[0].mxu0
      %v7827 = vpop.f32.mrb[0].mxu0
      %v7828 = vpop.f32.mrb[0].mxu0
      %v7829 = vadd.f32 %v7229, %v7828
      %v7830 = vpop.f32.mrb[0].mxu0
      %7831 = vmatprep.mubr.bf16.mxu0 0
      %7832 = vmatmul.mubr.bf16.gmra.mrb[0].mxu0 %v7547
      %v7833 = vpop.f32.mrb[0].mxu0
      %v7834 = vadd.f32 %v7234, %v7833
      %v7835 = vpop.f32.mrb[0].mxu0
      %v7836 = vpop.f32.mrb[0].mxu0
      %v7837 = vpop.f32.mrb[0].mxu0
      %7838 = vmatprep.mubr.bf16.mxu0 0
      %7839 = vmatmul.mubr.bf16.gmra.mrb[0].mxu0 %v7555
      %v7840 = vpop.f32.mrb[0].mxu0
      %v7841 = vadd.f32 %v7241, %v7840
      %v7842 = vpop.f32.mrb[0].mxu0
      %v7843 = vpop.f32.mrb[0].mxu0
      %v7844 = vadd.f32 %v7244, %v7843
      %v7845 = vpop.f32.mrb[0].mxu0
      %7846 = vmatprep.mubr.bf16.mxu0 0
      %7847 = vmatmul.mubr.bf16.gmra.mrb[0].mxu0 %v7563
      %v7848 = vpop.f32.mrb[0].mxu0
      %v7849 = vpop.f32.mrb[0].mxu0
      %v7850 = vpop.f32.mrb[0].mxu0
      %v7851 = vadd.f32 %v7251, %v7850
      %v7852 = vpop.f32.mrb[0].mxu0
      %7853 = vmatprep.mubr.bf16.mxu0 0
      %7854 = vmatmul.mubr.bf16.gmra.mrb[0].mxu0 %v7571
      %v7855 = vpop.f32.mrb[0].mxu0
      %v7856 = vadd.f32 %v7256, %v7855
      %v7857 = vpop.f32.mrb[0].mxu0
      %v7858 = vpop.f32.mrb[0].mxu0
      %v7859 = vpop.f32.mrb[0].mxu0
      %7860 = vmatprep.mubr.bf16.mxu0 0
      %7861 = vmatmul.mubr.bf16.gmra.mrb[0].mxu0 %v7579
      %v7862 = vpop.f32.mrb[0].mxu0
      %v7863 = vadd.f32 %v7263, %v7862
      %v7864 = vpop.f32.mrb[0].mxu0
      %v7865 = vpop.f32.mrb[0].mxu0
      %v7866 = vadd.f32 %v7266, %v7865
      %v7867 = vpop.f32.mrb[0].mxu0
      %7868 = vmatprep.mubr.bf16.mxu0 0
      %7869 = vmatmul.mubr.bf16.gmra.mrb[0].mxu0 %v7587
      %v7870 = vpop.f32.mrb[0].mxu0
      %v7871 = vpop.f32.mrb[0].mxu0
      %v7872 = vpop.f32.mrb[0].mxu0
      %v7873 = vadd.f32 %v7273, %v7872
      %v7874 = vpop.f32.mrb[0].mxu0
      %7875 = vmatprep.mubr.bf16.mxu0 0
      %7876 = vmatmul.mubr.bf16.gmra.mrb[0].mxu0 %v7595
      %v7877 = vpop.f32.mrb[0].mxu0
      %v7878 = vadd.f32 %v7278, %v7877
      %v7879 = vpop.f32.mrb[0].mxu0
      %v7880 = vpop.f32.mrb[0].mxu0
      %v7881 = vpop.f32.mrb[0].mxu0
      %7882 = vmatprep.mubr.bf16.mxu0 0
      %7883 = vmatmul.mubr.bf16.gmra.mrb[0].mxu0 %v7603
      %v7884 = vpop.f32.mrb[0].mxu0
      %v7885 = vadd.f32 %v7285, %v7884
      %v7886 = vpop.f32.mrb[0].mxu0
      %v7887 = vpop.f32.mrb[0].mxu0
      %v7888 = vadd.f32 %v7288, %v7887
      %v7889 = vpop.f32.mrb[0].mxu0
      %7890 = vmatprep.mubr.bf16.mxu0 0
      %7891 = vmatmul.mubr.bf16.gmra.mrb[0].mxu0 %v7611
      %v7892 = vpop.f32.mrb[0].mxu0
      %v7893 = vpop.f32.mrb[0].mxu0
      %v7894 = vpop.f32.mrb[0].mxu0
      %v7895 = vadd.f32 %v7295, %v7894
      %v7896 = vpop.f32.mrb[0].mxu0
      %7897 = vmatprep.mubr.bf16.mxu0 0
      %7898 = vmatmul.mubr.bf16.gmra.mrb[0].mxu0 %v7619
      %v7899 = vpop.f32.mrb[0].mxu0
      %v7900 = vadd.f32 %v7300, %v7899
      %v7901 = vpop.f32.mrb[0].mxu0
      %v7902 = vpop.f32.mrb[0].mxu0
      %v7903 = vpop.f32.mrb[0].mxu0
      %7904 = vmatprep.mubr.bf16.mxu0 0
      %7905 = vmatmul.mubr.bf16.gmra.mrb[0].mxu0 %v7627
      %v7906 = vpop.f32.mrb[0].mxu0
      %v7907 = vadd.f32 %v7307, %v7906
      %v7908 = vpop.f32.mrb[0].mxu0
      %v7909 = vpop.f32.mrb[0].mxu0
      %v7910 = vadd.f32 %v7310, %v7909
      %v7911 = vpop.f32.mrb[0].mxu0
      %7912 = vmatprep.mubr.bf16.mxu0 0
      %7913 = vmatmul.mubr.bf16.gmra.mrb[0].mxu0 %v7635
      %v7914 = vpop.f32.mrb[0].mxu0
      %v7915 = vpop.f32.mrb[0].mxu0
      %v7916 = vpop.f32.mrb[0].mxu0
      %v7917 = vadd.f32 %v7317, %v7916
      %v7918 = vpop.f32.mrb[0].mxu0
      %7919 = vmatprep.mubr.bf16.mxu0 0
      %7920 = vmatmul.mubr.bf16.gmra.mrb[0].mxu0 %v7643
      %v7921 = vpop.f32.mrb[0].mxu0
      %v7922 = vadd.f32 %v7322, %v7921
      %v7923 = vpop.f32.mrb[0].mxu0
      %v7924 = vpop.f32.mrb[0].mxu0
      %v7925 = vpop.f32.mrb[0].mxu0
      %7926 = vmatprep.mubr.bf16.mxu0 0
      %7927 = vmatmul.mubr.bf16.gmra.mrb[0].mxu0 %v7651
      %v7928 = vpop.f32.mrb[0].mxu0
      %v7929 = vadd.f32 %v7329, %v7928
      %v7930 = vpop.f32.mrb[0].mxu0
      %v7931 = vpop.f32.mrb[0].mxu0
      %v7932 = vadd.f32 %v7332, %v7931
      %v7933 = vpop.f32.mrb[0].mxu0
      %7934 = vmatprep.mubr.bf16.mxu0 0
      %7935 = vmatmul.mubr.bf16.gmra.mrb[0].mxu0 %v7659
      %v7936 = vpop.f32.mrb[0].mxu0
      %v7937 = vpop.f32.mrb[0].mxu0
      %v7938 = vpop.f32.mrb[0].mxu0
      %v7939 = vadd.f32 %v7339, %v7938
      %v7940 = vpop.f32.mrb[0].mxu0
      %7941 = vmatprep.mubr.bf16.mxu0 0
      %7942 = vmatmul.mubr.bf16.gmra.mrb[0].mxu0 %v7667
      %v7943 = vpop.f32.mrb[0].mxu0
      %v7944 = vadd.f32 %v7344, %v7943
      %v7945 = vpop.f32.mrb[0].mxu0
      %v7946 = vpop.f32.mrb[0].mxu0
      %v7947 = vpop.f32.mrb[0].mxu0
      %7948 = vdwg.mxu0
      %v7949 = vld [vmem:[#allocation2] sm:$0xf]
      %v7950 = vld [vmem:[#allocation2 + $0x4] sm:$0xf]
      %v7951 = vld [vmem:[#allocation2 + $0x8] sm:$0xf]
      %v7952 = vld [vmem:[#allocation2 + $0xc] sm:$0xf]
      %v7953 = vld [vmem:[#allocation2 + $0x10] sm:$0xf]
      %v7954 = vld [vmem:[#allocation2 + $0x14] sm:$0xf]
      %v7955 = vld [vmem:[#allocation2 + $0x18] sm:$0xf]
      %v7956 = vld [vmem:[#allocation2 + $0x1c] sm:$0xf]
      %v7957 = vld [vmem:[#allocation2 + $0x20] sm:$0xf]
      %v7958 = vld [vmem:[#allocation2 + $0x24] sm:$0xf]
      %v7959 = vld [vmem:[#allocation2 + $0x28] sm:$0xf]
      %v7960 = vld [vmem:[#allocation2 + $0x2c] sm:$0xf]
      %v7961 = vld [vmem:[#allocation2 + $0x30] sm:$0xf]
      %v7962 = vld [vmem:[#allocation2 + $0x34] sm:$0xf]
      %v7963 = vld [vmem:[#allocation2 + $0x38] sm:$0xf]
      %v7964 = vld [vmem:[#allocation2 + $0x3c] sm:$0xf]
      %v7965 = vld [vmem:[#allocation2 + $0x40] sm:$0xf]
      %v7966 = vld [vmem:[#allocation2 + $0x44] sm:$0xf]
      %v7967 = vld [vmem:[#allocation2 + $0x48] sm:$0xf]
      %v7968 = vld [vmem:[#allocation2 + $0x4c] sm:$0xf]
      %v7969 = vld [vmem:[#allocation2 + $0x50] sm:$0xf]
      %v7970 = vld [vmem:[#allocation2 + $0x54] sm:$0xf]
      %v7971 = vld [vmem:[#allocation2 + $0x58] sm:$0xf]
      %v7972 = vld [vmem:[#allocation2 + $0x5c] sm:$0xf]
      %v7973 = vld [vmem:[#allocation2 + $0x60] sm:$0xf]
      %v7974 = vld [vmem:[#allocation2 + $0x64] sm:$0xf]
      %v7975 = vld [vmem:[#allocation2 + $0x68] sm:$0xf]
      %v7976 = vld [vmem:[#allocation2 + $0x6c] sm:$0xf]
      %v7977 = vld [vmem:[#allocation2 + $0x70] sm:$0xf]
      %v7978 = vld [vmem:[#allocation2 + $0x74] sm:$0xf]
      %v7979 = vld [vmem:[#allocation2 + $0x78] sm:$0xf]
      %v7980 = vld [vmem:[#allocation2 + $0x7c] sm:$0xf]
      %v7981 = vld [vmem:[#allocation2 + $0x80] sm:$0xf]
      %v7982 = vld [vmem:[#allocation2 + $0x84] sm:$0xf]
      %v7983 = vld [vmem:[#allocation2 + $0x88] sm:$0xf]
      %v7984 = vld [vmem:[#allocation2 + $0x8c] sm:$0xf]
      %v7985 = vld [vmem:[#allocation2 + $0x90] sm:$0xf]
      %v7986 = vld [vmem:[#allocation2 + $0x94] sm:$0xf]
      %v7987 = vld [vmem:[#allocation2 + $0x98] sm:$0xf]
      %v7988 = vld [vmem:[#allocation2 + $0x9c] sm:$0xf]
      %v7989 = vld [vmem:[#allocation2 + $0xa0] sm:$0xf]
      %v7990 = vld [vmem:[#allocation2 + $0xa4] sm:$0xf]
      %v7991 = vld [vmem:[#allocation2 + $0xa8] sm:$0xf]
      %v7992 = vld [vmem:[#allocation2 + $0xac] sm:$0xf]
      %v7993 = vld [vmem:[#allocation2 + $0xb0] sm:$0xf]
      %v7994 = vld [vmem:[#allocation2 + $0xb4] sm:$0xf]
      %v7995 = vld [vmem:[#allocation2 + $0xb8] sm:$0xf]
      %v7996 = vld [vmem:[#allocation2 + $0xbc] sm:$0xf]
      %v7997 = vld [vmem:[#allocation2 + $0xc0] sm:$0x1]
      %s7998 = scalar_lea.vmem %s3, 64
      %v7999 = vld [vmem:[%s7998] sm:$0xf]
      %v8000 = vld [vmem:[%s7998 + $0x4] sm:$0xf]
      %v8001 = vld [vmem:[%s7998 + $0x8] sm:$0xf]
      %v8002 = vld [vmem:[%s7998 + $0xc] sm:$0xf]
      %v8003 = vld [vmem:[%s7998 + $0x10] sm:$0xf]
      %v8004 = vld [vmem:[%s7998 + $0x14] sm:$0xf]
      %v8005 = vld [vmem:[%s7998 + $0x18] sm:$0xf]
      %v8006 = vld [vmem:[%s7998 + $0x1c] sm:$0xf]
      %v8007 = vld [vmem:[%s7998 + $0x20] sm:$0xf]
      %v8008 = vld [vmem:[%s7998 + $0x24] sm:$0xf]
      %v8009 = vld [vmem:[%s7998 + $0x28] sm:$0xf]
      %v8010 = vld [vmem:[%s7998 + $0x2c] sm:$0xf]
      %v8011 = vld [vmem:[%s7998 + $0x30] sm:$0xf]
      %v8012 = vld [vmem:[%s7998 + $0x34] sm:$0xf]
      %v8013 = vld [vmem:[%s7998 + $0x38] sm:$0xf]
      %v8014 = vld [vmem:[%s7998 + $0x3c] sm:$0xf]
      %v8064 = vunpack.c.l.b16 %v7949
      %v8065 = vunpack.c.l.b16 %v7950
      %v8066 = vunpack.c.l.b16 %v7951
      %v8067 = vunpack.c.l.b16 %v7952
      %v8068 = vunpack.c.l.b16 %v7953
      %v8069 = vunpack.c.l.b16 %v7954
      %v8070 = vunpack.c.l.b16 %v7955
      %v8071 = vunpack.c.l.b16 %v7956
      %v8072 = vunpack.c.l.b16 %v7957
      %v8073 = vunpack.c.l.b16 %v7958
      %v8074 = vunpack.c.l.b16 %v7959
      %v8075 = vunpack.c.l.b16 %v7960
      %v8076 = vunpack.c.l.b16 %v7961
      %v8077 = vunpack.c.l.b16 %v7962
      %v8078 = vunpack.c.l.b16 %v7963
      %v8079 = vunpack.c.l.b16 %v7964
      %v8080 = vunpack.c.l.b16 %v7965
      %v8081 = vunpack.c.l.b16 %v7966
      %v8082 = vunpack.c.l.b16 %v7967
      %v8083 = vunpack.c.l.b16 %v7968
      %v8084 = vunpack.c.l.b16 %v7969
      %v8085 = vunpack.c.l.b16 %v7970
      %v8086 = vunpack.c.l.b16 %v7971
      %v8087 = vunpack.c.l.b16 %v7972
      %v8088 = vunpack.c.l.b16 %v7973
      %v8089 = vunpack.c.l.b16 %v7974
      %v8090 = vunpack.c.l.b16 %v7975
      %v8091 = vunpack.c.l.b16 %v7976
      %v8092 = vunpack.c.l.b16 %v7977
      %v8093 = vunpack.c.l.b16 %v7978
      %v8094 = vunpack.c.l.b16 %v7979
      %v8095 = vunpack.c.l.b16 %v7980
      %v8096 = vunpack.c.l.b16 %v7981
      %v8097 = vunpack.c.l.b16 %v7982
      %v8098 = vunpack.c.l.b16 %v7983
      %v8099 = vunpack.c.l.b16 %v7984
      %v8100 = vunpack.c.l.b16 %v7985
      %v8101 = vunpack.c.l.b16 %v7986
      %v8102 = vunpack.c.l.b16 %v7987
      %v8103 = vunpack.c.l.b16 %v7988
      %v8104 = vunpack.c.l.b16 %v7989
      %v8105 = vunpack.c.l.b16 %v7990
      %v8106 = vunpack.c.l.b16 %v7991
      %v8107 = vunpack.c.l.b16 %v7992
      %v8108 = vunpack.c.l.b16 %v7993
      %v8109 = vunpack.c.l.b16 %v7994
      %v8110 = vunpack.c.l.b16 %v7995
      %v8111 = vunpack.c.l.b16 %v7996
      %v8112 = vunpack.c.l.b16 %v7997
      %v8113 = vpack.c.b16 %v8065, %v8064
      %v8114 = vpack.c.b16 %v8067, %v8066
      %v8115 = vpack.c.b16 %v8069, %v8068
      %v8116 = vpack.c.b16 %v8071, %v8070
      %v8117 = vpack.c.b16 %v8073, %v8072
      %v8118 = vpack.c.b16 %v8075, %v8074
      %v8119 = vpack.c.b16 %v8077, %v8076
      %v8120 = vpack.c.b16 %v8079, %v8078
      %v8121 = vpack.c.b16 %v8081, %v8080
      %v8122 = vpack.c.b16 %v8083, %v8082
      %v8123 = vpack.c.b16 %v8085, %v8084
      %v8124 = vpack.c.b16 %v8087, %v8086
      %v8125 = vpack.c.b16 %v8089, %v8088
      %v8126 = vpack.c.b16 %v8091, %v8090
      %v8127 = vpack.c.b16 %v8093, %v8092
      %v8128 = vpack.c.b16 %v8095, %v8094
      %v8129 = vpack.c.b16 %v8097, %v8096
      %v8130 = vpack.c.b16 %v8099, %v8098
      %v8131 = vpack.c.b16 %v8101, %v8100
      %v8132 = vpack.c.b16 %v8103, %v8102
      %v8133 = vpack.c.b16 %v8105, %v8104
      %v8134 = vpack.c.b16 %v8107, %v8106
      %v8135 = vpack.c.b16 %v8109, %v8108
      %v8136 = vpack.c.b16 %v8111, %v8110
      %v8137 = vpack.c.b16 %v8112, %v8112
      %v8139 = vshrl.u32 %v8113, 16
      %v8141 = vshll.u32 %v8113, 16
      %v8143 = vrot.slane %v8141, 1
      %v8144 = vor.u32 %v8139, %v8143
      %v8146 = vshll.u32 %v8114, 16
      %v8148 = vrot.slane %v8146, 1
      %v8149 = vsel %vm458, %v8144, %v8148
      %v8150 = vshrl.u32 %v8114, 16
      %v8152 = vor.u32 %v8150, %v8148
      %v8154 = vshll.u32 %v8115, 16
      %v8156 = vrot.slane %v8154, 1
      %v8157 = vsel %vm458, %v8152, %v8156
      %v8158 = vshrl.u32 %v8115, 16
      %v8160 = vor.u32 %v8158, %v8156
      %v8162 = vshll.u32 %v8116, 16
      %v8164 = vrot.slane %v8162, 1
      %v8165 = vsel %vm458, %v8160, %v8164
      %v8166 = vshrl.u32 %v8116, 16
      %v8168 = vor.u32 %v8166, %v8164
      %v8170 = vshll.u32 %v8117, 16
      %v8172 = vrot.slane %v8170, 1
      %v8173 = vsel %vm458, %v8168, %v8172
      %v8174 = vshrl.u32 %v8117, 16
      %v8176 = vor.u32 %v8174, %v8172
      %v8178 = vshll.u32 %v8118, 16
      %v8180 = vrot.slane %v8178, 1
      %v8181 = vsel %vm458, %v8176, %v8180
      %v8182 = vshrl.u32 %v8118, 16
      %v8184 = vor.u32 %v8182, %v8180
      %v8186 = vshll.u32 %v8119, 16
      %v8188 = vrot.slane %v8186, 1
      %v8189 = vsel %vm458, %v8184, %v8188
      %v8190 = vshrl.u32 %v8119, 16
      %v8192 = vor.u32 %v8190, %v8188
      %v8194 = vshll.u32 %v8120, 16
      %v8196 = vrot.slane %v8194, 1
      %v8197 = vsel %vm458, %v8192, %v8196
      %v8198 = vshrl.u32 %v8120, 16
      %v8200 = vor.u32 %v8198, %v8196
      %v8202 = vshll.u32 %v8121, 16
      %v8204 = vrot.slane %v8202, 1
      %v8205 = vsel %vm458, %v8200, %v8204
      %v8206 = vshrl.u32 %v8121, 16
      %v8208 = vor.u32 %v8206, %v8204
      %v8210 = vshll.u32 %v8122, 16
      %v8212 = vrot.slane %v8210, 1
      %v8213 = vsel %vm458, %v8208, %v8212
      %v8214 = vshrl.u32 %v8122, 16
      %v8216 = vor.u32 %v8214, %v8212
      %v8218 = vshll.u32 %v8123, 16
      %v8220 = vrot.slane %v8218, 1
      %v8221 = vsel %vm458, %v8216, %v8220
      %v8222 = vshrl.u32 %v8123, 16
      %v8224 = vor.u32 %v8222, %v8220
      %v8226 = vshll.u32 %v8124, 16
      %v8228 = vrot.slane %v8226, 1
      %v8229 = vsel %vm458, %v8224, %v8228
      %v8230 = vshrl.u32 %v8124, 16
      %v8232 = vor.u32 %v8230, %v8228
      %v8234 = vshll.u32 %v8125, 16
      %v8236 = vrot.slane %v8234, 1
      %v8237 = vsel %vm458, %v8232, %v8236
      %v8238 = vshrl.u32 %v8125, 16
      %v8240 = vor.u32 %v8238, %v8236
      %v8242 = vshll.u32 %v8126, 16
      %v8244 = vrot.slane %v8242, 1
      %v8245 = vsel %vm458, %v8240, %v8244
      %v8246 = vshrl.u32 %v8126, 16
      %v8248 = vor.u32 %v8246, %v8244
      %v8250 = vshll.u32 %v8127, 16
      %v8252 = vrot.slane %v8250, 1
      %v8253 = vsel %vm458, %v8248, %v8252
      %v8254 = vshrl.u32 %v8127, 16
      %v8256 = vor.u32 %v8254, %v8252
      %v8258 = vshll.u32 %v8128, 16
      %v8260 = vrot.slane %v8258, 1
      %v8261 = vsel %vm458, %v8256, %v8260
      %v8262 = vshrl.u32 %v8128, 16
      %v8264 = vor.u32 %v8262, %v8260
      %v8266 = vshll.u32 %v8129, 16
      %v8268 = vrot.slane %v8266, 1
      %v8269 = vsel %vm458, %v8264, %v8268
      %v8270 = vshrl.u32 %v8129, 16
      %v8272 = vor.u32 %v8270, %v8268
      %v8274 = vshll.u32 %v8130, 16
      %v8276 = vrot.slane %v8274, 1
      %v8277 = vsel %vm458, %v8272, %v8276
      %v8278 = vshrl.u32 %v8130, 16
      %v8280 = vor.u32 %v8278, %v8276
      %v8282 = vshll.u32 %v8131, 16
      %v8284 = vrot.slane %v8282, 1
      %v8285 = vsel %vm458, %v8280, %v8284
      %v8286 = vshrl.u32 %v8131, 16
      %v8288 = vor.u32 %v8286, %v8284
      %v8290 = vshll.u32 %v8132, 16
      %v8292 = vrot.slane %v8290, 1
      %v8293 = vsel %vm458, %v8288, %v8292
      %v8294 = vshrl.u32 %v8132, 16
      %v8296 = vor.u32 %v8294, %v8292
      %v8298 = vshll.u32 %v8133, 16
      %v8300 = vrot.slane %v8298, 1
      %v8301 = vsel %vm458, %v8296, %v8300
      %v8302 = vshrl.u32 %v8133, 16
      %v8304 = vor.u32 %v8302, %v8300
      %v8306 = vshll.u32 %v8134, 16
      %v8308 = vrot.slane %v8306, 1
      %v8309 = vsel %vm458, %v8304, %v8308
      %v8310 = vshrl.u32 %v8134, 16
      %v8312 = vor.u32 %v8310, %v8308
      %v8314 = vshll.u32 %v8135, 16
      %v8316 = vrot.slane %v8314, 1
      %v8317 = vsel %vm458, %v8312, %v8316
      %v8318 = vshrl.u32 %v8135, 16
      %v8320 = vor.u32 %v8318, %v8316
      %v8322 = vshll.u32 %v8136, 16
      %v8324 = vrot.slane %v8322, 1
      %v8325 = vsel %vm458, %v8320, %v8324
      %v8326 = vshrl.u32 %v8136, 16
      %v8328 = vor.u32 %v8326, %v8324
      %v8330 = vshll.u32 %v8137, 16
      %v8332 = vrot.slane %v8330, 1
      %v8333 = vsel %vm458, %v8328, %v8332
      %v8374 = vunpack.c.l.b16 %v7999
      %v8375 = vunpack.c.l.b16 %v8000
      %v8376 = vunpack.c.l.b16 %v8001
      %v8377 = vunpack.c.l.b16 %v8002
      %v8378 = vunpack.c.l.b16 %v8003
      %v8379 = vunpack.c.l.b16 %v8004
      %v8380 = vunpack.c.l.b16 %v8005
      %v8381 = vunpack.c.l.b16 %v8006
      %v8382 = vunpack.c.l.b16 %v8007
      %v8383 = vunpack.c.l.b16 %v8008
      %v8384 = vunpack.c.l.b16 %v8009
      %v8385 = vunpack.c.l.b16 %v8010
      %v8386 = vunpack.c.l.b16 %v8011
      %v8387 = vunpack.c.l.b16 %v8012
      %v8388 = vunpack.c.l.b16 %v8013
      %v8389 = vunpack.c.l.b16 %v8014
      %v8390 = vpack.c.b16 %v8375, %v8374
      %v8391 = vpack.c.b16 %v8377, %v8376
      %v8392 = vpack.c.b16 %v8379, %v8378
      %v8393 = vpack.c.b16 %v8381, %v8380
      %v8394 = vpack.c.b16 %v8383, %v8382
      %v8395 = vpack.c.b16 %v8385, %v8384
      %v8396 = vpack.c.b16 %v8387, %v8386
      %v8397 = vpack.c.b16 %v8389, %v8388
      %8406 = vmatprep.subr.bf16.mxu0 0
      %8407 = vmatpush1.bf16.msra.mxu0 %v8390
      %8408 = vmatprep.subr.bf16.mxu0 0
      %8409 = vmatpush1.bf16.msra.mxu0 %v8391
      %8410 = vmatprep.subr.bf16.mxu0 0
      %8411 = vmatpush1.bf16.msra.mxu0 %v8392
      %8412 = vmatprep.subr.bf16.mxu0 0
      %8413 = vmatpush1.bf16.msra.mxu0 %v8393
      %8414 = vmatprep.subr.bf16.mxu0 0
      %8415 = vmatpush1.bf16.msra.mxu0 %v8394
      %8416 = vmatprep.subr.bf16.mxu0 0
      %8417 = vmatpush1.bf16.msra.mxu0 %v8395
      %8418 = vmatprep.subr.bf16.mxu0 0
      %8419 = vmatpush1.bf16.msra.mxu0 %v8396
      %8420 = vmatprep.subr.bf16.mxu0 0
      %8421 = vmatpush1.bf16.msra.mxu0 %v8397
      %8422 = vmatprep.subr.bf16.mxu0 0
      %8423 = vmatpush1.bf16.msra.mxu0 0
      %8424 = vmatprep.subr.bf16.mxu0 0
      %8425 = vmatpush1.bf16.msra.mxu0 0
      %8426 = vmatprep.subr.bf16.mxu0 0
      %8427 = vmatpush1.bf16.msra.mxu0 0
      %8428 = vmatprep.subr.bf16.mxu0 0
      %8429 = vmatpush1.bf16.msra.mxu0 0
      %8430 = vmatprep.subr.bf16.mxu0 0
      %8431 = vmatpush1.bf16.msra.mxu0 0
      %8432 = vmatprep.subr.bf16.mxu0 0
      %8433 = vmatpush1.bf16.msra.mxu0 0
      %8434 = vmatprep.subr.bf16.mxu0 0
      %8435 = vmatpush1.bf16.msra.mxu0 0
      %8436 = vmatprep.subr.bf16.mxu0 0
      %8437 = vmatpush1.bf16.msra.mxu0 0
      %8438 = vmatprep.mubr.bf16.mxu0 0
      %8439 = vmatmul.mubr.bf16.gmra.mrb[0].mxu0 %v8149
      %v8440 = vpop.f32.mrb[0].mxu0
      %v8441 = vadd.f32 0.0, %v8440
      %v8442 = vpop.f32.mrb[0].mxu0
      %v8443 = vpop.f32.mrb[0].mxu0
      %v8444 = vadd.f32 0.0, %v8443
      %v8445 = vpop.f32.mrb[0].mxu0
      %8446 = vmatprep.mubr.bf16.mxu0 0
      %8447 = vmatmul.mubr.bf16.gmra.mrb[0].mxu0 %v8157
      %v8448 = vpop.f32.mrb[0].mxu0
      %v8449 = vpop.f32.mrb[0].mxu0
      %v8450 = vpop.f32.mrb[0].mxu0
      %v8451 = vadd.f32 0.0, %v8450
      %v8452 = vpop.f32.mrb[0].mxu0
      %8453 = vmatprep.mubr.bf16.mxu0 0
      %8454 = vmatmul.mubr.bf16.gmra.mrb[0].mxu0 %v8165
      %v8455 = vpop.f32.mrb[0].mxu0
      %v8456 = vadd.f32 0.0, %v8455
      %v8457 = vpop.f32.mrb[0].mxu0
      %v8458 = vpop.f32.mrb[0].mxu0
      %v8459 = vpop.f32.mrb[0].mxu0
      %8460 = vmatprep.mubr.bf16.mxu0 0
      %8461 = vmatmul.mubr.bf16.gmra.mrb[0].mxu0 %v8173
      %v8462 = vpop.f32.mrb[0].mxu0
      %v8463 = vadd.f32 0.0, %v8462
      %v8464 = vpop.f32.mrb[0].mxu0
      %v8465 = vpop.f32.mrb[0].mxu0
      %v8466 = vadd.f32 0.0, %v8465
      %v8467 = vpop.f32.mrb[0].mxu0
      %8468 = vmatprep.mubr.bf16.mxu0 0
      %8469 = vmatmul.mubr.bf16.gmra.mrb[0].mxu0 %v8181
      %v8470 = vpop.f32.mrb[0].mxu0
      %v8471 = vpop.f32.mrb[0].mxu0
      %v8472 = vpop.f32.mrb[0].mxu0
      %v8473 = vadd.f32 0.0, %v8472
      %v8474 = vpop.f32.mrb[0].mxu0
      %8475 = vmatprep.mubr.bf16.mxu0 0
      %8476 = vmatmul.mubr.bf16.gmra.mrb[0].mxu0 %v8189
      %v8477 = vpop.f32.mrb[0].mxu0
      %v8478 = vadd.f32 0.0, %v8477
      %v8479 = vpop.f32.mrb[0].mxu0
      %v8480 = vpop.f32.mrb[0].mxu0
      %v8481 = vpop.f32.mrb[0].mxu0
      %8482 = vmatprep.mubr.bf16.mxu0 0
      %8483 = vmatmul.mubr.bf16.gmra.mrb[0].mxu0 %v8197
      %v8484 = vpop.f32.mrb[0].mxu0
      %v8485 = vadd.f32 0.0, %v8484
      %v8486 = vpop.f32.mrb[0].mxu0
      %v8487 = vpop.f32.mrb[0].mxu0
      %v8488 = vadd.f32 0.0, %v8487
      %v8489 = vpop.f32.mrb[0].mxu0
      %8490 = vmatprep.mubr.bf16.mxu0 0
      %8491 = vmatmul.mubr.bf16.gmra.mrb[0].mxu0 %v8205
      %v8492 = vpop.f32.mrb[0].mxu0
      %v8493 = vpop.f32.mrb[0].mxu0
      %v8494 = vpop.f32.mrb[0].mxu0
      %v8495 = vadd.f32 0.0, %v8494
      %v8496 = vpop.f32.mrb[0].mxu0
      %8497 = vmatprep.mubr.bf16.mxu0 0
      %8498 = vmatmul.mubr.bf16.gmra.mrb[0].mxu0 %v8213
      %v8499 = vpop.f32.mrb[0].mxu0
      %v8500 = vadd.f32 0.0, %v8499
      %v8501 = vpop.f32.mrb[0].mxu0
      %v8502 = vpop.f32.mrb[0].mxu0
      %v8503 = vpop.f32.mrb[0].mxu0
      %8504 = vmatprep.mubr.bf16.mxu0 0
      %8505 = vmatmul.mubr.bf16.gmra.mrb[0].mxu0 %v8221
      %v8506 = vpop.f32.mrb[0].mxu0
      %v8507 = vadd.f32 0.0, %v8506
      %v8508 = vpop.f32.mrb[0].mxu0
      %v8509 = vpop.f32.mrb[0].mxu0
      %v8510 = vadd.f32 0.0, %v8509
      %v8511 = vpop.f32.mrb[0].mxu0
      %8512 = vmatprep.mubr.bf16.mxu0 0
      %8513 = vmatmul.mubr.bf16.gmra.mrb[0].mxu0 %v8229
      %v8514 = vpop.f32.mrb[0].mxu0
      %v8515 = vpop.f32.mrb[0].mxu0
      %v8516 = vpop.f32.mrb[0].mxu0
      %v8517 = vadd.f32 0.0, %v8516
      %v8518 = vpop.f32.mrb[0].mxu0
      %8519 = vmatprep.mubr.bf16.mxu0 0
      %8520 = vmatmul.mubr.bf16.gmra.mrb[0].mxu0 %v8237
      %v8521 = vpop.f32.mrb[0].mxu0
      %v8522 = vadd.f32 0.0, %v8521
      %v8523 = vpop.f32.mrb[0].mxu0
      %v8524 = vpop.f32.mrb[0].mxu0
      %v8525 = vpop.f32.mrb[0].mxu0
      %8526 = vmatprep.mubr.bf16.mxu0 0
      %8527 = vmatmul.mubr.bf16.gmra.mrb[0].mxu0 %v8245
      %v8528 = vpop.f32.mrb[0].mxu0
      %v8529 = vadd.f32 0.0, %v8528
      %v8530 = vpop.f32.mrb[0].mxu0
      %v8531 = vpop.f32.mrb[0].mxu0
      %v8532 = vadd.f32 0.0, %v8531
      %v8533 = vpop.f32.mrb[0].mxu0
      %8534 = vmatprep.mubr.bf16.mxu0 0
      %8535 = vmatmul.mubr.bf16.gmra.mrb[0].mxu0 %v8253
      %v8536 = vpop.f32.mrb[0].mxu0
      %v8537 = vpop.f32.mrb[0].mxu0
      %v8538 = vpop.f32.mrb[0].mxu0
      %v8539 = vadd.f32 0.0, %v8538
      %v8540 = vpop.f32.mrb[0].mxu0
      %8541 = vmatprep.mubr.bf16.mxu0 0
      %8542 = vmatmul.mubr.bf16.gmra.mrb[0].mxu0 %v8261
      %v8543 = vpop.f32.mrb[0].mxu0
      %v8544 = vadd.f32 0.0, %v8543
      %v8545 = vpop.f32.mrb[0].mxu0
      %v8546 = vpop.f32.mrb[0].mxu0
      %v8547 = vpop.f32.mrb[0].mxu0
      %8548 = vmatprep.mubr.bf16.mxu0 0
      %8549 = vmatmul.mubr.bf16.gmra.mrb[0].mxu0 %v8269
      %v8550 = vpop.f32.mrb[0].mxu0
      %v8551 = vadd.f32 0.0, %v8550
      %v8552 = vpop.f32.mrb[0].mxu0
      %v8553 = vpop.f32.mrb[0].mxu0
      %v8554 = vadd.f32 0.0, %v8553
      %v8555 = vpop.f32.mrb[0].mxu0
      %8556 = vmatprep.mubr.bf16.mxu0 0
      %8557 = vmatmul.mubr.bf16.gmra.mrb[0].mxu0 %v8277
      %v8558 = vpop.f32.mrb[0].mxu0
      %v8559 = vpop.f32.mrb[0].mxu0
      %v8560 = vpop.f32.mrb[0].mxu0
      %v8561 = vadd.f32 0.0, %v8560
      %v8562 = vpop.f32.mrb[0].mxu0
      %8563 = vmatprep.mubr.bf16.mxu0 0
      %8564 = vmatmul.mubr.bf16.gmra.mrb[0].mxu0 %v8285
      %v8565 = vpop.f32.mrb[0].mxu0
      %v8566 = vadd.f32 0.0, %v8565
      %v8567 = vpop.f32.mrb[0].mxu0
      %v8568 = vpop.f32.mrb[0].mxu0
      %v8569 = vpop.f32.mrb[0].mxu0
      %8570 = vmatprep.mubr.bf16.mxu0 0
      %8571 = vmatmul.mubr.bf16.gmra.mrb[0].mxu0 %v8293
      %v8572 = vpop.f32.mrb[0].mxu0
      %v8573 = vadd.f32 0.0, %v8572
      %v8574 = vpop.f32.mrb[0].mxu0
      %v8575 = vpop.f32.mrb[0].mxu0
      %v8576 = vadd.f32 0.0, %v8575
      %v8577 = vpop.f32.mrb[0].mxu0
      %8578 = vmatprep.mubr.bf16.mxu0 0
      %8579 = vmatmul.mubr.bf16.gmra.mrb[0].mxu0 %v8301
      %v8580 = vpop.f32.mrb[0].mxu0
      %v8581 = vpop.f32.mrb[0].mxu0
      %v8582 = vpop.f32.mrb[0].mxu0
      %v8583 = vadd.f32 0.0, %v8582
      %v8584 = vpop.f32.mrb[0].mxu0
      %8585 = vmatprep.mubr.bf16.mxu0 0
      %8586 = vmatmul.mubr.bf16.gmra.mrb[0].mxu0 %v8309
      %v8587 = vpop.f32.mrb[0].mxu0
      %v8588 = vadd.f32 0.0, %v8587
      %v8589 = vpop.f32.mrb[0].mxu0
      %v8590 = vpop.f32.mrb[0].mxu0
      %v8591 = vpop.f32.mrb[0].mxu0
      %8592 = vmatprep.mubr.bf16.mxu0 0
      %8593 = vmatmul.mubr.bf16.gmra.mrb[0].mxu0 %v8317
      %v8594 = vpop.f32.mrb[0].mxu0
      %v8595 = vadd.f32 0.0, %v8594
      %v8596 = vpop.f32.mrb[0].mxu0
      %v8597 = vpop.f32.mrb[0].mxu0
      %v8598 = vadd.f32 0.0, %v8597
      %v8599 = vpop.f32.mrb[0].mxu0
      %8600 = vmatprep.mubr.bf16.mxu0 0
      %8601 = vmatmul.mubr.bf16.gmra.mrb[0].mxu0 %v8325
      %v8602 = vpop.f32.mrb[0].mxu0
      %v8603 = vpop.f32.mrb[0].mxu0
      %v8604 = vpop.f32.mrb[0].mxu0
      %v8605 = vadd.f32 0.0, %v8604
      %v8606 = vpop.f32.mrb[0].mxu0
      %8607 = vmatprep.mubr.bf16.mxu0 0
      %8608 = vmatmul.mubr.bf16.gmra.mrb[0].mxu0 %v8333
      %v8609 = vpop.f32.mrb[0].mxu0
      %v8610 = vadd.f32 0.0, %v8609
      %v8611 = vpop.f32.mrb[0].mxu0
      %v8612 = vpop.f32.mrb[0].mxu0
      %v8613 = vpop.f32.mrb[0].mxu0
      %8614 = vdwg.mxu0
      %v8615 = vadd.f32 %v7775, %v8441
      %v8616 = vadd.f32 %v7778, %v8444
      %v8617 = vadd.f32 %v7785, %v8451
      %v8618 = vadd.f32 %v7790, %v8456
      %v8619 = vadd.f32 %v7797, %v8463
      %v8620 = vadd.f32 %v7800, %v8466
      %v8621 = vadd.f32 %v7807, %v8473
      %v8622 = vadd.f32 %v7812, %v8478
      %v8623 = vadd.f32 %v7819, %v8485
      %v8624 = vadd.f32 %v7822, %v8488
      %v8625 = vadd.f32 %v7829, %v8495
      %v8626 = vadd.f32 %v7834, %v8500
      %v8627 = vadd.f32 %v7841, %v8507
      %v8628 = vadd.f32 %v7844, %v8510
      %v8629 = vadd.f32 %v7851, %v8517
      %v8630 = vadd.f32 %v7856, %v8522
      %v8631 = vadd.f32 %v7863, %v8529
      %v8632 = vadd.f32 %v7866, %v8532
      %v8633 = vadd.f32 %v7873, %v8539
      %v8634 = vadd.f32 %v7878, %v8544
      %v8635 = vadd.f32 %v7885, %v8551
      %v8636 = vadd.f32 %v7888, %v8554
      %v8637 = vadd.f32 %v7895, %v8561
      %v8638 = vadd.f32 %v7900, %v8566
      %v8639 = vadd.f32 %v7907, %v8573
      %v8640 = vadd.f32 %v7910, %v8576
      %v8641 = vadd.f32 %v7917, %v8583
      %v8642 = vadd.f32 %v7922, %v8588
      %v8643 = vadd.f32 %v7929, %v8595
      %v8644 = vadd.f32 %v7932, %v8598
      %v8645 = vadd.f32 %v7939, %v8605
      %v8646 = vadd.f32 %v7944, %v8610
      %v8647 = vld [vmem:[#allocation2] sm:$0xe]
      %s8648 = scalar_lea.vmem %s3, 128
      %v8649 = vld [vmem:[%s8648] sm:$0xf]
      %v8650 = vld [vmem:[%s8648 + $0x4] sm:$0xf]
      %v8651 = vld [vmem:[%s8648 + $0x8] sm:$0xf]
      %v8652 = vld [vmem:[%s8648 + $0xc] sm:$0xf]
      %v8653 = vld [vmem:[%s8648 + $0x10] sm:$0xf]
      %v8654 = vld [vmem:[%s8648 + $0x14] sm:$0xf]
      %v8655 = vld [vmem:[%s8648 + $0x18] sm:$0xf]
      %v8656 = vld [vmem:[%s8648 + $0x1c] sm:$0xf]
      %v8657 = vld [vmem:[%s8648 + $0x20] sm:$0xf]
      %v8658 = vld [vmem:[%s8648 + $0x24] sm:$0xf]
      %v8659 = vld [vmem:[%s8648 + $0x28] sm:$0xf]
      %v8660 = vld [vmem:[%s8648 + $0x2c] sm:$0xf]
      %v8661 = vld [vmem:[%s8648 + $0x30] sm:$0xf]
      %v8662 = vld [vmem:[%s8648 + $0x34] sm:$0xf]
      %v8663 = vld [vmem:[%s8648 + $0x38] sm:$0xf]
      %v8664 = vld [vmem:[%s8648 + $0x3c] sm:$0xf]
      %v8666 = vunpack.c.l.b16 %v8647
      %v8667 = vpack.c.b16 %v8065, %v8666
      %v8668 = vrot.slane %v8667, 1
      %v8669 = vrot.slane %v8114, 1
      %v8670 = vsel %vm1270, %v8668, %v8669
      %v8671 = vrot.slane %v8115, 1
      %v8672 = vsel %vm1270, %v8669, %v8671
      %v8673 = vrot.slane %v8116, 1
      %v8674 = vsel %vm1270, %v8671, %v8673
      %v8675 = vrot.slane %v8117, 1
      %v8676 = vsel %vm1270, %v8673, %v8675
      %v8677 = vrot.slane %v8118, 1
      %v8678 = vsel %vm1270, %v8675, %v8677
      %v8679 = vrot.slane %v8119, 1
      %v8680 = vsel %vm1270, %v8677, %v8679
      %v8681 = vrot.slane %v8120, 1
      %v8682 = vsel %vm1270, %v8679, %v8681
      %v8683 = vrot.slane %v8121, 1
      %v8684 = vsel %vm1270, %v8681, %v8683
      %v8685 = vrot.slane %v8122, 1
      %v8686 = vsel %vm1270, %v8683, %v8685
      %v8687 = vrot.slane %v8123, 1
      %v8688 = vsel %vm1270, %v8685, %v8687
      %v8689 = vrot.slane %v8124, 1
      %v8690 = vsel %vm1270, %v8687, %v8689
      %v8691 = vrot.slane %v8125, 1
      %v8692 = vsel %vm1270, %v8689, %v8691
      %v8693 = vrot.slane %v8126, 1
      %v8694 = vsel %vm1270, %v8691, %v8693
      %v8695 = vrot.slane %v8127, 1
      %v8696 = vsel %vm1270, %v8693, %v8695
      %v8697 = vrot.slane %v8128, 1
      %v8698 = vsel %vm1270, %v8695, %v8697
      %v8699 = vrot.slane %v8129, 1
      %v8700 = vsel %vm1270, %v8697, %v8699
      %v8701 = vrot.slane %v8130, 1
      %v8702 = vsel %vm1270, %v8699, %v8701
      %v8703 = vrot.slane %v8131, 1
      %v8704 = vsel %vm1270, %v8701, %v8703
      %v8705 = vrot.slane %v8132, 1
      %v8706 = vsel %vm1270, %v8703, %v8705
      %v8707 = vrot.slane %v8133, 1
      %v8708 = vsel %vm1270, %v8705, %v8707
      %v8709 = vrot.slane %v8134, 1
      %v8710 = vsel %vm1270, %v8707, %v8709
      %v8711 = vrot.slane %v8135, 1
      %v8712 = vsel %vm1270, %v8709, %v8711
      %v8713 = vrot.slane %v8136, 1
      %v8714 = vsel %vm1270, %v8711, %v8713
      %v8715 = vrot.slane %v8137, 1
      %v8716 = vsel %vm1270, %v8713, %v8715
      %v8757 = vunpack.c.l.b16 %v8649
      %v8758 = vunpack.c.l.b16 %v8650
      %v8759 = vunpack.c.l.b16 %v8651
      %v8760 = vunpack.c.l.b16 %v8652
      %v8761 = vunpack.c.l.b16 %v8653
      %v8762 = vunpack.c.l.b16 %v8654
      %v8763 = vunpack.c.l.b16 %v8655
      %v8764 = vunpack.c.l.b16 %v8656
      %v8765 = vunpack.c.l.b16 %v8657
      %v8766 = vunpack.c.l.b16 %v8658
      %v8767 = vunpack.c.l.b16 %v8659
      %v8768 = vunpack.c.l.b16 %v8660
      %v8769 = vunpack.c.l.b16 %v8661
      %v8770 = vunpack.c.l.b16 %v8662
      %v8771 = vunpack.c.l.b16 %v8663
      %v8772 = vunpack.c.l.b16 %v8664
      %v8773 = vpack.c.b16 %v8758, %v8757
      %v8774 = vpack.c.b16 %v8760, %v8759
      %v8775 = vpack.c.b16 %v8762, %v8761
      %v8776 = vpack.c.b16 %v8764, %v8763
      %v8777 = vpack.c.b16 %v8766, %v8765
      %v8778 = vpack.c.b16 %v8768, %v8767
      %v8779 = vpack.c.b16 %v8770, %v8769
      %v8780 = vpack.c.b16 %v8772, %v8771
      %8789 = vmatprep.subr.bf16.mxu0 0
      %8790 = vmatpush1.bf16.msra.mxu0 %v8773
      %8791 = vmatprep.subr.bf16.mxu0 0
      %8792 = vmatpush1.bf16.msra.mxu0 %v8774
      %8793 = vmatprep.subr.bf16.mxu0 0
      %8794 = vmatpush1.bf16.msra.mxu0 %v8775
      %8795 = vmatprep.subr.bf16.mxu0 0
      %8796 = vmatpush1.bf16.msra.mxu0 %v8776
      %8797 = vmatprep.subr.bf16.mxu0 0
      %8798 = vmatpush1.bf16.msra.mxu0 %v8777
      %8799 = vmatprep.subr.bf16.mxu0 0
      %8800 = vmatpush1.bf16.msra.mxu0 %v8778
      %8801 = vmatprep.subr.bf16.mxu0 0
      %8802 = vmatpush1.bf16.msra.mxu0 %v8779
      %8803 = vmatprep.subr.bf16.mxu0 0
      %8804 = vmatpush1.bf16.msra.mxu0 %v8780
      %8805 = vmatprep.subr.bf16.mxu0 0
      %8806 = vmatpush1.bf16.msra.mxu0 0
      %8807 = vmatprep.subr.bf16.mxu0 0
      %8808 = vmatpush1.bf16.msra.mxu0 0
      %8809 = vmatprep.subr.bf16.mxu0 0
      %8810 = vmatpush1.bf16.msra.mxu0 0
      %8811 = vmatprep.subr.bf16.mxu0 0
      %8812 = vmatpush1.bf16.msra.mxu0 0
      %8813 = vmatprep.subr.bf16.mxu0 0
      %8814 = vmatpush1.bf16.msra.mxu0 0
      %8815 = vmatprep.subr.bf16.mxu0 0
      %8816 = vmatpush1.bf16.msra.mxu0 0
      %8817 = vmatprep.subr.bf16.mxu0 0
      %8818 = vmatpush1.bf16.msra.mxu0 0
      %8819 = vmatprep.subr.bf16.mxu0 0
      %8820 = vmatpush1.bf16.msra.mxu0 0
      %8821 = vmatprep.mubr.bf16.mxu0 0
      %8822 = vmatmul.mubr.bf16.gmra.mrb[0].mxu0 %v8670
      %v8823 = vpop.f32.mrb[0].mxu0
      %v8824 = vadd.f32 0.0, %v8823
      %v8825 = vpop.f32.mrb[0].mxu0
      %v8826 = vpop.f32.mrb[0].mxu0
      %v8827 = vadd.f32 0.0, %v8826
      %v8828 = vpop.f32.mrb[0].mxu0
      %8829 = vmatprep.mubr.bf16.mxu0 0
      %8830 = vmatmul.mubr.bf16.gmra.mrb[0].mxu0 %v8672
      %v8831 = vpop.f32.mrb[0].mxu0
      %v8832 = vpop.f32.mrb[0].mxu0
      %v8833 = vpop.f32.mrb[0].mxu0
      %v8834 = vadd.f32 0.0, %v8833
      %v8835 = vpop.f32.mrb[0].mxu0
      %8836 = vmatprep.mubr.bf16.mxu0 0
      %8837 = vmatmul.mubr.bf16.gmra.mrb[0].mxu0 %v8674
      %v8838 = vpop.f32.mrb[0].mxu0
      %v8839 = vadd.f32 0.0, %v8838
      %v8840 = vpop.f32.mrb[0].mxu0
      %v8841 = vpop.f32.mrb[0].mxu0
      %v8842 = vpop.f32.mrb[0].mxu0
      %8843 = vmatprep.mubr.bf16.mxu0 0
      %8844 = vmatmul.mubr.bf16.gmra.mrb[0].mxu0 %v8676
      %v8845 = vpop.f32.mrb[0].mxu0
      %v8846 = vadd.f32 0.0, %v8845
      %v8847 = vpop.f32.mrb[0].mxu0
      %v8848 = vpop.f32.mrb[0].mxu0
      %v8849 = vadd.f32 0.0, %v8848
      %v8850 = vpop.f32.mrb[0].mxu0
      %8851 = vmatprep.mubr.bf16.mxu0 0
      %8852 = vmatmul.mubr.bf16.gmra.mrb[0].mxu0 %v8678
      %v8853 = vpop.f32.mrb[0].mxu0
      %v8854 = vpop.f32.mrb[0].mxu0
      %v8855 = vpop.f32.mrb[0].mxu0
      %v8856 = vadd.f32 0.0, %v8855
      %v8857 = vpop.f32.mrb[0].mxu0
      %8858 = vmatprep.mubr.bf16.mxu0 0
      %8859 = vmatmul.mubr.bf16.gmra.mrb[0].mxu0 %v8680
      %v8860 = vpop.f32.mrb[0].mxu0
      %v8861 = vadd.f32 0.0, %v8860
      %v8862 = vpop.f32.mrb[0].mxu0
      %v8863 = vpop.f32.mrb[0].mxu0
      %v8864 = vpop.f32.mrb[0].mxu0
      %8865 = vmatprep.mubr.bf16.mxu0 0
      %8866 = vmatmul.mubr.bf16.gmra.mrb[0].mxu0 %v8682
      %v8867 = vpop.f32.mrb[0].mxu0
      %v8868 = vadd.f32 0.0, %v8867
      %v8869 = vpop.f32.mrb[0].mxu0
      %v8870 = vpop.f32.mrb[0].mxu0
      %v8871 = vadd.f32 0.0, %v8870
      %v8872 = vpop.f32.mrb[0].mxu0
      %8873 = vmatprep.mubr.bf16.mxu0 0
      %8874 = vmatmul.mubr.bf16.gmra.mrb[0].mxu0 %v8684
      %v8875 = vpop.f32.mrb[0].mxu0
      %v8876 = vpop.f32.mrb[0].mxu0
      %v8877 = vpop.f32.mrb[0].mxu0
      %v8878 = vadd.f32 0.0, %v8877
      %v8879 = vpop.f32.mrb[0].mxu0
      %8880 = vmatprep.mubr.bf16.mxu0 0
      %8881 = vmatmul.mubr.bf16.gmra.mrb[0].mxu0 %v8686
      %v8882 = vpop.f32.mrb[0].mxu0
      %v8883 = vadd.f32 0.0, %v8882
      %v8884 = vpop.f32.mrb[0].mxu0
      %v8885 = vpop.f32.mrb[0].mxu0
      %v8886 = vpop.f32.mrb[0].mxu0
      %8887 = vmatprep.mubr.bf16.mxu0 0
      %8888 = vmatmul.mubr.bf16.gmra.mrb[0].mxu0 %v8688
      %v8889 = vpop.f32.mrb[0].mxu0
      %v8890 = vadd.f32 0.0, %v8889
      %v8891 = vpop.f32.mrb[0].mxu0
      %v8892 = vpop.f32.mrb[0].mxu0
      %v8893 = vadd.f32 0.0, %v8892
      %v8894 = vpop.f32.mrb[0].mxu0
      %8895 = vmatprep.mubr.bf16.mxu0 0
      %8896 = vmatmul.mubr.bf16.gmra.mrb[0].mxu0 %v8690
      %v8897 = vpop.f32.mrb[0].mxu0
      %v8898 = vpop.f32.mrb[0].mxu0
      %v8899 = vpop.f32.mrb[0].mxu0
      %v8900 = vadd.f32 0.0, %v8899
      %v8901 = vpop.f32.mrb[0].mxu0
      %8902 = vmatprep.mubr.bf16.mxu0 0
      %8903 = vmatmul.mubr.bf16.gmra.mrb[0].mxu0 %v8692
      %v8904 = vpop.f32.mrb[0].mxu0
      %v8905 = vadd.f32 0.0, %v8904
      %v8906 = vpop.f32.mrb[0].mxu0
      %v8907 = vpop.f32.mrb[0].mxu0
      %v8908 = vpop.f32.mrb[0].mxu0
      %8909 = vmatprep.mubr.bf16.mxu0 0
      %8910 = vmatmul.mubr.bf16.gmra.mrb[0].mxu0 %v8694
      %v8911 = vpop.f32.mrb[0].mxu0
      %v8912 = vadd.f32 0.0, %v8911
      %v8913 = vpop.f32.mrb[0].mxu0
      %v8914 = vpop.f32.mrb[0].mxu0
      %v8915 = vadd.f32 0.0, %v8914
      %v8916 = vpop.f32.mrb[0].mxu0
      %8917 = vmatprep.mubr.bf16.mxu0 0
      %8918 = vmatmul.mubr.bf16.gmra.mrb[0].mxu0 %v8696
      %v8919 = vpop.f32.mrb[0].mxu0
      %v8920 = vpop.f32.mrb[0].mxu0
      %v8921 = vpop.f32.mrb[0].mxu0
      %v8922 = vadd.f32 0.0, %v8921
      %v8923 = vpop.f32.mrb[0].mxu0
      %8924 = vmatprep.mubr.bf16.mxu0 0
      %8925 = vmatmul.mubr.bf16.gmra.mrb[0].mxu0 %v8698
      %v8926 = vpop.f32.mrb[0].mxu0
      %v8927 = vadd.f32 0.0, %v8926
      %v8928 = vpop.f32.mrb[0].mxu0
      %v8929 = vpop.f32.mrb[0].mxu0
      %v8930 = vpop.f32.mrb[0].mxu0
      %8931 = vmatprep.mubr.bf16.mxu0 0
      %8932 = vmatmul.mubr.bf16.gmra.mrb[0].mxu0 %v8700
      %v8933 = vpop.f32.mrb[0].mxu0
      %v8934 = vadd.f32 0.0, %v8933
      %v8935 = vpop.f32.mrb[0].mxu0
      %v8936 = vpop.f32.mrb[0].mxu0
      %v8937 = vadd.f32 0.0, %v8936
      %v8938 = vpop.f32.mrb[0].mxu0
      %8939 = vmatprep.mubr.bf16.mxu0 0
      %8940 = vmatmul.mubr.bf16.gmra.mrb[0].mxu0 %v8702
      %v8941 = vpop.f32.mrb[0].mxu0
      %v8942 = vpop.f32.mrb[0].mxu0
      %v8943 = vpop.f32.mrb[0].mxu0
      %v8944 = vadd.f32 0.0, %v8943
      %v8945 = vpop.f32.mrb[0].mxu0
      %8946 = vmatprep.mubr.bf16.mxu0 0
      %8947 = vmatmul.mubr.bf16.gmra.mrb[0].mxu0 %v8704
      %v8948 = vpop.f32.mrb[0].mxu0
      %v8949 = vadd.f32 0.0, %v8948
      %v8950 = vpop.f32.mrb[0].mxu0
      %v8951 = vpop.f32.mrb[0].mxu0
      %v8952 = vpop.f32.mrb[0].mxu0
      %8953 = vmatprep.mubr.bf16.mxu0 0
      %8954 = vmatmul.mubr.bf16.gmra.mrb[0].mxu0 %v8706
      %v8955 = vpop.f32.mrb[0].mxu0
      %v8956 = vadd.f32 0.0, %v8955
      %v8957 = vpop.f32.mrb[0].mxu0
      %v8958 = vpop.f32.mrb[0].mxu0
      %v8959 = vadd.f32 0.0, %v8958
      %v8960 = vpop.f32.mrb[0].mxu0
      %8961 = vmatprep.mubr.bf16.mxu0 0
      %8962 = vmatmul.mubr.bf16.gmra.mrb[0].mxu0 %v8708
      %v8963 = vpop.f32.mrb[0].mxu0
      %v8964 = vpop.f32.mrb[0].mxu0
      %v8965 = vpop.f32.mrb[0].mxu0
      %v8966 = vadd.f32 0.0, %v8965
      %v8967 = vpop.f32.mrb[0].mxu0
      %8968 = vmatprep.mubr.bf16.mxu0 0
      %8969 = vmatmul.mubr.bf16.gmra.mrb[0].mxu0 %v8710
      %v8970 = vpop.f32.mrb[0].mxu0
      %v8971 = vadd.f32 0.0, %v8970
      %v8972 = vpop.f32.mrb[0].mxu0
      %v8973 = vpop.f32.mrb[0].mxu0
      %v8974 = vpop.f32.mrb[0].mxu0
      %8975 = vmatprep.mubr.bf16.mxu0 0
      %8976 = vmatmul.mubr.bf16.gmra.mrb[0].mxu0 %v8712
      %v8977 = vpop.f32.mrb[0].mxu0
      %v8978 = vadd.f32 0.0, %v8977
      %v8979 = vpop.f32.mrb[0].mxu0
      %v8980 = vpop.f32.mrb[0].mxu0
      %v8981 = vadd.f32 0.0, %v8980
      %v8982 = vpop.f32.mrb[0].mxu0
      %8983 = vmatprep.mubr.bf16.mxu0 0
      %8984 = vmatmul.mubr.bf16.gmra.mrb[0].mxu0 %v8714
      %v8985 = vpop.f32.mrb[0].mxu0
      %v8986 = vpop.f32.mrb[0].mxu0
      %v8987 = vpop.f32.mrb[0].mxu0
      %v8988 = vadd.f32 0.0, %v8987
      %v8989 = vpop.f32.mrb[0].mxu0
      %8990 = vmatprep.mubr.bf16.mxu0 0
      %8991 = vmatmul.mubr.bf16.gmra.mrb[0].mxu0 %v8716
      %v8992 = vpop.f32.mrb[0].mxu0
      %v8993 = vadd.f32 0.0, %v8992
      %v8994 = vpop.f32.mrb[0].mxu0
      %v8995 = vpop.f32.mrb[0].mxu0
      %v8996 = vpop.f32.mrb[0].mxu0
      %8997 = vdwg.mxu0
      %v8998 = vadd.f32 %v8615, %v8824
      %v8999 = vadd.f32 %v8616, %v8827
      %v9000 = vadd.f32 %v8617, %v8834
      %v9001 = vadd.f32 %v8618, %v8839
      %v9002 = vadd.f32 %v8619, %v8846
      %v9003 = vadd.f32 %v8620, %v8849
      %v9004 = vadd.f32 %v8621, %v8856
      %v9005 = vadd.f32 %v8622, %v8861
      %v9006 = vadd.f32 %v8623, %v8868
      %v9007 = vadd.f32 %v8624, %v8871
      %v9008 = vadd.f32 %v8625, %v8878
      %v9009 = vadd.f32 %v8626, %v8883
      %v9010 = vadd.f32 %v8627, %v8890
      %v9011 = vadd.f32 %v8628, %v8893
      %v9012 = vadd.f32 %v8629, %v8900
      %v9013 = vadd.f32 %v8630, %v8905
      %v9014 = vadd.f32 %v8631, %v8912
      %v9015 = vadd.f32 %v8632, %v8915
      %v9016 = vadd.f32 %v8633, %v8922
      %v9017 = vadd.f32 %v8634, %v8927
      %v9018 = vadd.f32 %v8635, %v8934
      %v9019 = vadd.f32 %v8636, %v8937
      %v9020 = vadd.f32 %v8637, %v8944
      %v9021 = vadd.f32 %v8638, %v8949
      %v9022 = vadd.f32 %v8639, %v8956
      %v9023 = vadd.f32 %v8640, %v8959
      %v9024 = vadd.f32 %v8641, %v8966
      %v9025 = vadd.f32 %v8642, %v8971
      %v9026 = vadd.f32 %v8643, %v8978
      %v9027 = vadd.f32 %v8644, %v8981
      %v9028 = vadd.f32 %v8645, %v8988
      %v9029 = vadd.f32 %v8646, %v8993
      %v9030 = vld [vmem:[#allocation2 + $0xc] sm:$0xf]
      %v9031 = vld [vmem:[#allocation2 + $0x10] sm:$0xf]
      %v9032 = vld [vmem:[#allocation2 + $0x14] sm:$0xf]
      %v9033 = vld [vmem:[#allocation2 + $0x18] sm:$0xf]
      %v9034 = vld [vmem:[#allocation2 + $0x1c] sm:$0xf]
      %v9035 = vld [vmem:[#allocation2 + $0x20] sm:$0xf]
      %v9036 = vld [vmem:[#allocation2 + $0x24] sm:$0xf]
      %v9037 = vld [vmem:[#allocation2 + $0x28] sm:$0xf]
      %v9038 = vld [vmem:[#allocation2 + $0x2c] sm:$0xf]
      %v9039 = vld [vmem:[#allocation2 + $0x30] sm:$0xf]
      %v9040 = vld [vmem:[#allocation2 + $0x34] sm:$0xf]
      %v9041 = vld [vmem:[#allocation2 + $0x38] sm:$0xf]
      %v9042 = vld [vmem:[#allocation2 + $0x3c] sm:$0xf]
      %v9043 = vld [vmem:[#allocation2 + $0x40] sm:$0xf]
      %v9044 = vld [vmem:[#allocation2 + $0x44] sm:$0xf]
      %v9045 = vld [vmem:[#allocation2 + $0x48] sm:$0xf]
      %v9046 = vld [vmem:[#allocation2 + $0x4c] sm:$0xf]
      %v9047 = vld [vmem:[#allocation2 + $0x50] sm:$0xf]
      %v9048 = vld [vmem:[#allocation2 + $0x54] sm:$0xf]
      %v9049 = vld [vmem:[#allocation2 + $0x58] sm:$0xf]
      %v9050 = vld [vmem:[#allocation2 + $0x5c] sm:$0xf]
      %v9051 = vld [vmem:[#allocation2 + $0x60] sm:$0xf]
      %v9052 = vld [vmem:[#allocation2 + $0x64] sm:$0xf]
      %v9053 = vld [vmem:[#allocation2 + $0x68] sm:$0xf]
      %v9054 = vld [vmem:[#allocation2 + $0x6c] sm:$0xf]
      %v9055 = vld [vmem:[#allocation2 + $0x70] sm:$0xf]
      %v9056 = vld [vmem:[#allocation2 + $0x74] sm:$0xf]
      %v9057 = vld [vmem:[#allocation2 + $0x78] sm:$0xf]
      %v9058 = vld [vmem:[#allocation2 + $0x7c] sm:$0xf]
      %v9059 = vld [vmem:[#allocation2 + $0x80] sm:$0xf]
      %v9060 = vld [vmem:[#allocation2 + $0x84] sm:$0xf]
      %v9061 = vld [vmem:[#allocation2 + $0x88] sm:$0xf]
      %v9062 = vld [vmem:[#allocation2 + $0x8c] sm:$0xf]
      %v9063 = vld [vmem:[#allocation2 + $0x90] sm:$0xf]
      %v9064 = vld [vmem:[#allocation2 + $0x94] sm:$0xf]
      %v9065 = vld [vmem:[#allocation2 + $0x98] sm:$0xf]
      %v9066 = vld [vmem:[#allocation2 + $0x9c] sm:$0xf]
      %v9067 = vld [vmem:[#allocation2 + $0xa0] sm:$0xf]
      %v9068 = vld [vmem:[#allocation2 + $0xa4] sm:$0xf]
      %v9069 = vld [vmem:[#allocation2 + $0xa8] sm:$0xf]
      %v9070 = vld [vmem:[#allocation2 + $0xac] sm:$0xf]
      %v9071 = vld [vmem:[#allocation2 + $0xb0] sm:$0xf]
      %v9072 = vld [vmem:[#allocation2 + $0xb4] sm:$0xf]
      %v9073 = vld [vmem:[#allocation2 + $0xb8] sm:$0xf]
      %v9074 = vld [vmem:[#allocation2 + $0xbc] sm:$0xf]
      %v9075 = vld [vmem:[#allocation2 + $0xc0] sm:$0xf]
      %v9076 = vld [vmem:[#allocation2 + $0xc4] sm:$0xf]
      %v9077 = vld [vmem:[#allocation2 + $0xc8] sm:$0xf]
      %s9078 = scalar_lea.vmem %s3, 192
      %v9079 = vld [vmem:[%s9078] sm:$0xf]
      %v9080 = vld [vmem:[%s9078 + $0x4] sm:$0xf]
      %v9081 = vld [vmem:[%s9078 + $0x8] sm:$0xf]
      %v9082 = vld [vmem:[%s9078 + $0xc] sm:$0xf]
      %v9083 = vld [vmem:[%s9078 + $0x10] sm:$0xf]
      %v9084 = vld [vmem:[%s9078 + $0x14] sm:$0xf]
      %v9085 = vld [vmem:[%s9078 + $0x18] sm:$0xf]
      %v9086 = vld [vmem:[%s9078 + $0x1c] sm:$0xf]
      %v9087 = vld [vmem:[%s9078 + $0x20] sm:$0xf]
      %v9088 = vld [vmem:[%s9078 + $0x24] sm:$0xf]
      %v9089 = vld [vmem:[%s9078 + $0x28] sm:$0xf]
      %v9090 = vld [vmem:[%s9078 + $0x2c] sm:$0xf]
      %v9091 = vld [vmem:[%s9078 + $0x30] sm:$0xf]
      %v9092 = vld [vmem:[%s9078 + $0x34] sm:$0xf]
      %v9093 = vld [vmem:[%s9078 + $0x38] sm:$0xf]
      %v9094 = vld [vmem:[%s9078 + $0x3c] sm:$0xf]
      %v9143 = vunpack.c.l.b16 %v9030
      %v9144 = vunpack.c.l.b16 %v9031
      %v9145 = vunpack.c.l.b16 %v9032
      %v9146 = vunpack.c.l.b16 %v9033
      %v9147 = vunpack.c.l.b16 %v9034
      %v9148 = vunpack.c.l.b16 %v9035
      %v9149 = vunpack.c.l.b16 %v9036
      %v9150 = vunpack.c.l.b16 %v9037
      %v9151 = vunpack.c.l.b16 %v9038
      %v9152 = vunpack.c.l.b16 %v9039
      %v9153 = vunpack.c.l.b16 %v9040
      %v9154 = vunpack.c.l.b16 %v9041
      %v9155 = vunpack.c.l.b16 %v9042
      %v9156 = vunpack.c.l.b16 %v9043
      %v9157 = vunpack.c.l.b16 %v9044
      %v9158 = vunpack.c.l.b16 %v9045
      %v9159 = vunpack.c.l.b16 %v9046
      %v9160 = vunpack.c.l.b16 %v9047
      %v9161 = vunpack.c.l.b16 %v9048
      %v9162 = vunpack.c.l.b16 %v9049
      %v9163 = vunpack.c.l.b16 %v9050
      %v9164 = vunpack.c.l.b16 %v9051
      %v9165 = vunpack.c.l.b16 %v9052
      %v9166 = vunpack.c.l.b16 %v9053
      %v9167 = vunpack.c.l.b16 %v9054
      %v9168 = vunpack.c.l.b16 %v9055
      %v9169 = vunpack.c.l.b16 %v9056
      %v9170 = vunpack.c.l.b16 %v9057
      %v9171 = vunpack.c.l.b16 %v9058
      %v9172 = vunpack.c.l.b16 %v9059
      %v9173 = vunpack.c.l.b16 %v9060
      %v9174 = vunpack.c.l.b16 %v9061
      %v9175 = vunpack.c.l.b16 %v9062
      %v9176 = vunpack.c.l.b16 %v9063
      %v9177 = vunpack.c.l.b16 %v9064
      %v9178 = vunpack.c.l.b16 %v9065
      %v9179 = vunpack.c.l.b16 %v9066
      %v9180 = vunpack.c.l.b16 %v9067
      %v9181 = vunpack.c.l.b16 %v9068
      %v9182 = vunpack.c.l.b16 %v9069
      %v9183 = vunpack.c.l.b16 %v9070
      %v9184 = vunpack.c.l.b16 %v9071
      %v9185 = vunpack.c.l.b16 %v9072
      %v9186 = vunpack.c.l.b16 %v9073
      %v9187 = vunpack.c.l.b16 %v9074
      %v9188 = vunpack.c.l.b16 %v9075
      %v9189 = vunpack.c.l.b16 %v9076
      %v9190 = vunpack.c.l.b16 %v9077
      %v9191 = vpack.c.b16 %v9144, %v9143
      %v9192 = vpack.c.b16 %v9146, %v9145
      %v9193 = vpack.c.b16 %v9148, %v9147
      %v9194 = vpack.c.b16 %v9150, %v9149
      %v9195 = vpack.c.b16 %v9152, %v9151
      %v9196 = vpack.c.b16 %v9154, %v9153
      %v9197 = vpack.c.b16 %v9156, %v9155
      %v9198 = vpack.c.b16 %v9158, %v9157
      %v9199 = vpack.c.b16 %v9160, %v9159
      %v9200 = vpack.c.b16 %v9162, %v9161
      %v9201 = vpack.c.b16 %v9164, %v9163
      %v9202 = vpack.c.b16 %v9166, %v9165
      %v9203 = vpack.c.b16 %v9168, %v9167
      %v9204 = vpack.c.b16 %v9170, %v9169
      %v9205 = vpack.c.b16 %v9172, %v9171
      %v9206 = vpack.c.b16 %v9174, %v9173
      %v9207 = vpack.c.b16 %v9176, %v9175
      %v9208 = vpack.c.b16 %v9178, %v9177
      %v9209 = vpack.c.b16 %v9180, %v9179
      %v9210 = vpack.c.b16 %v9182, %v9181
      %v9211 = vpack.c.b16 %v9184, %v9183
      %v9212 = vpack.c.b16 %v9186, %v9185
      %v9213 = vpack.c.b16 %v9188, %v9187
      %v9214 = vpack.c.b16 %v9190, %v9189
      %v9255 = vunpack.c.l.b16 %v9079
      %v9256 = vunpack.c.l.b16 %v9080
      %v9257 = vunpack.c.l.b16 %v9081
      %v9258 = vunpack.c.l.b16 %v9082
      %v9259 = vunpack.c.l.b16 %v9083
      %v9260 = vunpack.c.l.b16 %v9084
      %v9261 = vunpack.c.l.b16 %v9085
      %v9262 = vunpack.c.l.b16 %v9086
      %v9263 = vunpack.c.l.b16 %v9087
      %v9264 = vunpack.c.l.b16 %v9088
      %v9265 = vunpack.c.l.b16 %v9089
      %v9266 = vunpack.c.l.b16 %v9090
      %v9267 = vunpack.c.l.b16 %v9091
      %v9268 = vunpack.c.l.b16 %v9092
      %v9269 = vunpack.c.l.b16 %v9093
      %v9270 = vunpack.c.l.b16 %v9094
      %v9271 = vpack.c.b16 %v9256, %v9255
      %v9272 = vpack.c.b16 %v9258, %v9257
      %v9273 = vpack.c.b16 %v9260, %v9259
      %v9274 = vpack.c.b16 %v9262, %v9261
      %v9275 = vpack.c.b16 %v9264, %v9263
      %v9276 = vpack.c.b16 %v9266, %v9265
      %v9277 = vpack.c.b16 %v9268, %v9267
      %v9278 = vpack.c.b16 %v9270, %v9269
      %9287 = vmatprep.subr.bf16.mxu0 0
      %9288 = vmatpush1.bf16.msra.mxu0 %v9271
      %9289 = vmatprep.subr.bf16.mxu0 0
      %9290 = vmatpush1.bf16.msra.mxu0 %v9272
      %9291 = vmatprep.subr.bf16.mxu0 0
      %9292 = vmatpush1.bf16.msra.mxu0 %v9273
      %9293 = vmatprep.subr.bf16.mxu0 0
      %9294 = vmatpush1.bf16.msra.mxu0 %v9274
      %9295 = vmatprep.subr.bf16.mxu0 0
      %9296 = vmatpush1.bf16.msra.mxu0 %v9275
      %9297 = vmatprep.subr.bf16.mxu0 0
      %9298 = vmatpush1.bf16.msra.mxu0 %v9276
      %9299 = vmatprep.subr.bf16.mxu0 0
      %9300 = vmatpush1.bf16.msra.mxu0 %v9277
      %9301 = vmatprep.subr.bf16.mxu0 0
      %9302 = vmatpush1.bf16.msra.mxu0 %v9278
      %9303 = vmatprep.subr.bf16.mxu0 0
      %9304 = vmatpush1.bf16.msra.mxu0 0
      %9305 = vmatprep.subr.bf16.mxu0 0
      %9306 = vmatpush1.bf16.msra.mxu0 0
      %9307 = vmatprep.subr.bf16.mxu0 0
      %9308 = vmatpush1.bf16.msra.mxu0 0
      %9309 = vmatprep.subr.bf16.mxu0 0
      %9310 = vmatpush1.bf16.msra.mxu0 0
      %9311 = vmatprep.subr.bf16.mxu0 0
      %9312 = vmatpush1.bf16.msra.mxu0 0
      %9313 = vmatprep.subr.bf16.mxu0 0
      %9314 = vmatpush1.bf16.msra.mxu0 0
      %9315 = vmatprep.subr.bf16.mxu0 0
      %9316 = vmatpush1.bf16.msra.mxu0 0
      %9317 = vmatprep.subr.bf16.mxu0 0
      %9318 = vmatpush1.bf16.msra.mxu0 0
      %9319 = vmatprep.mubr.bf16.mxu0 0
      %9320 = vmatmul.mubr.bf16.gmra.mrb[0].mxu0 %v9191
      %v9321 = vpop.f32.mrb[0].mxu0
      %v9322 = vadd.f32 0.0, %v9321
      %v9323 = vpop.f32.mrb[0].mxu0
      %v9324 = vpop.f32.mrb[0].mxu0
      %v9325 = vadd.f32 0.0, %v9324
      %v9326 = vpop.f32.mrb[0].mxu0
      %9327 = vmatprep.mubr.bf16.mxu0 0
      %9328 = vmatmul.mubr.bf16.gmra.mrb[0].mxu0 %v9192
      %v9329 = vpop.f32.mrb[0].mxu0
      %v9330 = vpop.f32.mrb[0].mxu0
      %v9331 = vpop.f32.mrb[0].mxu0
      %v9332 = vadd.f32 0.0, %v9331
      %v9333 = vpop.f32.mrb[0].mxu0
      %9334 = vmatprep.mubr.bf16.mxu0 0
      %9335 = vmatmul.mubr.bf16.gmra.mrb[0].mxu0 %v9193
      %v9336 = vpop.f32.mrb[0].mxu0
      %v9337 = vadd.f32 0.0, %v9336
      %v9338 = vpop.f32.mrb[0].mxu0
      %v9339 = vpop.f32.mrb[0].mxu0
      %v9340 = vpop.f32.mrb[0].mxu0
      %9341 = vmatprep.mubr.bf16.mxu0 0
      %9342 = vmatmul.mubr.bf16.gmra.mrb[0].mxu0 %v9194
      %v9343 = vpop.f32.mrb[0].mxu0
      %v9344 = vadd.f32 0.0, %v9343
      %v9345 = vpop.f32.mrb[0].mxu0
      %v9346 = vpop.f32.mrb[0].mxu0
      %v9347 = vadd.f32 0.0, %v9346
      %v9348 = vpop.f32.mrb[0].mxu0
      %9349 = vmatprep.mubr.bf16.mxu0 0
      %9350 = vmatmul.mubr.bf16.gmra.mrb[0].mxu0 %v9195
      %v9351 = vpop.f32.mrb[0].mxu0
      %v9352 = vpop.f32.mrb[0].mxu0
      %v9353 = vpop.f32.mrb[0].mxu0
      %v9354 = vadd.f32 0.0, %v9353
      %v9355 = vpop.f32.mrb[0].mxu0
      %9356 = vmatprep.mubr.bf16.mxu0 0
      %9357 = vmatmul.mubr.bf16.gmra.mrb[0].mxu0 %v9196
      %v9358 = vpop.f32.mrb[0].mxu0
      %v9359 = vadd.f32 0.0, %v9358
      %v9360 = vpop.f32.mrb[0].mxu0
      %v9361 = vpop.f32.mrb[0].mxu0
      %v9362 = vpop.f32.mrb[0].mxu0
      %9363 = vmatprep.mubr.bf16.mxu0 0
      %9364 = vmatmul.mubr.bf16.gmra.mrb[0].mxu0 %v9197
      %v9365 = vpop.f32.mrb[0].mxu0
      %v9366 = vadd.f32 0.0, %v9365
      %v9367 = vpop.f32.mrb[0].mxu0
      %v9368 = vpop.f32.mrb[0].mxu0
      %v9369 = vadd.f32 0.0, %v9368
      %v9370 = vpop.f32.mrb[0].mxu0
      %9371 = vmatprep.mubr.bf16.mxu0 0
      %9372 = vmatmul.mubr.bf16.gmra.mrb[0].mxu0 %v9198
      %v9373 = vpop.f32.mrb[0].mxu0
      %v9374 = vpop.f32.mrb[0].mxu0
      %v9375 = vpop.f32.mrb[0].mxu0
      %v9376 = vadd.f32 0.0, %v9375
      %v9377 = vpop.f32.mrb[0].mxu0
      %9378 = vmatprep.mubr.bf16.mxu0 0
      %9379 = vmatmul.mubr.bf16.gmra.mrb[0].mxu0 %v9199
      %v9380 = vpop.f32.mrb[0].mxu0
      %v9381 = vadd.f32 0.0, %v9380
      %v9382 = vpop.f32.mrb[0].mxu0
      %v9383 = vpop.f32.mrb[0].mxu0
      %v9384 = vpop.f32.mrb[0].mxu0
      %9385 = vmatprep.mubr.bf16.mxu0 0
      %9386 = vmatmul.mubr.bf16.gmra.mrb[0].mxu0 %v9200
      %v9387 = vpop.f32.mrb[0].mxu0
      %v9388 = vadd.f32 0.0, %v9387
      %v9389 = vpop.f32.mrb[0].mxu0
      %v9390 = vpop.f32.mrb[0].mxu0
      %v9391 = vadd.f32 0.0, %v9390
      %v9392 = vpop.f32.mrb[0].mxu0
      %9393 = vmatprep.mubr.bf16.mxu0 0
      %9394 = vmatmul.mubr.bf16.gmra.mrb[0].mxu0 %v9201
      %v9395 = vpop.f32.mrb[0].mxu0
      %v9396 = vpop.f32.mrb[0].mxu0
      %v9397 = vpop.f32.mrb[0].mxu0
      %v9398 = vadd.f32 0.0, %v9397
      %v9399 = vpop.f32.mrb[0].mxu0
      %9400 = vmatprep.mubr.bf16.mxu0 0
      %9401 = vmatmul.mubr.bf16.gmra.mrb[0].mxu0 %v9202
      %v9402 = vpop.f32.mrb[0].mxu0
      %v9403 = vadd.f32 0.0, %v9402
      %v9404 = vpop.f32.mrb[0].mxu0
      %v9405 = vpop.f32.mrb[0].mxu0
      %v9406 = vpop.f32.mrb[0].mxu0
      %9407 = vmatprep.mubr.bf16.mxu0 0
      %9408 = vmatmul.mubr.bf16.gmra.mrb[0].mxu0 %v9203
      %v9409 = vpop.f32.mrb[0].mxu0
      %v9410 = vadd.f32 0.0, %v9409
      %v9411 = vpop.f32.mrb[0].mxu0
      %v9412 = vpop.f32.mrb[0].mxu0
      %v9413 = vadd.f32 0.0, %v9412
      %v9414 = vpop.f32.mrb[0].mxu0
      %9415 = vmatprep.mubr.bf16.mxu0 0
      %9416 = vmatmul.mubr.bf16.gmra.mrb[0].mxu0 %v9204
      %v9417 = vpop.f32.mrb[0].mxu0
      %v9418 = vpop.f32.mrb[0].mxu0
      %v9419 = vpop.f32.mrb[0].mxu0
      %v9420 = vadd.f32 0.0, %v9419
      %v9421 = vpop.f32.mrb[0].mxu0
      %9422 = vmatprep.mubr.bf16.mxu0 0
      %9423 = vmatmul.mubr.bf16.gmra.mrb[0].mxu0 %v9205
      %v9424 = vpop.f32.mrb[0].mxu0
      %v9425 = vadd.f32 0.0, %v9424
      %v9426 = vpop.f32.mrb[0].mxu0
      %v9427 = vpop.f32.mrb[0].mxu0
      %v9428 = vpop.f32.mrb[0].mxu0
      %9429 = vmatprep.mubr.bf16.mxu0 0
      %9430 = vmatmul.mubr.bf16.gmra.mrb[0].mxu0 %v9206
      %v9431 = vpop.f32.mrb[0].mxu0
      %v9432 = vadd.f32 0.0, %v9431
      %v9433 = vpop.f32.mrb[0].mxu0
      %v9434 = vpop.f32.mrb[0].mxu0
      %v9435 = vadd.f32 0.0, %v9434
      %v9436 = vpop.f32.mrb[0].mxu0
      %9437 = vmatprep.mubr.bf16.mxu0 0
      %9438 = vmatmul.mubr.bf16.gmra.mrb[0].mxu0 %v9207
      %v9439 = vpop.f32.mrb[0].mxu0
      %v9440 = vpop.f32.mrb[0].mxu0
      %v9441 = vpop.f32.mrb[0].mxu0
      %v9442 = vadd.f32 0.0, %v9441
      %v9443 = vpop.f32.mrb[0].mxu0
      %9444 = vmatprep.mubr.bf16.mxu0 0
      %9445 = vmatmul.mubr.bf16.gmra.mrb[0].mxu0 %v9208
      %v9446 = vpop.f32.mrb[0].mxu0
      %v9447 = vadd.f32 0.0, %v9446
      %v9448 = vpop.f32.mrb[0].mxu0
      %v9449 = vpop.f32.mrb[0].mxu0
      %v9450 = vpop.f32.mrb[0].mxu0
      %9451 = vmatprep.mubr.bf16.mxu0 0
      %9452 = vmatmul.mubr.bf16.gmra.mrb[0].mxu0 %v9209
      %v9453 = vpop.f32.mrb[0].mxu0
      %v9454 = vadd.f32 0.0, %v9453
      %v9455 = vpop.f32.mrb[0].mxu0
      %v9456 = vpop.f32.mrb[0].mxu0
      %v9457 = vadd.f32 0.0, %v9456
      %v9458 = vpop.f32.mrb[0].mxu0
      %9459 = vmatprep.mubr.bf16.mxu0 0
      %9460 = vmatmul.mubr.bf16.gmra.mrb[0].mxu0 %v9210
      %v9461 = vpop.f32.mrb[0].mxu0
      %v9462 = vpop.f32.mrb[0].mxu0
      %v9463 = vpop.f32.mrb[0].mxu0
      %v9464 = vadd.f32 0.0, %v9463
      %v9465 = vpop.f32.mrb[0].mxu0
      %9466 = vmatprep.mubr.bf16.mxu0 0
      %9467 = vmatmul.mubr.bf16.gmra.mrb[0].mxu0 %v9211
      %v9468 = vpop.f32.mrb[0].mxu0
      %v9469 = vadd.f32 0.0, %v9468
      %v9470 = vpop.f32.mrb[0].mxu0
      %v9471 = vpop.f32.mrb[0].mxu0
      %v9472 = vpop.f32.mrb[0].mxu0
      %9473 = vmatprep.mubr.bf16.mxu0 0
      %9474 = vmatmul.mubr.bf16.gmra.mrb[0].mxu0 %v9212
      %v9475 = vpop.f32.mrb[0].mxu0
      %v9476 = vadd.f32 0.0, %v9475
      %v9477 = vpop.f32.mrb[0].mxu0
      %v9478 = vpop.f32.mrb[0].mxu0
      %v9479 = vadd.f32 0.0, %v9478
      %v9480 = vpop.f32.mrb[0].mxu0
      %9481 = vmatprep.mubr.bf16.mxu0 0
      %9482 = vmatmul.mubr.bf16.gmra.mrb[0].mxu0 %v9213
      %v9483 = vpop.f32.mrb[0].mxu0
      %v9484 = vpop.f32.mrb[0].mxu0
      %v9485 = vpop.f32.mrb[0].mxu0
      %v9486 = vadd.f32 0.0, %v9485
      %v9487 = vpop.f32.mrb[0].mxu0
      %9488 = vmatprep.mubr.bf16.mxu0 0
      %9489 = vmatmul.mubr.bf16.gmra.mrb[0].mxu0 %v9214
      %v9490 = vpop.f32.mrb[0].mxu0
      %v9491 = vadd.f32 0.0, %v9490
      %v9492 = vpop.f32.mrb[0].mxu0
      %v9493 = vpop.f32.mrb[0].mxu0
      %v9494 = vpop.f32.mrb[0].mxu0
      %9495 = vdwg.mxu0
      %v9496 = vadd.f32 %v8998, %v9322
      %v9497 = vadd.f32 %v8999, %v9325
      %v9498 = vadd.f32 %v9000, %v9332
      %v9499 = vadd.f32 %v9001, %v9337
      %v9500 = vadd.f32 %v9002, %v9344
      %v9501 = vadd.f32 %v9003, %v9347
      %v9502 = vadd.f32 %v9004, %v9354
      %v9503 = vadd.f32 %v9005, %v9359
      %v9504 = vadd.f32 %v9006, %v9366
      %v9505 = vadd.f32 %v9007, %v9369
      %v9506 = vadd.f32 %v9008, %v9376
      %v9507 = vadd.f32 %v9009, %v9381
      %v9508 = vadd.f32 %v9010, %v9388
      %v9509 = vadd.f32 %v9011, %v9391
      %v9510 = vadd.f32 %v9012, %v9398
      %v9511 = vadd.f32 %v9013, %v9403
      %v9512 = vadd.f32 %v9014, %v9410
      %v9513 = vadd.f32 %v9015, %v9413
      %v9514 = vadd.f32 %v9016, %v9420
      %v9515 = vadd.f32 %v9017, %v9425
      %v9516 = vadd.f32 %v9018, %v9432
      %v9517 = vadd.f32 %v9019, %v9435
      %v9518 = vadd.f32 %v9020, %v9442
      %v9519 = vadd.f32 %v9021, %v9447
      %v9520 = vadd.f32 %v9022, %v9454
      %v9521 = vadd.f32 %v9023, %v9457
      %v9522 = vadd.f32 %v9024, %v9464
      %v9523 = vadd.f32 %v9025, %v9469
      %v9524 = vadd.f32 %v9026, %v9476
      %v9525 = vadd.f32 %v9027, %v9479
      %v9526 = vadd.f32 %v9028, %v9486
      %v9527 = vadd.f32 %v9029, %v9491
      %v9528 = vld [vmem:[#allocation2 + $0xc] sm:$0xf]
      %v9529 = vld [vmem:[#allocation2 + $0x10] sm:$0xf]
      %v9530 = vld [vmem:[#allocation2 + $0x14] sm:$0xf]
      %v9531 = vld [vmem:[#allocation2 + $0x18] sm:$0xf]
      %v9532 = vld [vmem:[#allocation2 + $0x1c] sm:$0xf]
      %v9533 = vld [vmem:[#allocation2 + $0x20] sm:$0xf]
      %v9534 = vld [vmem:[#allocation2 + $0x24] sm:$0xf]
      %v9535 = vld [vmem:[#allocation2 + $0x28] sm:$0xf]
      %v9536 = vld [vmem:[#allocation2 + $0x2c] sm:$0xf]
      %v9537 = vld [vmem:[#allocation2 + $0x30] sm:$0xf]
      %v9538 = vld [vmem:[#allocation2 + $0x34] sm:$0xf]
      %v9539 = vld [vmem:[#allocation2 + $0x38] sm:$0xf]
      %v9540 = vld [vmem:[#allocation2 + $0x3c] sm:$0xf]
      %v9541 = vld [vmem:[#allocation2 + $0x40] sm:$0xf]
      %v9542 = vld [vmem:[#allocation2 + $0x44] sm:$0xf]
      %v9543 = vld [vmem:[#allocation2 + $0x48] sm:$0xf]
      %v9544 = vld [vmem:[#allocation2 + $0x4c] sm:$0xf]
      %v9545 = vld [vmem:[#allocation2 + $0x50] sm:$0xf]
      %v9546 = vld [vmem:[#allocation2 + $0x54] sm:$0xf]
      %v9547 = vld [vmem:[#allocation2 + $0x58] sm:$0xf]
      %v9548 = vld [vmem:[#allocation2 + $0x5c] sm:$0xf]
      %v9549 = vld [vmem:[#allocation2 + $0x60] sm:$0xf]
      %v9550 = vld [vmem:[#allocation2 + $0x64] sm:$0xf]
      %v9551 = vld [vmem:[#allocation2 + $0x68] sm:$0xf]
      %v9552 = vld [vmem:[#allocation2 + $0x6c] sm:$0xf]
      %v9553 = vld [vmem:[#allocation2 + $0x70] sm:$0xf]
      %v9554 = vld [vmem:[#allocation2 + $0x74] sm:$0xf]
      %v9555 = vld [vmem:[#allocation2 + $0x78] sm:$0xf]
      %v9556 = vld [vmem:[#allocation2 + $0x7c] sm:$0xf]
      %v9557 = vld [vmem:[#allocation2 + $0x80] sm:$0xf]
      %v9558 = vld [vmem:[#allocation2 + $0x84] sm:$0xf]
      %v9559 = vld [vmem:[#allocation2 + $0x88] sm:$0xf]
      %v9560 = vld [vmem:[#allocation2 + $0x8c] sm:$0xf]
      %v9561 = vld [vmem:[#allocation2 + $0x90] sm:$0xf]
      %v9562 = vld [vmem:[#allocation2 + $0x94] sm:$0xf]
      %v9563 = vld [vmem:[#allocation2 + $0x98] sm:$0xf]
      %v9564 = vld [vmem:[#allocation2 + $0x9c] sm:$0xf]
      %v9565 = vld [vmem:[#allocation2 + $0xa0] sm:$0xf]
      %v9566 = vld [vmem:[#allocation2 + $0xa4] sm:$0xf]
      %v9567 = vld [vmem:[#allocation2 + $0xa8] sm:$0xf]
      %v9568 = vld [vmem:[#allocation2 + $0xac] sm:$0xf]
      %v9569 = vld [vmem:[#allocation2 + $0xb0] sm:$0xf]
      %v9570 = vld [vmem:[#allocation2 + $0xb4] sm:$0xf]
      %v9571 = vld [vmem:[#allocation2 + $0xb8] sm:$0xf]
      %v9572 = vld [vmem:[#allocation2 + $0xbc] sm:$0xf]
      %v9573 = vld [vmem:[#allocation2 + $0xc0] sm:$0xf]
      %v9574 = vld [vmem:[#allocation2 + $0xc4] sm:$0xf]
      %v9575 = vld [vmem:[#allocation2 + $0xc8] sm:$0xf]
      %v9576 = vld [vmem:[#allocation2 + $0xcc] sm:$0x1]
      %s9577 = scalar_lea.vmem %s3, 256
      %v9578 = vld [vmem:[%s9577] sm:$0xf]
      %v9579 = vld [vmem:[%s9577 + $0x4] sm:$0xf]
      %v9580 = vld [vmem:[%s9577 + $0x8] sm:$0xf]
      %v9581 = vld [vmem:[%s9577 + $0xc] sm:$0xf]
      %v9582 = vld [vmem:[%s9577 + $0x10] sm:$0xf]
      %v9583 = vld [vmem:[%s9577 + $0x14] sm:$0xf]
      %v9584 = vld [vmem:[%s9577 + $0x18] sm:$0xf]
      %v9585 = vld [vmem:[%s9577 + $0x1c] sm:$0xf]
      %v9586 = vld [vmem:[%s9577 + $0x20] sm:$0xf]
      %v9587 = vld [vmem:[%s9577 + $0x24] sm:$0xf]
      %v9588 = vld [vmem:[%s9577 + $0x28] sm:$0xf]
      %v9589 = vld [vmem:[%s9577 + $0x2c] sm:$0xf]
      %v9590 = vld [vmem:[%s9577 + $0x30] sm:$0xf]
      %v9591 = vld [vmem:[%s9577 + $0x34] sm:$0xf]
      %v9592 = vld [vmem:[%s9577 + $0x38] sm:$0xf]
      %v9593 = vld [vmem:[%s9577 + $0x3c] sm:$0xf]
      %v9643 = vunpack.c.l.b16 %v9528
      %v9644 = vunpack.c.l.b16 %v9529
      %v9645 = vunpack.c.l.b16 %v9530
      %v9646 = vunpack.c.l.b16 %v9531
      %v9647 = vunpack.c.l.b16 %v9532
      %v9648 = vunpack.c.l.b16 %v9533
      %v9649 = vunpack.c.l.b16 %v9534
      %v9650 = vunpack.c.l.b16 %v9535
      %v9651 = vunpack.c.l.b16 %v9536
      %v9652 = vunpack.c.l.b16 %v9537
      %v9653 = vunpack.c.l.b16 %v9538
      %v9654 = vunpack.c.l.b16 %v9539
      %v9655 = vunpack.c.l.b16 %v9540
      %v9656 = vunpack.c.l.b16 %v9541
      %v9657 = vunpack.c.l.b16 %v9542
      %v9658 = vunpack.c.l.b16 %v9543
      %v9659 = vunpack.c.l.b16 %v9544
      %v9660 = vunpack.c.l.b16 %v9545
      %v9661 = vunpack.c.l.b16 %v9546
      %v9662 = vunpack.c.l.b16 %v9547
      %v9663 = vunpack.c.l.b16 %v9548
      %v9664 = vunpack.c.l.b16 %v9549
      %v9665 = vunpack.c.l.b16 %v9550
      %v9666 = vunpack.c.l.b16 %v9551
      %v9667 = vunpack.c.l.b16 %v9552
      %v9668 = vunpack.c.l.b16 %v9553
      %v9669 = vunpack.c.l.b16 %v9554
      %v9670 = vunpack.c.l.b16 %v9555
      %v9671 = vunpack.c.l.b16 %v9556
      %v9672 = vunpack.c.l.b16 %v9557
      %v9673 = vunpack.c.l.b16 %v9558
      %v9674 = vunpack.c.l.b16 %v9559
      %v9675 = vunpack.c.l.b16 %v9560
      %v9676 = vunpack.c.l.b16 %v9561
      %v9677 = vunpack.c.l.b16 %v9562
      %v9678 = vunpack.c.l.b16 %v9563
      %v9679 = vunpack.c.l.b16 %v9564
      %v9680 = vunpack.c.l.b16 %v9565
      %v9681 = vunpack.c.l.b16 %v9566
      %v9682 = vunpack.c.l.b16 %v9567
      %v9683 = vunpack.c.l.b16 %v9568
      %v9684 = vunpack.c.l.b16 %v9569
      %v9685 = vunpack.c.l.b16 %v9570
      %v9686 = vunpack.c.l.b16 %v9571
      %v9687 = vunpack.c.l.b16 %v9572
      %v9688 = vunpack.c.l.b16 %v9573
      %v9689 = vunpack.c.l.b16 %v9574
      %v9690 = vunpack.c.l.b16 %v9575
      %v9691 = vunpack.c.l.b16 %v9576
      %v9692 = vpack.c.b16 %v9644, %v9643
      %v9693 = vpack.c.b16 %v9646, %v9645
      %v9694 = vpack.c.b16 %v9648, %v9647
      %v9695 = vpack.c.b16 %v9650, %v9649
      %v9696 = vpack.c.b16 %v9652, %v9651
      %v9697 = vpack.c.b16 %v9654, %v9653
      %v9698 = vpack.c.b16 %v9656, %v9655
      %v9699 = vpack.c.b16 %v9658, %v9657
      %v9700 = vpack.c.b16 %v9660, %v9659
      %v9701 = vpack.c.b16 %v9662, %v9661
      %v9702 = vpack.c.b16 %v9664, %v9663
      %v9703 = vpack.c.b16 %v9666, %v9665
      %v9704 = vpack.c.b16 %v9668, %v9667
      %v9705 = vpack.c.b16 %v9670, %v9669
      %v9706 = vpack.c.b16 %v9672, %v9671
      %v9707 = vpack.c.b16 %v9674, %v9673
      %v9708 = vpack.c.b16 %v9676, %v9675
      %v9709 = vpack.c.b16 %v9678, %v9677
      %v9710 = vpack.c.b16 %v9680, %v9679
      %v9711 = vpack.c.b16 %v9682, %v9681
      %v9712 = vpack.c.b16 %v9684, %v9683
      %v9713 = vpack.c.b16 %v9686, %v9685
      %v9714 = vpack.c.b16 %v9688, %v9687
      %v9715 = vpack.c.b16 %v9690, %v9689
      %v9716 = vpack.c.b16 %v9691, %v9691
      %v9718 = vshrl.u32 %v9692, 16
      %v9720 = vshll.u32 %v9692, 16
      %v9722 = vrot.slane %v9720, 1
      %v9723 = vor.u32 %v9718, %v9722
      %v9725 = vshll.u32 %v9693, 16
      %v9727 = vrot.slane %v9725, 1
      %v9728 = vsel %vm458, %v9723, %v9727
      %v9729 = vshrl.u32 %v9693, 16
      %v9731 = vor.u32 %v9729, %v9727
      %v9733 = vshll.u32 %v9694, 16
      %v9735 = vrot.slane %v9733, 1
      %v9736 = vsel %vm458, %v9731, %v9735
      %v9737 = vshrl.u32 %v9694, 16
      %v9739 = vor.u32 %v9737, %v9735
      %v9741 = vshll.u32 %v9695, 16
      %v9743 = vrot.slane %v9741, 1
      %v9744 = vsel %vm458, %v9739, %v9743
      %v9745 = vshrl.u32 %v9695, 16
      %v9747 = vor.u32 %v9745, %v9743
      %v9749 = vshll.u32 %v9696, 16
      %v9751 = vrot.slane %v9749, 1
      %v9752 = vsel %vm458, %v9747, %v9751
      %v9753 = vshrl.u32 %v9696, 16
      %v9755 = vor.u32 %v9753, %v9751
      %v9757 = vshll.u32 %v9697, 16
      %v9759 = vrot.slane %v9757, 1
      %v9760 = vsel %vm458, %v9755, %v9759
      %v9761 = vshrl.u32 %v9697, 16
      %v9763 = vor.u32 %v9761, %v9759
      %v9765 = vshll.u32 %v9698, 16
      %v9767 = vrot.slane %v9765, 1
      %v9768 = vsel %vm458, %v9763, %v9767
      %v9769 = vshrl.u32 %v9698, 16
      %v9771 = vor.u32 %v9769, %v9767
      %v9773 = vshll.u32 %v9699, 16
      %v9775 = vrot.slane %v9773, 1
      %v9776 = vsel %vm458, %v9771, %v9775
      %v9777 = vshrl.u32 %v9699, 16
      %v9779 = vor.u32 %v9777, %v9775
      %v9781 = vshll.u32 %v9700, 16
      %v9783 = vrot.slane %v9781, 1
      %v9784 = vsel %vm458, %v9779, %v9783
      %v9785 = vshrl.u32 %v9700, 16
      %v9787 = vor.u32 %v9785, %v9783
      %v9789 = vshll.u32 %v9701, 16
      %v9791 = vrot.slane %v9789, 1
      %v9792 = vsel %vm458, %v9787, %v9791
      %v9793 = vshrl.u32 %v9701, 16
      %v9795 = vor.u32 %v9793, %v9791
      %v9797 = vshll.u32 %v9702, 16
      %v9799 = vrot.slane %v9797, 1
      %v9800 = vsel %vm458, %v9795, %v9799
      %v9801 = vshrl.u32 %v9702, 16
      %v9803 = vor.u32 %v9801, %v9799
      %v9805 = vshll.u32 %v9703, 16
      %v9807 = vrot.slane %v9805, 1
      %v9808 = vsel %vm458, %v9803, %v9807
      %v9809 = vshrl.u32 %v9703, 16
      %v9811 = vor.u32 %v9809, %v9807
      %v9813 = vshll.u32 %v9704, 16
      %v9815 = vrot.slane %v9813, 1
      %v9816 = vsel %vm458, %v9811, %v9815
      %v9817 = vshrl.u32 %v9704, 16
      %v9819 = vor.u32 %v9817, %v9815
      %v9821 = vshll.u32 %v9705, 16
      %v9823 = vrot.slane %v9821, 1
      %v9824 = vsel %vm458, %v9819, %v9823
      %v9825 = vshrl.u32 %v9705, 16
      %v9827 = vor.u32 %v9825, %v9823
      %v9829 = vshll.u32 %v9706, 16
      %v9831 = vrot.slane %v9829, 1
      %v9832 = vsel %vm458, %v9827, %v9831
      %v9833 = vshrl.u32 %v9706, 16
      %v9835 = vor.u32 %v9833, %v9831
      %v9837 = vshll.u32 %v9707, 16
      %v9839 = vrot.slane %v9837, 1
      %v9840 = vsel %vm458, %v9835, %v9839
      %v9841 = vshrl.u32 %v9707, 16
      %v9843 = vor.u32 %v9841, %v9839
      %v9845 = vshll.u32 %v9708, 16
      %v9847 = vrot.slane %v9845, 1
      %v9848 = vsel %vm458, %v9843, %v9847
      %v9849 = vshrl.u32 %v9708, 16
      %v9851 = vor.u32 %v9849, %v9847
      %v9853 = vshll.u32 %v9709, 16
      %v9855 = vrot.slane %v9853, 1
      %v9856 = vsel %vm458, %v9851, %v9855
      %v9857 = vshrl.u32 %v9709, 16
      %v9859 = vor.u32 %v9857, %v9855
      %v9861 = vshll.u32 %v9710, 16
      %v9863 = vrot.slane %v9861, 1
      %v9864 = vsel %vm458, %v9859, %v9863
      %v9865 = vshrl.u32 %v9710, 16
      %v9867 = vor.u32 %v9865, %v9863
      %v9869 = vshll.u32 %v9711, 16
      %v9871 = vrot.slane %v9869, 1
      %v9872 = vsel %vm458, %v9867, %v9871
      %v9873 = vshrl.u32 %v9711, 16
      %v9875 = vor.u32 %v9873, %v9871
      %v9877 = vshll.u32 %v9712, 16
      %v9879 = vrot.slane %v9877, 1
      %v9880 = vsel %vm458, %v9875, %v9879
      %v9881 = vshrl.u32 %v9712, 16
      %v9883 = vor.u32 %v9881, %v9879
      %v9885 = vshll.u32 %v9713, 16
      %v9887 = vrot.slane %v9885, 1
      %v9888 = vsel %vm458, %v9883, %v9887
      %v9889 = vshrl.u32 %v9713, 16
      %v9891 = vor.u32 %v9889, %v9887
      %v9893 = vshll.u32 %v9714, 16
      %v9895 = vrot.slane %v9893, 1
      %v9896 = vsel %vm458, %v9891, %v9895
      %v9897 = vshrl.u32 %v9714, 16
      %v9899 = vor.u32 %v9897, %v9895
      %v9901 = vshll.u32 %v9715, 16
      %v9903 = vrot.slane %v9901, 1
      %v9904 = vsel %vm458, %v9899, %v9903
      %v9905 = vshrl.u32 %v9715, 16
      %v9907 = vor.u32 %v9905, %v9903
      %v9909 = vshll.u32 %v9716, 16
      %v9911 = vrot.slane %v9909, 1
      %v9912 = vsel %vm458, %v9907, %v9911
      %v9953 = vunpack.c.l.b16 %v9578
      %v9954 = vunpack.c.l.b16 %v9579
      %v9955 = vunpack.c.l.b16 %v9580
      %v9956 = vunpack.c.l.b16 %v9581
      %v9957 = vunpack.c.l.b16 %v9582
      %v9958 = vunpack.c.l.b16 %v9583
      %v9959 = vunpack.c.l.b16 %v9584
      %v9960 = vunpack.c.l.b16 %v9585
      %v9961 = vunpack.c.l.b16 %v9586
      %v9962 = vunpack.c.l.b16 %v9587
      %v9963 = vunpack.c.l.b16 %v9588
      %v9964 = vunpack.c.l.b16 %v9589
      %v9965 = vunpack.c.l.b16 %v9590
      %v9966 = vunpack.c.l.b16 %v9591
      %v9967 = vunpack.c.l.b16 %v9592
      %v9968 = vunpack.c.l.b16 %v9593
      %v9969 = vpack.c.b16 %v9954, %v9953
      %v9970 = vpack.c.b16 %v9956, %v9955
      %v9971 = vpack.c.b16 %v9958, %v9957
      %v9972 = vpack.c.b16 %v9960, %v9959
      %v9973 = vpack.c.b16 %v9962, %v9961
      %v9974 = vpack.c.b16 %v9964, %v9963
      %v9975 = vpack.c.b16 %v9966, %v9965
      %v9976 = vpack.c.b16 %v9968, %v9967
      %9985 = vmatprep.subr.bf16.mxu0 0
      %9986 = vmatpush1.bf16.msra.mxu0 %v9969
      %9987 = vmatprep.subr.bf16.mxu0 0
      %9988 = vmatpush1.bf16.msra.mxu0 %v9970
      %9989 = vmatprep.subr.bf16.mxu0 0
      %9990 = vmatpush1.bf16.msra.mxu0 %v9971
      %9991 = vmatprep.subr.bf16.mxu0 0
      %9992 = vmatpush1.bf16.msra.mxu0 %v9972
      %9993 = vmatprep.subr.bf16.mxu0 0
      %9994 = vmatpush1.bf16.msra.mxu0 %v9973
      %9995 = vmatprep.subr.bf16.mxu0 0
      %9996 = vmatpush1.bf16.msra.mxu0 %v9974
      %9997 = vmatprep.subr.bf16.mxu0 0
      %9998 = vmatpush1.bf16.msra.mxu0 %v9975
      %9999 = vmatprep.subr.bf16.mxu0 0
      %10000 = vmatpush1.bf16.msra.mxu0 %v9976
      %10001 = vmatprep.subr.bf16.mxu0 0
      %10002 = vmatpush1.bf16.msra.mxu0 0
      %10003 = vmatprep.subr.bf16.mxu0 0
      %10004 = vmatpush1.bf16.msra.mxu0 0
      %10005 = vmatprep.subr.bf16.mxu0 0
      %10006 = vmatpush1.bf16.msra.mxu0 0
      %10007 = vmatprep.subr.bf16.mxu0 0
      %10008 = vmatpush1.bf16.msra.mxu0 0
      %10009 = vmatprep.subr.bf16.mxu0 0
      %10010 = vmatpush1.bf16.msra.mxu0 0
      %10011 = vmatprep.subr.bf16.mxu0 0
      %10012 = vmatpush1.bf16.msra.mxu0 0
      %10013 = vmatprep.subr.bf16.mxu0 0
      %10014 = vmatpush1.bf16.msra.mxu0 0
      %10015 = vmatprep.subr.bf16.mxu0 0
      %10016 = vmatpush1.bf16.msra.mxu0 0
      %10017 = vmatprep.mubr.bf16.mxu0 0
      %10018 = vmatmul.mubr.bf16.gmra.mrb[0].mxu0 %v9728
      %v10019 = vpop.f32.mrb[0].mxu0
      %v10020 = vadd.f32 0.0, %v10019
      %v10021 = vpop.f32.mrb[0].mxu0
      %v10022 = vpop.f32.mrb[0].mxu0
      %v10023 = vadd.f32 0.0, %v10022
      %v10024 = vpop.f32.mrb[0].mxu0
      %10025 = vmatprep.mubr.bf16.mxu0 0
      %10026 = vmatmul.mubr.bf16.gmra.mrb[0].mxu0 %v9736
      %v10027 = vpop.f32.mrb[0].mxu0
      %v10028 = vpop.f32.mrb[0].mxu0
      %v10029 = vpop.f32.mrb[0].mxu0
      %v10030 = vadd.f32 0.0, %v10029
      %v10031 = vpop.f32.mrb[0].mxu0
      %10032 = vmatprep.mubr.bf16.mxu0 0
      %10033 = vmatmul.mubr.bf16.gmra.mrb[0].mxu0 %v9744
      %v10034 = vpop.f32.mrb[0].mxu0
      %v10035 = vadd.f32 0.0, %v10034
      %v10036 = vpop.f32.mrb[0].mxu0
      %v10037 = vpop.f32.mrb[0].mxu0
      %v10038 = vpop.f32.mrb[0].mxu0
      %10039 = vmatprep.mubr.bf16.mxu0 0
      %10040 = vmatmul.mubr.bf16.gmra.mrb[0].mxu0 %v9752
      %v10041 = vpop.f32.mrb[0].mxu0
      %v10042 = vadd.f32 0.0, %v10041
      %v10043 = vpop.f32.mrb[0].mxu0
      %v10044 = vpop.f32.mrb[0].mxu0
      %v10045 = vadd.f32 0.0, %v10044
      %v10046 = vpop.f32.mrb[0].mxu0
      %10047 = vmatprep.mubr.bf16.mxu0 0
      %10048 = vmatmul.mubr.bf16.gmra.mrb[0].mxu0 %v9760
      %v10049 = vpop.f32.mrb[0].mxu0
      %v10050 = vpop.f32.mrb[0].mxu0
      %v10051 = vpop.f32.mrb[0].mxu0
      %v10052 = vadd.f32 0.0, %v10051
      %v10053 = vpop.f32.mrb[0].mxu0
      %10054 = vmatprep.mubr.bf16.mxu0 0
      %10055 = vmatmul.mubr.bf16.gmra.mrb[0].mxu0 %v9768
      %v10056 = vpop.f32.mrb[0].mxu0
      %v10057 = vadd.f32 0.0, %v10056
      %v10058 = vpop.f32.mrb[0].mxu0
      %v10059 = vpop.f32.mrb[0].mxu0
      %v10060 = vpop.f32.mrb[0].mxu0
      %10061 = vmatprep.mubr.bf16.mxu0 0
      %10062 = vmatmul.mubr.bf16.gmra.mrb[0].mxu0 %v9776
      %v10063 = vpop.f32.mrb[0].mxu0
      %v10064 = vadd.f32 0.0, %v10063
      %v10065 = vpop.f32.mrb[0].mxu0
      %v10066 = vpop.f32.mrb[0].mxu0
      %v10067 = vadd.f32 0.0, %v10066
      %v10068 = vpop.f32.mrb[0].mxu0
      %10069 = vmatprep.mubr.bf16.mxu0 0
      %10070 = vmatmul.mubr.bf16.gmra.mrb[0].mxu0 %v9784
      %v10071 = vpop.f32.mrb[0].mxu0
      %v10072 = vpop.f32.mrb[0].mxu0
      %v10073 = vpop.f32.mrb[0].mxu0
      %v10074 = vadd.f32 0.0, %v10073
      %v10075 = vpop.f32.mrb[0].mxu0
      %10076 = vmatprep.mubr.bf16.mxu0 0
      %10077 = vmatmul.mubr.bf16.gmra.mrb[0].mxu0 %v9792
      %v10078 = vpop.f32.mrb[0].mxu0
      %v10079 = vadd.f32 0.0, %v10078
      %v10080 = vpop.f32.mrb[0].mxu0
      %v10081 = vpop.f32.mrb[0].mxu0
      %v10082 = vpop.f32.mrb[0].mxu0
      %10083 = vmatprep.mubr.bf16.mxu0 0
      %10084 = vmatmul.mubr.bf16.gmra.mrb[0].mxu0 %v9800
      %v10085 = vpop.f32.mrb[0].mxu0
      %v10086 = vadd.f32 0.0, %v10085
      %v10087 = vpop.f32.mrb[0].mxu0
      %v10088 = vpop.f32.mrb[0].mxu0
      %v10089 = vadd.f32 0.0, %v10088
      %v10090 = vpop.f32.mrb[0].mxu0
      %10091 = vmatprep.mubr.bf16.mxu0 0
      %10092 = vmatmul.mubr.bf16.gmra.mrb[0].mxu0 %v9808
      %v10093 = vpop.f32.mrb[0].mxu0
      %v10094 = vpop.f32.mrb[0].mxu0
      %v10095 = vpop.f32.mrb[0].mxu0
      %v10096 = vadd.f32 0.0, %v10095
      %v10097 = vpop.f32.mrb[0].mxu0
      %10098 = vmatprep.mubr.bf16.mxu0 0
      %10099 = vmatmul.mubr.bf16.gmra.mrb[0].mxu0 %v9816
      %v10100 = vpop.f32.mrb[0].mxu0
      %v10101 = vadd.f32 0.0, %v10100
      %v10102 = vpop.f32.mrb[0].mxu0
      %v10103 = vpop.f32.mrb[0].mxu0
      %v10104 = vpop.f32.mrb[0].mxu0
      %10105 = vmatprep.mubr.bf16.mxu0 0
      %10106 = vmatmul.mubr.bf16.gmra.mrb[0].mxu0 %v9824
      %v10107 = vpop.f32.mrb[0].mxu0
      %v10108 = vadd.f32 0.0, %v10107
      %v10109 = vpop.f32.mrb[0].mxu0
      %v10110 = vpop.f32.mrb[0].mxu0
      %v10111 = vadd.f32 0.0, %v10110
      %v10112 = vpop.f32.mrb[0].mxu0
      %10113 = vmatprep.mubr.bf16.mxu0 0
      %10114 = vmatmul.mubr.bf16.gmra.mrb[0].mxu0 %v9832
      %v10115 = vpop.f32.mrb[0].mxu0
      %v10116 = vpop.f32.mrb[0].mxu0
      %v10117 = vpop.f32.mrb[0].mxu0
      %v10118 = vadd.f32 0.0, %v10117
      %v10119 = vpop.f32.mrb[0].mxu0
      %10120 = vmatprep.mubr.bf16.mxu0 0
      %10121 = vmatmul.mubr.bf16.gmra.mrb[0].mxu0 %v9840
      %v10122 = vpop.f32.mrb[0].mxu0
      %v10123 = vadd.f32 0.0, %v10122
      %v10124 = vpop.f32.mrb[0].mxu0
      %v10125 = vpop.f32.mrb[0].mxu0
      %v10126 = vpop.f32.mrb[0].mxu0
      %10127 = vmatprep.mubr.bf16.mxu0 0
      %10128 = vmatmul.mubr.bf16.gmra.mrb[0].mxu0 %v9848
      %v10129 = vpop.f32.mrb[0].mxu0
      %v10130 = vadd.f32 0.0, %v10129
      %v10131 = vpop.f32.mrb[0].mxu0
      %v10132 = vpop.f32.mrb[0].mxu0
      %v10133 = vadd.f32 0.0, %v10132
      %v10134 = vpop.f32.mrb[0].mxu0
      %10135 = vmatprep.mubr.bf16.mxu0 0
      %10136 = vmatmul.mubr.bf16.gmra.mrb[0].mxu0 %v9856
      %v10137 = vpop.f32.mrb[0].mxu0
      %v10138 = vpop.f32.mrb[0].mxu0
      %v10139 = vpop.f32.mrb[0].mxu0
      %v10140 = vadd.f32 0.0, %v10139
      %v10141 = vpop.f32.mrb[0].mxu0
      %10142 = vmatprep.mubr.bf16.mxu0 0
      %10143 = vmatmul.mubr.bf16.gmra.mrb[0].mxu0 %v9864
      %v10144 = vpop.f32.mrb[0].mxu0
      %v10145 = vadd.f32 0.0, %v10144
      %v10146 = vpop.f32.mrb[0].mxu0
      %v10147 = vpop.f32.mrb[0].mxu0
      %v10148 = vpop.f32.mrb[0].mxu0
      %10149 = vmatprep.mubr.bf16.mxu0 0
      %10150 = vmatmul.mubr.bf16.gmra.mrb[0].mxu0 %v9872
      %v10151 = vpop.f32.mrb[0].mxu0
      %v10152 = vadd.f32 0.0, %v10151
      %v10153 = vpop.f32.mrb[0].mxu0
      %v10154 = vpop.f32.mrb[0].mxu0
      %v10155 = vadd.f32 0.0, %v10154
      %v10156 = vpop.f32.mrb[0].mxu0
      %10157 = vmatprep.mubr.bf16.mxu0 0
      %10158 = vmatmul.mubr.bf16.gmra.mrb[0].mxu0 %v9880
      %v10159 = vpop.f32.mrb[0].mxu0
      %v10160 = vpop.f32.mrb[0].mxu0
      %v10161 = vpop.f32.mrb[0].mxu0
      %v10162 = vadd.f32 0.0, %v10161
      %v10163 = vpop.f32.mrb[0].mxu0
      %10164 = vmatprep.mubr.bf16.mxu0 0
      %10165 = vmatmul.mubr.bf16.gmra.mrb[0].mxu0 %v9888
      %v10166 = vpop.f32.mrb[0].mxu0
      %v10167 = vadd.f32 0.0, %v10166
      %v10168 = vpop.f32.mrb[0].mxu0
      %v10169 = vpop.f32.mrb[0].mxu0
      %v10170 = vpop.f32.mrb[0].mxu0
      %10171 = vmatprep.mubr.bf16.mxu0 0
      %10172 = vmatmul.mubr.bf16.gmra.mrb[0].mxu0 %v9896
      %v10173 = vpop.f32.mrb[0].mxu0
      %v10174 = vadd.f32 0.0, %v10173
      %v10175 = vpop.f32.mrb[0].mxu0
      %v10176 = vpop.f32.mrb[0].mxu0
      %v10177 = vadd.f32 0.0, %v10176
      %v10178 = vpop.f32.mrb[0].mxu0
      %10179 = vmatprep.mubr.bf16.mxu0 0
      %10180 = vmatmul.mubr.bf16.gmra.mrb[0].mxu0 %v9904
      %v10181 = vpop.f32.mrb[0].mxu0
      %v10182 = vpop.f32.mrb[0].mxu0
      %v10183 = vpop.f32.mrb[0].mxu0
      %v10184 = vadd.f32 0.0, %v10183
      %v10185 = vpop.f32.mrb[0].mxu0
      %10186 = vmatprep.mubr.bf16.mxu0 0
      %10187 = vmatmul.mubr.bf16.gmra.mrb[0].mxu0 %v9912
      %v10188 = vpop.f32.mrb[0].mxu0
      %v10189 = vadd.f32 0.0, %v10188
      %v10190 = vpop.f32.mrb[0].mxu0
      %v10191 = vpop.f32.mrb[0].mxu0
      %v10192 = vpop.f32.mrb[0].mxu0
      %10193 = vdwg.mxu0
      %v10194 = vadd.f32 %v9496, %v10020
      %v10195 = vadd.f32 %v9497, %v10023
      %v10196 = vadd.f32 %v9498, %v10030
      %v10197 = vadd.f32 %v9499, %v10035
      %v10198 = vadd.f32 %v9500, %v10042
      %v10199 = vadd.f32 %v9501, %v10045
      %v10200 = vadd.f32 %v9502, %v10052
      %v10201 = vadd.f32 %v9503, %v10057
      %v10202 = vadd.f32 %v9504, %v10064
      %v10203 = vadd.f32 %v9505, %v10067
      %v10204 = vadd.f32 %v9506, %v10074
      %v10205 = vadd.f32 %v9507, %v10079
      %v10206 = vadd.f32 %v9508, %v10086
      %v10207 = vadd.f32 %v9509, %v10089
      %v10208 = vadd.f32 %v9510, %v10096
      %v10209 = vadd.f32 %v9511, %v10101
      %v10210 = vadd.f32 %v9512, %v10108
      %v10211 = vadd.f32 %v9513, %v10111
      %v10212 = vadd.f32 %v9514, %v10118
      %v10213 = vadd.f32 %v9515, %v10123
      %v10214 = vadd.f32 %v9516, %v10130
      %v10215 = vadd.f32 %v9517, %v10133
      %v10216 = vadd.f32 %v9518, %v10140
      %v10217 = vadd.f32 %v9519, %v10145
      %v10218 = vadd.f32 %v9520, %v10152
      %v10219 = vadd.f32 %v9521, %v10155
      %v10220 = vadd.f32 %v9522, %v10162
      %v10221 = vadd.f32 %v9523, %v10167
      %v10222 = vadd.f32 %v9524, %v10174
      %v10223 = vadd.f32 %v9525, %v10177
      %v10224 = vadd.f32 %v9526, %v10184
      %v10225 = vadd.f32 %v9527, %v10189
      %v10226 = vld [vmem:[#allocation2 + $0xc] sm:$0xe]
      %s10227 = scalar_lea.vmem %s3, 320
      %v10228 = vld [vmem:[%s10227] sm:$0xf]
      %v10229 = vld [vmem:[%s10227 + $0x4] sm:$0xf]
      %v10230 = vld [vmem:[%s10227 + $0x8] sm:$0xf]
      %v10231 = vld [vmem:[%s10227 + $0xc] sm:$0xf]
      %v10232 = vld [vmem:[%s10227 + $0x10] sm:$0xf]
      %v10233 = vld [vmem:[%s10227 + $0x14] sm:$0xf]
      %v10234 = vld [vmem:[%s10227 + $0x18] sm:$0xf]
      %v10235 = vld [vmem:[%s10227 + $0x1c] sm:$0xf]
      %v10236 = vld [vmem:[%s10227 + $0x20] sm:$0xf]
      %v10237 = vld [vmem:[%s10227 + $0x24] sm:$0xf]
      %v10238 = vld [vmem:[%s10227 + $0x28] sm:$0xf]
      %v10239 = vld [vmem:[%s10227 + $0x2c] sm:$0xf]
      %v10240 = vld [vmem:[%s10227 + $0x30] sm:$0xf]
      %v10241 = vld [vmem:[%s10227 + $0x34] sm:$0xf]
      %v10242 = vld [vmem:[%s10227 + $0x38] sm:$0xf]
      %v10243 = vld [vmem:[%s10227 + $0x3c] sm:$0xf]
      %v10245 = vunpack.c.l.b16 %v10226
      %v10246 = vpack.c.b16 %v9644, %v10245
      %v10247 = vrot.slane %v10246, 1
      %v10248 = vrot.slane %v9693, 1
      %v10249 = vsel %vm1270, %v10247, %v10248
      %v10250 = vrot.slane %v9694, 1
      %v10251 = vsel %vm1270, %v10248, %v10250
      %v10252 = vrot.slane %v9695, 1
      %v10253 = vsel %vm1270, %v10250, %v10252
      %v10254 = vrot.slane %v9696, 1
      %v10255 = vsel %vm1270, %v10252, %v10254
      %v10256 = vrot.slane %v9697, 1
      %v10257 = vsel %vm1270, %v10254, %v10256
      %v10258 = vrot.slane %v9698, 1
      %v10259 = vsel %vm1270, %v10256, %v10258
      %v10260 = vrot.slane %v9699, 1
      %v10261 = vsel %vm1270, %v10258, %v10260
      %v10262 = vrot.slane %v9700, 1
      %v10263 = vsel %vm1270, %v10260, %v10262
      %v10264 = vrot.slane %v9701, 1
      %v10265 = vsel %vm1270, %v10262, %v10264
      %v10266 = vrot.slane %v9702, 1
      %v10267 = vsel %vm1270, %v10264, %v10266
      %v10268 = vrot.slane %v9703, 1
      %v10269 = vsel %vm1270, %v10266, %v10268
      %v10270 = vrot.slane %v9704, 1
      %v10271 = vsel %vm1270, %v10268, %v10270
      %v10272 = vrot.slane %v9705, 1
      %v10273 = vsel %vm1270, %v10270, %v10272
      %v10274 = vrot.slane %v9706, 1
      %v10275 = vsel %vm1270, %v10272, %v10274
      %v10276 = vrot.slane %v9707, 1
      %v10277 = vsel %vm1270, %v10274, %v10276
      %v10278 = vrot.slane %v9708, 1
      %v10279 = vsel %vm1270, %v10276, %v10278
      %v10280 = vrot.slane %v9709, 1
      %v10281 = vsel %vm1270, %v10278, %v10280
      %v10282 = vrot.slane %v9710, 1
      %v10283 = vsel %vm1270, %v10280, %v10282
      %v10284 = vrot.slane %v9711, 1
      %v10285 = vsel %vm1270, %v10282, %v10284
      %v10286 = vrot.slane %v9712, 1
      %v10287 = vsel %vm1270, %v10284, %v10286
      %v10288 = vrot.slane %v9713, 1
      %v10289 = vsel %vm1270, %v10286, %v10288
      %v10290 = vrot.slane %v9714, 1
      %v10291 = vsel %vm1270, %v10288, %v10290
      %v10292 = vrot.slane %v9715, 1
      %v10293 = vsel %vm1270, %v10290, %v10292
      %v10294 = vrot.slane %v9716, 1
      %v10295 = vsel %vm1270, %v10292, %v10294
      %v10336 = vunpack.c.l.b16 %v10228
      %v10337 = vunpack.c.l.b16 %v10229
      %v10338 = vunpack.c.l.b16 %v10230
      %v10339 = vunpack.c.l.b16 %v10231
      %v10340 = vunpack.c.l.b16 %v10232
      %v10341 = vunpack.c.l.b16 %v10233
      %v10342 = vunpack.c.l.b16 %v10234
      %v10343 = vunpack.c.l.b16 %v10235
      %v10344 = vunpack.c.l.b16 %v10236
      %v10345 = vunpack.c.l.b16 %v10237
      %v10346 = vunpack.c.l.b16 %v10238
      %v10347 = vunpack.c.l.b16 %v10239
      %v10348 = vunpack.c.l.b16 %v10240
      %v10349 = vunpack.c.l.b16 %v10241
      %v10350 = vunpack.c.l.b16 %v10242
      %v10351 = vunpack.c.l.b16 %v10243
      %v10352 = vpack.c.b16 %v10337, %v10336
      %v10353 = vpack.c.b16 %v10339, %v10338
      %v10354 = vpack.c.b16 %v10341, %v10340
      %v10355 = vpack.c.b16 %v10343, %v10342
      %v10356 = vpack.c.b16 %v10345, %v10344
      %v10357 = vpack.c.b16 %v10347, %v10346
      %v10358 = vpack.c.b16 %v10349, %v10348
      %v10359 = vpack.c.b16 %v10351, %v10350
      %10368 = vmatprep.subr.bf16.mxu0 0
      %10369 = vmatpush1.bf16.msra.mxu0 %v10352
      %10370 = vmatprep.subr.bf16.mxu0 0
      %10371 = vmatpush1.bf16.msra.mxu0 %v10353
      %10372 = vmatprep.subr.bf16.mxu0 0
      %10373 = vmatpush1.bf16.msra.mxu0 %v10354
      %10374 = vmatprep.subr.bf16.mxu0 0
      %10375 = vmatpush1.bf16.msra.mxu0 %v10355
      %10376 = vmatprep.subr.bf16.mxu0 0
      %10377 = vmatpush1.bf16.msra.mxu0 %v10356
      %10378 = vmatprep.subr.bf16.mxu0 0
      %10379 = vmatpush1.bf16.msra.mxu0 %v10357
      %10380 = vmatprep.subr.bf16.mxu0 0
      %10381 = vmatpush1.bf16.msra.mxu0 %v10358
      %10382 = vmatprep.subr.bf16.mxu0 0
      %10383 = vmatpush1.bf16.msra.mxu0 %v10359
      %10384 = vmatprep.subr.bf16.mxu0 0
      %10385 = vmatpush1.bf16.msra.mxu0 0
      %10386 = vmatprep.subr.bf16.mxu0 0
      %10387 = vmatpush1.bf16.msra.mxu0 0
      %10388 = vmatprep.subr.bf16.mxu0 0
      %10389 = vmatpush1.bf16.msra.mxu0 0
      %10390 = vmatprep.subr.bf16.mxu0 0
      %10391 = vmatpush1.bf16.msra.mxu0 0
      %10392 = vmatprep.subr.bf16.mxu0 0
      %10393 = vmatpush1.bf16.msra.mxu0 0
      %10394 = vmatprep.subr.bf16.mxu0 0
      %10395 = vmatpush1.bf16.msra.mxu0 0
      %10396 = vmatprep.subr.bf16.mxu0 0
      %10397 = vmatpush1.bf16.msra.mxu0 0
      %10398 = vmatprep.subr.bf16.mxu0 0
      %10399 = vmatpush1.bf16.msra.mxu0 0
      %10400 = vmatprep.mubr.bf16.mxu0 0
      %10401 = vmatmul.mubr.bf16.gmra.mrb[0].mxu0 %v10249
      %v10402 = vpop.f32.mrb[0].mxu0
      %v10403 = vadd.f32 0.0, %v10402
      %v10404 = vpop.f32.mrb[0].mxu0
      %v10405 = vpop.f32.mrb[0].mxu0
      %v10406 = vadd.f32 0.0, %v10405
      %v10407 = vpop.f32.mrb[0].mxu0
      %10408 = vmatprep.mubr.bf16.mxu0 0
      %10409 = vmatmul.mubr.bf16.gmra.mrb[0].mxu0 %v10251
      %v10410 = vpop.f32.mrb[0].mxu0
      %v10411 = vpop.f32.mrb[0].mxu0
      %v10412 = vpop.f32.mrb[0].mxu0
      %v10413 = vadd.f32 0.0, %v10412
      %v10414 = vpop.f32.mrb[0].mxu0
      %10415 = vmatprep.mubr.bf16.mxu0 0
      %10416 = vmatmul.mubr.bf16.gmra.mrb[0].mxu0 %v10253
      %v10417 = vpop.f32.mrb[0].mxu0
      %v10418 = vadd.f32 0.0, %v10417
      %v10419 = vpop.f32.mrb[0].mxu0
      %v10420 = vpop.f32.mrb[0].mxu0
      %v10421 = vpop.f32.mrb[0].mxu0
      %10422 = vmatprep.mubr.bf16.mxu0 0
      %10423 = vmatmul.mubr.bf16.gmra.mrb[0].mxu0 %v10255
      %v10424 = vpop.f32.mrb[0].mxu0
      %v10425 = vadd.f32 0.0, %v10424
      %v10426 = vpop.f32.mrb[0].mxu0
      %v10427 = vpop.f32.mrb[0].mxu0
      %v10428 = vadd.f32 0.0, %v10427
      %v10429 = vpop.f32.mrb[0].mxu0
      %10430 = vmatprep.mubr.bf16.mxu0 0
      %10431 = vmatmul.mubr.bf16.gmra.mrb[0].mxu0 %v10257
      %v10432 = vpop.f32.mrb[0].mxu0
      %v10433 = vpop.f32.mrb[0].mxu0
      %v10434 = vpop.f32.mrb[0].mxu0
      %v10435 = vadd.f32 0.0, %v10434
      %v10436 = vpop.f32.mrb[0].mxu0
      %10437 = vmatprep.mubr.bf16.mxu0 0
      %10438 = vmatmul.mubr.bf16.gmra.mrb[0].mxu0 %v10259
      %v10439 = vpop.f32.mrb[0].mxu0
      %v10440 = vadd.f32 0.0, %v10439
      %v10441 = vpop.f32.mrb[0].mxu0
      %v10442 = vpop.f32.mrb[0].mxu0
      %v10443 = vpop.f32.mrb[0].mxu0
      %10444 = vmatprep.mubr.bf16.mxu0 0
      %10445 = vmatmul.mubr.bf16.gmra.mrb[0].mxu0 %v10261
      %v10446 = vpop.f32.mrb[0].mxu0
      %v10447 = vadd.f32 0.0, %v10446
      %v10448 = vpop.f32.mrb[0].mxu0
      %v10449 = vpop.f32.mrb[0].mxu0
      %v10450 = vadd.f32 0.0, %v10449
      %v10451 = vpop.f32.mrb[0].mxu0
      %10452 = vmatprep.mubr.bf16.mxu0 0
      %10453 = vmatmul.mubr.bf16.gmra.mrb[0].mxu0 %v10263
      %v10454 = vpop.f32.mrb[0].mxu0
      %v10455 = vpop.f32.mrb[0].mxu0
      %v10456 = vpop.f32.mrb[0].mxu0
      %v10457 = vadd.f32 0.0, %v10456
      %v10458 = vpop.f32.mrb[0].mxu0
      %10459 = vmatprep.mubr.bf16.mxu0 0
      %10460 = vmatmul.mubr.bf16.gmra.mrb[0].mxu0 %v10265
      %v10461 = vpop.f32.mrb[0].mxu0
      %v10462 = vadd.f32 0.0, %v10461
      %v10463 = vpop.f32.mrb[0].mxu0
      %v10464 = vpop.f32.mrb[0].mxu0
      %v10465 = vpop.f32.mrb[0].mxu0
      %10466 = vmatprep.mubr.bf16.mxu0 0
      %10467 = vmatmul.mubr.bf16.gmra.mrb[0].mxu0 %v10267
      %v10468 = vpop.f32.mrb[0].mxu0
      %v10469 = vadd.f32 0.0, %v10468
      %v10470 = vpop.f32.mrb[0].mxu0
      %v10471 = vpop.f32.mrb[0].mxu0
      %v10472 = vadd.f32 0.0, %v10471
      %v10473 = vpop.f32.mrb[0].mxu0
      %10474 = vmatprep.mubr.bf16.mxu0 0
      %10475 = vmatmul.mubr.bf16.gmra.mrb[0].mxu0 %v10269
      %v10476 = vpop.f32.mrb[0].mxu0
      %v10477 = vpop.f32.mrb[0].mxu0
      %v10478 = vpop.f32.mrb[0].mxu0
      %v10479 = vadd.f32 0.0, %v10478
      %v10480 = vpop.f32.mrb[0].mxu0
      %10481 = vmatprep.mubr.bf16.mxu0 0
      %10482 = vmatmul.mubr.bf16.gmra.mrb[0].mxu0 %v10271
      %v10483 = vpop.f32.mrb[0].mxu0
      %v10484 = vadd.f32 0.0, %v10483
      %v10485 = vpop.f32.mrb[0].mxu0
      %v10486 = vpop.f32.mrb[0].mxu0
      %v10487 = vpop.f32.mrb[0].mxu0
      %10488 = vmatprep.mubr.bf16.mxu0 0
      %10489 = vmatmul.mubr.bf16.gmra.mrb[0].mxu0 %v10273
      %v10490 = vpop.f32.mrb[0].mxu0
      %v10491 = vadd.f32 0.0, %v10490
      %v10492 = vpop.f32.mrb[0].mxu0
      %v10493 = vpop.f32.mrb[0].mxu0
      %v10494 = vadd.f32 0.0, %v10493
      %v10495 = vpop.f32.mrb[0].mxu0
      %10496 = vmatprep.mubr.bf16.mxu0 0
      %10497 = vmatmul.mubr.bf16.gmra.mrb[0].mxu0 %v10275
      %v10498 = vpop.f32.mrb[0].mxu0
      %v10499 = vpop.f32.mrb[0].mxu0
      %v10500 = vpop.f32.mrb[0].mxu0
      %v10501 = vadd.f32 0.0, %v10500
      %v10502 = vpop.f32.mrb[0].mxu0
      %10503 = vmatprep.mubr.bf16.mxu0 0
      %10504 = vmatmul.mubr.bf16.gmra.mrb[0].mxu0 %v10277
      %v10505 = vpop.f32.mrb[0].mxu0
      %v10506 = vadd.f32 0.0, %v10505
      %v10507 = vpop.f32.mrb[0].mxu0
      %v10508 = vpop.f32.mrb[0].mxu0
      %v10509 = vpop.f32.mrb[0].mxu0
      %10510 = vmatprep.mubr.bf16.mxu0 0
      %10511 = vmatmul.mubr.bf16.gmra.mrb[0].mxu0 %v10279
      %v10512 = vpop.f32.mrb[0].mxu0
      %v10513 = vadd.f32 0.0, %v10512
      %v10514 = vpop.f32.mrb[0].mxu0
      %v10515 = vpop.f32.mrb[0].mxu0
      %v10516 = vadd.f32 0.0, %v10515
      %v10517 = vpop.f32.mrb[0].mxu0
      %10518 = vmatprep.mubr.bf16.mxu0 0
      %10519 = vmatmul.mubr.bf16.gmra.mrb[0].mxu0 %v10281
      %v10520 = vpop.f32.mrb[0].mxu0
      %v10521 = vpop.f32.mrb[0].mxu0
      %v10522 = vpop.f32.mrb[0].mxu0
      %v10523 = vadd.f32 0.0, %v10522
      %v10524 = vpop.f32.mrb[0].mxu0
      %10525 = vmatprep.mubr.bf16.mxu0 0
      %10526 = vmatmul.mubr.bf16.gmra.mrb[0].mxu0 %v10283
      %v10527 = vpop.f32.mrb[0].mxu0
      %v10528 = vadd.f32 0.0, %v10527
      %v10529 = vpop.f32.mrb[0].mxu0
      %v10530 = vpop.f32.mrb[0].mxu0
      %v10531 = vpop.f32.mrb[0].mxu0
      %10532 = vmatprep.mubr.bf16.mxu0 0
      %10533 = vmatmul.mubr.bf16.gmra.mrb[0].mxu0 %v10285
      %v10534 = vpop.f32.mrb[0].mxu0
      %v10535 = vadd.f32 0.0, %v10534
      %v10536 = vpop.f32.mrb[0].mxu0
      %v10537 = vpop.f32.mrb[0].mxu0
      %v10538 = vadd.f32 0.0, %v10537
      %v10539 = vpop.f32.mrb[0].mxu0
      %10540 = vmatprep.mubr.bf16.mxu0 0
      %10541 = vmatmul.mubr.bf16.gmra.mrb[0].mxu0 %v10287
      %v10542 = vpop.f32.mrb[0].mxu0
      %v10543 = vpop.f32.mrb[0].mxu0
      %v10544 = vpop.f32.mrb[0].mxu0
      %v10545 = vadd.f32 0.0, %v10544
      %v10546 = vpop.f32.mrb[0].mxu0
      %10547 = vmatprep.mubr.bf16.mxu0 0
      %10548 = vmatmul.mubr.bf16.gmra.mrb[0].mxu0 %v10289
      %v10549 = vpop.f32.mrb[0].mxu0
      %v10550 = vadd.f32 0.0, %v10549
      %v10551 = vpop.f32.mrb[0].mxu0
      %v10552 = vpop.f32.mrb[0].mxu0
      %v10553 = vpop.f32.mrb[0].mxu0
      %10554 = vmatprep.mubr.bf16.mxu0 0
      %10555 = vmatmul.mubr.bf16.gmra.mrb[0].mxu0 %v10291
      %v10556 = vpop.f32.mrb[0].mxu0
      %v10557 = vadd.f32 0.0, %v10556
      %v10558 = vpop.f32.mrb[0].mxu0
      %v10559 = vpop.f32.mrb[0].mxu0
      %v10560 = vadd.f32 0.0, %v10559
      %v10561 = vpop.f32.mrb[0].mxu0
      %10562 = vmatprep.mubr.bf16.mxu0 0
      %10563 = vmatmul.mubr.bf16.gmra.mrb[0].mxu0 %v10293
      %v10564 = vpop.f32.mrb[0].mxu0
      %v10565 = vpop.f32.mrb[0].mxu0
      %v10566 = vpop.f32.mrb[0].mxu0
      %v10567 = vadd.f32 0.0, %v10566
      %v10568 = vpop.f32.mrb[0].mxu0
      %10569 = vmatprep.mubr.bf16.mxu0 0
      %10570 = vmatmul.mubr.bf16.gmra.mrb[0].mxu0 %v10295
      %v10571 = vpop.f32.mrb[0].mxu0
      %v10572 = vadd.f32 0.0, %v10571
      %v10573 = vpop.f32.mrb[0].mxu0
      %v10574 = vpop.f32.mrb[0].mxu0
      %v10575 = vpop.f32.mrb[0].mxu0
      %10576 = vdwg.mxu0
      %v10577 = vadd.f32 %v10194, %v10403
      %v10578 = vadd.f32 %v10195, %v10406
      %v10579 = vadd.f32 %v10196, %v10413
      %v10580 = vadd.f32 %v10197, %v10418
      %v10581 = vadd.f32 %v10198, %v10425
      %v10582 = vadd.f32 %v10199, %v10428
      %v10583 = vadd.f32 %v10200, %v10435
      %v10584 = vadd.f32 %v10201, %v10440
      %v10585 = vadd.f32 %v10202, %v10447
      %v10586 = vadd.f32 %v10203, %v10450
      %v10587 = vadd.f32 %v10204, %v10457
      %v10588 = vadd.f32 %v10205, %v10462
      %v10589 = vadd.f32 %v10206, %v10469
      %v10590 = vadd.f32 %v10207, %v10472
      %v10591 = vadd.f32 %v10208, %v10479
      %v10592 = vadd.f32 %v10209, %v10484
      %v10593 = vadd.f32 %v10210, %v10491
      %v10594 = vadd.f32 %v10211, %v10494
      %v10595 = vadd.f32 %v10212, %v10501
      %v10596 = vadd.f32 %v10213, %v10506
      %v10597 = vadd.f32 %v10214, %v10513
      %v10598 = vadd.f32 %v10215, %v10516
      %v10599 = vadd.f32 %v10216, %v10523
      %v10600 = vadd.f32 %v10217, %v10528
      %v10601 = vadd.f32 %v10218, %v10535
      %v10602 = vadd.f32 %v10219, %v10538
      %v10603 = vadd.f32 %v10220, %v10545
      %v10604 = vadd.f32 %v10221, %v10550
      %v10605 = vadd.f32 %v10222, %v10557
      %v10606 = vadd.f32 %v10223, %v10560
      %v10607 = vadd.f32 %v10224, %v10567
      %v10608 = vadd.f32 %v10225, %v10572
      %v10609 = vld [vmem:[#allocation2 + $0x18] sm:$0xf]
      %v10610 = vld [vmem:[#allocation2 + $0x1c] sm:$0xf]
      %v10611 = vld [vmem:[#allocation2 + $0x20] sm:$0xf]
      %v10612 = vld [vmem:[#allocation2 + $0x24] sm:$0xf]
      %v10613 = vld [vmem:[#allocation2 + $0x28] sm:$0xf]
      %v10614 = vld [vmem:[#allocation2 + $0x2c] sm:$0xf]
      %v10615 = vld [vmem:[#allocation2 + $0x30] sm:$0xf]
      %v10616 = vld [vmem:[#allocation2 + $0x34] sm:$0xf]
      %v10617 = vld [vmem:[#allocation2 + $0x38] sm:$0xf]
      %v10618 = vld [vmem:[#allocation2 + $0x3c] sm:$0xf]
      %v10619 = vld [vmem:[#allocation2 + $0x40] sm:$0xf]
      %v10620 = vld [vmem:[#allocation2 + $0x44] sm:$0xf]
      %v10621 = vld [vmem:[#allocation2 + $0x48] sm:$0xf]
      %v10622 = vld [vmem:[#allocation2 + $0x4c] sm:$0xf]
      %v10623 = vld [vmem:[#allocation2 + $0x50] sm:$0xf]
      %v10624 = vld [vmem:[#allocation2 + $0x54] sm:$0xf]
      %v10625 = vld [vmem:[#allocation2 + $0x58] sm:$0xf]
      %v10626 = vld [vmem:[#allocation2 + $0x5c] sm:$0xf]
      %v10627 = vld [vmem:[#allocation2 + $0x60] sm:$0xf]
      %v10628 = vld [vmem:[#allocation2 + $0x64] sm:$0xf]
      %v10629 = vld [vmem:[#allocation2 + $0x68] sm:$0xf]
      %v10630 = vld [vmem:[#allocation2 + $0x6c] sm:$0xf]
      %v10631 = vld [vmem:[#allocation2 + $0x70] sm:$0xf]
      %v10632 = vld [vmem:[#allocation2 + $0x74] sm:$0xf]
      %v10633 = vld [vmem:[#allocation2 + $0x78] sm:$0xf]
      %v10634 = vld [vmem:[#allocation2 + $0x7c] sm:$0xf]
      %v10635 = vld [vmem:[#allocation2 + $0x80] sm:$0xf]
      %v10636 = vld [vmem:[#allocation2 + $0x84] sm:$0xf]
      %v10637 = vld [vmem:[#allocation2 + $0x88] sm:$0xf]
      %v10638 = vld [vmem:[#allocation2 + $0x8c] sm:$0xf]
      %v10639 = vld [vmem:[#allocation2 + $0x90] sm:$0xf]
      %v10640 = vld [vmem:[#allocation2 + $0x94] sm:$0xf]
      %v10641 = vld [vmem:[#allocation2 + $0x98] sm:$0xf]
      %v10642 = vld [vmem:[#allocation2 + $0x9c] sm:$0xf]
      %v10643 = vld [vmem:[#allocation2 + $0xa0] sm:$0xf]
      %v10644 = vld [vmem:[#allocation2 + $0xa4] sm:$0xf]
      %v10645 = vld [vmem:[#allocation2 + $0xa8] sm:$0xf]
      %v10646 = vld [vmem:[#allocation2 + $0xac] sm:$0xf]
      %v10647 = vld [vmem:[#allocation2 + $0xb0] sm:$0xf]
      %v10648 = vld [vmem:[#allocation2 + $0xb4] sm:$0xf]
      %v10649 = vld [vmem:[#allocation2 + $0xb8] sm:$0xf]
      %v10650 = vld [vmem:[#allocation2 + $0xbc] sm:$0xf]
      %v10651 = vld [vmem:[#allocation2 + $0xc0] sm:$0xf]
      %v10652 = vld [vmem:[#allocation2 + $0xc4] sm:$0xf]
      %v10653 = vld [vmem:[#allocation2 + $0xc8] sm:$0xf]
      %v10654 = vld [vmem:[#allocation2 + $0xcc] sm:$0xf]
      %v10655 = vld [vmem:[#allocation2 + $0xd0] sm:$0xf]
      %v10656 = vld [vmem:[#allocation2 + $0xd4] sm:$0xf]
      %s10657 = scalar_lea.vmem %s3, 384
      %v10658 = vld [vmem:[%s10657] sm:$0xf]
      %v10659 = vld [vmem:[%s10657 + $0x4] sm:$0xf]
      %v10660 = vld [vmem:[%s10657 + $0x8] sm:$0xf]
      %v10661 = vld [vmem:[%s10657 + $0xc] sm:$0xf]
      %v10662 = vld [vmem:[%s10657 + $0x10] sm:$0xf]
      %v10663 = vld [vmem:[%s10657 + $0x14] sm:$0xf]
      %v10664 = vld [vmem:[%s10657 + $0x18] sm:$0xf]
      %v10665 = vld [vmem:[%s10657 + $0x1c] sm:$0xf]
      %v10666 = vld [vmem:[%s10657 + $0x20] sm:$0xf]
      %v10667 = vld [vmem:[%s10657 + $0x24] sm:$0xf]
      %v10668 = vld [vmem:[%s10657 + $0x28] sm:$0xf]
      %v10669 = vld [vmem:[%s10657 + $0x2c] sm:$0xf]
      %v10670 = vld [vmem:[%s10657 + $0x30] sm:$0xf]
      %v10671 = vld [vmem:[%s10657 + $0x34] sm:$0xf]
      %v10672 = vld [vmem:[%s10657 + $0x38] sm:$0xf]
      %v10673 = vld [vmem:[%s10657 + $0x3c] sm:$0xf]
      %v10722 = vunpack.c.l.b16 %v10609
      %v10723 = vunpack.c.l.b16 %v10610
      %v10724 = vunpack.c.l.b16 %v10611
      %v10725 = vunpack.c.l.b16 %v10612
      %v10726 = vunpack.c.l.b16 %v10613
      %v10727 = vunpack.c.l.b16 %v10614
      %v10728 = vunpack.c.l.b16 %v10615
      %v10729 = vunpack.c.l.b16 %v10616
      %v10730 = vunpack.c.l.b16 %v10617
      %v10731 = vunpack.c.l.b16 %v10618
      %v10732 = vunpack.c.l.b16 %v10619
      %v10733 = vunpack.c.l.b16 %v10620
      %v10734 = vunpack.c.l.b16 %v10621
      %v10735 = vunpack.c.l.b16 %v10622
      %v10736 = vunpack.c.l.b16 %v10623
      %v10737 = vunpack.c.l.b16 %v10624
      %v10738 = vunpack.c.l.b16 %v10625
      %v10739 = vunpack.c.l.b16 %v10626
      %v10740 = vunpack.c.l.b16 %v10627
      %v10741 = vunpack.c.l.b16 %v10628
      %v10742 = vunpack.c.l.b16 %v10629
      %v10743 = vunpack.c.l.b16 %v10630
      %v10744 = vunpack.c.l.b16 %v10631
      %v10745 = vunpack.c.l.b16 %v10632
      %v10746 = vunpack.c.l.b16 %v10633
      %v10747 = vunpack.c.l.b16 %v10634
      %v10748 = vunpack.c.l.b16 %v10635
      %v10749 = vunpack.c.l.b16 %v10636
      %v10750 = vunpack.c.l.b16 %v10637
      %v10751 = vunpack.c.l.b16 %v10638
      %v10752 = vunpack.c.l.b16 %v10639
      %v10753 = vunpack.c.l.b16 %v10640
      %v10754 = vunpack.c.l.b16 %v10641
      %v10755 = vunpack.c.l.b16 %v10642
      %v10756 = vunpack.c.l.b16 %v10643
      %v10757 = vunpack.c.l.b16 %v10644
      %v10758 = vunpack.c.l.b16 %v10645
      %v10759 = vunpack.c.l.b16 %v10646
      %v10760 = vunpack.c.l.b16 %v10647
      %v10761 = vunpack.c.l.b16 %v10648
      %v10762 = vunpack.c.l.b16 %v10649
      %v10763 = vunpack.c.l.b16 %v10650
      %v10764 = vunpack.c.l.b16 %v10651
      %v10765 = vunpack.c.l.b16 %v10652
      %v10766 = vunpack.c.l.b16 %v10653
      %v10767 = vunpack.c.l.b16 %v10654
      %v10768 = vunpack.c.l.b16 %v10655
      %v10769 = vunpack.c.l.b16 %v10656
      %v10770 = vpack.c.b16 %v10723, %v10722
      %v10771 = vpack.c.b16 %v10725, %v10724
      %v10772 = vpack.c.b16 %v10727, %v10726
      %v10773 = vpack.c.b16 %v10729, %v10728
      %v10774 = vpack.c.b16 %v10731, %v10730
      %v10775 = vpack.c.b16 %v10733, %v10732
      %v10776 = vpack.c.b16 %v10735, %v10734
      %v10777 = vpack.c.b16 %v10737, %v10736
      %v10778 = vpack.c.b16 %v10739, %v10738
      %v10779 = vpack.c.b16 %v10741, %v10740
      %v10780 = vpack.c.b16 %v10743, %v10742
      %v10781 = vpack.c.b16 %v10745, %v10744
      %v10782 = vpack.c.b16 %v10747, %v10746
      %v10783 = vpack.c.b16 %v10749, %v10748
      %v10784 = vpack.c.b16 %v10751, %v10750
      %v10785 = vpack.c.b16 %v10753, %v10752
      %v10786 = vpack.c.b16 %v10755, %v10754
      %v10787 = vpack.c.b16 %v10757, %v10756
      %v10788 = vpack.c.b16 %v10759, %v10758
      %v10789 = vpack.c.b16 %v10761, %v10760
      %v10790 = vpack.c.b16 %v10763, %v10762
      %v10791 = vpack.c.b16 %v10765, %v10764
      %v10792 = vpack.c.b16 %v10767, %v10766
      %v10793 = vpack.c.b16 %v10769, %v10768
      %v10834 = vunpack.c.l.b16 %v10658
      %v10835 = vunpack.c.l.b16 %v10659
      %v10836 = vunpack.c.l.b16 %v10660
      %v10837 = vunpack.c.l.b16 %v10661
      %v10838 = vunpack.c.l.b16 %v10662
      %v10839 = vunpack.c.l.b16 %v10663
      %v10840 = vunpack.c.l.b16 %v10664
      %v10841 = vunpack.c.l.b16 %v10665
      %v10842 = vunpack.c.l.b16 %v10666
      %v10843 = vunpack.c.l.b16 %v10667
      %v10844 = vunpack.c.l.b16 %v10668
      %v10845 = vunpack.c.l.b16 %v10669
      %v10846 = vunpack.c.l.b16 %v10670
      %v10847 = vunpack.c.l.b16 %v10671
      %v10848 = vunpack.c.l.b16 %v10672
      %v10849 = vunpack.c.l.b16 %v10673
      %v10850 = vpack.c.b16 %v10835, %v10834
      %v10851 = vpack.c.b16 %v10837, %v10836
      %v10852 = vpack.c.b16 %v10839, %v10838
      %v10853 = vpack.c.b16 %v10841, %v10840
      %v10854 = vpack.c.b16 %v10843, %v10842
      %v10855 = vpack.c.b16 %v10845, %v10844
      %v10856 = vpack.c.b16 %v10847, %v10846
      %v10857 = vpack.c.b16 %v10849, %v10848
      %10866 = vmatprep.subr.bf16.mxu0 0
      %10867 = vmatpush1.bf16.msra.mxu0 %v10850
      %10868 = vmatprep.subr.bf16.mxu0 0
      %10869 = vmatpush1.bf16.msra.mxu0 %v10851
      %10870 = vmatprep.subr.bf16.mxu0 0
      %10871 = vmatpush1.bf16.msra.mxu0 %v10852
      %10872 = vmatprep.subr.bf16.mxu0 0
      %10873 = vmatpush1.bf16.msra.mxu0 %v10853
      %10874 = vmatprep.subr.bf16.mxu0 0
      %10875 = vmatpush1.bf16.msra.mxu0 %v10854
      %10876 = vmatprep.subr.bf16.mxu0 0
      %10877 = vmatpush1.bf16.msra.mxu0 %v10855
      %10878 = vmatprep.subr.bf16.mxu0 0
      %10879 = vmatpush1.bf16.msra.mxu0 %v10856
      %10880 = vmatprep.subr.bf16.mxu0 0
      %10881 = vmatpush1.bf16.msra.mxu0 %v10857
      %10882 = vmatprep.subr.bf16.mxu0 0
      %10883 = vmatpush1.bf16.msra.mxu0 0
      %10884 = vmatprep.subr.bf16.mxu0 0
      %10885 = vmatpush1.bf16.msra.mxu0 0
      %10886 = vmatprep.subr.bf16.mxu0 0
      %10887 = vmatpush1.bf16.msra.mxu0 0
      %10888 = vmatprep.subr.bf16.mxu0 0
      %10889 = vmatpush1.bf16.msra.mxu0 0
      %10890 = vmatprep.subr.bf16.mxu0 0
      %10891 = vmatpush1.bf16.msra.mxu0 0
      %10892 = vmatprep.subr.bf16.mxu0 0
      %10893 = vmatpush1.bf16.msra.mxu0 0
      %10894 = vmatprep.subr.bf16.mxu0 0
      %10895 = vmatpush1.bf16.msra.mxu0 0
      %10896 = vmatprep.subr.bf16.mxu0 0
      %10897 = vmatpush1.bf16.msra.mxu0 0
      %10898 = vmatprep.mubr.bf16.mxu0 0
      %10899 = vmatmul.mubr.bf16.gmra.mrb[0].mxu0 %v10770
      %v10900 = vpop.f32.mrb[0].mxu0
      %v10901 = vadd.f32 0.0, %v10900
      %v10902 = vpop.f32.mrb[0].mxu0
      %v10903 = vpop.f32.mrb[0].mxu0
      %v10904 = vadd.f32 0.0, %v10903
      %v10905 = vpop.f32.mrb[0].mxu0
      %10906 = vmatprep.mubr.bf16.mxu0 0
      %10907 = vmatmul.mubr.bf16.gmra.mrb[0].mxu0 %v10771
      %v10908 = vpop.f32.mrb[0].mxu0
      %v10909 = vpop.f32.mrb[0].mxu0
      %v10910 = vpop.f32.mrb[0].mxu0
      %v10911 = vadd.f32 0.0, %v10910
      %v10912 = vpop.f32.mrb[0].mxu0
      %10913 = vmatprep.mubr.bf16.mxu0 0
      %10914 = vmatmul.mubr.bf16.gmra.mrb[0].mxu0 %v10772
      %v10915 = vpop.f32.mrb[0].mxu0
      %v10916 = vadd.f32 0.0, %v10915
      %v10917 = vpop.f32.mrb[0].mxu0
      %v10918 = vpop.f32.mrb[0].mxu0
      %v10919 = vpop.f32.mrb[0].mxu0
      %10920 = vmatprep.mubr.bf16.mxu0 0
      %10921 = vmatmul.mubr.bf16.gmra.mrb[0].mxu0 %v10773
      %v10922 = vpop.f32.mrb[0].mxu0
      %v10923 = vadd.f32 0.0, %v10922
      %v10924 = vpop.f32.mrb[0].mxu0
      %v10925 = vpop.f32.mrb[0].mxu0
      %v10926 = vadd.f32 0.0, %v10925
      %v10927 = vpop.f32.mrb[0].mxu0
      %10928 = vmatprep.mubr.bf16.mxu0 0
      %10929 = vmatmul.mubr.bf16.gmra.mrb[0].mxu0 %v10774
      %v10930 = vpop.f32.mrb[0].mxu0
      %v10931 = vpop.f32.mrb[0].mxu0
      %v10932 = vpop.f32.mrb[0].mxu0
      %v10933 = vadd.f32 0.0, %v10932
      %v10934 = vpop.f32.mrb[0].mxu0
      %10935 = vmatprep.mubr.bf16.mxu0 0
      %10936 = vmatmul.mubr.bf16.gmra.mrb[0].mxu0 %v10775
      %v10937 = vpop.f32.mrb[0].mxu0
      %v10938 = vadd.f32 0.0, %v10937
      %v10939 = vpop.f32.mrb[0].mxu0
      %v10940 = vpop.f32.mrb[0].mxu0
      %v10941 = vpop.f32.mrb[0].mxu0
      %10942 = vmatprep.mubr.bf16.mxu0 0
      %10943 = vmatmul.mubr.bf16.gmra.mrb[0].mxu0 %v10776
      %v10944 = vpop.f32.mrb[0].mxu0
      %v10945 = vadd.f32 0.0, %v10944
      %v10946 = vpop.f32.mrb[0].mxu0
      %v10947 = vpop.f32.mrb[0].mxu0
      %v10948 = vadd.f32 0.0, %v10947
      %v10949 = vpop.f32.mrb[0].mxu0
      %10950 = vmatprep.mubr.bf16.mxu0 0
      %10951 = vmatmul.mubr.bf16.gmra.mrb[0].mxu0 %v10777
      %v10952 = vpop.f32.mrb[0].mxu0
      %v10953 = vpop.f32.mrb[0].mxu0
      %v10954 = vpop.f32.mrb[0].mxu0
      %v10955 = vadd.f32 0.0, %v10954
      %v10956 = vpop.f32.mrb[0].mxu0
      %10957 = vmatprep.mubr.bf16.mxu0 0
      %10958 = vmatmul.mubr.bf16.gmra.mrb[0].mxu0 %v10778
      %v10959 = vpop.f32.mrb[0].mxu0
      %v10960 = vadd.f32 0.0, %v10959
      %v10961 = vpop.f32.mrb[0].mxu0
      %v10962 = vpop.f32.mrb[0].mxu0
      %v10963 = vpop.f32.mrb[0].mxu0
      %10964 = vmatprep.mubr.bf16.mxu0 0
      %10965 = vmatmul.mubr.bf16.gmra.mrb[0].mxu0 %v10779
      %v10966 = vpop.f32.mrb[0].mxu0
      %v10967 = vadd.f32 0.0, %v10966
      %v10968 = vpop.f32.mrb[0].mxu0
      %v10969 = vpop.f32.mrb[0].mxu0
      %v10970 = vadd.f32 0.0, %v10969
      %v10971 = vpop.f32.mrb[0].mxu0
      %10972 = vmatprep.mubr.bf16.mxu0 0
      %10973 = vmatmul.mubr.bf16.gmra.mrb[0].mxu0 %v10780
      %v10974 = vpop.f32.mrb[0].mxu0
      %v10975 = vpop.f32.mrb[0].mxu0
      %v10976 = vpop.f32.mrb[0].mxu0
      %v10977 = vadd.f32 0.0, %v10976
      %v10978 = vpop.f32.mrb[0].mxu0
      %10979 = vmatprep.mubr.bf16.mxu0 0
      %10980 = vmatmul.mubr.bf16.gmra.mrb[0].mxu0 %v10781
      %v10981 = vpop.f32.mrb[0].mxu0
      %v10982 = vadd.f32 0.0, %v10981
      %v10983 = vpop.f32.mrb[0].mxu0
      %v10984 = vpop.f32.mrb[0].mxu0
      %v10985 = vpop.f32.mrb[0].mxu0
      %10986 = vmatprep.mubr.bf16.mxu0 0
      %10987 = vmatmul.mubr.bf16.gmra.mrb[0].mxu0 %v10782
      %v10988 = vpop.f32.mrb[0].mxu0
      %v10989 = vadd.f32 0.0, %v10988
      %v10990 = vpop.f32.mrb[0].mxu0
      %v10991 = vpop.f32.mrb[0].mxu0
      %v10992 = vadd.f32 0.0, %v10991
      %v10993 = vpop.f32.mrb[0].mxu0
      %10994 = vmatprep.mubr.bf16.mxu0 0
      %10995 = vmatmul.mubr.bf16.gmra.mrb[0].mxu0 %v10783
      %v10996 = vpop.f32.mrb[0].mxu0
      %v10997 = vpop.f32.mrb[0].mxu0
      %v10998 = vpop.f32.mrb[0].mxu0
      %v10999 = vadd.f32 0.0, %v10998
      %v11000 = vpop.f32.mrb[0].mxu0
      %11001 = vmatprep.mubr.bf16.mxu0 0
      %11002 = vmatmul.mubr.bf16.gmra.mrb[0].mxu0 %v10784
      %v11003 = vpop.f32.mrb[0].mxu0
      %v11004 = vadd.f32 0.0, %v11003
      %v11005 = vpop.f32.mrb[0].mxu0
      %v11006 = vpop.f32.mrb[0].mxu0
      %v11007 = vpop.f32.mrb[0].mxu0
      %11008 = vmatprep.mubr.bf16.mxu0 0
      %11009 = vmatmul.mubr.bf16.gmra.mrb[0].mxu0 %v10785
      %v11010 = vpop.f32.mrb[0].mxu0
      %v11011 = vadd.f32 0.0, %v11010
      %v11012 = vpop.f32.mrb[0].mxu0
      %v11013 = vpop.f32.mrb[0].mxu0
      %v11014 = vadd.f32 0.0, %v11013
      %v11015 = vpop.f32.mrb[0].mxu0
      %11016 = vmatprep.mubr.bf16.mxu0 0
      %11017 = vmatmul.mubr.bf16.gmra.mrb[0].mxu0 %v10786
      %v11018 = vpop.f32.mrb[0].mxu0
      %v11019 = vpop.f32.mrb[0].mxu0
      %v11020 = vpop.f32.mrb[0].mxu0
      %v11021 = vadd.f32 0.0, %v11020
      %v11022 = vpop.f32.mrb[0].mxu0
      %11023 = vmatprep.mubr.bf16.mxu0 0
      %11024 = vmatmul.mubr.bf16.gmra.mrb[0].mxu0 %v10787
      %v11025 = vpop.f32.mrb[0].mxu0
      %v11026 = vadd.f32 0.0, %v11025
      %v11027 = vpop.f32.mrb[0].mxu0
      %v11028 = vpop.f32.mrb[0].mxu0
      %v11029 = vpop.f32.mrb[0].mxu0
      %11030 = vmatprep.mubr.bf16.mxu0 0
      %11031 = vmatmul.mubr.bf16.gmra.mrb[0].mxu0 %v10788
      %v11032 = vpop.f32.mrb[0].mxu0
      %v11033 = vadd.f32 0.0, %v11032
      %v11034 = vpop.f32.mrb[0].mxu0
      %v11035 = vpop.f32.mrb[0].mxu0
      %v11036 = vadd.f32 0.0, %v11035
      %v11037 = vpop.f32.mrb[0].mxu0
      %11038 = vmatprep.mubr.bf16.mxu0 0
      %11039 = vmatmul.mubr.bf16.gmra.mrb[0].mxu0 %v10789
      %v11040 = vpop.f32.mrb[0].mxu0
      %v11041 = vpop.f32.mrb[0].mxu0
      %v11042 = vpop.f32.mrb[0].mxu0
      %v11043 = vadd.f32 0.0, %v11042
      %v11044 = vpop.f32.mrb[0].mxu0
      %11045 = vmatprep.mubr.bf16.mxu0 0
      %11046 = vmatmul.mubr.bf16.gmra.mrb[0].mxu0 %v10790
      %v11047 = vpop.f32.mrb[0].mxu0
      %v11048 = vadd.f32 0.0, %v11047
      %v11049 = vpop.f32.mrb[0].mxu0
      %v11050 = vpop.f32.mrb[0].mxu0
      %v11051 = vpop.f32.mrb[0].mxu0
      %11052 = vmatprep.mubr.bf16.mxu0 0
      %11053 = vmatmul.mubr.bf16.gmra.mrb[0].mxu0 %v10791
      %v11054 = vpop.f32.mrb[0].mxu0
      %v11055 = vadd.f32 0.0, %v11054
      %v11056 = vpop.f32.mrb[0].mxu0
      %v11057 = vpop.f32.mrb[0].mxu0
      %v11058 = vadd.f32 0.0, %v11057
      %v11059 = vpop.f32.mrb[0].mxu0
      %11060 = vmatprep.mubr.bf16.mxu0 0
      %11061 = vmatmul.mubr.bf16.gmra.mrb[0].mxu0 %v10792
      %v11062 = vpop.f32.mrb[0].mxu0
      %v11063 = vpop.f32.mrb[0].mxu0
      %v11064 = vpop.f32.mrb[0].mxu0
      %v11065 = vadd.f32 0.0, %v11064
      %v11066 = vpop.f32.mrb[0].mxu0
      %11067 = vmatprep.mubr.bf16.mxu0 0
      %11068 = vmatmul.mubr.bf16.gmra.mrb[0].mxu0 %v10793
      %v11069 = vpop.f32.mrb[0].mxu0
      %v11070 = vadd.f32 0.0, %v11069
      %v11071 = vpop.f32.mrb[0].mxu0
      %v11072 = vpop.f32.mrb[0].mxu0
      %v11073 = vpop.f32.mrb[0].mxu0
      %11074 = vdwg.mxu0
      %v11075 = vadd.f32 %v10577, %v10901
      %v11076 = vadd.f32 %v10578, %v10904
      %v11077 = vadd.f32 %v10579, %v10911
      %v11078 = vadd.f32 %v10580, %v10916
      %v11079 = vadd.f32 %v10581, %v10923
      %v11080 = vadd.f32 %v10582, %v10926
      %v11081 = vadd.f32 %v10583, %v10933
      %v11082 = vadd.f32 %v10584, %v10938
      %v11083 = vadd.f32 %v10585, %v10945
      %v11084 = vadd.f32 %v10586, %v10948
      %v11085 = vadd.f32 %v10587, %v10955
      %v11086 = vadd.f32 %v10588, %v10960
      %v11087 = vadd.f32 %v10589, %v10967
      %v11088 = vadd.f32 %v10590, %v10970
      %v11089 = vadd.f32 %v10591, %v10977
      %v11090 = vadd.f32 %v10592, %v10982
      %v11091 = vadd.f32 %v10593, %v10989
      %v11092 = vadd.f32 %v10594, %v10992
      %v11093 = vadd.f32 %v10595, %v10999
      %v11094 = vadd.f32 %v10596, %v11004
      %v11095 = vadd.f32 %v10597, %v11011
      %v11096 = vadd.f32 %v10598, %v11014
      %v11097 = vadd.f32 %v10599, %v11021
      %v11098 = vadd.f32 %v10600, %v11026
      %v11099 = vadd.f32 %v10601, %v11033
      %v11100 = vadd.f32 %v10602, %v11036
      %v11101 = vadd.f32 %v10603, %v11043
      %v11102 = vadd.f32 %v10604, %v11048
      %v11103 = vadd.f32 %v10605, %v11055
      %v11104 = vadd.f32 %v10606, %v11058
      %v11105 = vadd.f32 %v10607, %v11065
      %v11106 = vadd.f32 %v10608, %v11070
      %v11107 = vld [vmem:[#allocation2 + $0x18] sm:$0xf]
      %v11108 = vld [vmem:[#allocation2 + $0x1c] sm:$0xf]
      %v11109 = vld [vmem:[#allocation2 + $0x20] sm:$0xf]
      %v11110 = vld [vmem:[#allocation2 + $0x24] sm:$0xf]
      %v11111 = vld [vmem:[#allocation2 + $0x28] sm:$0xf]
      %v11112 = vld [vmem:[#allocation2 + $0x2c] sm:$0xf]
      %v11113 = vld [vmem:[#allocation2 + $0x30] sm:$0xf]
      %v11114 = vld [vmem:[#allocation2 + $0x34] sm:$0xf]
      %v11115 = vld [vmem:[#allocation2 + $0x38] sm:$0xf]
      %v11116 = vld [vmem:[#allocation2 + $0x3c] sm:$0xf]
      %v11117 = vld [vmem:[#allocation2 + $0x40] sm:$0xf]
      %v11118 = vld [vmem:[#allocation2 + $0x44] sm:$0xf]
      %v11119 = vld [vmem:[#allocation2 + $0x48] sm:$0xf]
      %v11120 = vld [vmem:[#allocation2 + $0x4c] sm:$0xf]
      %v11121 = vld [vmem:[#allocation2 + $0x50] sm:$0xf]
      %v11122 = vld [vmem:[#allocation2 + $0x54] sm:$0xf]
      %v11123 = vld [vmem:[#allocation2 + $0x58] sm:$0xf]
      %v11124 = vld [vmem:[#allocation2 + $0x5c] sm:$0xf]
      %v11125 = vld [vmem:[#allocation2 + $0x60] sm:$0xf]
      %v11126 = vld [vmem:[#allocation2 + $0x64] sm:$0xf]
      %v11127 = vld [vmem:[#allocation2 + $0x68] sm:$0xf]
      %v11128 = vld [vmem:[#allocation2 + $0x6c] sm:$0xf]
      %v11129 = vld [vmem:[#allocation2 + $0x70] sm:$0xf]
      %v11130 = vld [vmem:[#allocation2 + $0x74] sm:$0xf]
      %v11131 = vld [vmem:[#allocation2 + $0x78] sm:$0xf]
      %v11132 = vld [vmem:[#allocation2 + $0x7c] sm:$0xf]
      %v11133 = vld [vmem:[#allocation2 + $0x80] sm:$0xf]
      %v11134 = vld [vmem:[#allocation2 + $0x84] sm:$0xf]
      %v11135 = vld [vmem:[#allocation2 + $0x88] sm:$0xf]
      %v11136 = vld [vmem:[#allocation2 + $0x8c] sm:$0xf]
      %v11137 = vld [vmem:[#allocation2 + $0x90] sm:$0xf]
      %v11138 = vld [vmem:[#allocation2 + $0x94] sm:$0xf]
      %v11139 = vld [vmem:[#allocation2 + $0x98] sm:$0xf]
      %v11140 = vld [vmem:[#allocation2 + $0x9c] sm:$0xf]
      %v11141 = vld [vmem:[#allocation2 + $0xa0] sm:$0xf]
      %v11142 = vld [vmem:[#allocation2 + $0xa4] sm:$0xf]
      %v11143 = vld [vmem:[#allocation2 + $0xa8] sm:$0xf]
      %v11144 = vld [vmem:[#allocation2 + $0xac] sm:$0xf]
      %v11145 = vld [vmem:[#allocation2 + $0xb0] sm:$0xf]
      %v11146 = vld [vmem:[#allocation2 + $0xb4] sm:$0xf]
      %v11147 = vld [vmem:[#allocation2 + $0xb8] sm:$0xf]
      %v11148 = vld [vmem:[#allocation2 + $0xbc] sm:$0xf]
      %v11149 = vld [vmem:[#allocation2 + $0xc0] sm:$0xf]
      %v11150 = vld [vmem:[#allocation2 + $0xc4] sm:$0xf]
      %v11151 = vld [vmem:[#allocation2 + $0xc8] sm:$0xf]
      %v11152 = vld [vmem:[#allocation2 + $0xcc] sm:$0xf]
      %v11153 = vld [vmem:[#allocation2 + $0xd0] sm:$0xf]
      %v11154 = vld [vmem:[#allocation2 + $0xd4] sm:$0xf]
      %v11155 = vld [vmem:[#allocation2 + $0xd8] sm:$0x1]
      %s11156 = scalar_lea.vmem %s3, 448
      %v11157 = vld [vmem:[%s11156] sm:$0xf]
      %v11158 = vld [vmem:[%s11156 + $0x4] sm:$0xf]
      %v11159 = vld [vmem:[%s11156 + $0x8] sm:$0xf]
      %v11160 = vld [vmem:[%s11156 + $0xc] sm:$0xf]
      %v11161 = vld [vmem:[%s11156 + $0x10] sm:$0xf]
      %v11162 = vld [vmem:[%s11156 + $0x14] sm:$0xf]
      %v11163 = vld [vmem:[%s11156 + $0x18] sm:$0xf]
      %v11164 = vld [vmem:[%s11156 + $0x1c] sm:$0xf]
      %v11165 = vld [vmem:[%s11156 + $0x20] sm:$0xf]
      %v11166 = vld [vmem:[%s11156 + $0x24] sm:$0xf]
      %v11167 = vld [vmem:[%s11156 + $0x28] sm:$0xf]
      %v11168 = vld [vmem:[%s11156 + $0x2c] sm:$0xf]
      %v11169 = vld [vmem:[%s11156 + $0x30] sm:$0xf]
      %v11170 = vld [vmem:[%s11156 + $0x34] sm:$0xf]
      %v11171 = vld [vmem:[%s11156 + $0x38] sm:$0xf]
      %v11172 = vld [vmem:[%s11156 + $0x3c] sm:$0xf]
      %v11222 = vunpack.c.l.b16 %v11107
      %v11223 = vunpack.c.l.b16 %v11108
      %v11224 = vunpack.c.l.b16 %v11109
      %v11225 = vunpack.c.l.b16 %v11110
      %v11226 = vunpack.c.l.b16 %v11111
      %v11227 = vunpack.c.l.b16 %v11112
      %v11228 = vunpack.c.l.b16 %v11113
      %v11229 = vunpack.c.l.b16 %v11114
      %v11230 = vunpack.c.l.b16 %v11115
      %v11231 = vunpack.c.l.b16 %v11116
      %v11232 = vunpack.c.l.b16 %v11117
      %v11233 = vunpack.c.l.b16 %v11118
      %v11234 = vunpack.c.l.b16 %v11119
      %v11235 = vunpack.c.l.b16 %v11120
      %v11236 = vunpack.c.l.b16 %v11121
      %v11237 = vunpack.c.l.b16 %v11122
      %v11238 = vunpack.c.l.b16 %v11123
      %v11239 = vunpack.c.l.b16 %v11124
      %v11240 = vunpack.c.l.b16 %v11125
      %v11241 = vunpack.c.l.b16 %v11126
      %v11242 = vunpack.c.l.b16 %v11127
      %v11243 = vunpack.c.l.b16 %v11128
      %v11244 = vunpack.c.l.b16 %v11129
      %v11245 = vunpack.c.l.b16 %v11130
      %v11246 = vunpack.c.l.b16 %v11131
      %v11247 = vunpack.c.l.b16 %v11132
      %v11248 = vunpack.c.l.b16 %v11133
      %v11249 = vunpack.c.l.b16 %v11134
      %v11250 = vunpack.c.l.b16 %v11135
      %v11251 = vunpack.c.l.b16 %v11136
      %v11252 = vunpack.c.l.b16 %v11137
      %v11253 = vunpack.c.l.b16 %v11138
      %v11254 = vunpack.c.l.b16 %v11139
      %v11255 = vunpack.c.l.b16 %v11140
      %v11256 = vunpack.c.l.b16 %v11141
      %v11257 = vunpack.c.l.b16 %v11142
      %v11258 = vunpack.c.l.b16 %v11143
      %v11259 = vunpack.c.l.b16 %v11144
      %v11260 = vunpack.c.l.b16 %v11145
      %v11261 = vunpack.c.l.b16 %v11146
      %v11262 = vunpack.c.l.b16 %v11147
      %v11263 = vunpack.c.l.b16 %v11148
      %v11264 = vunpack.c.l.b16 %v11149
      %v11265 = vunpack.c.l.b16 %v11150
      %v11266 = vunpack.c.l.b16 %v11151
      %v11267 = vunpack.c.l.b16 %v11152
      %v11268 = vunpack.c.l.b16 %v11153
      %v11269 = vunpack.c.l.b16 %v11154
      %v11270 = vunpack.c.l.b16 %v11155
      %v11271 = vpack.c.b16 %v11223, %v11222
      %v11272 = vpack.c.b16 %v11225, %v11224
      %v11273 = vpack.c.b16 %v11227, %v11226
      %v11274 = vpack.c.b16 %v11229, %v11228
      %v11275 = vpack.c.b16 %v11231, %v11230
      %v11276 = vpack.c.b16 %v11233, %v11232
      %v11277 = vpack.c.b16 %v11235, %v11234
      %v11278 = vpack.c.b16 %v11237, %v11236
      %v11279 = vpack.c.b16 %v11239, %v11238
      %v11280 = vpack.c.b16 %v11241, %v11240
      %v11281 = vpack.c.b16 %v11243, %v11242
      %v11282 = vpack.c.b16 %v11245, %v11244
      %v11283 = vpack.c.b16 %v11247, %v11246
      %v11284 = vpack.c.b16 %v11249, %v11248
      %v11285 = vpack.c.b16 %v11251, %v11250
      %v11286 = vpack.c.b16 %v11253, %v11252
      %v11287 = vpack.c.b16 %v11255, %v11254
      %v11288 = vpack.c.b16 %v11257, %v11256
      %v11289 = vpack.c.b16 %v11259, %v11258
      %v11290 = vpack.c.b16 %v11261, %v11260
      %v11291 = vpack.c.b16 %v11263, %v11262
      %v11292 = vpack.c.b16 %v11265, %v11264
      %v11293 = vpack.c.b16 %v11267, %v11266
      %v11294 = vpack.c.b16 %v11269, %v11268
      %v11295 = vpack.c.b16 %v11270, %v11270
      %v11297 = vshrl.u32 %v11271, 16
      %v11299 = vshll.u32 %v11271, 16
      %v11301 = vrot.slane %v11299, 1
      %v11302 = vor.u32 %v11297, %v11301
      %v11304 = vshll.u32 %v11272, 16
      %v11306 = vrot.slane %v11304, 1
      %v11307 = vsel %vm458, %v11302, %v11306
      %v11308 = vshrl.u32 %v11272, 16
      %v11310 = vor.u32 %v11308, %v11306
      %v11312 = vshll.u32 %v11273, 16
      %v11314 = vrot.slane %v11312, 1
      %v11315 = vsel %vm458, %v11310, %v11314
      %v11316 = vshrl.u32 %v11273, 16
      %v11318 = vor.u32 %v11316, %v11314
      %v11320 = vshll.u32 %v11274, 16
      %v11322 = vrot.slane %v11320, 1
      %v11323 = vsel %vm458, %v11318, %v11322
      %v11324 = vshrl.u32 %v11274, 16
      %v11326 = vor.u32 %v11324, %v11322
      %v11328 = vshll.u32 %v11275, 16
      %v11330 = vrot.slane %v11328, 1
      %v11331 = vsel %vm458, %v11326, %v11330
      %v11332 = vshrl.u32 %v11275, 16
      %v11334 = vor.u32 %v11332, %v11330
      %v11336 = vshll.u32 %v11276, 16
      %v11338 = vrot.slane %v11336, 1
      %v11339 = vsel %vm458, %v11334, %v11338
      %v11340 = vshrl.u32 %v11276, 16
      %v11342 = vor.u32 %v11340, %v11338
      %v11344 = vshll.u32 %v11277, 16
      %v11346 = vrot.slane %v11344, 1
      %v11347 = vsel %vm458, %v11342, %v11346
      %v11348 = vshrl.u32 %v11277, 16
      %v11350 = vor.u32 %v11348, %v11346
      %v11352 = vshll.u32 %v11278, 16
      %v11354 = vrot.slane %v11352, 1
      %v11355 = vsel %vm458, %v11350, %v11354
      %v11356 = vshrl.u32 %v11278, 16
      %v11358 = vor.u32 %v11356, %v11354
      %v11360 = vshll.u32 %v11279, 16
      %v11362 = vrot.slane %v11360, 1
      %v11363 = vsel %vm458, %v11358, %v11362
      %v11364 = vshrl.u32 %v11279, 16
      %v11366 = vor.u32 %v11364, %v11362
      %v11368 = vshll.u32 %v11280, 16
      %v11370 = vrot.slane %v11368, 1
      %v11371 = vsel %vm458, %v11366, %v11370
      %v11372 = vshrl.u32 %v11280, 16
      %v11374 = vor.u32 %v11372, %v11370
      %v11376 = vshll.u32 %v11281, 16
      %v11378 = vrot.slane %v11376, 1
      %v11379 = vsel %vm458, %v11374, %v11378
      %v11380 = vshrl.u32 %v11281, 16
      %v11382 = vor.u32 %v11380, %v11378
      %v11384 = vshll.u32 %v11282, 16
      %v11386 = vrot.slane %v11384, 1
      %v11387 = vsel %vm458, %v11382, %v11386
      %v11388 = vshrl.u32 %v11282, 16
      %v11390 = vor.u32 %v11388, %v11386
      %v11392 = vshll.u32 %v11283, 16
      %v11394 = vrot.slane %v11392, 1
      %v11395 = vsel %vm458, %v11390, %v11394
      %v11396 = vshrl.u32 %v11283, 16
      %v11398 = vor.u32 %v11396, %v11394
      %v11400 = vshll.u32 %v11284, 16
      %v11402 = vrot.slane %v11400, 1
      %v11403 = vsel %vm458, %v11398, %v11402
      %v11404 = vshrl.u32 %v11284, 16
      %v11406 = vor.u32 %v11404, %v11402
      %v11408 = vshll.u32 %v11285, 16
      %v11410 = vrot.slane %v11408, 1
      %v11411 = vsel %vm458, %v11406, %v11410
      %v11412 = vshrl.u32 %v11285, 16
      %v11414 = vor.u32 %v11412, %v11410
      %v11416 = vshll.u32 %v11286, 16
      %v11418 = vrot.slane %v11416, 1
      %v11419 = vsel %vm458, %v11414, %v11418
      %v11420 = vshrl.u32 %v11286, 16
      %v11422 = vor.u32 %v11420, %v11418
      %v11424 = vshll.u32 %v11287, 16
      %v11426 = vrot.slane %v11424, 1
      %v11427 = vsel %vm458, %v11422, %v11426
      %v11428 = vshrl.u32 %v11287, 16
      %v11430 = vor.u32 %v11428, %v11426
      %v11432 = vshll.u32 %v11288, 16
      %v11434 = vrot.slane %v11432, 1
      %v11435 = vsel %vm458, %v11430, %v11434
      %v11436 = vshrl.u32 %v11288, 16
      %v11438 = vor.u32 %v11436, %v11434
      %v11440 = vshll.u32 %v11289, 16
      %v11442 = vrot.slane %v11440, 1
      %v11443 = vsel %vm458, %v11438, %v11442
      %v11444 = vshrl.u32 %v11289, 16
      %v11446 = vor.u32 %v11444, %v11442
      %v11448 = vshll.u32 %v11290, 16
      %v11450 = vrot.slane %v11448, 1
      %v11451 = vsel %vm458, %v11446, %v11450
      %v11452 = vshrl.u32 %v11290, 16
      %v11454 = vor.u32 %v11452, %v11450
      %v11456 = vshll.u32 %v11291, 16
      %v11458 = vrot.slane %v11456, 1
      %v11459 = vsel %vm458, %v11454, %v11458
      %v11460 = vshrl.u32 %v11291, 16
      %v11462 = vor.u32 %v11460, %v11458
      %v11464 = vshll.u32 %v11292, 16
      %v11466 = vrot.slane %v11464, 1
      %v11467 = vsel %vm458, %v11462, %v11466
      %v11468 = vshrl.u32 %v11292, 16
      %v11470 = vor.u32 %v11468, %v11466
      %v11472 = vshll.u32 %v11293, 16
      %v11474 = vrot.slane %v11472, 1
      %v11475 = vsel %vm458, %v11470, %v11474
      %v11476 = vshrl.u32 %v11293, 16
      %v11478 = vor.u32 %v11476, %v11474
      %v11480 = vshll.u32 %v11294, 16
      %v11482 = vrot.slane %v11480, 1
      %v11483 = vsel %vm458, %v11478, %v11482
      %v11484 = vshrl.u32 %v11294, 16
      %v11486 = vor.u32 %v11484, %v11482
      %v11488 = vshll.u32 %v11295, 16
      %v11490 = vrot.slane %v11488, 1
      %v11491 = vsel %vm458, %v11486, %v11490
      %v11532 = vunpack.c.l.b16 %v11157
      %v11533 = vunpack.c.l.b16 %v11158
      %v11534 = vunpack.c.l.b16 %v11159
      %v11535 = vunpack.c.l.b16 %v11160
      %v11536 = vunpack.c.l.b16 %v11161
      %v11537 = vunpack.c.l.b16 %v11162
      %v11538 = vunpack.c.l.b16 %v11163
      %v11539 = vunpack.c.l.b16 %v11164
      %v11540 = vunpack.c.l.b16 %v11165
      %v11541 = vunpack.c.l.b16 %v11166
      %v11542 = vunpack.c.l.b16 %v11167
      %v11543 = vunpack.c.l.b16 %v11168
      %v11544 = vunpack.c.l.b16 %v11169
      %v11545 = vunpack.c.l.b16 %v11170
      %v11546 = vunpack.c.l.b16 %v11171
      %v11547 = vunpack.c.l.b16 %v11172
      %v11548 = vpack.c.b16 %v11533, %v11532
      %v11549 = vpack.c.b16 %v11535, %v11534
      %v11550 = vpack.c.b16 %v11537, %v11536
      %v11551 = vpack.c.b16 %v11539, %v11538
      %v11552 = vpack.c.b16 %v11541, %v11540
      %v11553 = vpack.c.b16 %v11543, %v11542
      %v11554 = vpack.c.b16 %v11545, %v11544
      %v11555 = vpack.c.b16 %v11547, %v11546
      %11564 = vmatprep.subr.bf16.mxu0 0
      %11565 = vmatpush1.bf16.msra.mxu0 %v11548
      %11566 = vmatprep.subr.bf16.mxu0 0
      %11567 = vmatpush1.bf16.msra.mxu0 %v11549
      %11568 = vmatprep.subr.bf16.mxu0 0
      %11569 = vmatpush1.bf16.msra.mxu0 %v11550
      %11570 = vmatprep.subr.bf16.mxu0 0
      %11571 = vmatpush1.bf16.msra.mxu0 %v11551
      %11572 = vmatprep.subr.bf16.mxu0 0
      %11573 = vmatpush1.bf16.msra.mxu0 %v11552
      %11574 = vmatprep.subr.bf16.mxu0 0
      %11575 = vmatpush1.bf16.msra.mxu0 %v11553
      %11576 = vmatprep.subr.bf16.mxu0 0
      %11577 = vmatpush1.bf16.msra.mxu0 %v11554
      %11578 = vmatprep.subr.bf16.mxu0 0
      %11579 = vmatpush1.bf16.msra.mxu0 %v11555
      %11580 = vmatprep.subr.bf16.mxu0 0
      %11581 = vmatpush1.bf16.msra.mxu0 0
      %11582 = vmatprep.subr.bf16.mxu0 0
      %11583 = vmatpush1.bf16.msra.mxu0 0
      %11584 = vmatprep.subr.bf16.mxu0 0
      %11585 = vmatpush1.bf16.msra.mxu0 0
      %11586 = vmatprep.subr.bf16.mxu0 0
      %11587 = vmatpush1.bf16.msra.mxu0 0
      %11588 = vmatprep.subr.bf16.mxu0 0
      %11589 = vmatpush1.bf16.msra.mxu0 0
      %11590 = vmatprep.subr.bf16.mxu0 0
      %11591 = vmatpush1.bf16.msra.mxu0 0
      %11592 = vmatprep.subr.bf16.mxu0 0
      %11593 = vmatpush1.bf16.msra.mxu0 0
      %11594 = vmatprep.subr.bf16.mxu0 0
      %11595 = vmatpush1.bf16.msra.mxu0 0
      %11596 = vmatprep.mubr.bf16.mxu0 0
      %11597 = vmatmul.mubr.bf16.gmra.mrb[0].mxu0 %v11307
      %v11598 = vpop.f32.mrb[0].mxu0
      %v11599 = vadd.f32 0.0, %v11598
      %v11600 = vpop.f32.mrb[0].mxu0
      %v11601 = vpop.f32.mrb[0].mxu0
      %v11602 = vadd.f32 0.0, %v11601
      %v11603 = vpop.f32.mrb[0].mxu0
      %11604 = vmatprep.mubr.bf16.mxu0 0
      %11605 = vmatmul.mubr.bf16.gmra.mrb[0].mxu0 %v11315
      %v11606 = vpop.f32.mrb[0].mxu0
      %v11607 = vpop.f32.mrb[0].mxu0
      %v11608 = vpop.f32.mrb[0].mxu0
      %v11609 = vadd.f32 0.0, %v11608
      %v11610 = vpop.f32.mrb[0].mxu0
      %11611 = vmatprep.mubr.bf16.mxu0 0
      %11612 = vmatmul.mubr.bf16.gmra.mrb[0].mxu0 %v11323
      %v11613 = vpop.f32.mrb[0].mxu0
      %v11614 = vadd.f32 0.0, %v11613
      %v11615 = vpop.f32.mrb[0].mxu0
      %v11616 = vpop.f32.mrb[0].mxu0
      %v11617 = vpop.f32.mrb[0].mxu0
      %11618 = vmatprep.mubr.bf16.mxu0 0
      %11619 = vmatmul.mubr.bf16.gmra.mrb[0].mxu0 %v11331
      %v11620 = vpop.f32.mrb[0].mxu0
      %v11621 = vadd.f32 0.0, %v11620
      %v11622 = vpop.f32.mrb[0].mxu0
      %v11623 = vpop.f32.mrb[0].mxu0
      %v11624 = vadd.f32 0.0, %v11623
      %v11625 = vpop.f32.mrb[0].mxu0
      %11626 = vmatprep.mubr.bf16.mxu0 0
      %11627 = vmatmul.mubr.bf16.gmra.mrb[0].mxu0 %v11339
      %v11628 = vpop.f32.mrb[0].mxu0
      %v11629 = vpop.f32.mrb[0].mxu0
      %v11630 = vpop.f32.mrb[0].mxu0
      %v11631 = vadd.f32 0.0, %v11630
      %v11632 = vpop.f32.mrb[0].mxu0
      %11633 = vmatprep.mubr.bf16.mxu0 0
      %11634 = vmatmul.mubr.bf16.gmra.mrb[0].mxu0 %v11347
      %v11635 = vpop.f32.mrb[0].mxu0
      %v11636 = vadd.f32 0.0, %v11635
      %v11637 = vpop.f32.mrb[0].mxu0
      %v11638 = vpop.f32.mrb[0].mxu0
      %v11639 = vpop.f32.mrb[0].mxu0
      %11640 = vmatprep.mubr.bf16.mxu0 0
      %11641 = vmatmul.mubr.bf16.gmra.mrb[0].mxu0 %v11355
      %v11642 = vpop.f32.mrb[0].mxu0
      %v11643 = vadd.f32 0.0, %v11642
      %v11644 = vpop.f32.mrb[0].mxu0
      %v11645 = vpop.f32.mrb[0].mxu0
      %v11646 = vadd.f32 0.0, %v11645
      %v11647 = vpop.f32.mrb[0].mxu0
      %11648 = vmatprep.mubr.bf16.mxu0 0
      %11649 = vmatmul.mubr.bf16.gmra.mrb[0].mxu0 %v11363
      %v11650 = vpop.f32.mrb[0].mxu0
      %v11651 = vpop.f32.mrb[0].mxu0
      %v11652 = vpop.f32.mrb[0].mxu0
      %v11653 = vadd.f32 0.0, %v11652
      %v11654 = vpop.f32.mrb[0].mxu0
      %11655 = vmatprep.mubr.bf16.mxu0 0
      %11656 = vmatmul.mubr.bf16.gmra.mrb[0].mxu0 %v11371
      %v11657 = vpop.f32.mrb[0].mxu0
      %v11658 = vadd.f32 0.0, %v11657
      %v11659 = vpop.f32.mrb[0].mxu0
      %v11660 = vpop.f32.mrb[0].mxu0
      %v11661 = vpop.f32.mrb[0].mxu0
      %11662 = vmatprep.mubr.bf16.mxu0 0
      %11663 = vmatmul.mubr.bf16.gmra.mrb[0].mxu0 %v11379
      %v11664 = vpop.f32.mrb[0].mxu0
      %v11665 = vadd.f32 0.0, %v11664
      %v11666 = vpop.f32.mrb[0].mxu0
      %v11667 = vpop.f32.mrb[0].mxu0
      %v11668 = vadd.f32 0.0, %v11667
      %v11669 = vpop.f32.mrb[0].mxu0
      %11670 = vmatprep.mubr.bf16.mxu0 0
      %11671 = vmatmul.mubr.bf16.gmra.mrb[0].mxu0 %v11387
      %v11672 = vpop.f32.mrb[0].mxu0
      %v11673 = vpop.f32.mrb[0].mxu0
      %v11674 = vpop.f32.mrb[0].mxu0
      %v11675 = vadd.f32 0.0, %v11674
      %v11676 = vpop.f32.mrb[0].mxu0
      %11677 = vmatprep.mubr.bf16.mxu0 0
      %11678 = vmatmul.mubr.bf16.gmra.mrb[0].mxu0 %v11395
      %v11679 = vpop.f32.mrb[0].mxu0
      %v11680 = vadd.f32 0.0, %v11679
      %v11681 = vpop.f32.mrb[0].mxu0
      %v11682 = vpop.f32.mrb[0].mxu0
      %v11683 = vpop.f32.mrb[0].mxu0
      %11684 = vmatprep.mubr.bf16.mxu0 0
      %11685 = vmatmul.mubr.bf16.gmra.mrb[0].mxu0 %v11403
      %v11686 = vpop.f32.mrb[0].mxu0
      %v11687 = vadd.f32 0.0, %v11686
      %v11688 = vpop.f32.mrb[0].mxu0
      %v11689 = vpop.f32.mrb[0].mxu0
      %v11690 = vadd.f32 0.0, %v11689
      %v11691 = vpop.f32.mrb[0].mxu0
      %11692 = vmatprep.mubr.bf16.mxu0 0
      %11693 = vmatmul.mubr.bf16.gmra.mrb[0].mxu0 %v11411
      %v11694 = vpop.f32.mrb[0].mxu0
      %v11695 = vpop.f32.mrb[0].mxu0
      %v11696 = vpop.f32.mrb[0].mxu0
      %v11697 = vadd.f32 0.0, %v11696
      %v11698 = vpop.f32.mrb[0].mxu0
      %11699 = vmatprep.mubr.bf16.mxu0 0
      %11700 = vmatmul.mubr.bf16.gmra.mrb[0].mxu0 %v11419
      %v11701 = vpop.f32.mrb[0].mxu0
      %v11702 = vadd.f32 0.0, %v11701
      %v11703 = vpop.f32.mrb[0].mxu0
      %v11704 = vpop.f32.mrb[0].mxu0
      %v11705 = vpop.f32.mrb[0].mxu0
      %11706 = vmatprep.mubr.bf16.mxu0 0
      %11707 = vmatmul.mubr.bf16.gmra.mrb[0].mxu0 %v11427
      %v11708 = vpop.f32.mrb[0].mxu0
      %v11709 = vadd.f32 0.0, %v11708
      %v11710 = vpop.f32.mrb[0].mxu0
      %v11711 = vpop.f32.mrb[0].mxu0
      %v11712 = vadd.f32 0.0, %v11711
      %v11713 = vpop.f32.mrb[0].mxu0
      %11714 = vmatprep.mubr.bf16.mxu0 0
      %11715 = vmatmul.mubr.bf16.gmra.mrb[0].mxu0 %v11435
      %v11716 = vpop.f32.mrb[0].mxu0
      %v11717 = vpop.f32.mrb[0].mxu0
      %v11718 = vpop.f32.mrb[0].mxu0
      %v11719 = vadd.f32 0.0, %v11718
      %v11720 = vpop.f32.mrb[0].mxu0
      %11721 = vmatprep.mubr.bf16.mxu0 0
      %11722 = vmatmul.mubr.bf16.gmra.mrb[0].mxu0 %v11443
      %v11723 = vpop.f32.mrb[0].mxu0
      %v11724 = vadd.f32 0.0, %v11723
      %v11725 = vpop.f32.mrb[0].mxu0
      %v11726 = vpop.f32.mrb[0].mxu0
      %v11727 = vpop.f32.mrb[0].mxu0
      %11728 = vmatprep.mubr.bf16.mxu0 0
      %11729 = vmatmul.mubr.bf16.gmra.mrb[0].mxu0 %v11451
      %v11730 = vpop.f32.mrb[0].mxu0
      %v11731 = vadd.f32 0.0, %v11730
      %v11732 = vpop.f32.mrb[0].mxu0
      %v11733 = vpop.f32.mrb[0].mxu0
      %v11734 = vadd.f32 0.0, %v11733
      %v11735 = vpop.f32.mrb[0].mxu0
      %11736 = vmatprep.mubr.bf16.mxu0 0
      %11737 = vmatmul.mubr.bf16.gmra.mrb[0].mxu0 %v11459
      %v11738 = vpop.f32.mrb[0].mxu0
      %v11739 = vpop.f32.mrb[0].mxu0
      %v11740 = vpop.f32.mrb[0].mxu0
      %v11741 = vadd.f32 0.0, %v11740
      %v11742 = vpop.f32.mrb[0].mxu0
      %11743 = vmatprep.mubr.bf16.mxu0 0
      %11744 = vmatmul.mubr.bf16.gmra.mrb[0].mxu0 %v11467
      %v11745 = vpop.f32.mrb[0].mxu0
      %v11746 = vadd.f32 0.0, %v11745
      %v11747 = vpop.f32.mrb[0].mxu0
      %v11748 = vpop.f32.mrb[0].mxu0
      %v11749 = vpop.f32.mrb[0].mxu0
      %11750 = vmatprep.mubr.bf16.mxu0 0
      %11751 = vmatmul.mubr.bf16.gmra.mrb[0].mxu0 %v11475
      %v11752 = vpop.f32.mrb[0].mxu0
      %v11753 = vadd.f32 0.0, %v11752
      %v11754 = vpop.f32.mrb[0].mxu0
      %v11755 = vpop.f32.mrb[0].mxu0
      %v11756 = vadd.f32 0.0, %v11755
      %v11757 = vpop.f32.mrb[0].mxu0
      %11758 = vmatprep.mubr.bf16.mxu0 0
      %11759 = vmatmul.mubr.bf16.gmra.mrb[0].mxu0 %v11483
      %v11760 = vpop.f32.mrb[0].mxu0
      %v11761 = vpop.f32.mrb[0].mxu0
      %v11762 = vpop.f32.mrb[0].mxu0
      %v11763 = vadd.f32 0.0, %v11762
      %v11764 = vpop.f32.mrb[0].mxu0
      %11765 = vmatprep.mubr.bf16.mxu0 0
      %11766 = vmatmul.mubr.bf16.gmra.mrb[0].mxu0 %v11491
      %v11767 = vpop.f32.mrb[0].mxu0
      %v11768 = vadd.f32 0.0, %v11767
      %v11769 = vpop.f32.mrb[0].mxu0
      %v11770 = vpop.f32.mrb[0].mxu0
      %v11771 = vpop.f32.mrb[0].mxu0
      %11772 = vdwg.mxu0
      %v11773 = vadd.f32 %v11075, %v11599
      %v11774 = vadd.f32 %v11076, %v11602
      %v11775 = vadd.f32 %v11077, %v11609
      %v11776 = vadd.f32 %v11078, %v11614
      %v11777 = vadd.f32 %v11079, %v11621
      %v11778 = vadd.f32 %v11080, %v11624
      %v11779 = vadd.f32 %v11081, %v11631
      %v11780 = vadd.f32 %v11082, %v11636
      %v11781 = vadd.f32 %v11083, %v11643
      %v11782 = vadd.f32 %v11084, %v11646
      %v11783 = vadd.f32 %v11085, %v11653
      %v11784 = vadd.f32 %v11086, %v11658
      %v11785 = vadd.f32 %v11087, %v11665
      %v11786 = vadd.f32 %v11088, %v11668
      %v11787 = vadd.f32 %v11089, %v11675
      %v11788 = vadd.f32 %v11090, %v11680
      %v11789 = vadd.f32 %v11091, %v11687
      %v11790 = vadd.f32 %v11092, %v11690
      %v11791 = vadd.f32 %v11093, %v11697
      %v11792 = vadd.f32 %v11094, %v11702
      %v11793 = vadd.f32 %v11095, %v11709
      %v11794 = vadd.f32 %v11096, %v11712
      %v11795 = vadd.f32 %v11097, %v11719
      %v11796 = vadd.f32 %v11098, %v11724
      %v11797 = vadd.f32 %v11099, %v11731
      %v11798 = vadd.f32 %v11100, %v11734
      %v11799 = vadd.f32 %v11101, %v11741
      %v11800 = vadd.f32 %v11102, %v11746
      %v11801 = vadd.f32 %v11103, %v11753
      %v11802 = vadd.f32 %v11104, %v11756
      %v11803 = vadd.f32 %v11105, %v11763
      %v11804 = vadd.f32 %v11106, %v11768
      %v11805 = vld [vmem:[#allocation2 + $0x18] sm:$0xe]
      %s11806 = scalar_lea.vmem %s3, 512
      %v11807 = vld [vmem:[%s11806] sm:$0xf]
      %v11808 = vld [vmem:[%s11806 + $0x4] sm:$0xf]
      %v11809 = vld [vmem:[%s11806 + $0x8] sm:$0xf]
      %v11810 = vld [vmem:[%s11806 + $0xc] sm:$0xf]
      %v11811 = vld [vmem:[%s11806 + $0x10] sm:$0xf]
      %v11812 = vld [vmem:[%s11806 + $0x14] sm:$0xf]
      %v11813 = vld [vmem:[%s11806 + $0x18] sm:$0xf]
      %v11814 = vld [vmem:[%s11806 + $0x1c] sm:$0xf]
      %v11815 = vld [vmem:[%s11806 + $0x20] sm:$0xf]
      %v11816 = vld [vmem:[%s11806 + $0x24] sm:$0xf]
      %v11817 = vld [vmem:[%s11806 + $0x28] sm:$0xf]
      %v11818 = vld [vmem:[%s11806 + $0x2c] sm:$0xf]
      %v11819 = vld [vmem:[%s11806 + $0x30] sm:$0xf]
      %v11820 = vld [vmem:[%s11806 + $0x34] sm:$0xf]
      %v11821 = vld [vmem:[%s11806 + $0x38] sm:$0xf]
      %v11822 = vld [vmem:[%s11806 + $0x3c] sm:$0xf]
      %v11824 = vunpack.c.l.b16 %v11805
      %v11825 = vpack.c.b16 %v11223, %v11824
      %v11826 = vrot.slane %v11825, 1
      %v11827 = vrot.slane %v11272, 1
      %v11828 = vsel %vm1270, %v11826, %v11827
      %v11829 = vrot.slane %v11273, 1
      %v11830 = vsel %vm1270, %v11827, %v11829
      %v11831 = vrot.slane %v11274, 1
      %v11832 = vsel %vm1270, %v11829, %v11831
      %v11833 = vrot.slane %v11275, 1
      %v11834 = vsel %vm1270, %v11831, %v11833
      %v11835 = vrot.slane %v11276, 1
      %v11836 = vsel %vm1270, %v11833, %v11835
      %v11837 = vrot.slane %v11277, 1
      %v11838 = vsel %vm1270, %v11835, %v11837
      %v11839 = vrot.slane %v11278, 1
      %v11840 = vsel %vm1270, %v11837, %v11839
      %v11841 = vrot.slane %v11279, 1
      %v11842 = vsel %vm1270, %v11839, %v11841
      %v11843 = vrot.slane %v11280, 1
      %v11844 = vsel %vm1270, %v11841, %v11843
      %v11845 = vrot.slane %v11281, 1
      %v11846 = vsel %vm1270, %v11843, %v11845
      %v11847 = vrot.slane %v11282, 1
      %v11848 = vsel %vm1270, %v11845, %v11847
      %v11849 = vrot.slane %v11283, 1
      %v11850 = vsel %vm1270, %v11847, %v11849
      %v11851 = vrot.slane %v11284, 1
      %v11852 = vsel %vm1270, %v11849, %v11851
      %v11853 = vrot.slane %v11285, 1
      %v11854 = vsel %vm1270, %v11851, %v11853
      %v11855 = vrot.slane %v11286, 1
      %v11856 = vsel %vm1270, %v11853, %v11855
      %v11857 = vrot.slane %v11287, 1
      %v11858 = vsel %vm1270, %v11855, %v11857
      %v11859 = vrot.slane %v11288, 1
      %v11860 = vsel %vm1270, %v11857, %v11859
      %v11861 = vrot.slane %v11289, 1
      %v11862 = vsel %vm1270, %v11859, %v11861
      %v11863 = vrot.slane %v11290, 1
      %v11864 = vsel %vm1270, %v11861, %v11863
      %v11865 = vrot.slane %v11291, 1
      %v11866 = vsel %vm1270, %v11863, %v11865
      %v11867 = vrot.slane %v11292, 1
      %v11868 = vsel %vm1270, %v11865, %v11867
      %v11869 = vrot.slane %v11293, 1
      %v11870 = vsel %vm1270, %v11867, %v11869
      %v11871 = vrot.slane %v11294, 1
      %v11872 = vsel %vm1270, %v11869, %v11871
      %v11873 = vrot.slane %v11295, 1
      %v11874 = vsel %vm1270, %v11871, %v11873
      %v11915 = vunpack.c.l.b16 %v11807
      %v11916 = vunpack.c.l.b16 %v11808
      %v11917 = vunpack.c.l.b16 %v11809
      %v11918 = vunpack.c.l.b16 %v11810
      %v11919 = vunpack.c.l.b16 %v11811
      %v11920 = vunpack.c.l.b16 %v11812
      %v11921 = vunpack.c.l.b16 %v11813
      %v11922 = vunpack.c.l.b16 %v11814
      %v11923 = vunpack.c.l.b16 %v11815
      %v11924 = vunpack.c.l.b16 %v11816
      %v11925 = vunpack.c.l.b16 %v11817
      %v11926 = vunpack.c.l.b16 %v11818
      %v11927 = vunpack.c.l.b16 %v11819
      %v11928 = vunpack.c.l.b16 %v11820
      %v11929 = vunpack.c.l.b16 %v11821
      %v11930 = vunpack.c.l.b16 %v11822
      %v11931 = vpack.c.b16 %v11916, %v11915
      %v11932 = vpack.c.b16 %v11918, %v11917
      %v11933 = vpack.c.b16 %v11920, %v11919
      %v11934 = vpack.c.b16 %v11922, %v11921
      %v11935 = vpack.c.b16 %v11924, %v11923
      %v11936 = vpack.c.b16 %v11926, %v11925
      %v11937 = vpack.c.b16 %v11928, %v11927
      %v11938 = vpack.c.b16 %v11930, %v11929
      %11947 = vmatprep.subr.bf16.mxu0 0
      %11948 = vmatpush1.bf16.msra.mxu0 %v11931
      %11949 = vmatprep.subr.bf16.mxu0 0
      %11950 = vmatpush1.bf16.msra.mxu0 %v11932
      %11951 = vmatprep.subr.bf16.mxu0 0
      %11952 = vmatpush1.bf16.msra.mxu0 %v11933
      %11953 = vmatprep.subr.bf16.mxu0 0
      %11954 = vmatpush1.bf16.msra.mxu0 %v11934
      %11955 = vmatprep.subr.bf16.mxu0 0
      %11956 = vmatpush1.bf16.msra.mxu0 %v11935
      %11957 = vmatprep.subr.bf16.mxu0 0
      %11958 = vmatpush1.bf16.msra.mxu0 %v11936
      %11959 = vmatprep.subr.bf16.mxu0 0
      %11960 = vmatpush1.bf16.msra.mxu0 %v11937
      %11961 = vmatprep.subr.bf16.mxu0 0
      %11962 = vmatpush1.bf16.msra.mxu0 %v11938
      %11963 = vmatprep.subr.bf16.mxu0 0
      %11964 = vmatpush1.bf16.msra.mxu0 0
      %11965 = vmatprep.subr.bf16.mxu0 0
      %11966 = vmatpush1.bf16.msra.mxu0 0
      %11967 = vmatprep.subr.bf16.mxu0 0
      %11968 = vmatpush1.bf16.msra.mxu0 0
      %11969 = vmatprep.subr.bf16.mxu0 0
      %11970 = vmatpush1.bf16.msra.mxu0 0
      %11971 = vmatprep.subr.bf16.mxu0 0
      %11972 = vmatpush1.bf16.msra.mxu0 0
      %11973 = vmatprep.subr.bf16.mxu0 0
      %11974 = vmatpush1.bf16.msra.mxu0 0
      %11975 = vmatprep.subr.bf16.mxu0 0
      %11976 = vmatpush1.bf16.msra.mxu0 0
      %11977 = vmatprep.subr.bf16.mxu0 0
      %11978 = vmatpush1.bf16.msra.mxu0 0
      %11979 = vmatprep.mubr.bf16.mxu0 0
      %11980 = vmatmul.mubr.bf16.gmra.mrb[0].mxu0 %v11828
      %v11981 = vpop.f32.mrb[0].mxu0
      %v11982 = vadd.f32 0.0, %v11981
      %v11983 = vpop.f32.mrb[0].mxu0
      %v11984 = vpop.f32.mrb[0].mxu0
      %v11985 = vadd.f32 0.0, %v11984
      %v11986 = vpop.f32.mrb[0].mxu0
      %11987 = vmatprep.mubr.bf16.mxu0 0
      %11988 = vmatmul.mubr.bf16.gmra.mrb[0].mxu0 %v11830
      %v11989 = vpop.f32.mrb[0].mxu0
      %v11990 = vpop.f32.mrb[0].mxu0
      %v11991 = vpop.f32.mrb[0].mxu0
      %v11992 = vadd.f32 0.0, %v11991
      %v11993 = vpop.f32.mrb[0].mxu0
      %11994 = vmatprep.mubr.bf16.mxu0 0
      %11995 = vmatmul.mubr.bf16.gmra.mrb[0].mxu0 %v11832
      %v11996 = vpop.f32.mrb[0].mxu0
      %v11997 = vadd.f32 0.0, %v11996
      %v11998 = vpop.f32.mrb[0].mxu0
      %v11999 = vpop.f32.mrb[0].mxu0
      %v12000 = vpop.f32.mrb[0].mxu0
      %12001 = vmatprep.mubr.bf16.mxu0 0
      %12002 = vmatmul.mubr.bf16.gmra.mrb[0].mxu0 %v11834
      %v12003 = vpop.f32.mrb[0].mxu0
      %v12004 = vadd.f32 0.0, %v12003
      %v12005 = vpop.f32.mrb[0].mxu0
      %v12006 = vpop.f32.mrb[0].mxu0
      %v12007 = vadd.f32 0.0, %v12006
      %v12008 = vpop.f32.mrb[0].mxu0
      %12009 = vmatprep.mubr.bf16.mxu0 0
      %12010 = vmatmul.mubr.bf16.gmra.mrb[0].mxu0 %v11836
      %v12011 = vpop.f32.mrb[0].mxu0
      %v12012 = vpop.f32.mrb[0].mxu0
      %v12013 = vpop.f32.mrb[0].mxu0
      %v12014 = vadd.f32 0.0, %v12013
      %v12015 = vpop.f32.mrb[0].mxu0
      %12016 = vmatprep.mubr.bf16.mxu0 0
      %12017 = vmatmul.mubr.bf16.gmra.mrb[0].mxu0 %v11838
      %v12018 = vpop.f32.mrb[0].mxu0
      %v12019 = vadd.f32 0.0, %v12018
      %v12020 = vpop.f32.mrb[0].mxu0
      %v12021 = vpop.f32.mrb[0].mxu0
      %v12022 = vpop.f32.mrb[0].mxu0
      %12023 = vmatprep.mubr.bf16.mxu0 0
      %12024 = vmatmul.mubr.bf16.gmra.mrb[0].mxu0 %v11840
      %v12025 = vpop.f32.mrb[0].mxu0
      %v12026 = vadd.f32 0.0, %v12025
      %v12027 = vpop.f32.mrb[0].mxu0
      %v12028 = vpop.f32.mrb[0].mxu0
      %v12029 = vadd.f32 0.0, %v12028
      %v12030 = vpop.f32.mrb[0].mxu0
      %12031 = vmatprep.mubr.bf16.mxu0 0
      %12032 = vmatmul.mubr.bf16.gmra.mrb[0].mxu0 %v11842
      %v12033 = vpop.f32.mrb[0].mxu0
      %v12034 = vpop.f32.mrb[0].mxu0
      %v12035 = vpop.f32.mrb[0].mxu0
      %v12036 = vadd.f32 0.0, %v12035
      %v12037 = vpop.f32.mrb[0].mxu0
      %12038 = vmatprep.mubr.bf16.mxu0 0
      %12039 = vmatmul.mubr.bf16.gmra.mrb[0].mxu0 %v11844
      %v12040 = vpop.f32.mrb[0].mxu0
      %v12041 = vadd.f32 0.0, %v12040
      %v12042 = vpop.f32.mrb[0].mxu0
      %v12043 = vpop.f32.mrb[0].mxu0
      %v12044 = vpop.f32.mrb[0].mxu0
      %12045 = vmatprep.mubr.bf16.mxu0 0
      %12046 = vmatmul.mubr.bf16.gmra.mrb[0].mxu0 %v11846
      %v12047 = vpop.f32.mrb[0].mxu0
      %v12048 = vadd.f32 0.0, %v12047
      %v12049 = vpop.f32.mrb[0].mxu0
      %v12050 = vpop.f32.mrb[0].mxu0
      %v12051 = vadd.f32 0.0, %v12050
      %v12052 = vpop.f32.mrb[0].mxu0
      %12053 = vmatprep.mubr.bf16.mxu0 0
      %12054 = vmatmul.mubr.bf16.gmra.mrb[0].mxu0 %v11848
      %v12055 = vpop.f32.mrb[0].mxu0
      %v12056 = vpop.f32.mrb[0].mxu0
      %v12057 = vpop.f32.mrb[0].mxu0
      %v12058 = vadd.f32 0.0, %v12057
      %v12059 = vpop.f32.mrb[0].mxu0
      %12060 = vmatprep.mubr.bf16.mxu0 0
      %12061 = vmatmul.mubr.bf16.gmra.mrb[0].mxu0 %v11850
      %v12062 = vpop.f32.mrb[0].mxu0
      %v12063 = vadd.f32 0.0, %v12062
      %v12064 = vpop.f32.mrb[0].mxu0
      %v12065 = vpop.f32.mrb[0].mxu0
      %v12066 = vpop.f32.mrb[0].mxu0
      %12067 = vmatprep.mubr.bf16.mxu0 0
      %12068 = vmatmul.mubr.bf16.gmra.mrb[0].mxu0 %v11852
      %v12069 = vpop.f32.mrb[0].mxu0
      %v12070 = vadd.f32 0.0, %v12069
      %v12071 = vpop.f32.mrb[0].mxu0
      %v12072 = vpop.f32.mrb[0].mxu0
      %v12073 = vadd.f32 0.0, %v12072
      %v12074 = vpop.f32.mrb[0].mxu0
      %12075 = vmatprep.mubr.bf16.mxu0 0
      %12076 = vmatmul.mubr.bf16.gmra.mrb[0].mxu0 %v11854
      %v12077 = vpop.f32.mrb[0].mxu0
      %v12078 = vpop.f32.mrb[0].mxu0
      %v12079 = vpop.f32.mrb[0].mxu0
      %v12080 = vadd.f32 0.0, %v12079
      %v12081 = vpop.f32.mrb[0].mxu0
      %12082 = vmatprep.mubr.bf16.mxu0 0
      %12083 = vmatmul.mubr.bf16.gmra.mrb[0].mxu0 %v11856
      %v12084 = vpop.f32.mrb[0].mxu0
      %v12085 = vadd.f32 0.0, %v12084
      %v12086 = vpop.f32.mrb[0].mxu0
      %v12087 = vpop.f32.mrb[0].mxu0
      %v12088 = vpop.f32.mrb[0].mxu0
      %12089 = vmatprep.mubr.bf16.mxu0 0
      %12090 = vmatmul.mubr.bf16.gmra.mrb[0].mxu0 %v11858
      %v12091 = vpop.f32.mrb[0].mxu0
      %v12092 = vadd.f32 0.0, %v12091
      %v12093 = vpop.f32.mrb[0].mxu0
      %v12094 = vpop.f32.mrb[0].mxu0
      %v12095 = vadd.f32 0.0, %v12094
      %v12096 = vpop.f32.mrb[0].mxu0
      %12097 = vmatprep.mubr.bf16.mxu0 0
      %12098 = vmatmul.mubr.bf16.gmra.mrb[0].mxu0 %v11860
      %v12099 = vpop.f32.mrb[0].mxu0
      %v12100 = vpop.f32.mrb[0].mxu0
      %v12101 = vpop.f32.mrb[0].mxu0
      %v12102 = vadd.f32 0.0, %v12101
      %v12103 = vpop.f32.mrb[0].mxu0
      %12104 = vmatprep.mubr.bf16.mxu0 0
      %12105 = vmatmul.mubr.bf16.gmra.mrb[0].mxu0 %v11862
      %v12106 = vpop.f32.mrb[0].mxu0
      %v12107 = vadd.f32 0.0, %v12106
      %v12108 = vpop.f32.mrb[0].mxu0
      %v12109 = vpop.f32.mrb[0].mxu0
      %v12110 = vpop.f32.mrb[0].mxu0
      %12111 = vmatprep.mubr.bf16.mxu0 0
      %12112 = vmatmul.mubr.bf16.gmra.mrb[0].mxu0 %v11864
      %v12113 = vpop.f32.mrb[0].mxu0
      %v12114 = vadd.f32 0.0, %v12113
      %v12115 = vpop.f32.mrb[0].mxu0
      %v12116 = vpop.f32.mrb[0].mxu0
      %v12117 = vadd.f32 0.0, %v12116
      %v12118 = vpop.f32.mrb[0].mxu0
      %12119 = vmatprep.mubr.bf16.mxu0 0
      %12120 = vmatmul.mubr.bf16.gmra.mrb[0].mxu0 %v11866
      %v12121 = vpop.f32.mrb[0].mxu0
      %v12122 = vpop.f32.mrb[0].mxu0
      %v12123 = vpop.f32.mrb[0].mxu0
      %v12124 = vadd.f32 0.0, %v12123
      %v12125 = vpop.f32.mrb[0].mxu0
      %12126 = vmatprep.mubr.bf16.mxu0 0
      %12127 = vmatmul.mubr.bf16.gmra.mrb[0].mxu0 %v11868
      %v12128 = vpop.f32.mrb[0].mxu0
      %v12129 = vadd.f32 0.0, %v12128
      %v12130 = vpop.f32.mrb[0].mxu0
      %v12131 = vpop.f32.mrb[0].mxu0
      %v12132 = vpop.f32.mrb[0].mxu0
      %12133 = vmatprep.mubr.bf16.mxu0 0
      %12134 = vmatmul.mubr.bf16.gmra.mrb[0].mxu0 %v11870
      %v12135 = vpop.f32.mrb[0].mxu0
      %v12136 = vadd.f32 0.0, %v12135
      %v12137 = vpop.f32.mrb[0].mxu0
      %v12138 = vpop.f32.mrb[0].mxu0
      %v12139 = vadd.f32 0.0, %v12138
      %v12140 = vpop.f32.mrb[0].mxu0
      %12141 = vmatprep.mubr.bf16.mxu0 0
      %12142 = vmatmul.mubr.bf16.gmra.mrb[0].mxu0 %v11872
      %v12143 = vpop.f32.mrb[0].mxu0
      %v12144 = vpop.f32.mrb[0].mxu0
      %v12145 = vpop.f32.mrb[0].mxu0
      %v12146 = vadd.f32 0.0, %v12145
      %v12147 = vpop.f32.mrb[0].mxu0
      %12148 = vmatprep.mubr.bf16.mxu0 0
      %12149 = vmatmul.mubr.bf16.gmra.mrb[0].mxu0 %v11874
      %v12150 = vpop.f32.mrb[0].mxu0
      %v12151 = vadd.f32 0.0, %v12150
      %v12152 = vpop.f32.mrb[0].mxu0
      %v12153 = vpop.f32.mrb[0].mxu0
      %v12154 = vpop.f32.mrb[0].mxu0
      %12155 = vdwg.mxu0
      %v12156 = vadd.f32 %v11773, %v11982
      %v12157 = vadd.f32 %v11774, %v11985
      %v12158 = vadd.f32 %v11775, %v11992
      %v12159 = vadd.f32 %v11776, %v11997
      %v12160 = vadd.f32 %v11777, %v12004
      %v12161 = vadd.f32 %v11778, %v12007
      %v12162 = vadd.f32 %v11779, %v12014
      %v12163 = vadd.f32 %v11780, %v12019
      %v12164 = vadd.f32 %v11781, %v12026
      %v12165 = vadd.f32 %v11782, %v12029
      %v12166 = vadd.f32 %v11783, %v12036
      %v12167 = vadd.f32 %v11784, %v12041
      %v12168 = vadd.f32 %v11785, %v12048
      %v12169 = vadd.f32 %v11786, %v12051
      %v12170 = vadd.f32 %v11787, %v12058
      %v12171 = vadd.f32 %v11788, %v12063
      %v12172 = vadd.f32 %v11789, %v12070
      %v12173 = vadd.f32 %v11790, %v12073
      %v12174 = vadd.f32 %v11791, %v12080
      %v12175 = vadd.f32 %v11792, %v12085
      %v12176 = vadd.f32 %v11793, %v12092
      %v12177 = vadd.f32 %v11794, %v12095
      %v12178 = vadd.f32 %v11795, %v12102
      %v12179 = vadd.f32 %v11796, %v12107
      %v12180 = vadd.f32 %v11797, %v12114
      %v12181 = vadd.f32 %v11798, %v12117
      %v12182 = vadd.f32 %v11799, %v12124
      %v12183 = vadd.f32 %v11800, %v12129
      %v12184 = vadd.f32 %v11801, %v12136
      %v12185 = vadd.f32 %v11802, %v12139
      %v12186 = vadd.f32 %v11803, %v12146
      %v12187 = vadd.f32 %v11804, %v12151
      %v12188 = vld [vmem:[%s4] sm:$0x1]
      %v12190 = vlaneseq
      %v12191 = vshrl.u32 %v12190, 7
      %v12192 = vsub.s32 0, %v12191
      %v12193 = vrot.slane %v12188, %v12192
      %v12195 = vadd.f32 %v12156, %v12193
      %v12196 = vadd.f32 %v12157, %v12193
      %v12197 = vadd.f32 %v12158, %v12193
      %v12198 = vadd.f32 %v12159, %v12193
      %v12199 = vadd.f32 %v12160, %v12193
      %v12200 = vadd.f32 %v12161, %v12193
      %v12201 = vadd.f32 %v12162, %v12193
      %v12202 = vadd.f32 %v12163, %v12193
      %v12203 = vadd.f32 %v12164, %v12193
      %v12204 = vadd.f32 %v12165, %v12193
      %v12205 = vadd.f32 %v12166, %v12193
      %v12206 = vadd.f32 %v12167, %v12193
      %v12207 = vadd.f32 %v12168, %v12193
      %v12208 = vadd.f32 %v12169, %v12193
      %v12209 = vadd.f32 %v12170, %v12193
      %v12210 = vadd.f32 %v12171, %v12193
      %v12211 = vadd.f32 %v12172, %v12193
      %v12212 = vadd.f32 %v12173, %v12193
      %v12213 = vadd.f32 %v12174, %v12193
      %v12214 = vadd.f32 %v12175, %v12193
      %v12215 = vadd.f32 %v12176, %v12193
      %v12216 = vadd.f32 %v12177, %v12193
      %v12217 = vadd.f32 %v12178, %v12193
      %v12218 = vadd.f32 %v12179, %v12193
      %v12219 = vadd.f32 %v12180, %v12193
      %v12220 = vadd.f32 %v12181, %v12193
      %v12221 = vadd.f32 %v12182, %v12193
      %v12222 = vadd.f32 %v12183, %v12193
      %v12223 = vadd.f32 %v12184, %v12193
      %v12224 = vadd.f32 %v12185, %v12193
      %v12225 = vadd.f32 %v12186, %v12193
      %v12226 = vadd.f32 %v12187, %v12193
      %v12227 = vmax.f32 %v12195, 0.0
      %v12228 = vmax.f32 %v12196, 0.0
      %v12229 = vmax.f32 %v12197, 0.0
      %v12230 = vmax.f32 %v12198, 0.0
      %v12231 = vmax.f32 %v12199, 0.0
      %v12232 = vmax.f32 %v12200, 0.0
      %v12233 = vmax.f32 %v12201, 0.0
      %v12234 = vmax.f32 %v12202, 0.0
      %v12235 = vmax.f32 %v12203, 0.0
      %v12236 = vmax.f32 %v12204, 0.0
      %v12237 = vmax.f32 %v12205, 0.0
      %v12238 = vmax.f32 %v12206, 0.0
      %v12239 = vmax.f32 %v12207, 0.0
      %v12240 = vmax.f32 %v12208, 0.0
      %v12241 = vmax.f32 %v12209, 0.0
      %v12242 = vmax.f32 %v12210, 0.0
      %v12243 = vmax.f32 %v12211, 0.0
      %v12244 = vmax.f32 %v12212, 0.0
      %v12245 = vmax.f32 %v12213, 0.0
      %v12246 = vmax.f32 %v12214, 0.0
      %v12247 = vmax.f32 %v12215, 0.0
      %v12248 = vmax.f32 %v12216, 0.0
      %v12249 = vmax.f32 %v12217, 0.0
      %v12250 = vmax.f32 %v12218, 0.0
      %v12251 = vmax.f32 %v12219, 0.0
      %v12252 = vmax.f32 %v12220, 0.0
      %v12253 = vmax.f32 %v12221, 0.0
      %v12254 = vmax.f32 %v12222, 0.0
      %v12255 = vmax.f32 %v12223, 0.0
      %v12256 = vmax.f32 %v12224, 0.0
      %v12257 = vmax.f32 %v12225, 0.0
      %v12258 = vmax.f32 %v12226, 0.0
      %v12259 = vpack.c.bf16 %v12228, %v12227
      %v12261 = vunpack.c.l.b16 %v12259
      %v12262 = vunpack.c.h.b16 %v12259
      %v12263 = vpack.c.b16 %v12261, %v12261
      %v12264 = vpack.c.b16 %v12262, %v12262
      %12267 = vst [vmem:[%s251] sm:$0xf] %v12263
      %12268 = vst [vmem:[%s251 + $0x4] sm:$0xf] %v12264
      %v12269 = vpack.c.bf16 %v12230, %v12229
      %v12271 = vunpack.c.l.b16 %v12269
      %v12272 = vunpack.c.h.b16 %v12269
      %v12273 = vpack.c.b16 %v12271, %v12271
      %v12274 = vpack.c.b16 %v12272, %v12272
      %s12277 = scalar_lea.vmem %s251, 8
      %12278 = vst [vmem:[%s12277] sm:$0xf] %v12273
      %12279 = vst [vmem:[%s12277 + $0x4] sm:$0xf] %v12274
      %v12280 = vpack.c.bf16 %v12232, %v12231
      %v12282 = vunpack.c.l.b16 %v12280
      %v12283 = vunpack.c.h.b16 %v12280
      %v12284 = vpack.c.b16 %v12282, %v12282
      %v12285 = vpack.c.b16 %v12283, %v12283
      %s12288 = scalar_lea.vmem %s251, 16
      %12289 = vst [vmem:[%s12288] sm:$0xf] %v12284
      %12290 = vst [vmem:[%s12288 + $0x4] sm:$0xf] %v12285
      %v12291 = vpack.c.bf16 %v12234, %v12233
      %v12293 = vunpack.c.l.b16 %v12291
      %v12294 = vunpack.c.h.b16 %v12291
      %v12295 = vpack.c.b16 %v12293, %v12293
      %v12296 = vpack.c.b16 %v12294, %v12294
      %s12299 = scalar_lea.vmem %s251, 24
      %12300 = vst [vmem:[%s12299] sm:$0xf] %v12295
      %12301 = vst [vmem:[%s12299 + $0x4] sm:$0xf] %v12296
      %v12302 = vpack.c.bf16 %v12236, %v12235
      %v12304 = vunpack.c.l.b16 %v12302
      %v12305 = vunpack.c.h.b16 %v12302
      %v12306 = vpack.c.b16 %v12304, %v12304
      %v12307 = vpack.c.b16 %v12305, %v12305
      %s12310 = scalar_lea.vmem %s251, 32
      %12311 = vst [vmem:[%s12310] sm:$0xf] %v12306
      %12312 = vst [vmem:[%s12310 + $0x4] sm:$0xf] %v12307
      %v12313 = vpack.c.bf16 %v12238, %v12237
      %v12315 = vunpack.c.l.b16 %v12313
      %v12316 = vunpack.c.h.b16 %v12313
      %v12317 = vpack.c.b16 %v12315, %v12315
      %v12318 = vpack.c.b16 %v12316, %v12316
      %s12321 = scalar_lea.vmem %s251, 40
      %12322 = vst [vmem:[%s12321] sm:$0xf] %v12317
      %12323 = vst [vmem:[%s12321 + $0x4] sm:$0xf] %v12318
      %v12324 = vpack.c.bf16 %v12240, %v12239
      %v12326 = vunpack.c.l.b16 %v12324
      %v12327 = vunpack.c.h.b16 %v12324
      %v12328 = vpack.c.b16 %v12326, %v12326
      %v12329 = vpack.c.b16 %v12327, %v12327
      %s12332 = scalar_lea.vmem %s251, 48
      %12333 = vst [vmem:[%s12332] sm:$0xf] %v12328
      %12334 = vst [vmem:[%s12332 + $0x4] sm:$0xf] %v12329
      %v12335 = vpack.c.bf16 %v12242, %v12241
      %v12337 = vunpack.c.l.b16 %v12335
      %v12338 = vunpack.c.h.b16 %v12335
      %v12339 = vpack.c.b16 %v12337, %v12337
      %v12340 = vpack.c.b16 %v12338, %v12338
      %s12343 = scalar_lea.vmem %s251, 56
      %12344 = vst [vmem:[%s12343] sm:$0xf] %v12339
      %12345 = vst [vmem:[%s12343 + $0x4] sm:$0xf] %v12340
      %v12346 = vpack.c.bf16 %v12244, %v12243
      %v12348 = vunpack.c.l.b16 %v12346
      %v12349 = vunpack.c.h.b16 %v12346
      %v12350 = vpack.c.b16 %v12348, %v12348
      %v12351 = vpack.c.b16 %v12349, %v12349
      %s12354 = scalar_lea.vmem %s251, 64
      %12355 = vst [vmem:[%s12354] sm:$0xf] %v12350
      %12356 = vst [vmem:[%s12354 + $0x4] sm:$0xf] %v12351
      %v12357 = vpack.c.bf16 %v12246, %v12245
      %v12359 = vunpack.c.l.b16 %v12357
      %v12360 = vunpack.c.h.b16 %v12357
      %v12361 = vpack.c.b16 %v12359, %v12359
      %v12362 = vpack.c.b16 %v12360, %v12360
      %s12365 = scalar_lea.vmem %s251, 72
      %12366 = vst [vmem:[%s12365] sm:$0xf] %v12361
      %12367 = vst [vmem:[%s12365 + $0x4] sm:$0xf] %v12362
      %v12368 = vpack.c.bf16 %v12248, %v12247
      %v12370 = vunpack.c.l.b16 %v12368
      %v12371 = vunpack.c.h.b16 %v12368
      %v12372 = vpack.c.b16 %v12370, %v12370
      %v12373 = vpack.c.b16 %v12371, %v12371
      %s12376 = scalar_lea.vmem %s251, 80
      %12377 = vst [vmem:[%s12376] sm:$0xf] %v12372
      %12378 = vst [vmem:[%s12376 + $0x4] sm:$0xf] %v12373
      %v12379 = vpack.c.bf16 %v12250, %v12249
      %v12381 = vunpack.c.l.b16 %v12379
      %v12382 = vunpack.c.h.b16 %v12379
      %v12383 = vpack.c.b16 %v12381, %v12381
      %v12384 = vpack.c.b16 %v12382, %v12382
      %s12387 = scalar_lea.vmem %s251, 88
      %12388 = vst [vmem:[%s12387] sm:$0xf] %v12383
      %12389 = vst [vmem:[%s12387 + $0x4] sm:$0xf] %v12384
      %v12390 = vpack.c.bf16 %v12252, %v12251
      %v12392 = vunpack.c.l.b16 %v12390
      %v12393 = vunpack.c.h.b16 %v12390
      %v12394 = vpack.c.b16 %v12392, %v12392
      %v12395 = vpack.c.b16 %v12393, %v12393
      %s12398 = scalar_lea.vmem %s251, 96
      %12399 = vst [vmem:[%s12398] sm:$0xf] %v12394
      %12400 = vst [vmem:[%s12398 + $0x4] sm:$0xf] %v12395
      %v12401 = vpack.c.bf16 %v12254, %v12253
      %v12403 = vunpack.c.l.b16 %v12401
      %v12404 = vunpack.c.h.b16 %v12401
      %v12405 = vpack.c.b16 %v12403, %v12403
      %v12406 = vpack.c.b16 %v12404, %v12404
      %s12409 = scalar_lea.vmem %s251, 104
      %12410 = vst [vmem:[%s12409] sm:$0xf] %v12405
      %12411 = vst [vmem:[%s12409 + $0x4] sm:$0xf] %v12406
      %v12412 = vpack.c.bf16 %v12256, %v12255
      %v12414 = vunpack.c.l.b16 %v12412
      %v12415 = vunpack.c.h.b16 %v12412
      %v12416 = vpack.c.b16 %v12414, %v12414
      %v12417 = vpack.c.b16 %v12415, %v12415
      %s12420 = scalar_lea.vmem %s251, 112
      %12421 = vst [vmem:[%s12420] sm:$0xf] %v12416
      %12422 = vst [vmem:[%s12420 + $0x4] sm:$0xf] %v12417
      %v12423 = vpack.c.bf16 %v12258, %v12257
      %v12425 = vunpack.c.l.b16 %v12423
      %v12426 = vunpack.c.h.b16 %v12423
      %v12427 = vpack.c.b16 %v12425, %v12425
      %v12428 = vpack.c.b16 %v12426, %v12426
      %s12431 = scalar_lea.vmem %s251, 120
      %12432 = vst [vmem:[%s12431] sm:$0xf] %v12427
      %12433 = vst [vmem:[%s12431 + $0x4] sm:$0xf] %v12428
      %p12434 = scmp.lt.s32.totalorder %s17, 1
      %s12435 = scalar_select %p12434, %s17, 1
      %s12436 = smul.addr %s12435, 32
      %s12437 = smul.addr %s12436, 4
      %s12438 = scalar_lea.vmem %s6, %s12437
      // Predicated region
      $region45: #{make_cell_v1_spatial_forward.1} parent=43 // pred_check
        %p12439 = pneg %p166
      $region46: #{make_cell_v1_spatial_forward.1} parent=43 // pred_check_branch
        %12441 = sbr.rel (%p12439) target = $region48
      $region47: #{make_cell_v1_spatial_forward.1} parent=43 // pred_region
        _
      $region48: #{make_cell_v1_spatial_forward.1} parent=43 // pred_fallthru
        _
    $region44: #{make_cell_v1_spatial_forward.1} parent=5 // pred_fallthru
      _
    %p12442 = scmp.le.s32.totalorder 2, %s12
    // Predicated region
    $region49: #{make_cell_v1_spatial_forward.1} parent=5 // pred_check
      %p12443 = pneg %p12442
    $region50: #{make_cell_v1_spatial_forward.1} parent=5 // pred_check_branch
      %12445 = sbr.rel (%p12443) target = $region52
    $region51: #{make_cell_v1_spatial_forward.1} parent=5 // pred_region
      %s12446 = ssub.s32 %s12, 2
      // Predicated region
      $region53: #{make_cell_v1_spatial_forward.1} parent=51 // pred_check
        %p12447 = pneg %p172
      $region54: #{make_cell_v1_spatial_forward.1} parent=51 // pred_check_branch
        %12449 = sbr.rel (%p12447) target = $region56
      $region55: #{make_cell_v1_spatial_forward.1} parent=51 // pred_region
        %p12450 = scmp.lt.s32.totalorder %s18, 1
        %s12451 = scalar_select %p12450, %s18, 1
        %s12452 = smul.addr %s12451, 32
        %s12453 = smul.addr %s12452, 4
        %s12454 = scalar_lea.vmem %s6, %s12453
      $region56: #{make_cell_v1_spatial_forward.1} parent=51 // pred_fallthru
        _
    $region52: #{make_cell_v1_spatial_forward.1} parent=5 // pred_fallthru
      _
  $region6: #{make_cell_v1_spatial_forward.1} parent=0 // loop_footer
    %s16 = sadd.s32 1, %s12
  $region7: #{make_cell_v1_spatial_forward.1} parent=0 // loop_footer_branch
    %11 = sbr.rel target = $region3
  $region8: #{make_cell_v1_spatial_forward.1} parent=0 // loop_exit
    _

</llo_original>
